<compile_context>
chip_gen: v7x
topology: tpu7x:2x2x1
jax: 0.10.0
libtpu: 0.0.40
codegen_flags: <defaults>
</compile_context>

<pallas_src>
import math

import jax
import jax.numpy as jnp
from jax import lax
from jax.experimental import pallas as pl
from jax.experimental.pallas import tpu as pltpu


def _silu(v):
    return v * jax.nn.sigmoid(v)


def fold_params(p, eps=1e-5):
    """Fold BatchNorm (running stats) and depthwise-conv biases into the 1x1 convs."""
    def fold_bn(w, b, stats):
        gamma, beta, mean, var = stats
        scale = gamma / jnp.sqrt(var + eps)
        return w * scale[:, None], scale * (b - mean) + beta

    w1, c1 = fold_bn(p['b1_w'], p['b1_b'], p['bn1'])
    w2, c2 = fold_bn(p['b2_w'], p['b2_w'] @ p['dw3_b'] + p['b2_b'], p['bn2'])
    w3, c3 = fold_bn(p['b3_w'], p['b3_w'] @ p['dw5_b'] + p['b3_b'], p['bn3'])
    wf, cf = fold_bn(p['f_w'], p['f_b'], p['bnf'])
    C = p['f_w'].shape[0]
    C4 = 4 * C
    return {
        'w_dw3': p['dw3_w'].reshape(C, 9),
        'w_dw5': p['dw5_w'].reshape(C, 25),
        'w_b': jnp.stack([w1, w2, w3]),                               # (3, 4C, C)
        'b_b': jnp.stack([c1, c2, c3])[:, :, None],                   # (3, 4C, 1)
        # Pre-split per branch so the kernel never lane-slices the fusion weight.
        'w_f': jnp.stack([wf[:, :C4], wf[:, C4:2 * C4], wf[:, 2 * C4:]]),  # (3, C, 4C)
        'b_f': cf[:, None],                                           # (C, 1)
        'w_se1': p['se1_w'], 'b_se1': p['se1_b'][:, None],
        'w_se2': p['se2_w'], 'b_se2': p['se2_b'][:, None],
    }


def multiscale_forward(x, params, eps=1e-5):
    """x: (B, C, H, W) float32, NCHW (matches the PyTorch module). Inference mode."""
    B, C, H, W = x.shape
    C4 = 4 * C
    Cr = params['se1_w'].shape[0]

    # ---- padded, flattened layout ---------------------------------------------------
    Wmin = W + 4                                   # halo for the 5x5 depthwise conv
    # Minimal Wp that (cheaply) makes L = H*Wp a multiple of 128 -> lane-dense stores.
    Wp = Wmin
    for extra in range(0, 129):
        cand = Wmin + extra
        if (H * cand) % 128 == 0:
            Wp = cand
            break
        if extra > max(8, Wmin // 4):              # don't waste >~25% columns on it
            break
    # Fully lane-aligned mode (Wp multiple of 128): every tap window is an aligned
    # slice; only worth the junk columns when the padding overhead is small.
    Wp_aligned = -(-Wmin // 128) * 128
    if Wp_aligned <= int(1.3 * Wmin):
        Wp = Wp_aligned
    aligned = (Wp % 128 == 0)

    Hp = H + 5                     # 2 rows top, 3 rows bottom (covers max flat shift)
    L = H * Wp
    Lp = Hp * Wp
    inv_hw = 1.0 / float(H * W)

    # TODO(synk): the host-side pad+reshape is an extra HBM round trip (~10-15% on
    # v5e); removing it requires the producer to emit the padded flat layout or an
    # in-kernel DMA into zero-initialised scratch.
    xpad = jnp.pad(x, ((0, 0), (0, 0), (2, Hp - H - 2), (2, Wp - W - 2)))
    xflat = xpad.reshape(B, C, Lp)

    # Valid-column mask: 1.0 on real image columns, 0.0 on junk right-padding columns.
    col = jnp.arange(L, dtype=jnp.int32) % Wp
    mask = (col < W).astype(jnp.float32)[None, :]                     # (1, L)

    kp = fold_params(params, eps=eps)

    # ---- kernel ---------------------------------------------------------------------
    def kernel(x_ref, mask_ref, w3_ref, w5_ref, wb_ref, bb_ref,
               wf_ref, bf_ref, wse1_ref, bse1_ref, wse2_ref, bse2_ref, o_ref):
        xf = x_ref[0]                                                 # (C, Lp)
        w3t = w3_ref[...]                                             # (C, 9)
        w5t = w5_ref[...]                                             # (C, 25)

        if aligned:
            # Hoist the 5 column shifts once (only 4 misaligned slices total); every
            # remaining tap window is a row shift a*Wp, lane-aligned (Wp % 128 == 0).
            Lrow = L + 4 * Wp
            cs = [xf[:, b: b + Lrow] for b in range(5)]

            def win(a, b):
                return cs[b][:, a * Wp: a * Wp + L]
        else:
            def win(a, b):
                s = a * Wp + b
                return xf[:, s: s + L]

        x_id = win(2, 2)                                              # (C, L) identity

        # Branch 1 (identity) -> start the fusion accumulator.
        b1 = _silu(jnp.dot(wb_ref[0], x_id, preferred_element_type=jnp.float32)
                   + bb_ref[0])
        fpre = jnp.dot(wf_ref[0], b1, preferred_element_type=jnp.float32) + bf_ref[...]
        del b1

        # Branch 2: depthwise 3x3 (padding=1) -> 1x1 -> accumulate into fpre.
        dw3 = w3t[:, 0:1] * win(1, 1)                 # first tap = assignment
        for a in range(3):
            for b in range(3):
                if a == 0 and b == 0:
                    continue
                dw3 = dw3 + w3t[:, a * 3 + b: a * 3 + b + 1] * win(a + 1, b + 1)
        b2 = _silu(jnp.dot(wb_ref[1], dw3, preferred_element_type=jnp.float32)
                   + bb_ref[1])
        del dw3
        fpre = fpre + jnp.dot(wf_ref[1], b2, preferred_element_type=jnp.float32)
        del b2

        # Branch 3: depthwise 5x5 (padding=2) -> 1x1 -> accumulate into fpre.
        dw5 = w5t[:, 0:1] * win(0, 0)
        for a in range(5):
            for b in range(5):
                if a == 0 and b == 0:
                    continue
                dw5 = dw5 + w5t[:, a * 5 + b: a * 5 + b + 1] * win(a, b)
        b3 = _silu(jnp.dot(wb_ref[2], dw5, preferred_element_type=jnp.float32)
                   + bb_ref[2])
        del dw5
        fpre = fpre + jnp.dot(wf_ref[2], b3, preferred_element_type=jnp.float32)
        del b3

        fused = _silu(fpre)                                           # (C, L)
        # TODO(synk): nn.Dropout(p=0.1) is identity at inference; training-mode dropout
        # and batch-statistics BatchNorm are out of scope.

        # SE gate: where-masked global average pool (no 0*inf risk on junk columns).
        valid = mask_ref[...] != 0.0                                  # (1, L)
        avg = jnp.sum(jnp.where(valid, fused, 0.0), axis=1, keepdims=True) * inv_hw
        h = _silu(jnp.dot(wse1_ref[...], avg, preferred_element_type=jnp.float32)
                  + bse1_ref[...])
        gate = jax.nn.sigmoid(jnp.dot(wse2_ref[...], h, preferred_element_type=jnp.float32)
                              + bse2_ref[...])                        # (C, 1)

        o_ref[0] = fused * gate + x_id                                # SE scale + residual

    # ---- specs / cost / VMEM ----------------------------------------------------------
    def wspec(shape):
        zeros = (0,) * len(shape)
        return pl.BlockSpec(shape, lambda b: zeros)

    weight_elems = (C * 9 + C * 25 + 3 * C4 * C + 3 * C4 + 3 * C * C4 + C
                    + Cr * C + Cr + C * Cr + C)
    flops = 2 * B * L * (34 * C + 6 * C4 * C + 3 * C) + 4 * B * (Cr * C + C * Cr)
    transcendentals = B * L * (3 * C4 + 2 * C) + B * (Cr + C)
    bytes_accessed = 4 * (B * C * (Lp + L) + weight_elems + L)

    # Exact double-buffered block bytes + live intermediates (branch-at-a-time peak),
    # capped per chip: <=48 MiB on v7x (64 MiB VMEM), up to ~96 MiB on v5e/v6e.
    blocks = 2 * 4 * (C * Lp + L + weight_elems + C * L)        # dbl-buffered in + out
    live = 4 * C * L * (13 if aligned else 9)
    need = blocks + live
    try:
        phys_vmem = int(pltpu.get_tpu_info().vmem_capacity_bytes)
    except Exception:
        phys_vmem = 64 * 1024 * 1024
    cap = min(100 * 1024 * 1024, max(48 * 1024 * 1024, (phys_vmem * 3) // 4))
    vmem_limit = int(min(cap, max(32 * 1024 * 1024, (need * 3) // 2)))
    # TODO(synk): for images where `need` exceeds `cap` (very large H*W*C on v7x),
    # add an L-tile grid axis and split the SE gate into a tiny second pass.

    out_flat = pl.pallas_call(
        kernel,
        out_shape=jax.ShapeDtypeStruct((B, C, L), x.dtype),
        grid=(B,),
        in_specs=[
            pl.BlockSpec((1, C, Lp), lambda b: (b, 0, 0)),   # padded, flattened x
            wspec((1, L)),                                   # valid-column mask
            wspec((C, 9)), wspec((C, 25)),                   # depthwise taps
            wspec((3, C4, C)), wspec((3, C4, 1)),            # branch 1x1 (BN folded)
            wspec((3, C, C4)), wspec((C, 1)),                # fusion 1x1 (pre-split)
            wspec((Cr, C)), wspec((Cr, 1)),                  # SE squeeze
            wspec((C, Cr)), wspec((C, 1)),                   # SE excite
        ],
        out_specs=pl.BlockSpec((1, C, L), lambda b: (b, 0, 0)),
        compiler_params=pltpu.CompilerParams(
            dimension_semantics=("parallel",),
            vmem_limit_bytes=vmem_limit),
        cost_estimate=pl.CostEstimate(flops=int(flops),
                                      transcendentals=int(transcendentals),
                                      bytes_accessed=int(bytes_accessed)),
    )(xflat, mask, kp['w_dw3'], kp['w_dw5'], kp['w_b'], kp['b_b'],
      kp['w_f'], kp['b_f'], kp['w_se1'], kp['b_se1'], kp['w_se2'], kp['b_se2'])

    # Drop the junk (right-padding) columns and restore NCHW.
    return out_flat.reshape(B, C, H, Wp)[:, :, :, :W]


def init_params(key, in_channels):
    C = in_channels
    C4 = 4 * C
    Cr = max(C // 16, 1)
    it = iter(jax.random.split(key, 24))

    def u(shape, fan_in):
        s = 1.0 / math.sqrt(fan_in)
        return jax.random.uniform(next(it), shape, jnp.float32, -s, s)

    def bn_stats(n):
        k1, k2, k3, k4 = jax.random.split(next(it), 4)
        gamma = jax.random.uniform(k1, (n,), jnp.float32, 0.5, 1.5)
        beta = 0.1 * jax.random.normal(k2, (n,), jnp.float32)
        mean = 0.1 * jax.random.normal(k3, (n,), jnp.float32)
        var = jax.random.uniform(k4, (n,), jnp.float32, 0.5, 1.5)
        return (gamma, beta, mean, var)

    return {
        'b1_w': u((C4, C), C), 'b1_b': u((C4,), C), 'bn1': bn_stats(C4),
        'dw3_w': u((C, 3, 3), 9), 'dw3_b': u((C,), 9),
        'b2_w': u((C4, C), C), 'b2_b': u((C4,), C), 'bn2': bn_stats(C4),
        'dw5_w': u((C, 5, 5), 25), 'dw5_b': u((C,), 25),
        'b3_w': u((C4, C), C), 'b3_b': u((C4,), C), 'bn3': bn_stats(C4),
        'f_w': u((C, 3 * C4), 3 * C4), 'f_b': u((C,), 3 * C4), 'bnf': bn_stats(C),
        'se1_w': u((Cr, C), C), 'se1_b': u((Cr,), C),
        'se2_w': u((C, Cr), Cr), 'se2_b': u((C,), Cr),
    }


def reference(x, p, eps=1e-5):
    """Pure-JAX reference (inference-mode BN/dropout), full f32 matmul precision."""
    with jax.default_matmul_precision('float32'):
        B, C, H, W = x.shape

        def bn(y, stats):
            gamma, beta, mean, var = stats
            inv = gamma / jnp.sqrt(var + eps)
            return ((y - mean[None, :, None, None]) * inv[None, :, None, None]
                    + beta[None, :, None, None])

        def conv1x1(y, w, b):
            return jnp.einsum('oc,bchw->bohw', w, y,
                              precision=lax.Precision.HIGHEST) + b[None, :, None, None]

        def dwconv(y, w, b, pad):
            out = lax.conv_general_dilated(
                y, w[:, None, :, :], window_strides=(1, 1),
                padding=[(pad, pad), (pad, pad)],
                dimension_numbers=('NCHW', 'OIHW', 'NCHW'),
                feature_group_count=C,
                precision=lax.Precision.HIGHEST)
            return out + b[None, :, None, None]

        act = jax.nn.silu
        b1 = act(bn(conv1x1(x, p['b1_w'], p['b1_b']), p['bn1']))
        b2 = act(bn(conv1x1(dwconv(x, p['dw3_w'], p['dw3_b'], 1),
                            p['b2_w'], p['b2_b']), p['bn2']))
        b3 = act(bn(conv1x1(dwconv(x, p['dw5_w'], p['dw5_b'], 2),
                            p['b3_w'], p['b3_b']), p['bn3']))
        cat = jnp.concatenate([b1, b2, b3], axis=1)
        fused = act(bn(conv1x1(cat, p['f_w'], p['f_b']), p['bnf']))
        # dropout = identity (inference)
        avg = jnp.mean(fused, axis=(2, 3))                             # (B, C)
        h = act(avg @ p['se1_w'].T + p['se1_b'][None, :])
        gate = jax.nn.sigmoid(h @ p['se2_w'].T + p['se2_b'][None, :])  # (B, C)
        return fused * gate[:, :, None, None] + x


if __name__ == "__main__":
    key = jax.random.PRNGKey(0)
    kx, kparam = jax.random.split(key)

    B, C, H, W = 2, 32, 16, 16            # SE hidden channels = C // 16 = 2
    x = jax.random.normal(kx, (B, C, H, W), dtype=jnp.float32)
    params = init_params(kparam, C)

    out = jax.block_until_ready(multiscale_forward(x, params))
    assert out.shape == x.shape

    ref = reference(x, params)
    err = float(jnp.max(jnp.abs(out - ref)))
    assert jnp.allclose(out, ref, rtol=2e-3, atol=2e-3), f"max abs err = {err}"
    print("KERNEL_OK")
</pallas_src>

<mosaic_0001>
module attributes {stable_mosaic.version = 11 : i64} {
  func.func @kernel(%arg0: i32, %arg1: memref<1x32x504xf32, #tpu.memory_space<vmem>>, %arg2: memref<1x384xf32, #tpu.memory_space<vmem>>, %arg3: memref<32x9xf32, #tpu.memory_space<vmem>>, %arg4: memref<32x25xf32, #tpu.memory_space<vmem>>, %arg5: memref<3x128x32xf32, #tpu.memory_space<vmem>>, %arg6: memref<3x128x1xf32, #tpu.memory_space<vmem>>, %arg7: memref<3x32x128xf32, #tpu.memory_space<vmem>>, %arg8: memref<32x1xf32, #tpu.memory_space<vmem>>, %arg9: memref<2x32xf32, #tpu.memory_space<vmem>>, %arg10: memref<2x1xf32, #tpu.memory_space<vmem>>, %arg11: memref<32x2xf32, #tpu.memory_space<vmem>>, %arg12: memref<32x1xf32, #tpu.memory_space<vmem>>, %arg13: memref<1x32x384xf32, #tpu.memory_space<vmem>>) attributes {dimension_semantics = [#tpu.dimension_semantics<parallel>], iteration_bounds = array<i64: 2>, scalar_prefetch = 0 : i64, scratch_operands = 0 : i64, tpu.core_type = #tpu.core_type<tc>, window_params = [{transform_indices = @transform_0, window_bounds = array<i64: 1, 32, 504>}, {pipeline_mode = #tpu.pipeline_mode<synchronous>, transform_indices = @transform_1, window_bounds = array<i64: 1, 384>}, {pipeline_mode = #tpu.pipeline_mode<synchronous>, transform_indices = @transform_2, window_bounds = array<i64: 32, 9>}, {pipeline_mode = #tpu.pipeline_mode<synchronous>, transform_indices = @transform_3, window_bounds = array<i64: 32, 25>}, {pipeline_mode = #tpu.pipeline_mode<synchronous>, transform_indices = @transform_4, window_bounds = array<i64: 3, 128, 32>}, {pipeline_mode = #tpu.pipeline_mode<synchronous>, transform_indices = @transform_5, window_bounds = array<i64: 3, 128, 1>}, {pipeline_mode = #tpu.pipeline_mode<synchronous>, transform_indices = @transform_6, window_bounds = array<i64: 3, 32, 128>}, {pipeline_mode = #tpu.pipeline_mode<synchronous>, transform_indices = @transform_7, window_bounds = array<i64: 32, 1>}, {pipeline_mode = #tpu.pipeline_mode<synchronous>, transform_indices = @transform_8, window_bounds = array<i64: 2, 32>}, {pipeline_mode = #tpu.pipeline_mode<synchronous>, transform_indices = @transform_9, window_bounds = array<i64: 2, 1>}, {pipeline_mode = #tpu.pipeline_mode<synchronous>, transform_indices = @transform_10, window_bounds = array<i64: 32, 2>}, {pipeline_mode = #tpu.pipeline_mode<synchronous>, transform_indices = @transform_11, window_bounds = array<i64: 32, 1>}, {transform_indices = @transform_12, window_bounds = array<i64: 1, 32, 384>}]} {
    %c0 = arith.constant 0 : index
    %c0_0 = arith.constant 0 : index
    %c0_1 = arith.constant 0 : index
    %0 = vector.load %arg1[%c0, %c0_0, %c0_1] : memref<1x32x504xf32, #tpu.memory_space<vmem>>, vector<1x32x504xf32>
    %1 = vector.shape_cast %0 : vector<1x32x504xf32> to vector<32x504xf32>
    %c0_2 = arith.constant 0 : index
    %c0_3 = arith.constant 0 : index
    %2 = vector.load %arg3[%c0_2, %c0_3] : memref<32x9xf32, #tpu.memory_space<vmem>>, vector<32x9xf32>
    %c0_4 = arith.constant 0 : index
    %c0_5 = arith.constant 0 : index
    %3 = vector.load %arg4[%c0_4, %c0_5] : memref<32x25xf32, #tpu.memory_space<vmem>>, vector<32x25xf32>
    %4 = vector.extract_strided_slice %1 {offsets = [0, 50], sizes = [32, 384], strides = [1, 1]} : vector<32x504xf32> to vector<32x384xf32>
    %c0_6 = arith.constant 0 : index
    %c0_7 = arith.constant 0 : index
    %c0_8 = arith.constant 0 : index
    %5 = vector.load %arg5[%c0_6, %c0_7, %c0_8] : memref<3x128x32xf32, #tpu.memory_space<vmem>>, vector<1x128x32xf32>
    %6 = vector.shape_cast %5 : vector<1x128x32xf32> to vector<128x32xf32>
    %cst = arith.constant dense<0.000000e+00> : vector<128x384xf32>
    %7 = tpu.matmul %6, %4, %cst {dimension_numbers = #tpu.dot_dimension_numbers<[1], [0], [0], [1], [0, 0, 1, 1], [], []>} : vector<128x32xf32>, vector<32x384xf32>, vector<128x384xf32> -> vector<128x384xf32>
    %c0_9 = arith.constant 0 : index
    %c0_10 = arith.constant 0 : index
    %c0_11 = arith.constant 0 : index
    %8 = vector.load %arg6[%c0_9, %c0_10, %c0_11] : memref<3x128x1xf32, #tpu.memory_space<vmem>>, vector<1x128x1xf32>
    %9 = vector.shape_cast %8 : vector<1x128x1xf32> to vector<128x1xf32>
    %10 = vector.broadcast %9 : vector<128x1xf32> to vector<128x384xf32>
    %11 = arith.addf %7, %10 : vector<128x384xf32>
    %12 = arith.negf %11 : vector<128x384xf32>
    %13 = math.exp %12 : vector<128x384xf32>
    %cst_12 = arith.constant 1.000000e+00 : f32
    %14 = vector.broadcast %cst_12 : f32 to vector<128x384xf32>
    %15 = arith.addf %14, %13 : vector<128x384xf32>
    %16 = arith.divf %14, %15 : vector<128x384xf32>
    %17 = arith.mulf %11, %16 : vector<128x384xf32>
    %c0_13 = arith.constant 0 : index
    %c0_14 = arith.constant 0 : index
    %c0_15 = arith.constant 0 : index
    %18 = vector.load %arg7[%c0_13, %c0_14, %c0_15] : memref<3x32x128xf32, #tpu.memory_space<vmem>>, vector<1x32x128xf32>
    %19 = vector.shape_cast %18 : vector<1x32x128xf32> to vector<32x128xf32>
    %cst_16 = arith.constant dense<0.000000e+00> : vector<32x384xf32>
    %20 = tpu.matmul %19, %17, %cst_16 {dimension_numbers = #tpu.dot_dimension_numbers<[1], [0], [0], [1], [0, 0, 1, 1], [], []>} : vector<32x128xf32>, vector<128x384xf32>, vector<32x384xf32> -> vector<32x384xf32>
    %c0_17 = arith.constant 0 : index
    %c0_18 = arith.constant 0 : index
    %21 = vector.load %arg8[%c0_17, %c0_18] : memref<32x1xf32, #tpu.memory_space<vmem>>, vector<32x1xf32>
    %22 = vector.broadcast %21 : vector<32x1xf32> to vector<32x384xf32>
    %23 = arith.addf %20, %22 : vector<32x384xf32>
    %24 = vector.extract_strided_slice %2 {offsets = [0, 0], sizes = [32, 1], strides = [1, 1]} : vector<32x9xf32> to vector<32x1xf32>
    %25 = vector.extract_strided_slice %1 {offsets = [0, 25], sizes = [32, 384], strides = [1, 1]} : vector<32x504xf32> to vector<32x384xf32>
    %26 = vector.broadcast %24 : vector<32x1xf32> to vector<32x384xf32>
    %27 = arith.mulf %26, %25 : vector<32x384xf32>
    %28 = vector.extract_strided_slice %2 {offsets = [0, 1], sizes = [32, 1], strides = [1, 1]} : vector<32x9xf32> to vector<32x1xf32>
    %29 = vector.extract_strided_slice %1 {offsets = [0, 26], sizes = [32, 384], strides = [1, 1]} : vector<32x504xf32> to vector<32x384xf32>
    %30 = vector.broadcast %28 : vector<32x1xf32> to vector<32x384xf32>
    %31 = arith.mulf %30, %29 : vector<32x384xf32>
    %32 = arith.addf %27, %31 : vector<32x384xf32>
    %33 = vector.extract_strided_slice %2 {offsets = [0, 2], sizes = [32, 1], strides = [1, 1]} : vector<32x9xf32> to vector<32x1xf32>
    %34 = vector.extract_strided_slice %1 {offsets = [0, 27], sizes = [32, 384], strides = [1, 1]} : vector<32x504xf32> to vector<32x384xf32>
    %35 = vector.broadcast %33 : vector<32x1xf32> to vector<32x384xf32>
    %36 = arith.mulf %35, %34 : vector<32x384xf32>
    %37 = arith.addf %32, %36 : vector<32x384xf32>
    %38 = vector.extract_strided_slice %2 {offsets = [0, 3], sizes = [32, 1], strides = [1, 1]} : vector<32x9xf32> to vector<32x1xf32>
    %39 = vector.extract_strided_slice %1 {offsets = [0, 49], sizes = [32, 384], strides = [1, 1]} : vector<32x504xf32> to vector<32x384xf32>
    %40 = vector.broadcast %38 : vector<32x1xf32> to vector<32x384xf32>
    %41 = arith.mulf %40, %39 : vector<32x384xf32>
    %42 = arith.addf %37, %41 : vector<32x384xf32>
    %43 = vector.extract_strided_slice %2 {offsets = [0, 4], sizes = [32, 1], strides = [1, 1]} : vector<32x9xf32> to vector<32x1xf32>
    %44 = vector.extract_strided_slice %1 {offsets = [0, 50], sizes = [32, 384], strides = [1, 1]} : vector<32x504xf32> to vector<32x384xf32>
    %45 = vector.broadcast %43 : vector<32x1xf32> to vector<32x384xf32>
    %46 = arith.mulf %45, %44 : vector<32x384xf32>
    %47 = arith.addf %42, %46 : vector<32x384xf32>
    %48 = vector.extract_strided_slice %2 {offsets = [0, 5], sizes = [32, 1], strides = [1, 1]} : vector<32x9xf32> to vector<32x1xf32>
    %49 = vector.extract_strided_slice %1 {offsets = [0, 51], sizes = [32, 384], strides = [1, 1]} : vector<32x504xf32> to vector<32x384xf32>
    %50 = vector.broadcast %48 : vector<32x1xf32> to vector<32x384xf32>
    %51 = arith.mulf %50, %49 : vector<32x384xf32>
    %52 = arith.addf %47, %51 : vector<32x384xf32>
    %53 = vector.extract_strided_slice %2 {offsets = [0, 6], sizes = [32, 1], strides = [1, 1]} : vector<32x9xf32> to vector<32x1xf32>
    %54 = vector.extract_strided_slice %1 {offsets = [0, 73], sizes = [32, 384], strides = [1, 1]} : vector<32x504xf32> to vector<32x384xf32>
    %55 = vector.broadcast %53 : vector<32x1xf32> to vector<32x384xf32>
    %56 = arith.mulf %55, %54 : vector<32x384xf32>
    %57 = arith.addf %52, %56 : vector<32x384xf32>
    %58 = vector.extract_strided_slice %2 {offsets = [0, 7], sizes = [32, 1], strides = [1, 1]} : vector<32x9xf32> to vector<32x1xf32>
    %59 = vector.extract_strided_slice %1 {offsets = [0, 74], sizes = [32, 384], strides = [1, 1]} : vector<32x504xf32> to vector<32x384xf32>
    %60 = vector.broadcast %58 : vector<32x1xf32> to vector<32x384xf32>
    %61 = arith.mulf %60, %59 : vector<32x384xf32>
    %62 = arith.addf %57, %61 : vector<32x384xf32>
    %63 = vector.extract_strided_slice %2 {offsets = [0, 8], sizes = [32, 1], strides = [1, 1]} : vector<32x9xf32> to vector<32x1xf32>
    %64 = vector.extract_strided_slice %1 {offsets = [0, 75], sizes = [32, 384], strides = [1, 1]} : vector<32x504xf32> to vector<32x384xf32>
    %65 = vector.broadcast %63 : vector<32x1xf32> to vector<32x384xf32>
    %66 = arith.mulf %65, %64 : vector<32x384xf32>
    %67 = arith.addf %62, %66 : vector<32x384xf32>
    %c1 = arith.constant 1 : index
    %c0_19 = arith.constant 0 : index
    %c0_20 = arith.constant 0 : index
    %68 = vector.load %arg5[%c1, %c0_19, %c0_20] : memref<3x128x32xf32, #tpu.memory_space<vmem>>, vector<1x128x32xf32>
    %69 = vector.shape_cast %68 : vector<1x128x32xf32> to vector<128x32xf32>
    %cst_21 = arith.constant dense<0.000000e+00> : vector<128x384xf32>
    %70 = tpu.matmul %69, %67, %cst_21 {dimension_numbers = #tpu.dot_dimension_numbers<[1], [0], [0], [1], [0, 0, 1, 1], [], []>} : vector<128x32xf32>, vector<32x384xf32>, vector<128x384xf32> -> vector<128x384xf32>
    %c1_22 = arith.constant 1 : index
    %c0_23 = arith.constant 0 : index
    %c0_24 = arith.constant 0 : index
    %71 = vector.load %arg6[%c1_22, %c0_23, %c0_24] : memref<3x128x1xf32, #tpu.memory_space<vmem>>, vector<1x128x1xf32>
    %72 = vector.shape_cast %71 : vector<1x128x1xf32> to vector<128x1xf32>
    %73 = vector.broadcast %72 : vector<128x1xf32> to vector<128x384xf32>
    %74 = arith.addf %70, %73 : vector<128x384xf32>
    %75 = arith.negf %74 : vector<128x384xf32>
    %76 = math.exp %75 : vector<128x384xf32>
    %cst_25 = arith.constant 1.000000e+00 : f32
    %77 = vector.broadcast %cst_25 : f32 to vector<128x384xf32>
    %78 = arith.addf %77, %76 : vector<128x384xf32>
    %79 = arith.divf %77, %78 : vector<128x384xf32>
    %80 = arith.mulf %74, %79 : vector<128x384xf32>
    %c1_26 = arith.constant 1 : index
    %c0_27 = arith.constant 0 : index
    %c0_28 = arith.constant 0 : index
    %81 = vector.load %arg7[%c1_26, %c0_27, %c0_28] : memref<3x32x128xf32, #tpu.memory_space<vmem>>, vector<1x32x128xf32>
    %82 = vector.shape_cast %81 : vector<1x32x128xf32> to vector<32x128xf32>
    %cst_29 = arith.constant dense<0.000000e+00> : vector<32x384xf32>
    %83 = tpu.matmul %82, %80, %cst_29 {dimension_numbers = #tpu.dot_dimension_numbers<[1], [0], [0], [1], [0, 0, 1, 1], [], []>} : vector<32x128xf32>, vector<128x384xf32>, vector<32x384xf32> -> vector<32x384xf32>
    %84 = arith.addf %23, %83 : vector<32x384xf32>
    %85 = vector.extract_strided_slice %3 {offsets = [0, 0], sizes = [32, 1], strides = [1, 1]} : vector<32x25xf32> to vector<32x1xf32>
    %86 = vector.extract_strided_slice %1 {offsets = [0, 0], sizes = [32, 384], strides = [1, 1]} : vector<32x504xf32> to vector<32x384xf32>
    %87 = vector.broadcast %85 : vector<32x1xf32> to vector<32x384xf32>
    %88 = arith.mulf %87, %86 : vector<32x384xf32>
    %89 = vector.extract_strided_slice %3 {offsets = [0, 1], sizes = [32, 1], strides = [1, 1]} : vector<32x25xf32> to vector<32x1xf32>
    %90 = vector.extract_strided_slice %1 {offsets = [0, 1], sizes = [32, 384], strides = [1, 1]} : vector<32x504xf32> to vector<32x384xf32>
    %91 = vector.broadcast %89 : vector<32x1xf32> to vector<32x384xf32>
    %92 = arith.mulf %91, %90 : vector<32x384xf32>
    %93 = arith.addf %88, %92 : vector<32x384xf32>
    %94 = vector.extract_strided_slice %3 {offsets = [0, 2], sizes = [32, 1], strides = [1, 1]} : vector<32x25xf32> to vector<32x1xf32>
    %95 = vector.extract_strided_slice %1 {offsets = [0, 2], sizes = [32, 384], strides = [1, 1]} : vector<32x504xf32> to vector<32x384xf32>
    %96 = vector.broadcast %94 : vector<32x1xf32> to vector<32x384xf32>
    %97 = arith.mulf %96, %95 : vector<32x384xf32>
    %98 = arith.addf %93, %97 : vector<32x384xf32>
    %99 = vector.extract_strided_slice %3 {offsets = [0, 3], sizes = [32, 1], strides = [1, 1]} : vector<32x25xf32> to vector<32x1xf32>
    %100 = vector.extract_strided_slice %1 {offsets = [0, 3], sizes = [32, 384], strides = [1, 1]} : vector<32x504xf32> to vector<32x384xf32>
    %101 = vector.broadcast %99 : vector<32x1xf32> to vector<32x384xf32>
    %102 = arith.mulf %101, %100 : vector<32x384xf32>
    %103 = arith.addf %98, %102 : vector<32x384xf32>
    %104 = vector.extract_strided_slice %3 {offsets = [0, 4], sizes = [32, 1], strides = [1, 1]} : vector<32x25xf32> to vector<32x1xf32>
    %105 = vector.extract_strided_slice %1 {offsets = [0, 4], sizes = [32, 384], strides = [1, 1]} : vector<32x504xf32> to vector<32x384xf32>
    %106 = vector.broadcast %104 : vector<32x1xf32> to vector<32x384xf32>
    %107 = arith.mulf %106, %105 : vector<32x384xf32>
    %108 = arith.addf %103, %107 : vector<32x384xf32>
    %109 = vector.extract_strided_slice %3 {offsets = [0, 5], sizes = [32, 1], strides = [1, 1]} : vector<32x25xf32> to vector<32x1xf32>
    %110 = vector.extract_strided_slice %1 {offsets = [0, 24], sizes = [32, 384], strides = [1, 1]} : vector<32x504xf32> to vector<32x384xf32>
    %111 = vector.broadcast %109 : vector<32x1xf32> to vector<32x384xf32>
    %112 = arith.mulf %111, %110 : vector<32x384xf32>
    %113 = arith.addf %108, %112 : vector<32x384xf32>
    %114 = vector.extract_strided_slice %3 {offsets = [0, 6], sizes = [32, 1], strides = [1, 1]} : vector<32x25xf32> to vector<32x1xf32>
    %115 = vector.extract_strided_slice %1 {offsets = [0, 25], sizes = [32, 384], strides = [1, 1]} : vector<32x504xf32> to vector<32x384xf32>
    %116 = vector.broadcast %114 : vector<32x1xf32> to vector<32x384xf32>
    %117 = arith.mulf %116, %115 : vector<32x384xf32>
    %118 = arith.addf %113, %117 : vector<32x384xf32>
    %119 = vector.extract_strided_slice %3 {offsets = [0, 7], sizes = [32, 1], strides = [1, 1]} : vector<32x25xf32> to vector<32x1xf32>
    %120 = vector.extract_strided_slice %1 {offsets = [0, 26], sizes = [32, 384], strides = [1, 1]} : vector<32x504xf32> to vector<32x384xf32>
    %121 = vector.broadcast %119 : vector<32x1xf32> to vector<32x384xf32>
    %122 = arith.mulf %121, %120 : vector<32x384xf32>
    %123 = arith.addf %118, %122 : vector<32x384xf32>
    %124 = vector.extract_strided_slice %3 {offsets = [0, 8], sizes = [32, 1], strides = [1, 1]} : vector<32x25xf32> to vector<32x1xf32>
    %125 = vector.extract_strided_slice %1 {offsets = [0, 27], sizes = [32, 384], strides = [1, 1]} : vector<32x504xf32> to vector<32x384xf32>
    %126 = vector.broadcast %124 : vector<32x1xf32> to vector<32x384xf32>
    %127 = arith.mulf %126, %125 : vector<32x384xf32>
    %128 = arith.addf %123, %127 : vector<32x384xf32>
    %129 = vector.extract_strided_slice %3 {offsets = [0, 9], sizes = [32, 1], strides = [1, 1]} : vector<32x25xf32> to vector<32x1xf32>
    %130 = vector.extract_strided_slice %1 {offsets = [0, 28], sizes = [32, 384], strides = [1, 1]} : vector<32x504xf32> to vector<32x384xf32>
    %131 = vector.broadcast %129 : vector<32x1xf32> to vector<32x384xf32>
    %132 = arith.mulf %131, %130 : vector<32x384xf32>
    %133 = arith.addf %128, %132 : vector<32x384xf32>
    %134 = vector.extract_strided_slice %3 {offsets = [0, 10], sizes = [32, 1], strides = [1, 1]} : vector<32x25xf32> to vector<32x1xf32>
    %135 = vector.extract_strided_slice %1 {offsets = [0, 48], sizes = [32, 384], strides = [1, 1]} : vector<32x504xf32> to vector<32x384xf32>
    %136 = vector.broadcast %134 : vector<32x1xf32> to vector<32x384xf32>
    %137 = arith.mulf %136, %135 : vector<32x384xf32>
    %138 = arith.addf %133, %137 : vector<32x384xf32>
    %139 = vector.extract_strided_slice %3 {offsets = [0, 11], sizes = [32, 1], strides = [1, 1]} : vector<32x25xf32> to vector<32x1xf32>
    %140 = vector.extract_strided_slice %1 {offsets = [0, 49], sizes = [32, 384], strides = [1, 1]} : vector<32x504xf32> to vector<32x384xf32>
    %141 = vector.broadcast %139 : vector<32x1xf32> to vector<32x384xf32>
    %142 = arith.mulf %141, %140 : vector<32x384xf32>
    %143 = arith.addf %138, %142 : vector<32x384xf32>
    %144 = vector.extract_strided_slice %3 {offsets = [0, 12], sizes = [32, 1], strides = [1, 1]} : vector<32x25xf32> to vector<32x1xf32>
    %145 = vector.extract_strided_slice %1 {offsets = [0, 50], sizes = [32, 384], strides = [1, 1]} : vector<32x504xf32> to vector<32x384xf32>
    %146 = vector.broadcast %144 : vector<32x1xf32> to vector<32x384xf32>
    %147 = arith.mulf %146, %145 : vector<32x384xf32>
    %148 = arith.addf %143, %147 : vector<32x384xf32>
    %149 = vector.extract_strided_slice %3 {offsets = [0, 13], sizes = [32, 1], strides = [1, 1]} : vector<32x25xf32> to vector<32x1xf32>
    %150 = vector.extract_strided_slice %1 {offsets = [0, 51], sizes = [32, 384], strides = [1, 1]} : vector<32x504xf32> to vector<32x384xf32>
    %151 = vector.broadcast %149 : vector<32x1xf32> to vector<32x384xf32>
    %152 = arith.mulf %151, %150 : vector<32x384xf32>
    %153 = arith.addf %148, %152 : vector<32x384xf32>
    %154 = vector.extract_strided_slice %3 {offsets = [0, 14], sizes = [32, 1], strides = [1, 1]} : vector<32x25xf32> to vector<32x1xf32>
    %155 = vector.extract_strided_slice %1 {offsets = [0, 52], sizes = [32, 384], strides = [1, 1]} : vector<32x504xf32> to vector<32x384xf32>
    %156 = vector.broadcast %154 : vector<32x1xf32> to vector<32x384xf32>
    %157 = arith.mulf %156, %155 : vector<32x384xf32>
    %158 = arith.addf %153, %157 : vector<32x384xf32>
    %159 = vector.extract_strided_slice %3 {offsets = [0, 15], sizes = [32, 1], strides = [1, 1]} : vector<32x25xf32> to vector<32x1xf32>
    %160 = vector.extract_strided_slice %1 {offsets = [0, 72], sizes = [32, 384], strides = [1, 1]} : vector<32x504xf32> to vector<32x384xf32>
    %161 = vector.broadcast %159 : vector<32x1xf32> to vector<32x384xf32>
    %162 = arith.mulf %161, %160 : vector<32x384xf32>
    %163 = arith.addf %158, %162 : vector<32x384xf32>
    %164 = vector.extract_strided_slice %3 {offsets = [0, 16], sizes = [32, 1], strides = [1, 1]} : vector<32x25xf32> to vector<32x1xf32>
    %165 = vector.extract_strided_slice %1 {offsets = [0, 73], sizes = [32, 384], strides = [1, 1]} : vector<32x504xf32> to vector<32x384xf32>
    %166 = vector.broadcast %164 : vector<32x1xf32> to vector<32x384xf32>
    %167 = arith.mulf %166, %165 : vector<32x384xf32>
    %168 = arith.addf %163, %167 : vector<32x384xf32>
    %169 = vector.extract_strided_slice %3 {offsets = [0, 17], sizes = [32, 1], strides = [1, 1]} : vector<32x25xf32> to vector<32x1xf32>
    %170 = vector.extract_strided_slice %1 {offsets = [0, 74], sizes = [32, 384], strides = [1, 1]} : vector<32x504xf32> to vector<32x384xf32>
    %171 = vector.broadcast %169 : vector<32x1xf32> to vector<32x384xf32>
    %172 = arith.mulf %171, %170 : vector<32x384xf32>
    %173 = arith.addf %168, %172 : vector<32x384xf32>
    %174 = vector.extract_strided_slice %3 {offsets = [0, 18], sizes = [32, 1], strides = [1, 1]} : vector<32x25xf32> to vector<32x1xf32>
    %175 = vector.extract_strided_slice %1 {offsets = [0, 75], sizes = [32, 384], strides = [1, 1]} : vector<32x504xf32> to vector<32x384xf32>
    %176 = vector.broadcast %174 : vector<32x1xf32> to vector<32x384xf32>
    %177 = arith.mulf %176, %175 : vector<32x384xf32>
    %178 = arith.addf %173, %177 : vector<32x384xf32>
    %179 = vector.extract_strided_slice %3 {offsets = [0, 19], sizes = [32, 1], strides = [1, 1]} : vector<32x25xf32> to vector<32x1xf32>
    %180 = vector.extract_strided_slice %1 {offsets = [0, 76], sizes = [32, 384], strides = [1, 1]} : vector<32x504xf32> to vector<32x384xf32>
    %181 = vector.broadcast %179 : vector<32x1xf32> to vector<32x384xf32>
    %182 = arith.mulf %181, %180 : vector<32x384xf32>
    %183 = arith.addf %178, %182 : vector<32x384xf32>
    %184 = vector.extract_strided_slice %3 {offsets = [0, 20], sizes = [32, 1], strides = [1, 1]} : vector<32x25xf32> to vector<32x1xf32>
    %185 = vector.extract_strided_slice %1 {offsets = [0, 96], sizes = [32, 384], strides = [1, 1]} : vector<32x504xf32> to vector<32x384xf32>
    %186 = vector.broadcast %184 : vector<32x1xf32> to vector<32x384xf32>
    %187 = arith.mulf %186, %185 : vector<32x384xf32>
    %188 = arith.addf %183, %187 : vector<32x384xf32>
    %189 = vector.extract_strided_slice %3 {offsets = [0, 21], sizes = [32, 1], strides = [1, 1]} : vector<32x25xf32> to vector<32x1xf32>
    %190 = vector.extract_strided_slice %1 {offsets = [0, 97], sizes = [32, 384], strides = [1, 1]} : vector<32x504xf32> to vector<32x384xf32>
    %191 = vector.broadcast %189 : vector<32x1xf32> to vector<32x384xf32>
    %192 = arith.mulf %191, %190 : vector<32x384xf32>
    %193 = arith.addf %188, %192 : vector<32x384xf32>
    %194 = vector.extract_strided_slice %3 {offsets = [0, 22], sizes = [32, 1], strides = [1, 1]} : vector<32x25xf32> to vector<32x1xf32>
    %195 = vector.extract_strided_slice %1 {offsets = [0, 98], sizes = [32, 384], strides = [1, 1]} : vector<32x504xf32> to vector<32x384xf32>
    %196 = vector.broadcast %194 : vector<32x1xf32> to vector<32x384xf32>
    %197 = arith.mulf %196, %195 : vector<32x384xf32>
    %198 = arith.addf %193, %197 : vector<32x384xf32>
    %199 = vector.extract_strided_slice %3 {offsets = [0, 23], sizes = [32, 1], strides = [1, 1]} : vector<32x25xf32> to vector<32x1xf32>
    %200 = vector.extract_strided_slice %1 {offsets = [0, 99], sizes = [32, 384], strides = [1, 1]} : vector<32x504xf32> to vector<32x384xf32>
    %201 = vector.broadcast %199 : vector<32x1xf32> to vector<32x384xf32>
    %202 = arith.mulf %201, %200 : vector<32x384xf32>
    %203 = arith.addf %198, %202 : vector<32x384xf32>
    %204 = vector.extract_strided_slice %3 {offsets = [0, 24], sizes = [32, 1], strides = [1, 1]} : vector<32x25xf32> to vector<32x1xf32>
    %205 = vector.extract_strided_slice %1 {offsets = [0, 100], sizes = [32, 384], strides = [1, 1]} : vector<32x504xf32> to vector<32x384xf32>
    %206 = vector.broadcast %204 : vector<32x1xf32> to vector<32x384xf32>
    %207 = arith.mulf %206, %205 : vector<32x384xf32>
    %208 = arith.addf %203, %207 : vector<32x384xf32>
    %c2 = arith.constant 2 : index
    %c0_30 = arith.constant 0 : index
    %c0_31 = arith.constant 0 : index
    %209 = vector.load %arg5[%c2, %c0_30, %c0_31] : memref<3x128x32xf32, #tpu.memory_space<vmem>>, vector<1x128x32xf32>
    %210 = vector.shape_cast %209 : vector<1x128x32xf32> to vector<128x32xf32>
    %cst_32 = arith.constant dense<0.000000e+00> : vector<128x384xf32>
    %211 = tpu.matmul %210, %208, %cst_32 {dimension_numbers = #tpu.dot_dimension_numbers<[1], [0], [0], [1], [0, 0, 1, 1], [], []>} : vector<128x32xf32>, vector<32x384xf32>, vector<128x384xf32> -> vector<128x384xf32>
    %c2_33 = arith.constant 2 : index
    %c0_34 = arith.constant 0 : index
    %c0_35 = arith.constant 0 : index
    %212 = vector.load %arg6[%c2_33, %c0_34, %c0_35] : memref<3x128x1xf32, #tpu.memory_space<vmem>>, vector<1x128x1xf32>
    %213 = vector.shape_cast %212 : vector<1x128x1xf32> to vector<128x1xf32>
    %214 = vector.broadcast %213 : vector<128x1xf32> to vector<128x384xf32>
    %215 = arith.addf %211, %214 : vector<128x384xf32>
    %216 = arith.negf %215 : vector<128x384xf32>
    %217 = math.exp %216 : vector<128x384xf32>
    %cst_36 = arith.constant 1.000000e+00 : f32
    %218 = vector.broadcast %cst_36 : f32 to vector<128x384xf32>
    %219 = arith.addf %218, %217 : vector<128x384xf32>
    %220 = arith.divf %218, %219 : vector<128x384xf32>
    %221 = arith.mulf %215, %220 : vector<128x384xf32>
    %c2_37 = arith.constant 2 : index
    %c0_38 = arith.constant 0 : index
    %c0_39 = arith.constant 0 : index
    %222 = vector.load %arg7[%c2_37, %c0_38, %c0_39] : memref<3x32x128xf32, #tpu.memory_space<vmem>>, vector<1x32x128xf32>
    %223 = vector.shape_cast %222 : vector<1x32x128xf32> to vector<32x128xf32>
    %cst_40 = arith.constant dense<0.000000e+00> : vector<32x384xf32>
    %224 = tpu.matmul %223, %221, %cst_40 {dimension_numbers = #tpu.dot_dimension_numbers<[1], [0], [0], [1], [0, 0, 1, 1], [], []>} : vector<32x128xf32>, vector<128x384xf32>, vector<32x384xf32> -> vector<32x384xf32>
    %225 = arith.addf %84, %224 : vector<32x384xf32>
    %226 = arith.negf %225 : vector<32x384xf32>
    %227 = math.exp %226 : vector<32x384xf32>
    %cst_41 = arith.constant 1.000000e+00 : f32
    %228 = vector.broadcast %cst_41 : f32 to vector<32x384xf32>
    %229 = arith.addf %228, %227 : vector<32x384xf32>
    %230 = arith.divf %228, %229 : vector<32x384xf32>
    %231 = arith.mulf %225, %230 : vector<32x384xf32>
    %c0_42 = arith.constant 0 : index
    %c0_43 = arith.constant 0 : index
    %232 = vector.load %arg2[%c0_42, %c0_43] : memref<1x384xf32, #tpu.memory_space<vmem>>, vector<1x384xf32>
    %cst_44 = arith.constant 0.000000e+00 : f32
    %233 = vector.broadcast %cst_44 : f32 to vector<1x384xf32>
    %234 = arith.cmpf one, %232, %233 : vector<1x384xf32>
    %cst_45 = arith.constant 0.000000e+00 : f32
    %235 = vector.shape_cast %234 : vector<1x384xi1> to vector<1x384xi1>
    %236 = vector.broadcast %235 : vector<1x384xi1> to vector<32x384xi1>
    %237 = vector.broadcast %cst_45 : f32 to vector<32x384xf32>
    %238 = arith.select %236, %231, %237 : vector<32x384xi1>, vector<32x384xf32>
    %cst_46 = arith.constant dense<0.000000e+00> : vector<32xf32>
    %239 = vector.multi_reduction <add>, %238, %cst_46 [1] : vector<32x384xf32> to vector<32xf32>
    %240 = vector.shape_cast %239 : vector<32xf32> to vector<32x1xf32>
    %cst_47 = arith.constant 3.906250e-03 : f32
    %241 = vector.broadcast %cst_47 : f32 to vector<32x1xf32>
    %242 = arith.mulf %240, %241 : vector<32x1xf32>
    %c0_48 = arith.constant 0 : index
    %c0_49 = arith.constant 0 : index
    %243 = vector.load %arg9[%c0_48, %c0_49] : memref<2x32xf32, #tpu.memory_space<vmem>>, vector<2x32xf32>
    %cst_50 = arith.constant dense<0.000000e+00> : vector<2x1xf32>
    %244 = tpu.matmul %243, %242, %cst_50 {dimension_numbers = #tpu.dot_dimension_numbers<[1], [0], [0], [1], [0, 0, 1, 1], [], []>} : vector<2x32xf32>, vector<32x1xf32>, vector<2x1xf32> -> vector<2x1xf32>
    %c0_51 = arith.constant 0 : index
    %c0_52 = arith.constant 0 : index
    %245 = vector.load %arg10[%c0_51, %c0_52] : memref<2x1xf32, #tpu.memory_space<vmem>>, vector<2x1xf32>
    %246 = arith.addf %244, %245 : vector<2x1xf32>
    %247 = arith.negf %246 : vector<2x1xf32>
    %248 = math.exp %247 : vector<2x1xf32>
    %cst_53 = arith.constant 1.000000e+00 : f32
    %249 = vector.broadcast %cst_53 : f32 to vector<2x1xf32>
    %250 = arith.addf %249, %248 : vector<2x1xf32>
    %251 = arith.divf %249, %250 : vector<2x1xf32>
    %252 = arith.mulf %246, %251 : vector<2x1xf32>
    %c0_54 = arith.constant 0 : index
    %c0_55 = arith.constant 0 : index
    %253 = vector.load %arg11[%c0_54, %c0_55] : memref<32x2xf32, #tpu.memory_space<vmem>>, vector<32x2xf32>
    %cst_56 = arith.constant dense<0.000000e+00> : vector<32x1xf32>
    %254 = tpu.matmul %253, %252, %cst_56 {dimension_numbers = #tpu.dot_dimension_numbers<[1], [0], [0], [1], [0, 0, 1, 1], [], []>} : vector<32x2xf32>, vector<2x1xf32>, vector<32x1xf32> -> vector<32x1xf32>
    %c0_57 = arith.constant 0 : index
    %c0_58 = arith.constant 0 : index
    %255 = vector.load %arg12[%c0_57, %c0_58] : memref<32x1xf32, #tpu.memory_space<vmem>>, vector<32x1xf32>
    %256 = arith.addf %254, %255 : vector<32x1xf32>
    %257 = arith.negf %256 : vector<32x1xf32>
    %258 = math.exp %257 : vector<32x1xf32>
    %cst_59 = arith.constant 1.000000e+00 : f32
    %259 = vector.broadcast %cst_59 : f32 to vector<32x1xf32>
    %260 = arith.addf %259, %258 : vector<32x1xf32>
    %261 = arith.divf %259, %260 : vector<32x1xf32>
    %262 = vector.broadcast %261 : vector<32x1xf32> to vector<32x384xf32>
    %263 = arith.mulf %231, %262 : vector<32x384xf32>
    %264 = arith.addf %263, %4 : vector<32x384xf32>
    %c0_60 = arith.constant 0 : index
    %c0_61 = arith.constant 0 : index
    %c0_62 = arith.constant 0 : index
    %265 = vector.load %arg13[%c0_60, %c0_61, %c0_62] : memref<1x32x384xf32, #tpu.memory_space<vmem>>, vector<1x32x384xf32>
    %266 = vector.shape_cast %265 : vector<1x32x384xf32> to vector<32x384xf32>
    %267 = vector.shape_cast %264 : vector<32x384xf32> to vector<1x32x384xf32>
    tpu.vector_store %arg13[%c0_60, %c0_61, %c0_62], %267 {strides = array<i32>} : memref<1x32x384xf32, #tpu.memory_space<vmem>>, vector<1x32x384xf32>,
    return
  }
  func.func @transform_0(%arg0: i32) -> (i32, i32, i32) {
    %c0_i32 = arith.constant 0 : i32
    %c0_i32_0 = arith.constant 0 : i32
    %c0_i32_1 = arith.constant 0 : i32
    return %arg0, %c0_i32, %c0_i32_0 : i32, i32, i32
  }
  func.func @transform_1(%arg0: i32) -> (i32, i32) {
    %c0_i32 = arith.constant 0 : i32
    %c0_i32_0 = arith.constant 0 : i32
    %c0_i32_1 = arith.constant 0 : i32
    return %c0_i32, %c0_i32_0 : i32, i32
  }
  func.func @transform_2(%arg0: i32) -> (i32, i32) {
    %c0_i32 = arith.constant 0 : i32
    %c0_i32_0 = arith.constant 0 : i32
    %c0_i32_1 = arith.constant 0 : i32
    return %c0_i32, %c0_i32_0 : i32, i32
  }
  func.func @transform_3(%arg0: i32) -> (i32, i32) {
    %c0_i32 = arith.constant 0 : i32
    %c0_i32_0 = arith.constant 0 : i32
    %c0_i32_1 = arith.constant 0 : i32
    return %c0_i32, %c0_i32_0 : i32, i32
  }
  func.func @transform_4(%arg0: i32) -> (i32, i32, i32) {
    %c0_i32 = arith.constant 0 : i32
    %c0_i32_0 = arith.constant 0 : i32
    %c0_i32_1 = arith.constant 0 : i32
    %c0_i32_2 = arith.constant 0 : i32
    return %c0_i32, %c0_i32_0, %c0_i32_1 : i32, i32, i32
  }
  func.func @transform_5(%arg0: i32) -> (i32, i32, i32) {
    %c0_i32 = arith.constant 0 : i32
    %c0_i32_0 = arith.constant 0 : i32
    %c0_i32_1 = arith.constant 0 : i32
    %c0_i32_2 = arith.constant 0 : i32
    return %c0_i32, %c0_i32_0, %c0_i32_1 : i32, i32, i32
  }
  func.func @transform_6(%arg0: i32) -> (i32, i32, i32) {
    %c0_i32 = arith.constant 0 : i32
    %c0_i32_0 = arith.constant 0 : i32
    %c0_i32_1 = arith.constant 0 : i32
    %c0_i32_2 = arith.constant 0 : i32
    return %c0_i32, %c0_i32_0, %c0_i32_1 : i32, i32, i32
  }
  func.func @transform_7(%arg0: i32) -> (i32, i32) {
    %c0_i32 = arith.constant 0 : i32
    %c0_i32_0 = arith.constant 0 : i32
    %c0_i32_1 = arith.constant 0 : i32
    return %c0_i32, %c0_i32_0 : i32, i32
  }
  func.func @transform_8(%arg0: i32) -> (i32, i32) {
    %c0_i32 = arith.constant 0 : i32
    %c0_i32_0 = arith.constant 0 : i32
    %c0_i32_1 = arith.constant 0 : i32
    return %c0_i32, %c0_i32_0 : i32, i32
  }
  func.func @transform_9(%arg0: i32) -> (i32, i32) {
    %c0_i32 = arith.constant 0 : i32
    %c0_i32_0 = arith.constant 0 : i32
    %c0_i32_1 = arith.constant 0 : i32
    return %c0_i32, %c0_i32_0 : i32, i32
  }
  func.func @transform_10(%arg0: i32) -> (i32, i32) {
    %c0_i32 = arith.constant 0 : i32
    %c0_i32_0 = arith.constant 0 : i32
    %c0_i32_1 = arith.constant 0 : i32
    return %c0_i32, %c0_i32_0 : i32, i32
  }
  func.func @transform_11(%arg0: i32) -> (i32, i32) {
    %c0_i32 = arith.constant 0 : i32
    %c0_i32_0 = arith.constant 0 : i32
    %c0_i32_1 = arith.constant 0 : i32
    return %c0_i32, %c0_i32_0 : i32, i32
  }
  func.func @transform_12(%arg0: i32) -> (i32, i32, i32) {
    %c0_i32 = arith.constant 0 : i32
    %c0_i32_0 = arith.constant 0 : i32
    %c0_i32_1 = arith.constant 0 : i32
    return %arg0, %c0_i32, %c0_i32_0 : i32, i32, i32
  }
}

</mosaic_0001>

<llo_original>
// kernel: tpu_custom_call.1
$region0: #{tpu_custom_call.1}
  #allocation0 [shape = 'u32[]', space=smem, size = 0x4, offset = 0x4, fixed_abs, tag = 'smem constant byte address 0x4 - core index']
  #allocation1 [shape = 'u32[144,128]{1,0:T(1,128)}', space=vmem, size = 0x12000, scoped, tag = 'internal scratch']
  %s0 = inlined_call_operand.vmem [shape: f32[2,32,504], index: 0, kind: input, shape index: {}]
  %s1 = inlined_call_operand.vmem [shape: f32[1,384], index: 1, kind: input, shape index: {}]
  %s2 = inlined_call_operand.vmem [shape: f32[32,9], index: 2, kind: input, shape index: {}]
  %s3 = inlined_call_operand.vmem [shape: f32[32,25], index: 3, kind: input, shape index: {}]
  %s4 = inlined_call_operand.vmem [shape: f32[3,128,32], index: 4, kind: input, shape index: {}]
  %s5 = inlined_call_operand.vmem [shape: f32[3,128,1], index: 5, kind: input, shape index: {}]
  %s6 = inlined_call_operand.vmem [shape: f32[3,32,128], index: 6, kind: input, shape index: {}]
  %s7 = inlined_call_operand.vmem [shape: f32[32,1], index: 7, kind: input, shape index: {}]
  %s8 = inlined_call_operand.vmem [shape: f32[2,32], index: 8, kind: input, shape index: {}]
  %s9 = inlined_call_operand.vmem [shape: f32[2,1], index: 9, kind: input, shape index: {}]
  %s10 = inlined_call_operand.vmem [shape: f32[32,2], index: 10, kind: input, shape index: {}]
  %s11 = inlined_call_operand.vmem [shape: f32[32,1], index: 11, kind: input, shape index: {}]
  %s12 = inlined_call_operand.hbm [shape: f32[2,32,384], index: 12, kind: output, shape index: {}]
  %s13 = sld [smem:[#allocation0]]
  $region81: #{tpu_custom_call.1} parent=0
    _
  %s15 = ssub.s32 1, %s13
  %s16 = scalar_select 0, %s15, %s13
  $region1: #{tpu_custom_call.1} parent=0
    #allocation2 [shape = 'u8[98304]{0}', space=vmem, size = 0x18000, scoped, tag = 'output window, operand 0']
    #allocation3 [shape = 's32[2]{0}', space=sflag, size = 0x8, scoped, tag = 'scoped memory for tpu_custom_call.1']
    %17 = vsyncpa [#allocation3], 0
    %s18 = scalar_lea.sflag [#allocation3], 1
    %19 = vsyncpa %s18, 0
    loop: start=0, step=1, limit=4
    $region2: #{tpu_custom_call.1} parent=1 // loop_pre_header
      _
    $region3: #{tpu_custom_call.1} parent=1 // loop_header
      %s21 = sphi 0, %s25
      %p22 = scmp.ge.s32.totalorder %s21, 4
      %s31 = sphi 0, %s33
      %s34 = sphi 0, %s31
      %s35 = sphi 0, %s34
      %s51 = sphi 0, %s35
      %s55 = sphi 0, %s55
      %s57 = sphi 0, %s55
      %s58 = sphi 0, %s57
      %s72 = sphi 0, %s58
      %s76 = sphi 0, %s76
      %s78 = sphi 0, %s76
      %s79 = sphi 0, %s78
      %s93 = sphi 0, %s79
      %s97 = sphi 0, %s97
      %s99 = sphi 0, %s97
      %s100 = sphi 0, %s99
      %s114 = sphi 0, %s100
      %s118 = sphi 0, %s118
      %s120 = sphi 0, %s118
      %s121 = sphi 0, %s120
      %s135 = sphi 0, %s121
      %s139 = sphi 0, %s139
      %s141 = sphi 0, %s139
      %s142 = sphi 0, %s141
      %s156 = sphi 0, %s142
      %s160 = sphi 0, %s160
      %s162 = sphi 0, %s160
      %s163 = sphi 0, %s162
      %s177 = sphi 0, %s163
      %s181 = sphi 0, %s181
      %s183 = sphi 0, %s181
      %s184 = sphi 0, %s183
      %s198 = sphi 0, %s184
      %s202 = sphi 0, %s202
      %s204 = sphi 0, %s202
      %s205 = sphi 0, %s204
      %s219 = sphi 0, %s205
      %s223 = sphi 0, %s223
      %s225 = sphi 0, %s223
      %s226 = sphi 0, %s225
      %s240 = sphi 0, %s226
      %s244 = sphi 0, %s244
      %s246 = sphi 0, %s244
      %s247 = sphi 0, %s246
      %s261 = sphi 0, %s247
      %s265 = sphi 0, %s265
      %s267 = sphi 0, %s265
      %s268 = sphi 0, %s267
      %s282 = sphi 0, %s268
      %s288 = sphi 0, %s290
      %s291 = sphi 0, %s288
      %s292 = sphi 0, %s291
      %s308 = sphi 0, %s292
    $region4: #{tpu_custom_call.1} parent=1 // loop_header_branch
      %24 = sbr.rel (%p22) target = $region8
    $region5: #{tpu_custom_call.1} parent=1 // loop_body
      %s26 = ssub.s32 %s21, 1
      %s27 = ssub.s32 %s21, 2
      %s28 = sadd.s32 %s21, 1
      %s29 = ssub.s32 %s21, %s28
      %p30 = scmp.eq.s32.totalorder %s29, 0
      %s32 = sadd.s32 %s31, 1
      %s33 = scalar_select %p30, %s31, %s32
      %p36 = pneg %p30
      %p37 = scmp.eq.s32.totalorder %s21, 1
      %p38 = por %p36, %p37
      %p39 = scmp.ne.s32.totalorder %s31, %s34
      %p40 = scmp.eq.s32.totalorder %s21, 0
      %p41 = por %p39, %p40
      %p42 = scmp.ne.s32.totalorder %s31, %s34
      %p43 = scmp.eq.s32.totalorder %s26, 1
      %p44 = por %p42, %p43
      %p45 = scmp.ne.s32.totalorder %s34, %s35
      %p46 = scmp.eq.s32.totalorder %s26, 0
      %p47 = por %p45, %p46
      %p48 = scmp.ne.s32.totalorder %s34, %s35
      %p49 = scmp.eq.s32.totalorder %s27, 1
      %p50 = por %p48, %p49
      %p52 = scmp.ne.s32.totalorder %s35, %s51
      %p53 = scmp.eq.s32.totalorder %s27, 0
      %p54 = por %p52, %p53
      %s56 = sadd.s32 %s55, 1
      %p59 = scmp.eq.s32.totalorder %s21, 1
      %p60 = scmp.ne.s32.totalorder %s55, %s57
      %p61 = scmp.eq.s32.totalorder %s21, 0
      %p62 = por %p60, %p61
      %p63 = scmp.ne.s32.totalorder %s55, %s57
      %p64 = scmp.eq.s32.totalorder %s26, 1
      %p65 = por %p63, %p64
      %p66 = scmp.ne.s32.totalorder %s57, %s58
      %p67 = scmp.eq.s32.totalorder %s26, 0
      %p68 = por %p66, %p67
      %p69 = scmp.ne.s32.totalorder %s57, %s58
      %p70 = scmp.eq.s32.totalorder %s27, 1
      %p71 = por %p69, %p70
      %p73 = scmp.ne.s32.totalorder %s58, %s72
      %p74 = scmp.eq.s32.totalorder %s27, 0
      %p75 = por %p73, %p74
      %s77 = sadd.s32 %s76, 1
      %p80 = scmp.eq.s32.totalorder %s21, 1
      %p81 = scmp.ne.s32.totalorder %s76, %s78
      %p82 = scmp.eq.s32.totalorder %s21, 0
      %p83 = por %p81, %p82
      %p84 = scmp.ne.s32.totalorder %s76, %s78
      %p85 = scmp.eq.s32.totalorder %s26, 1
      %p86 = por %p84, %p85
      %p87 = scmp.ne.s32.totalorder %s78, %s79
      %p88 = scmp.eq.s32.totalorder %s26, 0
      %p89 = por %p87, %p88
      %p90 = scmp.ne.s32.totalorder %s78, %s79
      %p91 = scmp.eq.s32.totalorder %s27, 1
      %p92 = por %p90, %p91
      %p94 = scmp.ne.s32.totalorder %s79, %s93
      %p95 = scmp.eq.s32.totalorder %s27, 0
      %p96 = por %p94, %p95
      %s98 = sadd.s32 %s97, 1
      %p101 = scmp.eq.s32.totalorder %s21, 1
      %p102 = scmp.ne.s32.totalorder %s97, %s99
      %p103 = scmp.eq.s32.totalorder %s21, 0
      %p104 = por %p102, %p103
      %p105 = scmp.ne.s32.totalorder %s97, %s99
      %p106 = scmp.eq.s32.totalorder %s26, 1
      %p107 = por %p105, %p106
      %p108 = scmp.ne.s32.totalorder %s99, %s100
      %p109 = scmp.eq.s32.totalorder %s26, 0
      %p110 = por %p108, %p109
      %p111 = scmp.ne.s32.totalorder %s99, %s100
      %p112 = scmp.eq.s32.totalorder %s27, 1
      %p113 = por %p111, %p112
      %p115 = scmp.ne.s32.totalorder %s100, %s114
      %p116 = scmp.eq.s32.totalorder %s27, 0
      %p117 = por %p115, %p116
      %s119 = sadd.s32 %s118, 1
      %p122 = scmp.eq.s32.totalorder %s21, 1
      %p123 = scmp.ne.s32.totalorder %s118, %s120
      %p124 = scmp.eq.s32.totalorder %s21, 0
      %p125 = por %p123, %p124
      %p126 = scmp.ne.s32.totalorder %s118, %s120
      %p127 = scmp.eq.s32.totalorder %s26, 1
      %p128 = por %p126, %p127
      %p129 = scmp.ne.s32.totalorder %s120, %s121
      %p130 = scmp.eq.s32.totalorder %s26, 0
      %p131 = por %p129, %p130
      %p132 = scmp.ne.s32.totalorder %s120, %s121
      %p133 = scmp.eq.s32.totalorder %s27, 1
      %p134 = por %p132, %p133
      %p136 = scmp.ne.s32.totalorder %s121, %s135
      %p137 = scmp.eq.s32.totalorder %s27, 0
      %p138 = por %p136, %p137
      %s140 = sadd.s32 %s139, 1
      %p143 = scmp.eq.s32.totalorder %s21, 1
      %p144 = scmp.ne.s32.totalorder %s139, %s141
      %p145 = scmp.eq.s32.totalorder %s21, 0
      %p146 = por %p144, %p145
      %p147 = scmp.ne.s32.totalorder %s139, %s141
      %p148 = scmp.eq.s32.totalorder %s26, 1
      %p149 = por %p147, %p148
      %p150 = scmp.ne.s32.totalorder %s141, %s142
      %p151 = scmp.eq.s32.totalorder %s26, 0
      %p152 = por %p150, %p151
      %p153 = scmp.ne.s32.totalorder %s141, %s142
      %p154 = scmp.eq.s32.totalorder %s27, 1
      %p155 = por %p153, %p154
      %p157 = scmp.ne.s32.totalorder %s142, %s156
      %p158 = scmp.eq.s32.totalorder %s27, 0
      %p159 = por %p157, %p158
      %s161 = sadd.s32 %s160, 1
      %p164 = scmp.eq.s32.totalorder %s21, 1
      %p165 = scmp.ne.s32.totalorder %s160, %s162
      %p166 = scmp.eq.s32.totalorder %s21, 0
      %p167 = por %p165, %p166
      %p168 = scmp.ne.s32.totalorder %s160, %s162
      %p169 = scmp.eq.s32.totalorder %s26, 1
      %p170 = por %p168, %p169
      %p171 = scmp.ne.s32.totalorder %s162, %s163
      %p172 = scmp.eq.s32.totalorder %s26, 0
      %p173 = por %p171, %p172
      %p174 = scmp.ne.s32.totalorder %s162, %s163
      %p175 = scmp.eq.s32.totalorder %s27, 1
      %p176 = por %p174, %p175
      %p178 = scmp.ne.s32.totalorder %s163, %s177
      %p179 = scmp.eq.s32.totalorder %s27, 0
      %p180 = por %p178, %p179
      %s182 = sadd.s32 %s181, 1
      %p185 = scmp.eq.s32.totalorder %s21, 1
      %p186 = scmp.ne.s32.totalorder %s181, %s183
      %p187 = scmp.eq.s32.totalorder %s21, 0
      %p188 = por %p186, %p187
      %p189 = scmp.ne.s32.totalorder %s181, %s183
      %p190 = scmp.eq.s32.totalorder %s26, 1
      %p191 = por %p189, %p190
      %p192 = scmp.ne.s32.totalorder %s183, %s184
      %p193 = scmp.eq.s32.totalorder %s26, 0
      %p194 = por %p192, %p193
      %p195 = scmp.ne.s32.totalorder %s183, %s184
      %p196 = scmp.eq.s32.totalorder %s27, 1
      %p197 = por %p195, %p196
      %p199 = scmp.ne.s32.totalorder %s184, %s198
      %p200 = scmp.eq.s32.totalorder %s27, 0
      %p201 = por %p199, %p200
      %s203 = sadd.s32 %s202, 1
      %p206 = scmp.eq.s32.totalorder %s21, 1
      %p207 = scmp.ne.s32.totalorder %s202, %s204
      %p208 = scmp.eq.s32.totalorder %s21, 0
      %p209 = por %p207, %p208
      %p210 = scmp.ne.s32.totalorder %s202, %s204
      %p211 = scmp.eq.s32.totalorder %s26, 1
      %p212 = por %p210, %p211
      %p213 = scmp.ne.s32.totalorder %s204, %s205
      %p214 = scmp.eq.s32.totalorder %s26, 0
      %p215 = por %p213, %p214
      %p216 = scmp.ne.s32.totalorder %s204, %s205
      %p217 = scmp.eq.s32.totalorder %s27, 1
      %p218 = por %p216, %p217
      %p220 = scmp.ne.s32.totalorder %s205, %s219
      %p221 = scmp.eq.s32.totalorder %s27, 0
      %p222 = por %p220, %p221
      %s224 = sadd.s32 %s223, 1
      %p227 = scmp.eq.s32.totalorder %s21, 1
      %p228 = scmp.ne.s32.totalorder %s223, %s225
      %p229 = scmp.eq.s32.totalorder %s21, 0
      %p230 = por %p228, %p229
      %p231 = scmp.ne.s32.totalorder %s223, %s225
      %p232 = scmp.eq.s32.totalorder %s26, 1
      %p233 = por %p231, %p232
      %p234 = scmp.ne.s32.totalorder %s225, %s226
      %p235 = scmp.eq.s32.totalorder %s26, 0
      %p236 = por %p234, %p235
      %p237 = scmp.ne.s32.totalorder %s225, %s226
      %p238 = scmp.eq.s32.totalorder %s27, 1
      %p239 = por %p237, %p238
      %p241 = scmp.ne.s32.totalorder %s226, %s240
      %p242 = scmp.eq.s32.totalorder %s27, 0
      %p243 = por %p241, %p242
      %s245 = sadd.s32 %s244, 1
      %p248 = scmp.eq.s32.totalorder %s21, 1
      %p249 = scmp.ne.s32.totalorder %s244, %s246
      %p250 = scmp.eq.s32.totalorder %s21, 0
      %p251 = por %p249, %p250
      %p252 = scmp.ne.s32.totalorder %s244, %s246
      %p253 = scmp.eq.s32.totalorder %s26, 1
      %p254 = por %p252, %p253
      %p255 = scmp.ne.s32.totalorder %s246, %s247
      %p256 = scmp.eq.s32.totalorder %s26, 0
      %p257 = por %p255, %p256
      %p258 = scmp.ne.s32.totalorder %s246, %s247
      %p259 = scmp.eq.s32.totalorder %s27, 1
      %p260 = por %p258, %p259
      %p262 = scmp.ne.s32.totalorder %s247, %s261
      %p263 = scmp.eq.s32.totalorder %s27, 0
      %p264 = por %p262, %p263
      %s266 = sadd.s32 %s265, 1
      %p269 = scmp.eq.s32.totalorder %s21, 1
      %p270 = scmp.ne.s32.totalorder %s265, %s267
      %p271 = scmp.eq.s32.totalorder %s21, 0
      %p272 = por %p270, %p271
      %p273 = scmp.ne.s32.totalorder %s265, %s267
      %p274 = scmp.eq.s32.totalorder %s26, 1
      %p275 = por %p273, %p274
      %p276 = scmp.ne.s32.totalorder %s267, %s268
      %p277 = scmp.eq.s32.totalorder %s26, 0
      %p278 = por %p276, %p277
      %p279 = scmp.ne.s32.totalorder %s267, %s268
      %p280 = scmp.eq.s32.totalorder %s27, 1
      %p281 = por %p279, %p280
      %p283 = scmp.ne.s32.totalorder %s268, %s282
      %p284 = scmp.eq.s32.totalorder %s27, 0
      %p285 = por %p283, %p284
      %s286 = ssub.s32 %s21, %s28
      %p287 = scmp.eq.s32.totalorder %s286, 0
      %s289 = sadd.s32 %s288, 1
      %s290 = scalar_select %p287, %s288, %s289
      %p293 = pneg %p287
      %p294 = scmp.eq.s32.totalorder %s21, 1
      %p295 = por %p293, %p294
      %p296 = scmp.ne.s32.totalorder %s288, %s291
      %p297 = scmp.eq.s32.totalorder %s21, 0
      %p298 = por %p296, %p297
      %p299 = scmp.ne.s32.totalorder %s288, %s291
      %p300 = scmp.eq.s32.totalorder %s26, 1
      %p301 = por %p299, %p300
      %p302 = scmp.ne.s32.totalorder %s291, %s292
      %p303 = scmp.eq.s32.totalorder %s26, 0
      %p304 = por %p302, %p303
      %p305 = scmp.ne.s32.totalorder %s291, %s292
      %p306 = scmp.eq.s32.totalorder %s27, 1
      %p307 = por %p305, %p306
      %p309 = scmp.ne.s32.totalorder %s292, %s308
      %p310 = scmp.eq.s32.totalorder %s27, 0
      %p311 = por %p309, %p310
      %p312 = scmp.le.s32.totalorder 1, %s21
      %p313 = scmp.lt.s32.totalorder %s21, 3
      %p314 = pnand %p312, %p313
      %p315 = pneg %p314
      // Predicated region
      $region9: #{tpu_custom_call.1} parent=5 // pred_check
        _
      $region10: #{tpu_custom_call.1} parent=5 // pred_check_branch
        %317 = sbr.rel (%p314) target = $region12
      $region11: #{tpu_custom_call.1} parent=5 // pred_region
        %s318 = ssub.s32 %s21, 1
        // Predicated region
        $region13: #{tpu_custom_call.1} parent=11 // pred_check
          %p319 = pneg %p68
        $region14: #{tpu_custom_call.1} parent=11 // pred_check_branch
          %321 = sbr.rel (%p319) target = $region16
        $region15: #{tpu_custom_call.1} parent=11 // pred_region
          _
        $region16: #{tpu_custom_call.1} parent=11 // pred_fallthru
          _
        // Predicated region
        $region17: #{tpu_custom_call.1} parent=11 // pred_check
          %p322 = pneg %p89
        $region18: #{tpu_custom_call.1} parent=11 // pred_check_branch
          %324 = sbr.rel (%p322) target = $region20
        $region19: #{tpu_custom_call.1} parent=11 // pred_region
          _
        $region20: #{tpu_custom_call.1} parent=11 // pred_fallthru
          _
        // Predicated region
        $region21: #{tpu_custom_call.1} parent=11 // pred_check
          %p325 = pneg %p110
        $region22: #{tpu_custom_call.1} parent=11 // pred_check_branch
          %327 = sbr.rel (%p325) target = $region24
        $region23: #{tpu_custom_call.1} parent=11 // pred_region
          _
        $region24: #{tpu_custom_call.1} parent=11 // pred_fallthru
          _
        // Predicated region
        $region25: #{tpu_custom_call.1} parent=11 // pred_check
          %p328 = pneg %p131
        $region26: #{tpu_custom_call.1} parent=11 // pred_check_branch
          %330 = sbr.rel (%p328) target = $region28
        $region27: #{tpu_custom_call.1} parent=11 // pred_region
          _
        $region28: #{tpu_custom_call.1} parent=11 // pred_fallthru
          _
        // Predicated region
        $region29: #{tpu_custom_call.1} parent=11 // pred_check
          %p331 = pneg %p152
        $region30: #{tpu_custom_call.1} parent=11 // pred_check_branch
          %333 = sbr.rel (%p331) target = $region32
        $region31: #{tpu_custom_call.1} parent=11 // pred_region
          _
        $region32: #{tpu_custom_call.1} parent=11 // pred_fallthru
          _
        // Predicated region
        $region33: #{tpu_custom_call.1} parent=11 // pred_check
          %p334 = pneg %p173
        $region34: #{tpu_custom_call.1} parent=11 // pred_check_branch
          %336 = sbr.rel (%p334) target = $region36
        $region35: #{tpu_custom_call.1} parent=11 // pred_region
          _
        $region36: #{tpu_custom_call.1} parent=11 // pred_fallthru
          _
        // Predicated region
        $region37: #{tpu_custom_call.1} parent=11 // pred_check
          %p337 = pneg %p194
        $region38: #{tpu_custom_call.1} parent=11 // pred_check_branch
          %339 = sbr.rel (%p337) target = $region40
        $region39: #{tpu_custom_call.1} parent=11 // pred_region
          _
        $region40: #{tpu_custom_call.1} parent=11 // pred_fallthru
          _
        // Predicated region
        $region41: #{tpu_custom_call.1} parent=11 // pred_check
          %p340 = pneg %p215
        $region42: #{tpu_custom_call.1} parent=11 // pred_check_branch
          %342 = sbr.rel (%p340) target = $region44
        $region43: #{tpu_custom_call.1} parent=11 // pred_region
          _
        $region44: #{tpu_custom_call.1} parent=11 // pred_fallthru
          _
        // Predicated region
        $region45: #{tpu_custom_call.1} parent=11 // pred_check
          %p343 = pneg %p236
        $region46: #{tpu_custom_call.1} parent=11 // pred_check_branch
          %345 = sbr.rel (%p343) target = $region48
        $region47: #{tpu_custom_call.1} parent=11 // pred_region
          _
        $region48: #{tpu_custom_call.1} parent=11 // pred_fallthru
          _
        // Predicated region
        $region49: #{tpu_custom_call.1} parent=11 // pred_check
          %p346 = pneg %p257
        $region50: #{tpu_custom_call.1} parent=11 // pred_check_branch
          %348 = sbr.rel (%p346) target = $region52
        $region51: #{tpu_custom_call.1} parent=11 // pred_region
          _
        $region52: #{tpu_custom_call.1} parent=11 // pred_fallthru
          _
        // Predicated region
        $region53: #{tpu_custom_call.1} parent=11 // pred_check
          %p349 = pneg %p278
        $region54: #{tpu_custom_call.1} parent=11 // pred_check_branch
          %351 = sbr.rel (%p349) target = $region56
        $region55: #{tpu_custom_call.1} parent=11 // pred_region
          _
        $region56: #{tpu_custom_call.1} parent=11 // pred_fallthru
          _
      $region12: #{tpu_custom_call.1} parent=5 // pred_fallthru
        _
      %p352 = scmp.lt.s32.totalorder %s21, 2
      // Predicated region
      $region57: #{tpu_custom_call.1} parent=5 // pred_check
        %p353 = pneg %p352
      $region58: #{tpu_custom_call.1} parent=5 // pred_check_branch
        %355 = sbr.rel (%p353) target = $region60
      $region59: #{tpu_custom_call.1} parent=5 // pred_region
        // Predicated region
        $region61: #{tpu_custom_call.1} parent=59 // pred_check
          %p356 = pneg %p41
        $region62: #{tpu_custom_call.1} parent=59 // pred_check_branch
          %358 = sbr.rel (%p356) target = $region64
        $region63: #{tpu_custom_call.1} parent=59 // pred_region
          %p359 = scmp.lt.s32.totalorder %s21, 1
          %s360 = scalar_select %p359, %s21, 1
          %s361 = smul.addr %s360, 16
          %s362 = smul.addr %s361, 8
          %s363 = scalar_lea.vmem %s0, %s362
        $region64: #{tpu_custom_call.1} parent=59 // pred_fallthru
          _
      $region60: #{tpu_custom_call.1} parent=5 // pred_fallthru
        _
      %p364 = scmp.le.s32.totalorder 1, %s21
      %p365 = scmp.lt.s32.totalorder %s21, 3
      %p366 = pnand %p364, %p365
      %p367 = pneg %p366
      // Predicated region
      $region65: #{tpu_custom_call.1} parent=5 // pred_check
        _
      $region66: #{tpu_custom_call.1} parent=5 // pred_check_branch
        %369 = sbr.rel (%p366) target = $region68
      $region67: #{tpu_custom_call.1} parent=5 // pred_region
        %s370 = ssub.s32 %s21, 1
        %p371 = scmp.lt.s32.totalorder %s26, 1
        %s372 = scalar_select %p371, %s26, 1
        %s373 = smul.addr %s372, 16
        %s374 = smul.addr %s373, 8
        %s375 = scalar_lea.vmem %s0, %s374
        %p376 = pneg %p47
        %p377 = pneg %p44
        %p378 = pneg %p68
        %p379 = pneg %p65
        %p380 = pneg %p89
        %p381 = pneg %p86
        %p382 = pneg %p110
        %p383 = pneg %p107
        %p384 = pneg %p131
        %p385 = pneg %p128
        %p386 = pneg %p152
        %p387 = pneg %p149
        %p388 = pneg %p173
        %p389 = pneg %p170
        %p390 = pneg %p194
        %p391 = pneg %p191
        %p392 = pneg %p215
        %p393 = pneg %p212
        %p394 = pneg %p236
        %p395 = pneg %p233
        %p396 = pneg %p257
        %p397 = pneg %p254
        %p398 = pneg %p278
        %p399 = pneg %p275
        %p400 = pneg %p304
        %p401 = pneg %p301
        %s402 = sand.u32 %s291, 1
        %s403 = scalar_lea.sflag [#allocation3], %s402
        %s404 = sand.u32 %s291, 1
        %s405 = smul.addr %s404, 96
        %s406 = scalar_lea.vmem [#allocation2], %s405
        %p407 = scmp.lt.s32.totalorder %s26, 1
        %s408 = scalar_select %p407, %s26, 1
        %s409 = smul.addr %s408, 16
        %s410 = smul.addr %s409, 8
        %s411 = scalar_lea.vmem %s0, %s410
        %v412 = vld [vmem:[%s411] sm:$0xff]
        %v413 = vld [vmem:[%s411 + $0x8] sm:$0xff]
        %v414 = vld [vmem:[%s411 + $0x10] sm:$0xff]
        %v415 = vld [vmem:[%s411 + $0x18] sm:$0xff]
        %v416 = vld [vmem:[%s411 + $0x20] sm:$0xff]
        %v417 = vld [vmem:[%s411 + $0x28] sm:$0xff]
        %v418 = vld [vmem:[%s411 + $0x30] sm:$0xff]
        %v419 = vld [vmem:[%s411 + $0x38] sm:$0xff]
        %v420 = vld [vmem:[%s411 + $0x40] sm:$0xff]
        %v421 = vld [vmem:[%s411 + $0x48] sm:$0xff]
        %v422 = vld [vmem:[%s411 + $0x50] sm:$0xff]
        %v423 = vld [vmem:[%s411 + $0x58] sm:$0xff]
        %v424 = vld [vmem:[%s411 + $0x60] sm:$0xff]
        %v425 = vld [vmem:[%s411 + $0x68] sm:$0xff]
        %v426 = vld [vmem:[%s411 + $0x70] sm:$0xff]
        %v427 = vld [vmem:[%s411 + $0x78] sm:$0xff]
        %v428 = vld [vmem:[%s2] sm:$0xff]
        %v429 = vld [vmem:[%s2 + $0x8] sm:$0xff]
        %v430 = vld [vmem:[%s2 + $0x10] sm:$0xff]
        %v431 = vld [vmem:[%s2 + $0x18] sm:$0xff]
        %v432 = vld [vmem:[%s3] sm:$0xff]
        %v433 = vld [vmem:[%s3 + $0x8] sm:$0xff]
        %v434 = vld [vmem:[%s3 + $0x10] sm:$0xff]
        %v435 = vld [vmem:[%s3 + $0x18] sm:$0xff]
        %v436 = vld [vmem:[%s4] sm:$0xff]
        %v437 = vld [vmem:[%s4 + $0x8] sm:$0xff]
        %v438 = vld [vmem:[%s4 + $0x10] sm:$0xff]
        %v439 = vld [vmem:[%s4 + $0x18] sm:$0xff]
        %v440 = vld [vmem:[%s4 + $0x20] sm:$0xff]
        %v441 = vld [vmem:[%s4 + $0x28] sm:$0xff]
        %v442 = vld [vmem:[%s4 + $0x30] sm:$0xff]
        %v443 = vld [vmem:[%s4 + $0x38] sm:$0xff]
        %v444 = vld [vmem:[%s4 + $0x40] sm:$0xff]
        %v445 = vld [vmem:[%s4 + $0x48] sm:$0xff]
        %v446 = vld [vmem:[%s4 + $0x50] sm:$0xff]
        %v447 = vld [vmem:[%s4 + $0x58] sm:$0xff]
        %v448 = vld [vmem:[%s4 + $0x60] sm:$0xff]
        %v449 = vld [vmem:[%s4 + $0x68] sm:$0xff]
        %v450 = vld [vmem:[%s4 + $0x70] sm:$0xff]
        %v451 = vld [vmem:[%s4 + $0x78] sm:$0xff]
        %v452 = vld [vmem:[%s5] sm:$0xff]
        %v453 = vld [vmem:[%s5 + $0x8] sm:$0xff]
        %v454 = vld [vmem:[%s5 + $0x10] sm:$0xff]
        %v455 = vld [vmem:[%s5 + $0x18] sm:$0xff]
        %v456 = vld [vmem:[%s5 + $0x20] sm:$0xff]
        %v457 = vld [vmem:[%s5 + $0x28] sm:$0xff]
        %v458 = vld [vmem:[%s5 + $0x30] sm:$0xff]
        %v459 = vld [vmem:[%s5 + $0x38] sm:$0xff]
        %v460 = vld [vmem:[%s5 + $0x40] sm:$0xff]
        %v461 = vld [vmem:[%s5 + $0x48] sm:$0xff]
        %v462 = vld [vmem:[%s5 + $0x50] sm:$0xff]
        %v463 = vld [vmem:[%s5 + $0x58] sm:$0xff]
        %v464 = vld [vmem:[%s5 + $0x60] sm:$0xff]
        %v465 = vld [vmem:[%s5 + $0x68] sm:$0xff]
        %v466 = vld [vmem:[%s5 + $0x70] sm:$0xff]
        %v467 = vld [vmem:[%s5 + $0x78] sm:$0xff]
        %469 = vset.pattern.permute.xlu0 0
        %470 = vperm.xlu0 %469, %v452
        %v471 = vpop.permute.xlu0 %470
        %474 = vset.pattern.permute.xlu0 0
        %475 = vperm.xlu0 %474, %v453
        %v476 = vpop.permute.xlu0 %475
        %479 = vset.pattern.permute.xlu0 0
        %480 = vperm.xlu0 %479, %v454
        %v481 = vpop.permute.xlu0 %480
        %484 = vset.pattern.permute.xlu0 0
        %485 = vperm.xlu0 %484, %v455
        %v486 = vpop.permute.xlu0 %485
        %489 = vset.pattern.permute.xlu0 0
        %490 = vperm.xlu0 %489, %v456
        %v491 = vpop.permute.xlu0 %490
        %494 = vset.pattern.permute.xlu0 0
        %495 = vperm.xlu0 %494, %v457
        %v496 = vpop.permute.xlu0 %495
        %499 = vset.pattern.permute.xlu0 0
        %500 = vperm.xlu0 %499, %v458
        %v501 = vpop.permute.xlu0 %500
        %504 = vset.pattern.permute.xlu0 0
        %505 = vperm.xlu0 %504, %v459
        %v506 = vpop.permute.xlu0 %505
        %509 = vset.pattern.permute.xlu0 0
        %510 = vperm.xlu0 %509, %v460
        %v511 = vpop.permute.xlu0 %510
        %514 = vset.pattern.permute.xlu0 0
        %515 = vperm.xlu0 %514, %v461
        %v516 = vpop.permute.xlu0 %515
        %519 = vset.pattern.permute.xlu0 0
        %520 = vperm.xlu0 %519, %v462
        %v521 = vpop.permute.xlu0 %520
        %524 = vset.pattern.permute.xlu0 0
        %525 = vperm.xlu0 %524, %v463
        %v526 = vpop.permute.xlu0 %525
        %529 = vset.pattern.permute.xlu0 0
        %530 = vperm.xlu0 %529, %v464
        %v531 = vpop.permute.xlu0 %530
        %534 = vset.pattern.permute.xlu0 0
        %535 = vperm.xlu0 %534, %v465
        %v536 = vpop.permute.xlu0 %535
        %539 = vset.pattern.permute.xlu0 0
        %540 = vperm.xlu0 %539, %v466
        %v541 = vpop.permute.xlu0 %540
        %544 = vset.pattern.permute.xlu0 0
        %545 = vperm.xlu0 %544, %v467
        %v546 = vpop.permute.xlu0 %545
        %564 = vrot.lane.b32.xlu0 %v412, 78
        %v565 = vpop.permute.xlu0 %564
        %566 = vrot.lane.b32.xlu0 %v413, 78
        %v567 = vpop.permute.xlu0 %566
        %568 = vrot.lane.b32.xlu0 %v414, 78
        %v569 = vpop.permute.xlu0 %568
        %570 = vrot.lane.b32.xlu0 %v415, 78
        %v571 = vpop.permute.xlu0 %570
        %572 = vrot.lane.b32.xlu0 %v416, 78
        %v573 = vpop.permute.xlu0 %572
        %574 = vrot.lane.b32.xlu0 %v417, 78
        %v575 = vpop.permute.xlu0 %574
        %576 = vrot.lane.b32.xlu0 %v418, 78
        %v577 = vpop.permute.xlu0 %576
        %578 = vrot.lane.b32.xlu0 %v419, 78
        %v579 = vpop.permute.xlu0 %578
        %580 = vrot.lane.b32.xlu0 %v420, 78
        %v581 = vpop.permute.xlu0 %580
        %582 = vrot.lane.b32.xlu0 %v421, 78
        %v583 = vpop.permute.xlu0 %582
        %584 = vrot.lane.b32.xlu0 %v422, 78
        %v585 = vpop.permute.xlu0 %584
        %586 = vrot.lane.b32.xlu0 %v423, 78
        %v587 = vpop.permute.xlu0 %586
        %588 = vrot.lane.b32.xlu0 %v424, 78
        %v589 = vpop.permute.xlu0 %588
        %590 = vrot.lane.b32.xlu0 %v425, 78
        %v591 = vpop.permute.xlu0 %590
        %592 = vrot.lane.b32.xlu0 %v426, 78
        %v593 = vpop.permute.xlu0 %592
        %594 = vrot.lane.b32.xlu0 %v427, 78
        %v595 = vpop.permute.xlu0 %594
        %vm596 = vcmask 637952
        %v597 = vsel %vm596, %v565, %v567
        %v598 = vsel %vm596, %v567, %v569
        %v599 = vsel %vm596, %v569, %v571
        %v600 = vsel %vm596, %v573, %v575
        %v601 = vsel %vm596, %v575, %v577
        %v602 = vsel %vm596, %v577, %v579
        %v603 = vsel %vm596, %v581, %v583
        %v604 = vsel %vm596, %v583, %v585
        %v605 = vsel %vm596, %v585, %v587
        %v606 = vsel %vm596, %v589, %v591
        %v607 = vsel %vm596, %v591, %v593
        %v608 = vsel %vm596, %v593, %v595
        %vm621 = vcmask 261120
        %v623 = vsel %vm621, %v436, 0
        %v626 = vsel %vm621, %v437, 0
        %v629 = vsel %vm621, %v438, 0
        %v632 = vsel %vm621, %v439, 0
        %v635 = vsel %vm621, %v440, 0
        %v638 = vsel %vm621, %v441, 0
        %v641 = vsel %vm621, %v442, 0
        %v644 = vsel %vm621, %v443, 0
        %v647 = vsel %vm621, %v444, 0
        %v650 = vsel %vm621, %v445, 0
        %v653 = vsel %vm621, %v446, 0
        %v656 = vsel %vm621, %v447, 0
        %v659 = vsel %vm621, %v448, 0
        %v662 = vsel %vm621, %v449, 0
        %v665 = vsel %vm621, %v450, 0
        %v668 = vsel %vm621, %v451, 0
        %670 = vmatprep.subr.mxu0 %v598
        %671 = vmatpush1.msra.mxu0 %v597
        %672 = vmatprep.subr.mxu0 %v601
        %673 = vmatpush1.msra.mxu0 %v600
        %674 = vmatprep.subr.mxu0 %v604
        %675 = vmatpush1.msra.mxu0 %v603
        %676 = vmatprep.subr.mxu0 %v607
        %677 = vmatpush1.msra.mxu0 %v606
        %678 = vmatprep.subr.mxu0 0.0
        %679 = vmatpush1.msra.mxu0 0.0
        %680 = vmatprep.subr.mxu0 0.0
        %681 = vmatpush1.msra.mxu0 0.0
        %682 = vmatprep.subr.mxu0 0.0
        %683 = vmatpush1.msra.mxu0 0.0
        %684 = vmatprep.subr.mxu0 0.0
        %685 = vmatpush1.msra.mxu0 0.0
        %686 = vmatprep.subr.mxu0 0.0
        %687 = vmatpush1.msra.mxu0 0.0
        %688 = vmatprep.subr.mxu0 0.0
        %689 = vmatpush1.msra.mxu0 0.0
        %690 = vmatprep.subr.mxu0 0.0
        %691 = vmatpush1.msra.mxu0 0.0
        %692 = vmatprep.subr.mxu0 0.0
        %693 = vmatpush1.msra.mxu0 0.0
        %694 = vmatprep.subr.mxu0 0.0
        %695 = vmatpush1.msra.mxu0 0.0
        %696 = vmatprep.subr.mxu0 0.0
        %697 = vmatpush1.msra.mxu0 0.0
        %698 = vmatprep.subr.mxu0 0.0
        %699 = vmatpush1.msra.mxu0 0.0
        %700 = vmatprep.subr.mxu0 0.0
        %701 = vmatpush1.msra.mxu0 0.0
        %702 = vmatprep.subr.mxu0 0.0
        %703 = vmatpush1.msra.mxu0 0.0
        %704 = vmatprep.subr.mxu0 0.0
        %705 = vmatpush1.msra.mxu0 0.0
        %706 = vmatprep.subr.mxu0 0.0
        %707 = vmatpush1.msra.mxu0 0.0
        %708 = vmatprep.subr.mxu0 0.0
        %709 = vmatpush1.msra.mxu0 0.0
        %710 = vmatprep.subr.mxu0 0.0
        %711 = vmatpush1.msra.mxu0 0.0
        %712 = vmatprep.subr.mxu0 0.0
        %713 = vmatpush1.msra.mxu0 0.0
        %714 = vmatprep.subr.mxu0 0.0
        %715 = vmatpush1.msra.mxu0 0.0
        %716 = vmatprep.subr.mxu0 0.0
        %717 = vmatpush1.msra.mxu0 0.0
        %718 = vmatprep.subr.mxu0 0.0
        %719 = vmatpush1.msra.mxu0 0.0
        %720 = vmatprep.subr.mxu0 0.0
        %721 = vmatpush1.msra.mxu0 0.0
        %722 = vmatprep.subr.mxu0 0.0
        %723 = vmatpush1.msra.mxu0 0.0
        %724 = vmatprep.subr.mxu0 0.0
        %725 = vmatpush1.msra.mxu0 0.0
        %726 = vmatprep.subr.mxu0 0.0
        %727 = vmatpush1.msra.mxu0 0.0
        %728 = vmatprep.subr.mxu0 0.0
        %729 = vmatpush1.msra.mxu0 0.0
        %730 = vmatprep.subr.mxu0 0.0
        %731 = vmatpush1.msra.mxu0 0.0
        %732 = vmatprep.subr.mxu0 0.0
        %733 = vmatpush1.msra.mxu0 0.0
        %734 = vmatprep.mubr.f32.mxu0 0.0
        %735 = vmatmul.mubr.f32.gmra.mrb[0].mxu0 %v623
        %v736 = vpop.f32.mrb[0].mxu0
        %v737 = vadd.f32 %v471, %v736
        %v738 = vpop.f32.mrb[0].mxu0
        %v739 = vadd.f32 %v471, %v738
        %740 = vmatprep.mubr.f32.mxu0 0.0
        %741 = vmatmul.mubr.f32.gmra.mrb[0].mxu0 %v626
        %v742 = vpop.f32.mrb[0].mxu0
        %v743 = vadd.f32 %v476, %v742
        %v744 = vpop.f32.mrb[0].mxu0
        %v745 = vadd.f32 %v476, %v744
        %746 = vmatprep.mubr.f32.mxu0 0.0
        %747 = vmatmul.mubr.f32.gmra.mrb[0].mxu0 %v629
        %v748 = vpop.f32.mrb[0].mxu0
        %v749 = vadd.f32 %v481, %v748
        %v750 = vpop.f32.mrb[0].mxu0
        %v751 = vadd.f32 %v481, %v750
        %752 = vmatprep.mubr.f32.mxu0 0.0
        %753 = vmatmul.mubr.f32.gmra.mrb[0].mxu0 %v632
        %v754 = vpop.f32.mrb[0].mxu0
        %v755 = vadd.f32 %v486, %v754
        %v756 = vpop.f32.mrb[0].mxu0
        %v757 = vadd.f32 %v486, %v756
        %758 = vmatprep.mubr.f32.mxu0 0.0
        %759 = vmatmul.mubr.f32.gmra.mrb[0].mxu0 %v635
        %v760 = vpop.f32.mrb[0].mxu0
        %v761 = vadd.f32 %v491, %v760
        %v762 = vpop.f32.mrb[0].mxu0
        %v763 = vadd.f32 %v491, %v762
        %764 = vmatprep.mubr.f32.mxu0 0.0
        %765 = vmatmul.mubr.f32.gmra.mrb[0].mxu0 %v638
        %v766 = vpop.f32.mrb[0].mxu0
        %v767 = vadd.f32 %v496, %v766
        %v768 = vpop.f32.mrb[0].mxu0
        %v769 = vadd.f32 %v496, %v768
        %770 = vmatprep.mubr.f32.mxu0 0.0
        %771 = vmatmul.mubr.f32.gmra.mrb[0].mxu0 %v641
        %v772 = vpop.f32.mrb[0].mxu0
        %v773 = vadd.f32 %v501, %v772
        %v774 = vpop.f32.mrb[0].mxu0
        %v775 = vadd.f32 %v501, %v774
        %776 = vmatprep.mubr.f32.mxu0 0.0
        %777 = vmatmul.mubr.f32.gmra.mrb[0].mxu0 %v644
        %v778 = vpop.f32.mrb[0].mxu0
        %v779 = vadd.f32 %v506, %v778
        %v780 = vpop.f32.mrb[0].mxu0
        %v781 = vadd.f32 %v506, %v780
        %782 = vmatprep.mubr.f32.mxu0 0.0
        %783 = vmatmul.mubr.f32.gmra.mrb[0].mxu0 %v647
        %v784 = vpop.f32.mrb[0].mxu0
        %v785 = vadd.f32 %v511, %v784
        %v786 = vpop.f32.mrb[0].mxu0
        %v787 = vadd.f32 %v511, %v786
        %788 = vmatprep.mubr.f32.mxu0 0.0
        %789 = vmatmul.mubr.f32.gmra.mrb[0].mxu0 %v650
        %v790 = vpop.f32.mrb[0].mxu0
        %v791 = vadd.f32 %v516, %v790
        %v792 = vpop.f32.mrb[0].mxu0
        %v793 = vadd.f32 %v516, %v792
        %794 = vmatprep.mubr.f32.mxu0 0.0
        %795 = vmatmul.mubr.f32.gmra.mrb[0].mxu0 %v653
        %v796 = vpop.f32.mrb[0].mxu0
        %v797 = vadd.f32 %v521, %v796
        %v798 = vpop.f32.mrb[0].mxu0
        %v799 = vadd.f32 %v521, %v798
        %800 = vmatprep.mubr.f32.mxu0 0.0
        %801 = vmatmul.mubr.f32.gmra.mrb[0].mxu0 %v656
        %v802 = vpop.f32.mrb[0].mxu0
        %v803 = vadd.f32 %v526, %v802
        %v804 = vpop.f32.mrb[0].mxu0
        %v805 = vadd.f32 %v526, %v804
        %806 = vmatprep.mubr.f32.mxu0 0.0
        %807 = vmatmul.mubr.f32.gmra.mrb[0].mxu0 %v659
        %v808 = vpop.f32.mrb[0].mxu0
        %v809 = vadd.f32 %v531, %v808
        %v810 = vpop.f32.mrb[0].mxu0
        %v811 = vadd.f32 %v531, %v810
        %812 = vmatprep.mubr.f32.mxu0 0.0
        %813 = vmatmul.mubr.f32.gmra.mrb[0].mxu0 %v662
        %v814 = vpop.f32.mrb[0].mxu0
        %v815 = vadd.f32 %v536, %v814
        %v816 = vpop.f32.mrb[0].mxu0
        %v817 = vadd.f32 %v536, %v816
        %818 = vmatprep.mubr.f32.mxu0 0.0
        %819 = vmatmul.mubr.f32.gmra.mrb[0].mxu0 %v665
        %v820 = vpop.f32.mrb[0].mxu0
        %v821 = vadd.f32 %v541, %v820
        %v822 = vpop.f32.mrb[0].mxu0
        %v823 = vadd.f32 %v541, %v822
        %824 = vmatprep.mubr.f32.mxu0 0.0
        %825 = vmatmul.mubr.f32.gmra.mrb[0].mxu0 %v668
        %v826 = vpop.f32.mrb[0].mxu0
        %v827 = vadd.f32 %v546, %v826
        %v828 = vpop.f32.mrb[0].mxu0
        %v829 = vadd.f32 %v546, %v828
        %830 = vdwg.mxu0
        %831 = vmatprep.subr.mxu0 0.0
        %832 = vmatpush1.msra.mxu0 %v599
        %833 = vmatprep.subr.mxu0 0.0
        %834 = vmatpush1.msra.mxu0 %v602
        %835 = vmatprep.subr.mxu0 0.0
        %836 = vmatpush1.msra.mxu0 %v605
        %837 = vmatprep.subr.mxu0 0.0
        %838 = vmatpush1.msra.mxu0 %v608
        %839 = vmatprep.subr.mxu0 0.0
        %840 = vmatpush1.msra.mxu0 0.0
        %841 = vmatprep.subr.mxu0 0.0
        %842 = vmatpush1.msra.mxu0 0.0
        %843 = vmatprep.subr.mxu0 0.0
        %844 = vmatpush1.msra.mxu0 0.0
        %845 = vmatprep.subr.mxu0 0.0
        %846 = vmatpush1.msra.mxu0 0.0
        %847 = vmatprep.subr.mxu0 0.0
        %848 = vmatpush1.msra.mxu0 0.0
        %849 = vmatprep.subr.mxu0 0.0
        %850 = vmatpush1.msra.mxu0 0.0
        %851 = vmatprep.subr.mxu0 0.0
        %852 = vmatpush1.msra.mxu0 0.0
        %853 = vmatprep.subr.mxu0 0.0
        %854 = vmatpush1.msra.mxu0 0.0
        %855 = vmatprep.subr.mxu0 0.0
        %856 = vmatpush1.msra.mxu0 0.0
        %857 = vmatprep.subr.mxu0 0.0
        %858 = vmatpush1.msra.mxu0 0.0
        %859 = vmatprep.subr.mxu0 0.0
        %860 = vmatpush1.msra.mxu0 0.0
        %861 = vmatprep.subr.mxu0 0.0
        %862 = vmatpush1.msra.mxu0 0.0
        %863 = vmatprep.subr.mxu0 0.0
        %864 = vmatpush1.msra.mxu0 0.0
        %865 = vmatprep.subr.mxu0 0.0
        %866 = vmatpush1.msra.mxu0 0.0
        %867 = vmatprep.subr.mxu0 0.0
        %868 = vmatpush1.msra.mxu0 0.0
        %869 = vmatprep.subr.mxu0 0.0
        %870 = vmatpush1.msra.mxu0 0.0
        %871 = vmatprep.subr.mxu0 0.0
        %872 = vmatpush1.msra.mxu0 0.0
        %873 = vmatprep.subr.mxu0 0.0
        %874 = vmatpush1.msra.mxu0 0.0
        %875 = vmatprep.subr.mxu0 0.0
        %876 = vmatpush1.msra.mxu0 0.0
        %877 = vmatprep.subr.mxu0 0.0
        %878 = vmatpush1.msra.mxu0 0.0
        %879 = vmatprep.subr.mxu0 0.0
        %880 = vmatpush1.msra.mxu0 0.0
        %881 = vmatprep.subr.mxu0 0.0
        %882 = vmatpush1.msra.mxu0 0.0
        %883 = vmatprep.subr.mxu0 0.0
        %884 = vmatpush1.msra.mxu0 0.0
        %885 = vmatprep.subr.mxu0 0.0
        %886 = vmatpush1.msra.mxu0 0.0
        %887 = vmatprep.subr.mxu0 0.0
        %888 = vmatpush1.msra.mxu0 0.0
        %889 = vmatprep.subr.mxu0 0.0
        %890 = vmatpush1.msra.mxu0 0.0
        %891 = vmatprep.subr.mxu0 0.0
        %892 = vmatpush1.msra.mxu0 0.0
        %893 = vmatprep.subr.mxu0 0.0
        %894 = vmatpush1.msra.mxu0 0.0
        %895 = vmatprep.mubr.f32.mxu0 0.0
        %896 = vmatmul.mubr.f32.gmra.mrb[0].mxu0 %v623
        %v897 = vpop.f32.mrb[0].mxu0
        %v898 = vadd.f32 %v471, %v897
        %v899 = vpop.f32.mrb[0].mxu0
        %900 = vmatprep.mubr.f32.mxu0 0.0
        %901 = vmatmul.mubr.f32.gmra.mrb[0].mxu0 %v626
        %v902 = vpop.f32.mrb[0].mxu0
        %v903 = vadd.f32 %v476, %v902
        %v904 = vpop.f32.mrb[0].mxu0
        %905 = vmatprep.mubr.f32.mxu0 0.0
        %906 = vmatmul.mubr.f32.gmra.mrb[0].mxu0 %v629
        %v907 = vpop.f32.mrb[0].mxu0
        %v908 = vadd.f32 %v481, %v907
        %v909 = vpop.f32.mrb[0].mxu0
        %910 = vmatprep.mubr.f32.mxu0 0.0
        %911 = vmatmul.mubr.f32.gmra.mrb[0].mxu0 %v632
        %v912 = vpop.f32.mrb[0].mxu0
        %v913 = vadd.f32 %v486, %v912
        %v914 = vpop.f32.mrb[0].mxu0
        %915 = vmatprep.mubr.f32.mxu0 0.0
        %916 = vmatmul.mubr.f32.gmra.mrb[0].mxu0 %v635
        %v917 = vpop.f32.mrb[0].mxu0
        %v918 = vadd.f32 %v491, %v917
        %v919 = vpop.f32.mrb[0].mxu0
        %920 = vmatprep.mubr.f32.mxu0 0.0
        %921 = vmatmul.mubr.f32.gmra.mrb[0].mxu0 %v638
        %v922 = vpop.f32.mrb[0].mxu0
        %v923 = vadd.f32 %v496, %v922
        %v924 = vpop.f32.mrb[0].mxu0
        %925 = vmatprep.mubr.f32.mxu0 0.0
        %926 = vmatmul.mubr.f32.gmra.mrb[0].mxu0 %v641
        %v927 = vpop.f32.mrb[0].mxu0
        %v928 = vadd.f32 %v501, %v927
        %v929 = vpop.f32.mrb[0].mxu0
        %930 = vmatprep.mubr.f32.mxu0 0.0
        %931 = vmatmul.mubr.f32.gmra.mrb[0].mxu0 %v644
        %v932 = vpop.f32.mrb[0].mxu0
        %v933 = vadd.f32 %v506, %v932
        %v934 = vpop.f32.mrb[0].mxu0
        %935 = vmatprep.mubr.f32.mxu0 0.0
        %936 = vmatmul.mubr.f32.gmra.mrb[0].mxu0 %v647
        %v937 = vpop.f32.mrb[0].mxu0
        %v938 = vadd.f32 %v511, %v937
        %v939 = vpop.f32.mrb[0].mxu0
        %940 = vmatprep.mubr.f32.mxu0 0.0
        %941 = vmatmul.mubr.f32.gmra.mrb[0].mxu0 %v650
        %v942 = vpop.f32.mrb[0].mxu0
        %v943 = vadd.f32 %v516, %v942
        %v944 = vpop.f32.mrb[0].mxu0
        %945 = vmatprep.mubr.f32.mxu0 0.0
        %946 = vmatmul.mubr.f32.gmra.mrb[0].mxu0 %v653
        %v947 = vpop.f32.mrb[0].mxu0
        %v948 = vadd.f32 %v521, %v947
        %v949 = vpop.f32.mrb[0].mxu0
        %950 = vmatprep.mubr.f32.mxu0 0.0
        %951 = vmatmul.mubr.f32.gmra.mrb[0].mxu0 %v656
        %v952 = vpop.f32.mrb[0].mxu0
        %v953 = vadd.f32 %v526, %v952
        %v954 = vpop.f32.mrb[0].mxu0
        %955 = vmatprep.mubr.f32.mxu0 0.0
        %956 = vmatmul.mubr.f32.gmra.mrb[0].mxu0 %v659
        %v957 = vpop.f32.mrb[0].mxu0
        %v958 = vadd.f32 %v531, %v957
        %v959 = vpop.f32.mrb[0].mxu0
        %960 = vmatprep.mubr.f32.mxu0 0.0
        %961 = vmatmul.mubr.f32.gmra.mrb[0].mxu0 %v662
        %v962 = vpop.f32.mrb[0].mxu0
        %v963 = vadd.f32 %v536, %v962
        %v964 = vpop.f32.mrb[0].mxu0
        %965 = vmatprep.mubr.f32.mxu0 0.0
        %966 = vmatmul.mubr.f32.gmra.mrb[0].mxu0 %v665
        %v967 = vpop.f32.mrb[0].mxu0
        %v968 = vadd.f32 %v541, %v967
        %v969 = vpop.f32.mrb[0].mxu0
        %970 = vmatprep.mubr.f32.mxu0 0.0
        %971 = vmatmul.mubr.f32.gmra.mrb[0].mxu0 %v668
        %v972 = vpop.f32.mrb[0].mxu0
        %v973 = vadd.f32 %v546, %v972
        %v974 = vpop.f32.mrb[0].mxu0
        %975 = vdwg.mxu0
        %v976 = vxor.u32 %v737, 2147483648
        %v977 = vxor.u32 %v739, 2147483648
        %v978 = vxor.u32 %v898, 2147483648
        %v979 = vxor.u32 %v743, 2147483648
        %v980 = vxor.u32 %v745, 2147483648
        %v981 = vxor.u32 %v903, 2147483648
        %v982 = vxor.u32 %v749, 2147483648
        %v983 = vxor.u32 %v751, 2147483648
        %v984 = vxor.u32 %v908, 2147483648
        %v985 = vxor.u32 %v755, 2147483648
        %v986 = vxor.u32 %v757, 2147483648
        %v987 = vxor.u32 %v913, 2147483648
        %v988 = vxor.u32 %v761, 2147483648
        %v989 = vxor.u32 %v763, 2147483648
        %v990 = vxor.u32 %v918, 2147483648
        %v991 = vxor.u32 %v767, 2147483648
        %v992 = vxor.u32 %v769, 2147483648
        %v993 = vxor.u32 %v923, 2147483648
        %v994 = vxor.u32 %v773, 2147483648
        %v995 = vxor.u32 %v775, 2147483648
        %v996 = vxor.u32 %v928, 2147483648
        %v997 = vxor.u32 %v779, 2147483648
        %v998 = vxor.u32 %v781, 2147483648
        %v999 = vxor.u32 %v933, 2147483648
        %v1000 = vxor.u32 %v785, 2147483648
        %v1001 = vxor.u32 %v787, 2147483648
        %v1002 = vxor.u32 %v938, 2147483648
        %v1003 = vxor.u32 %v791, 2147483648
        %v1004 = vxor.u32 %v793, 2147483648
        %v1005 = vxor.u32 %v943, 2147483648
        %v1006 = vxor.u32 %v797, 2147483648
        %v1007 = vxor.u32 %v799, 2147483648
        %v1008 = vxor.u32 %v948, 2147483648
        %v1009 = vxor.u32 %v803, 2147483648
        %v1010 = vxor.u32 %v805, 2147483648
        %v1011 = vxor.u32 %v953, 2147483648
        %v1012 = vxor.u32 %v809, 2147483648
        %v1013 = vxor.u32 %v811, 2147483648
        %v1014 = vxor.u32 %v958, 2147483648
        %v1015 = vxor.u32 %v815, 2147483648
        %v1016 = vxor.u32 %v817, 2147483648
        %v1017 = vxor.u32 %v963, 2147483648
        %v1018 = vxor.u32 %v821, 2147483648
        %v1019 = vxor.u32 %v823, 2147483648
        %v1020 = vxor.u32 %v968, 2147483648
        %v1021 = vxor.u32 %v827, 2147483648
        %v1022 = vxor.u32 %v829, 2147483648
        %v1023 = vxor.u32 %v973, 2147483648
        %v1024 = vmul.f32 %v976, 1.442695
        %v1025 = vpow.pop %v1024
        %v1026 = vmul.f32 %v977, 1.442695
        %v1027 = vpow.pop %v1026
        %v1028 = vmul.f32 %v978, 1.442695
        %v1029 = vpow.pop %v1028
        %v1030 = vmul.f32 %v979, 1.442695
        %v1031 = vpow.pop %v1030
        %v1032 = vmul.f32 %v980, 1.442695
        %v1033 = vpow.pop %v1032
        %v1034 = vmul.f32 %v981, 1.442695
        %v1035 = vpow.pop %v1034
        %v1036 = vmul.f32 %v982, 1.442695
        %v1037 = vpow.pop %v1036
        %v1038 = vmul.f32 %v983, 1.442695
        %v1039 = vpow.pop %v1038
        %v1040 = vmul.f32 %v984, 1.442695
        %v1041 = vpow.pop %v1040
        %v1042 = vmul.f32 %v985, 1.442695
        %v1043 = vpow.pop %v1042
        %v1044 = vmul.f32 %v986, 1.442695
        %v1045 = vpow.pop %v1044
        %v1046 = vmul.f32 %v987, 1.442695
        %v1047 = vpow.pop %v1046
        %v1048 = vmul.f32 %v988, 1.442695
        %v1049 = vpow.pop %v1048
        %v1050 = vmul.f32 %v989, 1.442695
        %v1051 = vpow.pop %v1050
        %v1052 = vmul.f32 %v990, 1.442695
        %v1053 = vpow.pop %v1052
        %v1054 = vmul.f32 %v991, 1.442695
        %v1055 = vpow.pop %v1054
        %v1056 = vmul.f32 %v992, 1.442695
        %v1057 = vpow.pop %v1056
        %v1058 = vmul.f32 %v993, 1.442695
        %v1059 = vpow.pop %v1058
        %v1060 = vmul.f32 %v994, 1.442695
        %v1061 = vpow.pop %v1060
        %v1062 = vmul.f32 %v995, 1.442695
        %v1063 = vpow.pop %v1062
        %v1064 = vmul.f32 %v996, 1.442695
        %v1065 = vpow.pop %v1064
        %v1066 = vmul.f32 %v997, 1.442695
        %v1067 = vpow.pop %v1066
        %v1068 = vmul.f32 %v998, 1.442695
        %v1069 = vpow.pop %v1068
        %v1070 = vmul.f32 %v999, 1.442695
        %v1071 = vpow.pop %v1070
        %v1072 = vmul.f32 %v1000, 1.442695
        %v1073 = vpow.pop %v1072
        %v1074 = vmul.f32 %v1001, 1.442695
        %v1075 = vpow.pop %v1074
        %v1076 = vmul.f32 %v1002, 1.442695
        %v1077 = vpow.pop %v1076
        %v1078 = vmul.f32 %v1003, 1.442695
        %v1079 = vpow.pop %v1078
        %v1080 = vmul.f32 %v1004, 1.442695
        %v1081 = vpow.pop %v1080
        %v1082 = vmul.f32 %v1005, 1.442695
        %v1083 = vpow.pop %v1082
        %v1084 = vmul.f32 %v1006, 1.442695
        %v1085 = vpow.pop %v1084
        %v1086 = vmul.f32 %v1007, 1.442695
        %v1087 = vpow.pop %v1086
        %v1088 = vmul.f32 %v1008, 1.442695
        %v1089 = vpow.pop %v1088
        %v1090 = vmul.f32 %v1009, 1.442695
        %v1091 = vpow.pop %v1090
        %v1092 = vmul.f32 %v1010, 1.442695
        %v1093 = vpow.pop %v1092
        %v1094 = vmul.f32 %v1011, 1.442695
        %v1095 = vpow.pop %v1094
        %v1096 = vmul.f32 %v1012, 1.442695
        %v1097 = vpow.pop %v1096
        %v1098 = vmul.f32 %v1013, 1.442695
        %v1099 = vpow.pop %v1098
        %v1100 = vmul.f32 %v1014, 1.442695
        %v1101 = vpow.pop %v1100
        %v1102 = vmul.f32 %v1015, 1.442695
        %v1103 = vpow.pop %v1102
        %v1104 = vmul.f32 %v1016, 1.442695
        %v1105 = vpow.pop %v1104
        %v1106 = vmul.f32 %v1017, 1.442695
        %v1107 = vpow.pop %v1106
        %v1108 = vmul.f32 %v1018, 1.442695
        %v1109 = vpow.pop %v1108
        %v1110 = vmul.f32 %v1019, 1.442695
        %v1111 = vpow.pop %v1110
        %v1112 = vmul.f32 %v1020, 1.442695
        %v1113 = vpow.pop %v1112
        %v1114 = vmul.f32 %v1021, 1.442695
        %v1115 = vpow.pop %v1114
        %v1116 = vmul.f32 %v1022, 1.442695
        %v1117 = vpow.pop %v1116
        %v1118 = vmul.f32 %v1023, 1.442695
        %v1119 = vpow.pop %v1118
        %v1120 = vadd.f32 %v1025, 1.0
        %v1121 = vadd.f32 %v1027, 1.0
        %v1122 = vadd.f32 %v1029, 1.0
        %v1123 = vadd.f32 %v1031, 1.0
        %v1124 = vadd.f32 %v1033, 1.0
        %v1125 = vadd.f32 %v1035, 1.0
        %v1126 = vadd.f32 %v1037, 1.0
        %v1127 = vadd.f32 %v1039, 1.0
        %v1128 = vadd.f32 %v1041, 1.0
        %v1129 = vadd.f32 %v1043, 1.0
        %v1130 = vadd.f32 %v1045, 1.0
        %v1131 = vadd.f32 %v1047, 1.0
        %v1132 = vadd.f32 %v1049, 1.0
        %v1133 = vadd.f32 %v1051, 1.0
        %v1134 = vadd.f32 %v1053, 1.0
        %v1135 = vadd.f32 %v1055, 1.0
        %v1136 = vadd.f32 %v1057, 1.0
        %v1137 = vadd.f32 %v1059, 1.0
        %v1138 = vadd.f32 %v1061, 1.0
        %v1139 = vadd.f32 %v1063, 1.0
        %v1140 = vadd.f32 %v1065, 1.0
        %v1141 = vadd.f32 %v1067, 1.0
        %v1142 = vadd.f32 %v1069, 1.0
        %v1143 = vadd.f32 %v1071, 1.0
        %v1144 = vadd.f32 %v1073, 1.0
        %v1145 = vadd.f32 %v1075, 1.0
        %v1146 = vadd.f32 %v1077, 1.0
        %v1147 = vadd.f32 %v1079, 1.0
        %v1148 = vadd.f32 %v1081, 1.0
        %v1149 = vadd.f32 %v1083, 1.0
        %v1150 = vadd.f32 %v1085, 1.0
        %v1151 = vadd.f32 %v1087, 1.0
        %v1152 = vadd.f32 %v1089, 1.0
        %v1153 = vadd.f32 %v1091, 1.0
        %v1154 = vadd.f32 %v1093, 1.0
        %v1155 = vadd.f32 %v1095, 1.0
        %v1156 = vadd.f32 %v1097, 1.0
        %v1157 = vadd.f32 %v1099, 1.0
        %v1158 = vadd.f32 %v1101, 1.0
        %v1159 = vadd.f32 %v1103, 1.0
        %v1160 = vadd.f32 %v1105, 1.0
        %v1161 = vadd.f32 %v1107, 1.0
        %v1162 = vadd.f32 %v1109, 1.0
        %v1163 = vadd.f32 %v1111, 1.0
        %v1164 = vadd.f32 %v1113, 1.0
        %v1165 = vadd.f32 %v1115, 1.0
        %v1166 = vadd.f32 %v1117, 1.0
        %v1167 = vadd.f32 %v1119, 1.0
        %v1168 = vrcp.pop %v1120
        %v1169 = vmul.f32 1.0, %v1168
        %v1170 = vrcp.pop %v1121
        %v1171 = vmul.f32 1.0, %v1170
        %v1172 = vrcp.pop %v1122
        %v1173 = vmul.f32 1.0, %v1172
        %v1174 = vrcp.pop %v1123
        %v1175 = vmul.f32 1.0, %v1174
        %v1176 = vrcp.pop %v1124
        %v1177 = vmul.f32 1.0, %v1176
        %v1178 = vrcp.pop %v1125
        %v1179 = vmul.f32 1.0, %v1178
        %v1180 = vrcp.pop %v1126
        %v1181 = vmul.f32 1.0, %v1180
        %v1182 = vrcp.pop %v1127
        %v1183 = vmul.f32 1.0, %v1182
        %v1184 = vrcp.pop %v1128
        %v1185 = vmul.f32 1.0, %v1184
        %v1186 = vrcp.pop %v1129
        %v1187 = vmul.f32 1.0, %v1186
        %v1188 = vrcp.pop %v1130
        %v1189 = vmul.f32 1.0, %v1188
        %v1190 = vrcp.pop %v1131
        %v1191 = vmul.f32 1.0, %v1190
        %v1192 = vrcp.pop %v1132
        %v1193 = vmul.f32 1.0, %v1192
        %v1194 = vrcp.pop %v1133
        %v1195 = vmul.f32 1.0, %v1194
        %v1196 = vrcp.pop %v1134
        %v1197 = vmul.f32 1.0, %v1196
        %v1198 = vrcp.pop %v1135
        %v1199 = vmul.f32 1.0, %v1198
        %v1200 = vrcp.pop %v1136
        %v1201 = vmul.f32 1.0, %v1200
        %v1202 = vrcp.pop %v1137
        %v1203 = vmul.f32 1.0, %v1202
        %v1204 = vrcp.pop %v1138
        %v1205 = vmul.f32 1.0, %v1204
        %v1206 = vrcp.pop %v1139
        %v1207 = vmul.f32 1.0, %v1206
        %v1208 = vrcp.pop %v1140
        %v1209 = vmul.f32 1.0, %v1208
        %v1210 = vrcp.pop %v1141
        %v1211 = vmul.f32 1.0, %v1210
        %v1212 = vrcp.pop %v1142
        %v1213 = vmul.f32 1.0, %v1212
        %v1214 = vrcp.pop %v1143
        %v1215 = vmul.f32 1.0, %v1214
        %v1216 = vrcp.pop %v1144
        %v1217 = vmul.f32 1.0, %v1216
        %v1218 = vrcp.pop %v1145
        %v1219 = vmul.f32 1.0, %v1218
        %v1220 = vrcp.pop %v1146
        %v1221 = vmul.f32 1.0, %v1220
        %v1222 = vrcp.pop %v1147
        %v1223 = vmul.f32 1.0, %v1222
        %v1224 = vrcp.pop %v1148
        %v1225 = vmul.f32 1.0, %v1224
        %v1226 = vrcp.pop %v1149
        %v1227 = vmul.f32 1.0, %v1226
        %v1228 = vrcp.pop %v1150
        %v1229 = vmul.f32 1.0, %v1228
        %v1230 = vrcp.pop %v1151
        %v1231 = vmul.f32 1.0, %v1230
        %v1232 = vrcp.pop %v1152
        %v1233 = vmul.f32 1.0, %v1232
        %v1234 = vrcp.pop %v1153
        %v1235 = vmul.f32 1.0, %v1234
        %v1236 = vrcp.pop %v1154
        %v1237 = vmul.f32 1.0, %v1236
        %v1238 = vrcp.pop %v1155
        %v1239 = vmul.f32 1.0, %v1238
        %v1240 = vrcp.pop %v1156
        %v1241 = vmul.f32 1.0, %v1240
        %v1242 = vrcp.pop %v1157
        %v1243 = vmul.f32 1.0, %v1242
        %v1244 = vrcp.pop %v1158
        %v1245 = vmul.f32 1.0, %v1244
        %v1246 = vrcp.pop %v1159
        %v1247 = vmul.f32 1.0, %v1246
        %v1248 = vrcp.pop %v1160
        %v1249 = vmul.f32 1.0, %v1248
        %v1250 = vrcp.pop %v1161
        %v1251 = vmul.f32 1.0, %v1250
        %v1252 = vrcp.pop %v1162
        %v1253 = vmul.f32 1.0, %v1252
        %v1254 = vrcp.pop %v1163
        %v1255 = vmul.f32 1.0, %v1254
        %v1256 = vrcp.pop %v1164
        %v1257 = vmul.f32 1.0, %v1256
        %v1258 = vrcp.pop %v1165
        %v1259 = vmul.f32 1.0, %v1258
        %v1260 = vrcp.pop %v1166
        %v1261 = vmul.f32 1.0, %v1260
        %v1262 = vrcp.pop %v1167
        %v1263 = vmul.f32 1.0, %v1262
        %v1264 = vmul.f32 %v737, %v1169
        %v1265 = vmul.f32 %v739, %v1171
        %v1266 = vmul.f32 %v898, %v1173
        %v1267 = vmul.f32 %v743, %v1175
        %v1268 = vmul.f32 %v745, %v1177
        %v1269 = vmul.f32 %v903, %v1179
        %v1270 = vmul.f32 %v749, %v1181
        %v1271 = vmul.f32 %v751, %v1183
        %v1272 = vmul.f32 %v908, %v1185
        %v1273 = vmul.f32 %v755, %v1187
        %v1274 = vmul.f32 %v757, %v1189
        %v1275 = vmul.f32 %v913, %v1191
        %v1276 = vmul.f32 %v761, %v1193
        %v1277 = vmul.f32 %v763, %v1195
        %v1278 = vmul.f32 %v918, %v1197
        %v1279 = vmul.f32 %v767, %v1199
        %v1280 = vmul.f32 %v769, %v1201
        %v1281 = vmul.f32 %v923, %v1203
        %v1282 = vmul.f32 %v773, %v1205
        %v1283 = vmul.f32 %v775, %v1207
        %v1284 = vmul.f32 %v928, %v1209
        %v1285 = vmul.f32 %v779, %v1211
        %v1286 = vmul.f32 %v781, %v1213
        %v1287 = vmul.f32 %v933, %v1215
        %v1288 = vmul.f32 %v785, %v1217
        %v1289 = vmul.f32 %v787, %v1219
        %v1290 = vmul.f32 %v938, %v1221
        %v1291 = vmul.f32 %v791, %v1223
        %v1292 = vmul.f32 %v793, %v1225
        %v1293 = vmul.f32 %v943, %v1227
        %v1294 = vmul.f32 %v797, %v1229
        %v1295 = vmul.f32 %v799, %v1231
        %v1296 = vmul.f32 %v948, %v1233
        %v1297 = vmul.f32 %v803, %v1235
        %v1298 = vmul.f32 %v805, %v1237
        %v1299 = vmul.f32 %v953, %v1239
        %v1300 = vmul.f32 %v809, %v1241
        %v1301 = vmul.f32 %v811, %v1243
        %v1302 = vmul.f32 %v958, %v1245
        %v1303 = vmul.f32 %v815, %v1247
        %v1304 = vmul.f32 %v817, %v1249
        %v1305 = vmul.f32 %v963, %v1251
        %v1306 = vmul.f32 %v821, %v1253
        %v1307 = vmul.f32 %v823, %v1255
        %v1308 = vmul.f32 %v968, %v1257
        %v1309 = vmul.f32 %v827, %v1259
        %v1310 = vmul.f32 %v829, %v1261
        %v1311 = vmul.f32 %v973, %v1263
        %v1312 = vld [vmem:[%s6] sm:$0xff]
        %v1313 = vld [vmem:[%s6 + $0x8] sm:$0xff]
        %v1314 = vld [vmem:[%s6 + $0x10] sm:$0xff]
        %v1315 = vld [vmem:[%s6 + $0x18] sm:$0xff]
        %v1316 = vld [vmem:[%s7] sm:$0xff]
        %v1317 = vld [vmem:[%s7 + $0x8] sm:$0xff]
        %v1318 = vld [vmem:[%s7 + $0x10] sm:$0xff]
        %v1319 = vld [vmem:[%s7 + $0x18] sm:$0xff]
        %1321 = vset.pattern.permute.xlu0 0
        %1322 = vperm.xlu0 %1321, %v1316
        %v1323 = vpop.permute.xlu0 %1322
        %1326 = vset.pattern.permute.xlu0 0
        %1327 = vperm.xlu0 %1326, %v1317
        %v1328 = vpop.permute.xlu0 %1327
        %1331 = vset.pattern.permute.xlu0 0
        %1332 = vperm.xlu0 %1331, %v1318
        %v1333 = vpop.permute.xlu0 %1332
        %1336 = vset.pattern.permute.xlu0 0
        %1337 = vperm.xlu0 %1336, %v1319
        %v1338 = vpop.permute.xlu0 %1337
        %1340 = vmatprep.subr.mxu0 %v1265
        %1341 = vmatpush1.msra.mxu0 %v1264
        %1342 = vmatprep.subr.mxu0 %v1268
        %1343 = vmatpush1.msra.mxu0 %v1267
        %1344 = vmatprep.subr.mxu0 %v1271
        %1345 = vmatpush1.msra.mxu0 %v1270
        %1346 = vmatprep.subr.mxu0 %v1274
        %1347 = vmatpush1.msra.mxu0 %v1273
        %1348 = vmatprep.subr.mxu0 %v1277
        %1349 = vmatpush1.msra.mxu0 %v1276
        %1350 = vmatprep.subr.mxu0 %v1280
        %1351 = vmatpush1.msra.mxu0 %v1279
        %1352 = vmatprep.subr.mxu0 %v1283
        %1353 = vmatpush1.msra.mxu0 %v1282
        %1354 = vmatprep.subr.mxu0 %v1286
        %1355 = vmatpush1.msra.mxu0 %v1285
        %1356 = vmatprep.subr.mxu0 %v1289
        %1357 = vmatpush1.msra.mxu0 %v1288
        %1358 = vmatprep.subr.mxu0 %v1292
        %1359 = vmatpush1.msra.mxu0 %v1291
        %1360 = vmatprep.subr.mxu0 %v1295
        %1361 = vmatpush1.msra.mxu0 %v1294
        %1362 = vmatprep.subr.mxu0 %v1298
        %1363 = vmatpush1.msra.mxu0 %v1297
        %1364 = vmatprep.subr.mxu0 %v1301
        %1365 = vmatpush1.msra.mxu0 %v1300
        %1366 = vmatprep.subr.mxu0 %v1304
        %1367 = vmatpush1.msra.mxu0 %v1303
        %1368 = vmatprep.subr.mxu0 %v1307
        %1369 = vmatpush1.msra.mxu0 %v1306
        %1370 = vmatprep.subr.mxu0 %v1310
        %1371 = vmatpush1.msra.mxu0 %v1309
        %1372 = vmatprep.subr.mxu0 0.0
        %1373 = vmatpush1.msra.mxu0 0.0
        %1374 = vmatprep.subr.mxu0 0.0
        %1375 = vmatpush1.msra.mxu0 0.0
        %1376 = vmatprep.subr.mxu0 0.0
        %1377 = vmatpush1.msra.mxu0 0.0
        %1378 = vmatprep.subr.mxu0 0.0
        %1379 = vmatpush1.msra.mxu0 0.0
        %1380 = vmatprep.subr.mxu0 0.0
        %1381 = vmatpush1.msra.mxu0 0.0
        %1382 = vmatprep.subr.mxu0 0.0
        %1383 = vmatpush1.msra.mxu0 0.0
        %1384 = vmatprep.subr.mxu0 0.0
        %1385 = vmatpush1.msra.mxu0 0.0
        %1386 = vmatprep.subr.mxu0 0.0
        %1387 = vmatpush1.msra.mxu0 0.0
        %1388 = vmatprep.subr.mxu0 0.0
        %1389 = vmatpush1.msra.mxu0 0.0
        %1390 = vmatprep.subr.mxu0 0.0
        %1391 = vmatpush1.msra.mxu0 0.0
        %1392 = vmatprep.subr.mxu0 0.0
        %1393 = vmatpush1.msra.mxu0 0.0
        %1394 = vmatprep.subr.mxu0 0.0
        %1395 = vmatpush1.msra.mxu0 0.0
        %1396 = vmatprep.subr.mxu0 0.0
        %1397 = vmatpush1.msra.mxu0 0.0
        %1398 = vmatprep.subr.mxu0 0.0
        %1399 = vmatpush1.msra.mxu0 0.0
        %1400 = vmatprep.subr.mxu0 0.0
        %1401 = vmatpush1.msra.mxu0 0.0
        %1402 = vmatprep.subr.mxu0 0.0
        %1403 = vmatpush1.msra.mxu0 0.0
        %1404 = vmatprep.mubr.f32.mxu0 0.0
        %1405 = vmatmul.mubr.f32.gmra.mrb[0].mxu0 %v1312
        %v1406 = vpop.f32.mrb[0].mxu0
        %v1407 = vadd.f32 %v1323, %v1406
        %v1408 = vpop.f32.mrb[0].mxu0
        %v1409 = vadd.f32 %v1323, %v1408
        %1410 = vmatprep.mubr.f32.mxu0 0.0
        %1411 = vmatmul.mubr.f32.gmra.mrb[0].mxu0 %v1313
        %v1412 = vpop.f32.mrb[0].mxu0
        %v1413 = vadd.f32 %v1328, %v1412
        %v1414 = vpop.f32.mrb[0].mxu0
        %v1415 = vadd.f32 %v1328, %v1414
        %1416 = vmatprep.mubr.f32.mxu0 0.0
        %1417 = vmatmul.mubr.f32.gmra.mrb[0].mxu0 %v1314
        %v1418 = vpop.f32.mrb[0].mxu0
        %v1419 = vadd.f32 %v1333, %v1418
        %v1420 = vpop.f32.mrb[0].mxu0
        %v1421 = vadd.f32 %v1333, %v1420
        %1422 = vmatprep.mubr.f32.mxu0 0.0
        %1423 = vmatmul.mubr.f32.gmra.mrb[0].mxu0 %v1315
        %v1424 = vpop.f32.mrb[0].mxu0
        %v1425 = vadd.f32 %v1338, %v1424
        %v1426 = vpop.f32.mrb[0].mxu0
        %v1427 = vadd.f32 %v1338, %v1426
        %1428 = vdwg.mxu0
        %1429 = vmatprep.subr.mxu0 0.0
        %1430 = vmatpush1.msra.mxu0 %v1266
        %1431 = vmatprep.subr.mxu0 0.0
        %1432 = vmatpush1.msra.mxu0 %v1269
        %1433 = vmatprep.subr.mxu0 0.0
        %1434 = vmatpush1.msra.mxu0 %v1272
        %1435 = vmatprep.subr.mxu0 0.0
        %1436 = vmatpush1.msra.mxu0 %v1275
        %1437 = vmatprep.subr.mxu0 0.0
        %1438 = vmatpush1.msra.mxu0 %v1278
        %1439 = vmatprep.subr.mxu0 0.0
        %1440 = vmatpush1.msra.mxu0 %v1281
        %1441 = vmatprep.subr.mxu0 0.0
        %1442 = vmatpush1.msra.mxu0 %v1284
        %1443 = vmatprep.subr.mxu0 0.0
        %1444 = vmatpush1.msra.mxu0 %v1287
        %1445 = vmatprep.subr.mxu0 0.0
        %1446 = vmatpush1.msra.mxu0 %v1290
        %1447 = vmatprep.subr.mxu0 0.0
        %1448 = vmatpush1.msra.mxu0 %v1293
        %1449 = vmatprep.subr.mxu0 0.0
        %1450 = vmatpush1.msra.mxu0 %v1296
        %1451 = vmatprep.subr.mxu0 0.0
        %1452 = vmatpush1.msra.mxu0 %v1299
        %1453 = vmatprep.subr.mxu0 0.0
        %1454 = vmatpush1.msra.mxu0 %v1302
        %1455 = vmatprep.subr.mxu0 0.0
        %1456 = vmatpush1.msra.mxu0 %v1305
        %1457 = vmatprep.subr.mxu0 0.0
        %1458 = vmatpush1.msra.mxu0 %v1308
        %1459 = vmatprep.subr.mxu0 0.0
        %1460 = vmatpush1.msra.mxu0 %v1311
        %1461 = vmatprep.subr.mxu0 0.0
        %1462 = vmatpush1.msra.mxu0 0.0
        %1463 = vmatprep.subr.mxu0 0.0
        %1464 = vmatpush1.msra.mxu0 0.0
        %1465 = vmatprep.subr.mxu0 0.0
        %1466 = vmatpush1.msra.mxu0 0.0
        %1467 = vmatprep.subr.mxu0 0.0
        %1468 = vmatpush1.msra.mxu0 0.0
        %1469 = vmatprep.subr.mxu0 0.0
        %1470 = vmatpush1.msra.mxu0 0.0
        %1471 = vmatprep.subr.mxu0 0.0
        %1472 = vmatpush1.msra.mxu0 0.0
        %1473 = vmatprep.subr.mxu0 0.0
        %1474 = vmatpush1.msra.mxu0 0.0
        %1475 = vmatprep.subr.mxu0 0.0
        %1476 = vmatpush1.msra.mxu0 0.0
        %1477 = vmatprep.subr.mxu0 0.0
        %1478 = vmatpush1.msra.mxu0 0.0
        %1479 = vmatprep.subr.mxu0 0.0
        %1480 = vmatpush1.msra.mxu0 0.0
        %1481 = vmatprep.subr.mxu0 0.0
        %1482 = vmatpush1.msra.mxu0 0.0
        %1483 = vmatprep.subr.mxu0 0.0
        %1484 = vmatpush1.msra.mxu0 0.0
        %1485 = vmatprep.subr.mxu0 0.0
        %1486 = vmatpush1.msra.mxu0 0.0
        %1487 = vmatprep.subr.mxu0 0.0
        %1488 = vmatpush1.msra.mxu0 0.0
        %1489 = vmatprep.subr.mxu0 0.0
        %1490 = vmatpush1.msra.mxu0 0.0
        %1491 = vmatprep.subr.mxu0 0.0
        %1492 = vmatpush1.msra.mxu0 0.0
        %1493 = vmatprep.mubr.f32.mxu0 0.0
        %1494 = vmatmul.mubr.f32.gmra.mrb[0].mxu0 %v1312
        %v1495 = vpop.f32.mrb[0].mxu0
        %v1496 = vadd.f32 %v1323, %v1495
        %v1497 = vpop.f32.mrb[0].mxu0
        %1498 = vmatprep.mubr.f32.mxu0 0.0
        %1499 = vmatmul.mubr.f32.gmra.mrb[0].mxu0 %v1313
        %v1500 = vpop.f32.mrb[0].mxu0
        %v1501 = vadd.f32 %v1328, %v1500
        %v1502 = vpop.f32.mrb[0].mxu0
        %1503 = vmatprep.mubr.f32.mxu0 0.0
        %1504 = vmatmul.mubr.f32.gmra.mrb[0].mxu0 %v1314
        %v1505 = vpop.f32.mrb[0].mxu0
        %v1506 = vadd.f32 %v1333, %v1505
        %v1507 = vpop.f32.mrb[0].mxu0
        %1508 = vmatprep.mubr.f32.mxu0 0.0
        %1509 = vmatmul.mubr.f32.gmra.mrb[0].mxu0 %v1315
        %v1510 = vpop.f32.mrb[0].mxu0
        %v1511 = vadd.f32 %v1338, %v1510
        %v1512 = vpop.f32.mrb[0].mxu0
        %1513 = vdwg.mxu0
        %1515 = vset.pattern.permute.xlu0 0
        %1516 = vperm.xlu0 %1515, %v428
        %v1517 = vpop.permute.xlu0 %1516
        %1520 = vset.pattern.permute.xlu0 0
        %1521 = vperm.xlu0 %1520, %v429
        %v1522 = vpop.permute.xlu0 %1521
        %1525 = vset.pattern.permute.xlu0 0
        %1526 = vperm.xlu0 %1525, %v430
        %v1527 = vpop.permute.xlu0 %1526
        %1530 = vset.pattern.permute.xlu0 0
        %1531 = vperm.xlu0 %1530, %v431
        %v1532 = vpop.permute.xlu0 %1531
        %v1534 = vmul.f32 %v1517, %v412
        %v1535 = vmul.f32 %v1517, %v413
        %v1536 = vmul.f32 %v1517, %v414
        %v1537 = vmul.f32 %v1517, %v415
        %v1538 = vmul.f32 %v1522, %v416
        %v1539 = vmul.f32 %v1522, %v417
        %v1540 = vmul.f32 %v1522, %v418
        %v1541 = vmul.f32 %v1522, %v419
        %v1542 = vmul.f32 %v1527, %v420
        %v1543 = vmul.f32 %v1527, %v421
        %v1544 = vmul.f32 %v1527, %v422
        %v1545 = vmul.f32 %v1527, %v423
        %v1546 = vmul.f32 %v1532, %v424
        %v1547 = vmul.f32 %v1532, %v425
        %v1548 = vmul.f32 %v1532, %v426
        %v1549 = vmul.f32 %v1532, %v427
        %1550 = vset.pattern.permute.xlu0 1
        %1551 = vperm.xlu0 %1550, %v428
        %v1552 = vpop.permute.xlu0 %1551
        %1554 = vset.pattern.permute.xlu0 1
        %1555 = vperm.xlu0 %1554, %v429
        %v1556 = vpop.permute.xlu0 %1555
        %1558 = vset.pattern.permute.xlu0 1
        %1559 = vperm.xlu0 %1558, %v430
        %v1560 = vpop.permute.xlu0 %1559
        %1562 = vset.pattern.permute.xlu0 1
        %1563 = vperm.xlu0 %1562, %v431
        %v1564 = vpop.permute.xlu0 %1563
        %v1566 = vmul.f32 %v1552, %v412
        %v1567 = vmul.f32 %v1552, %v413
        %v1568 = vmul.f32 %v1552, %v414
        %v1569 = vmul.f32 %v1552, %v415
        %v1570 = vmul.f32 %v1556, %v416
        %v1571 = vmul.f32 %v1556, %v417
        %v1572 = vmul.f32 %v1556, %v418
        %v1573 = vmul.f32 %v1556, %v419
        %v1574 = vmul.f32 %v1560, %v420
        %v1575 = vmul.f32 %v1560, %v421
        %v1576 = vmul.f32 %v1560, %v422
        %v1577 = vmul.f32 %v1560, %v423
        %v1578 = vmul.f32 %v1564, %v424
        %v1579 = vmul.f32 %v1564, %v425
        %v1580 = vmul.f32 %v1564, %v426
        %v1581 = vmul.f32 %v1564, %v427
        %1598 = vrot.lane.b32.xlu0 %v1566, 127
        %v1599 = vpop.permute.xlu0 %1598
        %1600 = vrot.lane.b32.xlu0 %v1567, 127
        %v1601 = vpop.permute.xlu0 %1600
        %1602 = vrot.lane.b32.xlu0 %v1568, 127
        %v1603 = vpop.permute.xlu0 %1602
        %1604 = vrot.lane.b32.xlu0 %v1569, 127
        %v1605 = vpop.permute.xlu0 %1604
        %1606 = vrot.lane.b32.xlu0 %v1570, 127
        %v1607 = vpop.permute.xlu0 %1606
        %1608 = vrot.lane.b32.xlu0 %v1571, 127
        %v1609 = vpop.permute.xlu0 %1608
        %1610 = vrot.lane.b32.xlu0 %v1572, 127
        %v1611 = vpop.permute.xlu0 %1610
        %1612 = vrot.lane.b32.xlu0 %v1573, 127
        %v1613 = vpop.permute.xlu0 %1612
        %1614 = vrot.lane.b32.xlu0 %v1574, 127
        %v1615 = vpop.permute.xlu0 %1614
        %1616 = vrot.lane.b32.xlu0 %v1575, 127
        %v1617 = vpop.permute.xlu0 %1616
        %1618 = vrot.lane.b32.xlu0 %v1576, 127
        %v1619 = vpop.permute.xlu0 %1618
        %1620 = vrot.lane.b32.xlu0 %v1577, 127
        %v1621 = vpop.permute.xlu0 %1620
        %1622 = vrot.lane.b32.xlu0 %v1578, 127
        %v1623 = vpop.permute.xlu0 %1622
        %1624 = vrot.lane.b32.xlu0 %v1579, 127
        %v1625 = vpop.permute.xlu0 %1624
        %1626 = vrot.lane.b32.xlu0 %v1580, 127
        %v1627 = vpop.permute.xlu0 %1626
        %1628 = vrot.lane.b32.xlu0 %v1581, 127
        %v1629 = vpop.permute.xlu0 %1628
        %vm1630 = vcmask 1039360
        %v1631 = vsel %vm1630, %v1599, %v1601
        %v1632 = vsel %vm1630, %v1601, %v1603
        %v1633 = vsel %vm1630, %v1603, %v1605
        %v1634 = vsel %vm1630, %v1607, %v1609
        %v1635 = vsel %vm1630, %v1609, %v1611
        %v1636 = vsel %vm1630, %v1611, %v1613
        %v1637 = vsel %vm1630, %v1615, %v1617
        %v1638 = vsel %vm1630, %v1617, %v1619
        %v1639 = vsel %vm1630, %v1619, %v1621
        %v1640 = vsel %vm1630, %v1623, %v1625
        %v1641 = vsel %vm1630, %v1625, %v1627
        %v1642 = vsel %vm1630, %v1627, %v1629
        %v1659 = vadd.f32 %v1534, %v1631
        %v1660 = vadd.f32 %v1535, %v1632
        %v1661 = vadd.f32 %v1536, %v1633
        %v1662 = vadd.f32 %v1537, %v1605
        %v1663 = vadd.f32 %v1538, %v1634
        %v1664 = vadd.f32 %v1539, %v1635
        %v1665 = vadd.f32 %v1540, %v1636
        %v1666 = vadd.f32 %v1541, %v1613
        %v1667 = vadd.f32 %v1542, %v1637
        %v1668 = vadd.f32 %v1543, %v1638
        %v1669 = vadd.f32 %v1544, %v1639
        %v1670 = vadd.f32 %v1545, %v1621
        %v1671 = vadd.f32 %v1546, %v1640
        %v1672 = vadd.f32 %v1547, %v1641
        %v1673 = vadd.f32 %v1548, %v1642
        %v1674 = vadd.f32 %v1549, %v1629
        %1675 = vset.pattern.permute.xlu0 2
        %1676 = vperm.xlu0 %1675, %v428
        %v1677 = vpop.permute.xlu0 %1676
        %1679 = vset.pattern.permute.xlu0 2
        %1680 = vperm.xlu0 %1679, %v429
        %v1681 = vpop.permute.xlu0 %1680
        %1683 = vset.pattern.permute.xlu0 2
        %1684 = vperm.xlu0 %1683, %v430
        %v1685 = vpop.permute.xlu0 %1684
        %1687 = vset.pattern.permute.xlu0 2
        %1688 = vperm.xlu0 %1687, %v431
        %v1689 = vpop.permute.xlu0 %1688
        %v1691 = vmul.f32 %v1677, %v412
        %v1692 = vmul.f32 %v1677, %v413
        %v1693 = vmul.f32 %v1677, %v414
        %v1694 = vmul.f32 %v1677, %v415
        %v1695 = vmul.f32 %v1681, %v416
        %v1696 = vmul.f32 %v1681, %v417
        %v1697 = vmul.f32 %v1681, %v418
        %v1698 = vmul.f32 %v1681, %v419
        %v1699 = vmul.f32 %v1685, %v420
        %v1700 = vmul.f32 %v1685, %v421
        %v1701 = vmul.f32 %v1685, %v422
        %v1702 = vmul.f32 %v1685, %v423
        %v1703 = vmul.f32 %v1689, %v424
        %v1704 = vmul.f32 %v1689, %v425
        %v1705 = vmul.f32 %v1689, %v426
        %v1706 = vmul.f32 %v1689, %v427
        %1723 = vrot.lane.b32.xlu0 %v1691, 126
        %v1724 = vpop.permute.xlu0 %1723
        %1725 = vrot.lane.b32.xlu0 %v1692, 126
        %v1726 = vpop.permute.xlu0 %1725
        %1727 = vrot.lane.b32.xlu0 %v1693, 126
        %v1728 = vpop.permute.xlu0 %1727
        %1729 = vrot.lane.b32.xlu0 %v1694, 126
        %v1730 = vpop.permute.xlu0 %1729
        %1731 = vrot.lane.b32.xlu0 %v1695, 126
        %v1732 = vpop.permute.xlu0 %1731
        %1733 = vrot.lane.b32.xlu0 %v1696, 126
        %v1734 = vpop.permute.xlu0 %1733
        %1735 = vrot.lane.b32.xlu0 %v1697, 126
        %v1736 = vpop.permute.xlu0 %1735
        %1737 = vrot.lane.b32.xlu0 %v1698, 126
        %v1738 = vpop.permute.xlu0 %1737
        %1739 = vrot.lane.b32.xlu0 %v1699, 126
        %v1740 = vpop.permute.xlu0 %1739
        %1741 = vrot.lane.b32.xlu0 %v1700, 126
        %v1742 = vpop.permute.xlu0 %1741
        %1743 = vrot.lane.b32.xlu0 %v1701, 126
        %v1744 = vpop.permute.xlu0 %1743
        %1745 = vrot.lane.b32.xlu0 %v1702, 126
        %v1746 = vpop.permute.xlu0 %1745
        %1747 = vrot.lane.b32.xlu0 %v1703, 126
        %v1748 = vpop.permute.xlu0 %1747
        %1749 = vrot.lane.b32.xlu0 %v1704, 126
        %v1750 = vpop.permute.xlu0 %1749
        %1751 = vrot.lane.b32.xlu0 %v1705, 126
        %v1752 = vpop.permute.xlu0 %1751
        %1753 = vrot.lane.b32.xlu0 %v1706, 126
        %v1754 = vpop.permute.xlu0 %1753
        %vm1755 = vcmask 1031168
        %v1756 = vsel %vm1755, %v1724, %v1726
        %v1757 = vsel %vm1755, %v1726, %v1728
        %v1758 = vsel %vm1755, %v1728, %v1730
        %v1759 = vsel %vm1755, %v1732, %v1734
        %v1760 = vsel %vm1755, %v1734, %v1736
        %v1761 = vsel %vm1755, %v1736, %v1738
        %v1762 = vsel %vm1755, %v1740, %v1742
        %v1763 = vsel %vm1755, %v1742, %v1744
        %v1764 = vsel %vm1755, %v1744, %v1746
        %v1765 = vsel %vm1755, %v1748, %v1750
        %v1766 = vsel %vm1755, %v1750, %v1752
        %v1767 = vsel %vm1755, %v1752, %v1754
        %v1784 = vadd.f32 %v1659, %v1756
        %v1785 = vadd.f32 %v1660, %v1757
        %v1786 = vadd.f32 %v1661, %v1758
        %v1787 = vadd.f32 %v1662, %v1730
        %v1788 = vadd.f32 %v1663, %v1759
        %v1789 = vadd.f32 %v1664, %v1760
        %v1790 = vadd.f32 %v1665, %v1761
        %v1791 = vadd.f32 %v1666, %v1738
        %v1792 = vadd.f32 %v1667, %v1762
        %v1793 = vadd.f32 %v1668, %v1763
        %v1794 = vadd.f32 %v1669, %v1764
        %v1795 = vadd.f32 %v1670, %v1746
        %v1796 = vadd.f32 %v1671, %v1765
        %v1797 = vadd.f32 %v1672, %v1766
        %v1798 = vadd.f32 %v1673, %v1767
        %v1799 = vadd.f32 %v1674, %v1754
        %1800 = vset.pattern.permute.xlu0 3
        %1801 = vperm.xlu0 %1800, %v428
        %v1802 = vpop.permute.xlu0 %1801
        %1804 = vset.pattern.permute.xlu0 3
        %1805 = vperm.xlu0 %1804, %v429
        %v1806 = vpop.permute.xlu0 %1805
        %1808 = vset.pattern.permute.xlu0 3
        %1809 = vperm.xlu0 %1808, %v430
        %v1810 = vpop.permute.xlu0 %1809
        %1812 = vset.pattern.permute.xlu0 3
        %1813 = vperm.xlu0 %1812, %v431
        %v1814 = vpop.permute.xlu0 %1813
        %v1816 = vmul.f32 %v1802, %v412
        %v1817 = vmul.f32 %v1802, %v413
        %v1818 = vmul.f32 %v1802, %v414
        %v1819 = vmul.f32 %v1802, %v415
        %v1820 = vmul.f32 %v1806, %v416
        %v1821 = vmul.f32 %v1806, %v417
        %v1822 = vmul.f32 %v1806, %v418
        %v1823 = vmul.f32 %v1806, %v419
        %v1824 = vmul.f32 %v1810, %v420
        %v1825 = vmul.f32 %v1810, %v421
        %v1826 = vmul.f32 %v1810, %v422
        %v1827 = vmul.f32 %v1810, %v423
        %v1828 = vmul.f32 %v1814, %v424
        %v1829 = vmul.f32 %v1814, %v425
        %v1830 = vmul.f32 %v1814, %v426
        %v1831 = vmul.f32 %v1814, %v427
        %1848 = vrot.lane.b32.xlu0 %v1816, 104
        %v1849 = vpop.permute.xlu0 %1848
        %1850 = vrot.lane.b32.xlu0 %v1817, 104
        %v1851 = vpop.permute.xlu0 %1850
        %1852 = vrot.lane.b32.xlu0 %v1818, 104
        %v1853 = vpop.permute.xlu0 %1852
        %1854 = vrot.lane.b32.xlu0 %v1819, 104
        %v1855 = vpop.permute.xlu0 %1854
        %1856 = vrot.lane.b32.xlu0 %v1820, 104
        %v1857 = vpop.permute.xlu0 %1856
        %1858 = vrot.lane.b32.xlu0 %v1821, 104
        %v1859 = vpop.permute.xlu0 %1858
        %1860 = vrot.lane.b32.xlu0 %v1822, 104
        %v1861 = vpop.permute.xlu0 %1860
        %1862 = vrot.lane.b32.xlu0 %v1823, 104
        %v1863 = vpop.permute.xlu0 %1862
        %1864 = vrot.lane.b32.xlu0 %v1824, 104
        %v1865 = vpop.permute.xlu0 %1864
        %1866 = vrot.lane.b32.xlu0 %v1825, 104
        %v1867 = vpop.permute.xlu0 %1866
        %1868 = vrot.lane.b32.xlu0 %v1826, 104
        %v1869 = vpop.permute.xlu0 %1868
        %1870 = vrot.lane.b32.xlu0 %v1827, 104
        %v1871 = vpop.permute.xlu0 %1870
        %1872 = vrot.lane.b32.xlu0 %v1828, 104
        %v1873 = vpop.permute.xlu0 %1872
        %1874 = vrot.lane.b32.xlu0 %v1829, 104
        %v1875 = vpop.permute.xlu0 %1874
        %1876 = vrot.lane.b32.xlu0 %v1830, 104
        %v1877 = vpop.permute.xlu0 %1876
        %1878 = vrot.lane.b32.xlu0 %v1831, 104
        %v1879 = vpop.permute.xlu0 %1878
        %vm1880 = vcmask 850944
        %v1881 = vsel %vm1880, %v1849, %v1851
        %v1882 = vsel %vm1880, %v1851, %v1853
        %v1883 = vsel %vm1880, %v1853, %v1855
        %v1884 = vsel %vm1880, %v1857, %v1859
        %v1885 = vsel %vm1880, %v1859, %v1861
        %v1886 = vsel %vm1880, %v1861, %v1863
        %v1887 = vsel %vm1880, %v1865, %v1867
        %v1888 = vsel %vm1880, %v1867, %v1869
        %v1889 = vsel %vm1880, %v1869, %v1871
        %v1890 = vsel %vm1880, %v1873, %v1875
        %v1891 = vsel %vm1880, %v1875, %v1877
        %v1892 = vsel %vm1880, %v1877, %v1879
        %v1909 = vadd.f32 %v1784, %v1881
        %v1910 = vadd.f32 %v1785, %v1882
        %v1911 = vadd.f32 %v1786, %v1883
        %v1912 = vadd.f32 %v1787, %v1855
        %v1913 = vadd.f32 %v1788, %v1884
        %v1914 = vadd.f32 %v1789, %v1885
        %v1915 = vadd.f32 %v1790, %v1886
        %v1916 = vadd.f32 %v1791, %v1863
        %v1917 = vadd.f32 %v1792, %v1887
        %v1918 = vadd.f32 %v1793, %v1888
        %v1919 = vadd.f32 %v1794, %v1889
        %v1920 = vadd.f32 %v1795, %v1871
        %v1921 = vadd.f32 %v1796, %v1890
        %v1922 = vadd.f32 %v1797, %v1891
        %v1923 = vadd.f32 %v1798, %v1892
        %v1924 = vadd.f32 %v1799, %v1879
        %1925 = vset.pattern.permute.xlu0 4
        %1926 = vperm.xlu0 %1925, %v428
        %v1927 = vpop.permute.xlu0 %1926
        %1929 = vset.pattern.permute.xlu0 4
        %1930 = vperm.xlu0 %1929, %v429
        %v1931 = vpop.permute.xlu0 %1930
        %1933 = vset.pattern.permute.xlu0 4
        %1934 = vperm.xlu0 %1933, %v430
        %v1935 = vpop.permute.xlu0 %1934
        %1937 = vset.pattern.permute.xlu0 4
        %1938 = vperm.xlu0 %1937, %v431
        %v1939 = vpop.permute.xlu0 %1938
        %v1941 = vmul.f32 %v1927, %v412
        %v1942 = vmul.f32 %v1927, %v413
        %v1943 = vmul.f32 %v1927, %v414
        %v1944 = vmul.f32 %v1927, %v415
        %v1945 = vmul.f32 %v1931, %v416
        %v1946 = vmul.f32 %v1931, %v417
        %v1947 = vmul.f32 %v1931, %v418
        %v1948 = vmul.f32 %v1931, %v419
        %v1949 = vmul.f32 %v1935, %v420
        %v1950 = vmul.f32 %v1935, %v421
        %v1951 = vmul.f32 %v1935, %v422
        %v1952 = vmul.f32 %v1935, %v423
        %v1953 = vmul.f32 %v1939, %v424
        %v1954 = vmul.f32 %v1939, %v425
        %v1955 = vmul.f32 %v1939, %v426
        %v1956 = vmul.f32 %v1939, %v427
        %1973 = vrot.lane.b32.xlu0 %v1941, 103
        %v1974 = vpop.permute.xlu0 %1973
        %1975 = vrot.lane.b32.xlu0 %v1942, 103
        %v1976 = vpop.permute.xlu0 %1975
        %1977 = vrot.lane.b32.xlu0 %v1943, 103
        %v1978 = vpop.permute.xlu0 %1977
        %1979 = vrot.lane.b32.xlu0 %v1944, 103
        %v1980 = vpop.permute.xlu0 %1979
        %1981 = vrot.lane.b32.xlu0 %v1945, 103
        %v1982 = vpop.permute.xlu0 %1981
        %1983 = vrot.lane.b32.xlu0 %v1946, 103
        %v1984 = vpop.permute.xlu0 %1983
        %1985 = vrot.lane.b32.xlu0 %v1947, 103
        %v1986 = vpop.permute.xlu0 %1985
        %1987 = vrot.lane.b32.xlu0 %v1948, 103
        %v1988 = vpop.permute.xlu0 %1987
        %1989 = vrot.lane.b32.xlu0 %v1949, 103
        %v1990 = vpop.permute.xlu0 %1989
        %1991 = vrot.lane.b32.xlu0 %v1950, 103
        %v1992 = vpop.permute.xlu0 %1991
        %1993 = vrot.lane.b32.xlu0 %v1951, 103
        %v1994 = vpop.permute.xlu0 %1993
        %1995 = vrot.lane.b32.xlu0 %v1952, 103
        %v1996 = vpop.permute.xlu0 %1995
        %1997 = vrot.lane.b32.xlu0 %v1953, 103
        %v1998 = vpop.permute.xlu0 %1997
        %1999 = vrot.lane.b32.xlu0 %v1954, 103
        %v2000 = vpop.permute.xlu0 %1999
        %2001 = vrot.lane.b32.xlu0 %v1955, 103
        %v2002 = vpop.permute.xlu0 %2001
        %2003 = vrot.lane.b32.xlu0 %v1956, 103
        %v2004 = vpop.permute.xlu0 %2003
        %vm2005 = vcmask 842752
        %v2006 = vsel %vm2005, %v1974, %v1976
        %v2007 = vsel %vm2005, %v1976, %v1978
        %v2008 = vsel %vm2005, %v1978, %v1980
        %v2009 = vsel %vm2005, %v1982, %v1984
        %v2010 = vsel %vm2005, %v1984, %v1986
        %v2011 = vsel %vm2005, %v1986, %v1988
        %v2012 = vsel %vm2005, %v1990, %v1992
        %v2013 = vsel %vm2005, %v1992, %v1994
        %v2014 = vsel %vm2005, %v1994, %v1996
        %v2015 = vsel %vm2005, %v1998, %v2000
        %v2016 = vsel %vm2005, %v2000, %v2002
        %v2017 = vsel %vm2005, %v2002, %v2004
        %v2034 = vadd.f32 %v1909, %v2006
        %v2035 = vadd.f32 %v1910, %v2007
        %v2036 = vadd.f32 %v1911, %v2008
        %v2037 = vadd.f32 %v1912, %v1980
        %v2038 = vadd.f32 %v1913, %v2009
        %v2039 = vadd.f32 %v1914, %v2010
        %v2040 = vadd.f32 %v1915, %v2011
        %v2041 = vadd.f32 %v1916, %v1988
        %v2042 = vadd.f32 %v1917, %v2012
        %v2043 = vadd.f32 %v1918, %v2013
        %v2044 = vadd.f32 %v1919, %v2014
        %v2045 = vadd.f32 %v1920, %v1996
        %v2046 = vadd.f32 %v1921, %v2015
        %v2047 = vadd.f32 %v1922, %v2016
        %v2048 = vadd.f32 %v1923, %v2017
        %v2049 = vadd.f32 %v1924, %v2004
        %2050 = vset.pattern.permute.xlu0 5
        %2051 = vperm.xlu0 %2050, %v428
        %v2052 = vpop.permute.xlu0 %2051
        %2054 = vset.pattern.permute.xlu0 5
        %2055 = vperm.xlu0 %2054, %v429
        %v2056 = vpop.permute.xlu0 %2055
        %2058 = vset.pattern.permute.xlu0 5
        %2059 = vperm.xlu0 %2058, %v430
        %v2060 = vpop.permute.xlu0 %2059
        %2062 = vset.pattern.permute.xlu0 5
        %2063 = vperm.xlu0 %2062, %v431
        %v2064 = vpop.permute.xlu0 %2063
        %v2066 = vmul.f32 %v2052, %v412
        %v2067 = vmul.f32 %v2052, %v413
        %v2068 = vmul.f32 %v2052, %v414
        %v2069 = vmul.f32 %v2052, %v415
        %v2070 = vmul.f32 %v2056, %v416
        %v2071 = vmul.f32 %v2056, %v417
        %v2072 = vmul.f32 %v2056, %v418
        %v2073 = vmul.f32 %v2056, %v419
        %v2074 = vmul.f32 %v2060, %v420
        %v2075 = vmul.f32 %v2060, %v421
        %v2076 = vmul.f32 %v2060, %v422
        %v2077 = vmul.f32 %v2060, %v423
        %v2078 = vmul.f32 %v2064, %v424
        %v2079 = vmul.f32 %v2064, %v425
        %v2080 = vmul.f32 %v2064, %v426
        %v2081 = vmul.f32 %v2064, %v427
        %2098 = vrot.lane.b32.xlu0 %v2066, 102
        %v2099 = vpop.permute.xlu0 %2098
        %2100 = vrot.lane.b32.xlu0 %v2067, 102
        %v2101 = vpop.permute.xlu0 %2100
        %2102 = vrot.lane.b32.xlu0 %v2068, 102
        %v2103 = vpop.permute.xlu0 %2102
        %2104 = vrot.lane.b32.xlu0 %v2069, 102
        %v2105 = vpop.permute.xlu0 %2104
        %2106 = vrot.lane.b32.xlu0 %v2070, 102
        %v2107 = vpop.permute.xlu0 %2106
        %2108 = vrot.lane.b32.xlu0 %v2071, 102
        %v2109 = vpop.permute.xlu0 %2108
        %2110 = vrot.lane.b32.xlu0 %v2072, 102
        %v2111 = vpop.permute.xlu0 %2110
        %2112 = vrot.lane.b32.xlu0 %v2073, 102
        %v2113 = vpop.permute.xlu0 %2112
        %2114 = vrot.lane.b32.xlu0 %v2074, 102
        %v2115 = vpop.permute.xlu0 %2114
        %2116 = vrot.lane.b32.xlu0 %v2075, 102
        %v2117 = vpop.permute.xlu0 %2116
        %2118 = vrot.lane.b32.xlu0 %v2076, 102
        %v2119 = vpop.permute.xlu0 %2118
        %2120 = vrot.lane.b32.xlu0 %v2077, 102
        %v2121 = vpop.permute.xlu0 %2120
        %2122 = vrot.lane.b32.xlu0 %v2078, 102
        %v2123 = vpop.permute.xlu0 %2122
        %2124 = vrot.lane.b32.xlu0 %v2079, 102
        %v2125 = vpop.permute.xlu0 %2124
        %2126 = vrot.lane.b32.xlu0 %v2080, 102
        %v2127 = vpop.permute.xlu0 %2126
        %2128 = vrot.lane.b32.xlu0 %v2081, 102
        %v2129 = vpop.permute.xlu0 %2128
        %vm2130 = vcmask 834560
        %v2131 = vsel %vm2130, %v2099, %v2101
        %v2132 = vsel %vm2130, %v2101, %v2103
        %v2133 = vsel %vm2130, %v2103, %v2105
        %v2134 = vsel %vm2130, %v2107, %v2109
        %v2135 = vsel %vm2130, %v2109, %v2111
        %v2136 = vsel %vm2130, %v2111, %v2113
        %v2137 = vsel %vm2130, %v2115, %v2117
        %v2138 = vsel %vm2130, %v2117, %v2119
        %v2139 = vsel %vm2130, %v2119, %v2121
        %v2140 = vsel %vm2130, %v2123, %v2125
        %v2141 = vsel %vm2130, %v2125, %v2127
        %v2142 = vsel %vm2130, %v2127, %v2129
        %v2159 = vadd.f32 %v2034, %v2131
        %v2160 = vadd.f32 %v2035, %v2132
        %v2161 = vadd.f32 %v2036, %v2133
        %v2162 = vadd.f32 %v2037, %v2105
        %v2163 = vadd.f32 %v2038, %v2134
        %v2164 = vadd.f32 %v2039, %v2135
        %v2165 = vadd.f32 %v2040, %v2136
        %v2166 = vadd.f32 %v2041, %v2113
        %v2167 = vadd.f32 %v2042, %v2137
        %v2168 = vadd.f32 %v2043, %v2138
        %v2169 = vadd.f32 %v2044, %v2139
        %v2170 = vadd.f32 %v2045, %v2121
        %v2171 = vadd.f32 %v2046, %v2140
        %v2172 = vadd.f32 %v2047, %v2141
        %v2173 = vadd.f32 %v2048, %v2142
        %v2174 = vadd.f32 %v2049, %v2129
        %2175 = vset.pattern.permute.xlu0 6
        %2176 = vperm.xlu0 %2175, %v428
        %v2177 = vpop.permute.xlu0 %2176
        %2179 = vset.pattern.permute.xlu0 6
        %2180 = vperm.xlu0 %2179, %v429
        %v2181 = vpop.permute.xlu0 %2180
        %2183 = vset.pattern.permute.xlu0 6
        %2184 = vperm.xlu0 %2183, %v430
        %v2185 = vpop.permute.xlu0 %2184
        %2187 = vset.pattern.permute.xlu0 6
        %2188 = vperm.xlu0 %2187, %v431
        %v2189 = vpop.permute.xlu0 %2188
        %v2191 = vmul.f32 %v2177, %v412
        %v2192 = vmul.f32 %v2177, %v413
        %v2193 = vmul.f32 %v2177, %v414
        %v2194 = vmul.f32 %v2177, %v415
        %v2195 = vmul.f32 %v2181, %v416
        %v2196 = vmul.f32 %v2181, %v417
        %v2197 = vmul.f32 %v2181, %v418
        %v2198 = vmul.f32 %v2181, %v419
        %v2199 = vmul.f32 %v2185, %v420
        %v2200 = vmul.f32 %v2185, %v421
        %v2201 = vmul.f32 %v2185, %v422
        %v2202 = vmul.f32 %v2185, %v423
        %v2203 = vmul.f32 %v2189, %v424
        %v2204 = vmul.f32 %v2189, %v425
        %v2205 = vmul.f32 %v2189, %v426
        %v2206 = vmul.f32 %v2189, %v427
        %2223 = vrot.lane.b32.xlu0 %v2191, 80
        %v2224 = vpop.permute.xlu0 %2223
        %2225 = vrot.lane.b32.xlu0 %v2192, 80
        %v2226 = vpop.permute.xlu0 %2225
        %2227 = vrot.lane.b32.xlu0 %v2193, 80
        %v2228 = vpop.permute.xlu0 %2227
        %2229 = vrot.lane.b32.xlu0 %v2194, 80
        %v2230 = vpop.permute.xlu0 %2229
        %2231 = vrot.lane.b32.xlu0 %v2195, 80
        %v2232 = vpop.permute.xlu0 %2231
        %2233 = vrot.lane.b32.xlu0 %v2196, 80
        %v2234 = vpop.permute.xlu0 %2233
        %2235 = vrot.lane.b32.xlu0 %v2197, 80
        %v2236 = vpop.permute.xlu0 %2235
        %2237 = vrot.lane.b32.xlu0 %v2198, 80
        %v2238 = vpop.permute.xlu0 %2237
        %2239 = vrot.lane.b32.xlu0 %v2199, 80
        %v2240 = vpop.permute.xlu0 %2239
        %2241 = vrot.lane.b32.xlu0 %v2200, 80
        %v2242 = vpop.permute.xlu0 %2241
        %2243 = vrot.lane.b32.xlu0 %v2201, 80
        %v2244 = vpop.permute.xlu0 %2243
        %2245 = vrot.lane.b32.xlu0 %v2202, 80
        %v2246 = vpop.permute.xlu0 %2245
        %2247 = vrot.lane.b32.xlu0 %v2203, 80
        %v2248 = vpop.permute.xlu0 %2247
        %2249 = vrot.lane.b32.xlu0 %v2204, 80
        %v2250 = vpop.permute.xlu0 %2249
        %2251 = vrot.lane.b32.xlu0 %v2205, 80
        %v2252 = vpop.permute.xlu0 %2251
        %2253 = vrot.lane.b32.xlu0 %v2206, 80
        %v2254 = vpop.permute.xlu0 %2253
        %vm2255 = vcmask 654336
        %v2256 = vsel %vm2255, %v2224, %v2226
        %v2257 = vsel %vm2255, %v2226, %v2228
        %v2258 = vsel %vm2255, %v2228, %v2230
        %v2259 = vsel %vm2255, %v2232, %v2234
        %v2260 = vsel %vm2255, %v2234, %v2236
        %v2261 = vsel %vm2255, %v2236, %v2238
        %v2262 = vsel %vm2255, %v2240, %v2242
        %v2263 = vsel %vm2255, %v2242, %v2244
        %v2264 = vsel %vm2255, %v2244, %v2246
        %v2265 = vsel %vm2255, %v2248, %v2250
        %v2266 = vsel %vm2255, %v2250, %v2252
        %v2267 = vsel %vm2255, %v2252, %v2254
        %v2284 = vadd.f32 %v2159, %v2256
        %v2285 = vadd.f32 %v2160, %v2257
        %v2286 = vadd.f32 %v2161, %v2258
        %v2287 = vadd.f32 %v2162, %v2230
        %v2288 = vadd.f32 %v2163, %v2259
        %v2289 = vadd.f32 %v2164, %v2260
        %v2290 = vadd.f32 %v2165, %v2261
        %v2291 = vadd.f32 %v2166, %v2238
        %v2292 = vadd.f32 %v2167, %v2262
        %v2293 = vadd.f32 %v2168, %v2263
        %v2294 = vadd.f32 %v2169, %v2264
        %v2295 = vadd.f32 %v2170, %v2246
        %v2296 = vadd.f32 %v2171, %v2265
        %v2297 = vadd.f32 %v2172, %v2266
        %v2298 = vadd.f32 %v2173, %v2267
        %v2299 = vadd.f32 %v2174, %v2254
        %2300 = vset.pattern.permute.xlu0 7
        %2301 = vperm.xlu0 %2300, %v428
        %v2302 = vpop.permute.xlu0 %2301
        %2304 = vset.pattern.permute.xlu0 7
        %2305 = vperm.xlu0 %2304, %v429
        %v2306 = vpop.permute.xlu0 %2305
        %2308 = vset.pattern.permute.xlu0 7
        %2309 = vperm.xlu0 %2308, %v430
        %v2310 = vpop.permute.xlu0 %2309
        %2312 = vset.pattern.permute.xlu0 7
        %2313 = vperm.xlu0 %2312, %v431
        %v2314 = vpop.permute.xlu0 %2313
        %v2316 = vmul.f32 %v2302, %v412
        %v2317 = vmul.f32 %v2302, %v413
        %v2318 = vmul.f32 %v2302, %v414
        %v2319 = vmul.f32 %v2302, %v415
        %v2320 = vmul.f32 %v2306, %v416
        %v2321 = vmul.f32 %v2306, %v417
        %v2322 = vmul.f32 %v2306, %v418
        %v2323 = vmul.f32 %v2306, %v419
        %v2324 = vmul.f32 %v2310, %v420
        %v2325 = vmul.f32 %v2310, %v421
        %v2326 = vmul.f32 %v2310, %v422
        %v2327 = vmul.f32 %v2310, %v423
        %v2328 = vmul.f32 %v2314, %v424
        %v2329 = vmul.f32 %v2314, %v425
        %v2330 = vmul.f32 %v2314, %v426
        %v2331 = vmul.f32 %v2314, %v427
        %2348 = vrot.lane.b32.xlu0 %v2316, 79
        %v2349 = vpop.permute.xlu0 %2348
        %2350 = vrot.lane.b32.xlu0 %v2317, 79
        %v2351 = vpop.permute.xlu0 %2350
        %2352 = vrot.lane.b32.xlu0 %v2318, 79
        %v2353 = vpop.permute.xlu0 %2352
        %2354 = vrot.lane.b32.xlu0 %v2319, 79
        %v2355 = vpop.permute.xlu0 %2354
        %2356 = vrot.lane.b32.xlu0 %v2320, 79
        %v2357 = vpop.permute.xlu0 %2356
        %2358 = vrot.lane.b32.xlu0 %v2321, 79
        %v2359 = vpop.permute.xlu0 %2358
        %2360 = vrot.lane.b32.xlu0 %v2322, 79
        %v2361 = vpop.permute.xlu0 %2360
        %2362 = vrot.lane.b32.xlu0 %v2323, 79
        %v2363 = vpop.permute.xlu0 %2362
        %2364 = vrot.lane.b32.xlu0 %v2324, 79
        %v2365 = vpop.permute.xlu0 %2364
        %2366 = vrot.lane.b32.xlu0 %v2325, 79
        %v2367 = vpop.permute.xlu0 %2366
        %2368 = vrot.lane.b32.xlu0 %v2326, 79
        %v2369 = vpop.permute.xlu0 %2368
        %2370 = vrot.lane.b32.xlu0 %v2327, 79
        %v2371 = vpop.permute.xlu0 %2370
        %2372 = vrot.lane.b32.xlu0 %v2328, 79
        %v2373 = vpop.permute.xlu0 %2372
        %2374 = vrot.lane.b32.xlu0 %v2329, 79
        %v2375 = vpop.permute.xlu0 %2374
        %2376 = vrot.lane.b32.xlu0 %v2330, 79
        %v2377 = vpop.permute.xlu0 %2376
        %2378 = vrot.lane.b32.xlu0 %v2331, 79
        %v2379 = vpop.permute.xlu0 %2378
        %vm2380 = vcmask 646144
        %v2381 = vsel %vm2380, %v2349, %v2351
        %v2382 = vsel %vm2380, %v2351, %v2353
        %v2383 = vsel %vm2380, %v2353, %v2355
        %v2384 = vsel %vm2380, %v2357, %v2359
        %v2385 = vsel %vm2380, %v2359, %v2361
        %v2386 = vsel %vm2380, %v2361, %v2363
        %v2387 = vsel %vm2380, %v2365, %v2367
        %v2388 = vsel %vm2380, %v2367, %v2369
        %v2389 = vsel %vm2380, %v2369, %v2371
        %v2390 = vsel %vm2380, %v2373, %v2375
        %v2391 = vsel %vm2380, %v2375, %v2377
        %v2392 = vsel %vm2380, %v2377, %v2379
        %v2409 = vadd.f32 %v2284, %v2381
        %v2410 = vadd.f32 %v2285, %v2382
        %v2411 = vadd.f32 %v2286, %v2383
        %v2412 = vadd.f32 %v2287, %v2355
        %v2413 = vadd.f32 %v2288, %v2384
        %v2414 = vadd.f32 %v2289, %v2385
        %v2415 = vadd.f32 %v2290, %v2386
        %v2416 = vadd.f32 %v2291, %v2363
        %v2417 = vadd.f32 %v2292, %v2387
        %v2418 = vadd.f32 %v2293, %v2388
        %v2419 = vadd.f32 %v2294, %v2389
        %v2420 = vadd.f32 %v2295, %v2371
        %v2421 = vadd.f32 %v2296, %v2390
        %v2422 = vadd.f32 %v2297, %v2391
        %v2423 = vadd.f32 %v2298, %v2392
        %v2424 = vadd.f32 %v2299, %v2379
        %2425 = vset.pattern.permute.xlu0 8
        %2426 = vperm.xlu0 %2425, %v428
        %v2427 = vpop.permute.xlu0 %2426
        %2429 = vset.pattern.permute.xlu0 8
        %2430 = vperm.xlu0 %2429, %v429
        %v2431 = vpop.permute.xlu0 %2430
        %2433 = vset.pattern.permute.xlu0 8
        %2434 = vperm.xlu0 %2433, %v430
        %v2435 = vpop.permute.xlu0 %2434
        %2437 = vset.pattern.permute.xlu0 8
        %2438 = vperm.xlu0 %2437, %v431
        %v2439 = vpop.permute.xlu0 %2438
        %v2441 = vmul.f32 %v2427, %v412
        %v2442 = vmul.f32 %v2427, %v413
        %v2443 = vmul.f32 %v2427, %v414
        %v2444 = vmul.f32 %v2427, %v415
        %v2445 = vmul.f32 %v2431, %v416
        %v2446 = vmul.f32 %v2431, %v417
        %v2447 = vmul.f32 %v2431, %v418
        %v2448 = vmul.f32 %v2431, %v419
        %v2449 = vmul.f32 %v2435, %v420
        %v2450 = vmul.f32 %v2435, %v421
        %v2451 = vmul.f32 %v2435, %v422
        %v2452 = vmul.f32 %v2435, %v423
        %v2453 = vmul.f32 %v2439, %v424
        %v2454 = vmul.f32 %v2439, %v425
        %v2455 = vmul.f32 %v2439, %v426
        %v2456 = vmul.f32 %v2439, %v427
        %2473 = vrot.lane.b32.xlu0 %v2441, 78
        %v2474 = vpop.permute.xlu0 %2473
        %2475 = vrot.lane.b32.xlu0 %v2442, 78
        %v2476 = vpop.permute.xlu0 %2475
        %2477 = vrot.lane.b32.xlu0 %v2443, 78
        %v2478 = vpop.permute.xlu0 %2477
        %2479 = vrot.lane.b32.xlu0 %v2444, 78
        %v2480 = vpop.permute.xlu0 %2479
        %2481 = vrot.lane.b32.xlu0 %v2445, 78
        %v2482 = vpop.permute.xlu0 %2481
        %2483 = vrot.lane.b32.xlu0 %v2446, 78
        %v2484 = vpop.permute.xlu0 %2483
        %2485 = vrot.lane.b32.xlu0 %v2447, 78
        %v2486 = vpop.permute.xlu0 %2485
        %2487 = vrot.lane.b32.xlu0 %v2448, 78
        %v2488 = vpop.permute.xlu0 %2487
        %2489 = vrot.lane.b32.xlu0 %v2449, 78
        %v2490 = vpop.permute.xlu0 %2489
        %2491 = vrot.lane.b32.xlu0 %v2450, 78
        %v2492 = vpop.permute.xlu0 %2491
        %2493 = vrot.lane.b32.xlu0 %v2451, 78
        %v2494 = vpop.permute.xlu0 %2493
        %2495 = vrot.lane.b32.xlu0 %v2452, 78
        %v2496 = vpop.permute.xlu0 %2495
        %2497 = vrot.lane.b32.xlu0 %v2453, 78
        %v2498 = vpop.permute.xlu0 %2497
        %2499 = vrot.lane.b32.xlu0 %v2454, 78
        %v2500 = vpop.permute.xlu0 %2499
        %2501 = vrot.lane.b32.xlu0 %v2455, 78
        %v2502 = vpop.permute.xlu0 %2501
        %2503 = vrot.lane.b32.xlu0 %v2456, 78
        %v2504 = vpop.permute.xlu0 %2503
        %v2505 = vsel %vm596, %v2474, %v2476
        %v2506 = vsel %vm596, %v2476, %v2478
        %v2507 = vsel %vm596, %v2478, %v2480
        %v2508 = vsel %vm596, %v2482, %v2484
        %v2509 = vsel %vm596, %v2484, %v2486
        %v2510 = vsel %vm596, %v2486, %v2488
        %v2511 = vsel %vm596, %v2490, %v2492
        %v2512 = vsel %vm596, %v2492, %v2494
        %v2513 = vsel %vm596, %v2494, %v2496
        %v2514 = vsel %vm596, %v2498, %v2500
        %v2515 = vsel %vm596, %v2500, %v2502
        %v2516 = vsel %vm596, %v2502, %v2504
        %v2533 = vadd.f32 %v2409, %v2505
        %v2534 = vadd.f32 %v2410, %v2506
        %v2535 = vadd.f32 %v2411, %v2507
        %v2536 = vadd.f32 %v2412, %v2480
        %v2537 = vadd.f32 %v2413, %v2508
        %v2538 = vadd.f32 %v2414, %v2509
        %v2539 = vadd.f32 %v2415, %v2510
        %v2540 = vadd.f32 %v2416, %v2488
        %v2541 = vadd.f32 %v2417, %v2511
        %v2542 = vadd.f32 %v2418, %v2512
        %v2543 = vadd.f32 %v2419, %v2513
        %v2544 = vadd.f32 %v2420, %v2496
        %v2545 = vadd.f32 %v2421, %v2514
        %v2546 = vadd.f32 %v2422, %v2515
        %v2547 = vadd.f32 %v2423, %v2516
        %v2548 = vadd.f32 %v2424, %v2504
        %s2549 = scalar_lea.vmem %s4, 128
        %v2550 = vld [vmem:[%s2549] sm:$0xff]
        %v2551 = vld [vmem:[%s2549 + $0x8] sm:$0xff]
        %v2552 = vld [vmem:[%s2549 + $0x10] sm:$0xff]
        %v2553 = vld [vmem:[%s2549 + $0x18] sm:$0xff]
        %v2554 = vld [vmem:[%s2549 + $0x20] sm:$0xff]
        %v2555 = vld [vmem:[%s2549 + $0x28] sm:$0xff]
        %v2556 = vld [vmem:[%s2549 + $0x30] sm:$0xff]
        %v2557 = vld [vmem:[%s2549 + $0x38] sm:$0xff]
        %v2558 = vld [vmem:[%s2549 + $0x40] sm:$0xff]
        %v2559 = vld [vmem:[%s2549 + $0x48] sm:$0xff]
        %v2560 = vld [vmem:[%s2549 + $0x50] sm:$0xff]
        %v2561 = vld [vmem:[%s2549 + $0x58] sm:$0xff]
        %v2562 = vld [vmem:[%s2549 + $0x60] sm:$0xff]
        %v2563 = vld [vmem:[%s2549 + $0x68] sm:$0xff]
        %v2564 = vld [vmem:[%s2549 + $0x70] sm:$0xff]
        %v2565 = vld [vmem:[%s2549 + $0x78] sm:$0xff]
        %s2566 = scalar_lea.vmem %s5, 128
        %v2567 = vld [vmem:[%s2566] sm:$0xff]
        %v2568 = vld [vmem:[%s2566 + $0x8] sm:$0xff]
        %v2569 = vld [vmem:[%s2566 + $0x10] sm:$0xff]
        %v2570 = vld [vmem:[%s2566 + $0x18] sm:$0xff]
        %v2571 = vld [vmem:[%s2566 + $0x20] sm:$0xff]
        %v2572 = vld [vmem:[%s2566 + $0x28] sm:$0xff]
        %v2573 = vld [vmem:[%s2566 + $0x30] sm:$0xff]
        %v2574 = vld [vmem:[%s2566 + $0x38] sm:$0xff]
        %v2575 = vld [vmem:[%s2566 + $0x40] sm:$0xff]
        %v2576 = vld [vmem:[%s2566 + $0x48] sm:$0xff]
        %v2577 = vld [vmem:[%s2566 + $0x50] sm:$0xff]
        %v2578 = vld [vmem:[%s2566 + $0x58] sm:$0xff]
        %v2579 = vld [vmem:[%s2566 + $0x60] sm:$0xff]
        %v2580 = vld [vmem:[%s2566 + $0x68] sm:$0xff]
        %v2581 = vld [vmem:[%s2566 + $0x70] sm:$0xff]
        %v2582 = vld [vmem:[%s2566 + $0x78] sm:$0xff]
        %2584 = vset.pattern.permute.xlu0 0
        %2585 = vperm.xlu0 %2584, %v2567
        %v2586 = vpop.permute.xlu0 %2585
        %2589 = vset.pattern.permute.xlu0 0
        %2590 = vperm.xlu0 %2589, %v2568
        %v2591 = vpop.permute.xlu0 %2590
        %2594 = vset.pattern.permute.xlu0 0
        %2595 = vperm.xlu0 %2594, %v2569
        %v2596 = vpop.permute.xlu0 %2595
        %2599 = vset.pattern.permute.xlu0 0
        %2600 = vperm.xlu0 %2599, %v2570
        %v2601 = vpop.permute.xlu0 %2600
        %2604 = vset.pattern.permute.xlu0 0
        %2605 = vperm.xlu0 %2604, %v2571
        %v2606 = vpop.permute.xlu0 %2605
        %2609 = vset.pattern.permute.xlu0 0
        %2610 = vperm.xlu0 %2609, %v2572
        %v2611 = vpop.permute.xlu0 %2610
        %2614 = vset.pattern.permute.xlu0 0
        %2615 = vperm.xlu0 %2614, %v2573
        %v2616 = vpop.permute.xlu0 %2615
        %2619 = vset.pattern.permute.xlu0 0
        %2620 = vperm.xlu0 %2619, %v2574
        %v2621 = vpop.permute.xlu0 %2620
        %2624 = vset.pattern.permute.xlu0 0
        %2625 = vperm.xlu0 %2624, %v2575
        %v2626 = vpop.permute.xlu0 %2625
        %2629 = vset.pattern.permute.xlu0 0
        %2630 = vperm.xlu0 %2629, %v2576
        %v2631 = vpop.permute.xlu0 %2630
        %2634 = vset.pattern.permute.xlu0 0
        %2635 = vperm.xlu0 %2634, %v2577
        %v2636 = vpop.permute.xlu0 %2635
        %2639 = vset.pattern.permute.xlu0 0
        %2640 = vperm.xlu0 %2639, %v2578
        %v2641 = vpop.permute.xlu0 %2640
        %2644 = vset.pattern.permute.xlu0 0
        %2645 = vperm.xlu0 %2644, %v2579
        %v2646 = vpop.permute.xlu0 %2645
        %2649 = vset.pattern.permute.xlu0 0
        %2650 = vperm.xlu0 %2649, %v2580
        %v2651 = vpop.permute.xlu0 %2650
        %2654 = vset.pattern.permute.xlu0 0
        %2655 = vperm.xlu0 %2654, %v2581
        %v2656 = vpop.permute.xlu0 %2655
        %2659 = vset.pattern.permute.xlu0 0
        %2660 = vperm.xlu0 %2659, %v2582
        %v2661 = vpop.permute.xlu0 %2660
        %2679 = vrot.lane.b32.xlu0 %v2533, 103
        %v2680 = vpop.permute.xlu0 %2679
        %2681 = vrot.lane.b32.xlu0 %v2534, 103
        %v2682 = vpop.permute.xlu0 %2681
        %2683 = vrot.lane.b32.xlu0 %v2535, 103
        %v2684 = vpop.permute.xlu0 %2683
        %2685 = vrot.lane.b32.xlu0 %v2536, 103
        %v2686 = vpop.permute.xlu0 %2685
        %2687 = vrot.lane.b32.xlu0 %v2537, 103
        %v2688 = vpop.permute.xlu0 %2687
        %2689 = vrot.lane.b32.xlu0 %v2538, 103
        %v2690 = vpop.permute.xlu0 %2689
        %2691 = vrot.lane.b32.xlu0 %v2539, 103
        %v2692 = vpop.permute.xlu0 %2691
        %2693 = vrot.lane.b32.xlu0 %v2540, 103
        %v2694 = vpop.permute.xlu0 %2693
        %2695 = vrot.lane.b32.xlu0 %v2541, 103
        %v2696 = vpop.permute.xlu0 %2695
        %2697 = vrot.lane.b32.xlu0 %v2542, 103
        %v2698 = vpop.permute.xlu0 %2697
        %2699 = vrot.lane.b32.xlu0 %v2543, 103
        %v2700 = vpop.permute.xlu0 %2699
        %2701 = vrot.lane.b32.xlu0 %v2544, 103
        %v2702 = vpop.permute.xlu0 %2701
        %2703 = vrot.lane.b32.xlu0 %v2545, 103
        %v2704 = vpop.permute.xlu0 %2703
        %2705 = vrot.lane.b32.xlu0 %v2546, 103
        %v2706 = vpop.permute.xlu0 %2705
        %2707 = vrot.lane.b32.xlu0 %v2547, 103
        %v2708 = vpop.permute.xlu0 %2707
        %2709 = vrot.lane.b32.xlu0 %v2548, 103
        %v2710 = vpop.permute.xlu0 %2709
        %v2711 = vsel %vm2005, %v2680, %v2682
        %v2712 = vsel %vm2005, %v2682, %v2684
        %v2713 = vsel %vm2005, %v2684, %v2686
        %v2714 = vsel %vm2005, %v2688, %v2690
        %v2715 = vsel %vm2005, %v2690, %v2692
        %v2716 = vsel %vm2005, %v2692, %v2694
        %v2717 = vsel %vm2005, %v2696, %v2698
        %v2718 = vsel %vm2005, %v2698, %v2700
        %v2719 = vsel %vm2005, %v2700, %v2702
        %v2720 = vsel %vm2005, %v2704, %v2706
        %v2721 = vsel %vm2005, %v2706, %v2708
        %v2722 = vsel %vm2005, %v2708, %v2710
        %v2736 = vsel %vm621, %v2550, 0
        %v2739 = vsel %vm621, %v2551, 0
        %v2742 = vsel %vm621, %v2552, 0
        %v2745 = vsel %vm621, %v2553, 0
        %v2748 = vsel %vm621, %v2554, 0
        %v2751 = vsel %vm621, %v2555, 0
        %v2754 = vsel %vm621, %v2556, 0
        %v2757 = vsel %vm621, %v2557, 0
        %v2760 = vsel %vm621, %v2558, 0
        %v2763 = vsel %vm621, %v2559, 0
        %v2766 = vsel %vm621, %v2560, 0
        %v2769 = vsel %vm621, %v2561, 0
        %v2772 = vsel %vm621, %v2562, 0
        %v2775 = vsel %vm621, %v2563, 0
        %v2778 = vsel %vm621, %v2564, 0
        %v2781 = vsel %vm621, %v2565, 0
        %2783 = vmatprep.subr.mxu0 %v2712
        %2784 = vmatpush1.msra.mxu0 %v2711
        %2785 = vmatprep.subr.mxu0 %v2715
        %2786 = vmatpush1.msra.mxu0 %v2714
        %2787 = vmatprep.subr.mxu0 %v2718
        %2788 = vmatpush1.msra.mxu0 %v2717
        %2789 = vmatprep.subr.mxu0 %v2721
        %2790 = vmatpush1.msra.mxu0 %v2720
        %2791 = vmatprep.subr.mxu0 0.0
        %2792 = vmatpush1.msra.mxu0 0.0
        %2793 = vmatprep.subr.mxu0 0.0
        %2794 = vmatpush1.msra.mxu0 0.0
        %2795 = vmatprep.subr.mxu0 0.0
        %2796 = vmatpush1.msra.mxu0 0.0
        %2797 = vmatprep.subr.mxu0 0.0
        %2798 = vmatpush1.msra.mxu0 0.0
        %2799 = vmatprep.subr.mxu0 0.0
        %2800 = vmatpush1.msra.mxu0 0.0
        %2801 = vmatprep.subr.mxu0 0.0
        %2802 = vmatpush1.msra.mxu0 0.0
        %2803 = vmatprep.subr.mxu0 0.0
        %2804 = vmatpush1.msra.mxu0 0.0
        %2805 = vmatprep.subr.mxu0 0.0
        %2806 = vmatpush1.msra.mxu0 0.0
        %2807 = vmatprep.subr.mxu0 0.0
        %2808 = vmatpush1.msra.mxu0 0.0
        %2809 = vmatprep.subr.mxu0 0.0
        %2810 = vmatpush1.msra.mxu0 0.0
        %2811 = vmatprep.subr.mxu0 0.0
        %2812 = vmatpush1.msra.mxu0 0.0
        %2813 = vmatprep.subr.mxu0 0.0
        %2814 = vmatpush1.msra.mxu0 0.0
        %2815 = vmatprep.subr.mxu0 0.0
        %2816 = vmatpush1.msra.mxu0 0.0
        %2817 = vmatprep.subr.mxu0 0.0
        %2818 = vmatpush1.msra.mxu0 0.0
        %2819 = vmatprep.subr.mxu0 0.0
        %2820 = vmatpush1.msra.mxu0 0.0
        %2821 = vmatprep.subr.mxu0 0.0
        %2822 = vmatpush1.msra.mxu0 0.0
        %2823 = vmatprep.subr.mxu0 0.0
        %2824 = vmatpush1.msra.mxu0 0.0
        %2825 = vmatprep.subr.mxu0 0.0
        %2826 = vmatpush1.msra.mxu0 0.0
        %2827 = vmatprep.subr.mxu0 0.0
        %2828 = vmatpush1.msra.mxu0 0.0
        %2829 = vmatprep.subr.mxu0 0.0
        %2830 = vmatpush1.msra.mxu0 0.0
        %2831 = vmatprep.subr.mxu0 0.0
        %2832 = vmatpush1.msra.mxu0 0.0
        %2833 = vmatprep.subr.mxu0 0.0
        %2834 = vmatpush1.msra.mxu0 0.0
        %2835 = vmatprep.subr.mxu0 0.0
        %2836 = vmatpush1.msra.mxu0 0.0
        %2837 = vmatprep.subr.mxu0 0.0
        %2838 = vmatpush1.msra.mxu0 0.0
        %2839 = vmatprep.subr.mxu0 0.0
        %2840 = vmatpush1.msra.mxu0 0.0
        %2841 = vmatprep.subr.mxu0 0.0
        %2842 = vmatpush1.msra.mxu0 0.0
        %2843 = vmatprep.subr.mxu0 0.0
        %2844 = vmatpush1.msra.mxu0 0.0
        %2845 = vmatprep.subr.mxu0 0.0
        %2846 = vmatpush1.msra.mxu0 0.0
        %2847 = vmatprep.mubr.f32.mxu0 0.0
        %2848 = vmatmul.mubr.f32.gmra.mrb[0].mxu0 %v2736
        %v2849 = vpop.f32.mrb[0].mxu0
        %v2850 = vadd.f32 %v2586, %v2849
        %v2851 = vpop.f32.mrb[0].mxu0
        %v2852 = vadd.f32 %v2586, %v2851
        %2853 = vmatprep.mubr.f32.mxu0 0.0
        %2854 = vmatmul.mubr.f32.gmra.mrb[0].mxu0 %v2739
        %v2855 = vpop.f32.mrb[0].mxu0
        %v2856 = vadd.f32 %v2591, %v2855
        %v2857 = vpop.f32.mrb[0].mxu0
        %v2858 = vadd.f32 %v2591, %v2857
        %2859 = vmatprep.mubr.f32.mxu0 0.0
        %2860 = vmatmul.mubr.f32.gmra.mrb[0].mxu0 %v2742
        %v2861 = vpop.f32.mrb[0].mxu0
        %v2862 = vadd.f32 %v2596, %v2861
        %v2863 = vpop.f32.mrb[0].mxu0
        %v2864 = vadd.f32 %v2596, %v2863
        %2865 = vmatprep.mubr.f32.mxu0 0.0
        %2866 = vmatmul.mubr.f32.gmra.mrb[0].mxu0 %v2745
        %v2867 = vpop.f32.mrb[0].mxu0
        %v2868 = vadd.f32 %v2601, %v2867
        %v2869 = vpop.f32.mrb[0].mxu0
        %v2870 = vadd.f32 %v2601, %v2869
        %2871 = vmatprep.mubr.f32.mxu0 0.0
        %2872 = vmatmul.mubr.f32.gmra.mrb[0].mxu0 %v2748
        %v2873 = vpop.f32.mrb[0].mxu0
        %v2874 = vadd.f32 %v2606, %v2873
        %v2875 = vpop.f32.mrb[0].mxu0
        %v2876 = vadd.f32 %v2606, %v2875
        %2877 = vmatprep.mubr.f32.mxu0 0.0
        %2878 = vmatmul.mubr.f32.gmra.mrb[0].mxu0 %v2751
        %v2879 = vpop.f32.mrb[0].mxu0
        %v2880 = vadd.f32 %v2611, %v2879
        %v2881 = vpop.f32.mrb[0].mxu0
        %v2882 = vadd.f32 %v2611, %v2881
        %2883 = vmatprep.mubr.f32.mxu0 0.0
        %2884 = vmatmul.mubr.f32.gmra.mrb[0].mxu0 %v2754
        %v2885 = vpop.f32.mrb[0].mxu0
        %v2886 = vadd.f32 %v2616, %v2885
        %v2887 = vpop.f32.mrb[0].mxu0
        %v2888 = vadd.f32 %v2616, %v2887
        %2889 = vmatprep.mubr.f32.mxu0 0.0
        %2890 = vmatmul.mubr.f32.gmra.mrb[0].mxu0 %v2757
        %v2891 = vpop.f32.mrb[0].mxu0
        %v2892 = vadd.f32 %v2621, %v2891
        %v2893 = vpop.f32.mrb[0].mxu0
        %v2894 = vadd.f32 %v2621, %v2893
        %2895 = vmatprep.mubr.f32.mxu0 0.0
        %2896 = vmatmul.mubr.f32.gmra.mrb[0].mxu0 %v2760
        %v2897 = vpop.f32.mrb[0].mxu0
        %v2898 = vadd.f32 %v2626, %v2897
        %v2899 = vpop.f32.mrb[0].mxu0
        %v2900 = vadd.f32 %v2626, %v2899
        %2901 = vmatprep.mubr.f32.mxu0 0.0
        %2902 = vmatmul.mubr.f32.gmra.mrb[0].mxu0 %v2763
        %v2903 = vpop.f32.mrb[0].mxu0
        %v2904 = vadd.f32 %v2631, %v2903
        %v2905 = vpop.f32.mrb[0].mxu0
        %v2906 = vadd.f32 %v2631, %v2905
        %2907 = vmatprep.mubr.f32.mxu0 0.0
        %2908 = vmatmul.mubr.f32.gmra.mrb[0].mxu0 %v2766
        %v2909 = vpop.f32.mrb[0].mxu0
        %v2910 = vadd.f32 %v2636, %v2909
        %v2911 = vpop.f32.mrb[0].mxu0
        %v2912 = vadd.f32 %v2636, %v2911
        %2913 = vmatprep.mubr.f32.mxu0 0.0
        %2914 = vmatmul.mubr.f32.gmra.mrb[0].mxu0 %v2769
        %v2915 = vpop.f32.mrb[0].mxu0
        %v2916 = vadd.f32 %v2641, %v2915
        %v2917 = vpop.f32.mrb[0].mxu0
        %v2918 = vadd.f32 %v2641, %v2917
        %2919 = vmatprep.mubr.f32.mxu0 0.0
        %2920 = vmatmul.mubr.f32.gmra.mrb[0].mxu0 %v2772
        %v2921 = vpop.f32.mrb[0].mxu0
        %v2922 = vadd.f32 %v2646, %v2921
        %v2923 = vpop.f32.mrb[0].mxu0
        %v2924 = vadd.f32 %v2646, %v2923
        %2925 = vmatprep.mubr.f32.mxu0 0.0
        %2926 = vmatmul.mubr.f32.gmra.mrb[0].mxu0 %v2775
        %v2927 = vpop.f32.mrb[0].mxu0
        %v2928 = vadd.f32 %v2651, %v2927
        %v2929 = vpop.f32.mrb[0].mxu0
        %v2930 = vadd.f32 %v2651, %v2929
        %2931 = vmatprep.mubr.f32.mxu0 0.0
        %2932 = vmatmul.mubr.f32.gmra.mrb[0].mxu0 %v2778
        %v2933 = vpop.f32.mrb[0].mxu0
        %v2934 = vadd.f32 %v2656, %v2933
        %v2935 = vpop.f32.mrb[0].mxu0
        %v2936 = vadd.f32 %v2656, %v2935
        %2937 = vmatprep.mubr.f32.mxu0 0.0
        %2938 = vmatmul.mubr.f32.gmra.mrb[0].mxu0 %v2781
        %v2939 = vpop.f32.mrb[0].mxu0
        %v2940 = vadd.f32 %v2661, %v2939
        %v2941 = vpop.f32.mrb[0].mxu0
        %v2942 = vadd.f32 %v2661, %v2941
        %2943 = vdwg.mxu0
        %2944 = vmatprep.subr.mxu0 0.0
        %2945 = vmatpush1.msra.mxu0 %v2713
        %2946 = vmatprep.subr.mxu0 0.0
        %2947 = vmatpush1.msra.mxu0 %v2716
        %2948 = vmatprep.subr.mxu0 0.0
        %2949 = vmatpush1.msra.mxu0 %v2719
        %2950 = vmatprep.subr.mxu0 0.0
        %2951 = vmatpush1.msra.mxu0 %v2722
        %2952 = vmatprep.subr.mxu0 0.0
        %2953 = vmatpush1.msra.mxu0 0.0
        %2954 = vmatprep.subr.mxu0 0.0
        %2955 = vmatpush1.msra.mxu0 0.0
        %2956 = vmatprep.subr.mxu0 0.0
        %2957 = vmatpush1.msra.mxu0 0.0
        %2958 = vmatprep.subr.mxu0 0.0
        %2959 = vmatpush1.msra.mxu0 0.0
        %2960 = vmatprep.subr.mxu0 0.0
        %2961 = vmatpush1.msra.mxu0 0.0
        %2962 = vmatprep.subr.mxu0 0.0
        %2963 = vmatpush1.msra.mxu0 0.0
        %2964 = vmatprep.subr.mxu0 0.0
        %2965 = vmatpush1.msra.mxu0 0.0
        %2966 = vmatprep.subr.mxu0 0.0
        %2967 = vmatpush1.msra.mxu0 0.0
        %2968 = vmatprep.subr.mxu0 0.0
        %2969 = vmatpush1.msra.mxu0 0.0
        %2970 = vmatprep.subr.mxu0 0.0
        %2971 = vmatpush1.msra.mxu0 0.0
        %2972 = vmatprep.subr.mxu0 0.0
        %2973 = vmatpush1.msra.mxu0 0.0
        %2974 = vmatprep.subr.mxu0 0.0
        %2975 = vmatpush1.msra.mxu0 0.0
        %2976 = vmatprep.subr.mxu0 0.0
        %2977 = vmatpush1.msra.mxu0 0.0
        %2978 = vmatprep.subr.mxu0 0.0
        %2979 = vmatpush1.msra.mxu0 0.0
        %2980 = vmatprep.subr.mxu0 0.0
        %2981 = vmatpush1.msra.mxu0 0.0
        %2982 = vmatprep.subr.mxu0 0.0
        %2983 = vmatpush1.msra.mxu0 0.0
        %2984 = vmatprep.subr.mxu0 0.0
        %2985 = vmatpush1.msra.mxu0 0.0
        %2986 = vmatprep.subr.mxu0 0.0
        %2987 = vmatpush1.msra.mxu0 0.0
        %2988 = vmatprep.subr.mxu0 0.0
        %2989 = vmatpush1.msra.mxu0 0.0
        %2990 = vmatprep.subr.mxu0 0.0
        %2991 = vmatpush1.msra.mxu0 0.0
        %2992 = vmatprep.subr.mxu0 0.0
        %2993 = vmatpush1.msra.mxu0 0.0
        %2994 = vmatprep.subr.mxu0 0.0
        %2995 = vmatpush1.msra.mxu0 0.0
        %2996 = vmatprep.subr.mxu0 0.0
        %2997 = vmatpush1.msra.mxu0 0.0
        %2998 = vmatprep.subr.mxu0 0.0
        %2999 = vmatpush1.msra.mxu0 0.0
        %3000 = vmatprep.subr.mxu0 0.0
        %3001 = vmatpush1.msra.mxu0 0.0
        %3002 = vmatprep.subr.mxu0 0.0
        %3003 = vmatpush1.msra.mxu0 0.0
        %3004 = vmatprep.subr.mxu0 0.0
        %3005 = vmatpush1.msra.mxu0 0.0
        %3006 = vmatprep.subr.mxu0 0.0
        %3007 = vmatpush1.msra.mxu0 0.0
        %3008 = vmatprep.mubr.f32.mxu0 0.0
        %3009 = vmatmul.mubr.f32.gmra.mrb[0].mxu0 %v2736
        %v3010 = vpop.f32.mrb[0].mxu0
        %v3011 = vadd.f32 %v2586, %v3010
        %v3012 = vpop.f32.mrb[0].mxu0
        %3013 = vmatprep.mubr.f32.mxu0 0.0
        %3014 = vmatmul.mubr.f32.gmra.mrb[0].mxu0 %v2739
        %v3015 = vpop.f32.mrb[0].mxu0
        %v3016 = vadd.f32 %v2591, %v3015
        %v3017 = vpop.f32.mrb[0].mxu0
        %3018 = vmatprep.mubr.f32.mxu0 0.0
        %3019 = vmatmul.mubr.f32.gmra.mrb[0].mxu0 %v2742
        %v3020 = vpop.f32.mrb[0].mxu0
        %v3021 = vadd.f32 %v2596, %v3020
        %v3022 = vpop.f32.mrb[0].mxu0
        %3023 = vmatprep.mubr.f32.mxu0 0.0
        %3024 = vmatmul.mubr.f32.gmra.mrb[0].mxu0 %v2745
        %v3025 = vpop.f32.mrb[0].mxu0
        %v3026 = vadd.f32 %v2601, %v3025
        %v3027 = vpop.f32.mrb[0].mxu0
        %3028 = vmatprep.mubr.f32.mxu0 0.0
        %3029 = vmatmul.mubr.f32.gmra.mrb[0].mxu0 %v2748
        %v3030 = vpop.f32.mrb[0].mxu0
        %v3031 = vadd.f32 %v2606, %v3030
        %v3032 = vpop.f32.mrb[0].mxu0
        %3033 = vmatprep.mubr.f32.mxu0 0.0
        %3034 = vmatmul.mubr.f32.gmra.mrb[0].mxu0 %v2751
        %v3035 = vpop.f32.mrb[0].mxu0
        %v3036 = vadd.f32 %v2611, %v3035
        %v3037 = vpop.f32.mrb[0].mxu0
        %3038 = vmatprep.mubr.f32.mxu0 0.0
        %3039 = vmatmul.mubr.f32.gmra.mrb[0].mxu0 %v2754
        %v3040 = vpop.f32.mrb[0].mxu0
        %v3041 = vadd.f32 %v2616, %v3040
        %v3042 = vpop.f32.mrb[0].mxu0
        %3043 = vmatprep.mubr.f32.mxu0 0.0
        %3044 = vmatmul.mubr.f32.gmra.mrb[0].mxu0 %v2757
        %v3045 = vpop.f32.mrb[0].mxu0
        %v3046 = vadd.f32 %v2621, %v3045
        %v3047 = vpop.f32.mrb[0].mxu0
        %3048 = vmatprep.mubr.f32.mxu0 0.0
        %3049 = vmatmul.mubr.f32.gmra.mrb[0].mxu0 %v2760
        %v3050 = vpop.f32.mrb[0].mxu0
        %v3051 = vadd.f32 %v2626, %v3050
        %v3052 = vpop.f32.mrb[0].mxu0
        %3053 = vmatprep.mubr.f32.mxu0 0.0
        %3054 = vmatmul.mubr.f32.gmra.mrb[0].mxu0 %v2763
        %v3055 = vpop.f32.mrb[0].mxu0
        %v3056 = vadd.f32 %v2631, %v3055
        %v3057 = vpop.f32.mrb[0].mxu0
        %3058 = vmatprep.mubr.f32.mxu0 0.0
        %3059 = vmatmul.mubr.f32.gmra.mrb[0].mxu0 %v2766
        %v3060 = vpop.f32.mrb[0].mxu0
        %v3061 = vadd.f32 %v2636, %v3060
        %v3062 = vpop.f32.mrb[0].mxu0
        %3063 = vmatprep.mubr.f32.mxu0 0.0
        %3064 = vmatmul.mubr.f32.gmra.mrb[0].mxu0 %v2769
        %v3065 = vpop.f32.mrb[0].mxu0
        %v3066 = vadd.f32 %v2641, %v3065
        %v3067 = vpop.f32.mrb[0].mxu0
        %3068 = vmatprep.mubr.f32.mxu0 0.0
        %3069 = vmatmul.mubr.f32.gmra.mrb[0].mxu0 %v2772
        %v3070 = vpop.f32.mrb[0].mxu0
        %v3071 = vadd.f32 %v2646, %v3070
        %v3072 = vpop.f32.mrb[0].mxu0
        %3073 = vmatprep.mubr.f32.mxu0 0.0
        %3074 = vmatmul.mubr.f32.gmra.mrb[0].mxu0 %v2775
        %v3075 = vpop.f32.mrb[0].mxu0
        %v3076 = vadd.f32 %v2651, %v3075
        %v3077 = vpop.f32.mrb[0].mxu0
        %3078 = vmatprep.mubr.f32.mxu0 0.0
        %3079 = vmatmul.mubr.f32.gmra.mrb[0].mxu0 %v2778
        %v3080 = vpop.f32.mrb[0].mxu0
        %v3081 = vadd.f32 %v2656, %v3080
        %v3082 = vpop.f32.mrb[0].mxu0
        %3083 = vmatprep.mubr.f32.mxu0 0.0
        %3084 = vmatmul.mubr.f32.gmra.mrb[0].mxu0 %v2781
        %v3085 = vpop.f32.mrb[0].mxu0
        %v3086 = vadd.f32 %v2661, %v3085
        %v3087 = vpop.f32.mrb[0].mxu0
        %3088 = vdwg.mxu0
        %v3089 = vxor.u32 %v2850, 2147483648
        %v3090 = vxor.u32 %v2852, 2147483648
        %v3091 = vxor.u32 %v3011, 2147483648
        %v3092 = vxor.u32 %v2856, 2147483648
        %v3093 = vxor.u32 %v2858, 2147483648
        %v3094 = vxor.u32 %v3016, 2147483648
        %v3095 = vxor.u32 %v2862, 2147483648
        %v3096 = vxor.u32 %v2864, 2147483648
        %v3097 = vxor.u32 %v3021, 2147483648
        %v3098 = vxor.u32 %v2868, 2147483648
        %v3099 = vxor.u32 %v2870, 2147483648
        %v3100 = vxor.u32 %v3026, 2147483648
        %v3101 = vxor.u32 %v2874, 2147483648
        %v3102 = vxor.u32 %v2876, 2147483648
        %v3103 = vxor.u32 %v3031, 2147483648
        %v3104 = vxor.u32 %v2880, 2147483648
        %v3105 = vxor.u32 %v2882, 2147483648
        %v3106 = vxor.u32 %v3036, 2147483648
        %v3107 = vxor.u32 %v2886, 2147483648
        %v3108 = vxor.u32 %v2888, 2147483648
        %v3109 = vxor.u32 %v3041, 2147483648
        %v3110 = vxor.u32 %v2892, 2147483648
        %v3111 = vxor.u32 %v2894, 2147483648
        %v3112 = vxor.u32 %v3046, 2147483648
        %v3113 = vxor.u32 %v2898, 2147483648
        %v3114 = vxor.u32 %v2900, 2147483648
        %v3115 = vxor.u32 %v3051, 2147483648
        %v3116 = vxor.u32 %v2904, 2147483648
        %v3117 = vxor.u32 %v2906, 2147483648
        %v3118 = vxor.u32 %v3056, 2147483648
        %v3119 = vxor.u32 %v2910, 2147483648
        %v3120 = vxor.u32 %v2912, 2147483648
        %v3121 = vxor.u32 %v3061, 2147483648
        %v3122 = vxor.u32 %v2916, 2147483648
        %v3123 = vxor.u32 %v2918, 2147483648
        %v3124 = vxor.u32 %v3066, 2147483648
        %v3125 = vxor.u32 %v2922, 2147483648
        %v3126 = vxor.u32 %v2924, 2147483648
        %v3127 = vxor.u32 %v3071, 2147483648
        %v3128 = vxor.u32 %v2928, 2147483648
        %v3129 = vxor.u32 %v2930, 2147483648
        %v3130 = vxor.u32 %v3076, 2147483648
        %v3131 = vxor.u32 %v2934, 2147483648
        %v3132 = vxor.u32 %v2936, 2147483648
        %v3133 = vxor.u32 %v3081, 2147483648
        %v3134 = vxor.u32 %v2940, 2147483648
        %v3135 = vxor.u32 %v2942, 2147483648
        %v3136 = vxor.u32 %v3086, 2147483648
        %v3137 = vmul.f32 %v3089, 1.442695
        %v3138 = vpow.pop %v3137
        %v3139 = vmul.f32 %v3090, 1.442695
        %v3140 = vpow.pop %v3139
        %v3141 = vmul.f32 %v3091, 1.442695
        %v3142 = vpow.pop %v3141
        %v3143 = vmul.f32 %v3092, 1.442695
        %v3144 = vpow.pop %v3143
        %v3145 = vmul.f32 %v3093, 1.442695
        %v3146 = vpow.pop %v3145
        %v3147 = vmul.f32 %v3094, 1.442695
        %v3148 = vpow.pop %v3147
        %v3149 = vmul.f32 %v3095, 1.442695
        %v3150 = vpow.pop %v3149
        %v3151 = vmul.f32 %v3096, 1.442695
        %v3152 = vpow.pop %v3151
        %v3153 = vmul.f32 %v3097, 1.442695
        %v3154 = vpow.pop %v3153
        %v3155 = vmul.f32 %v3098, 1.442695
        %v3156 = vpow.pop %v3155
        %v3157 = vmul.f32 %v3099, 1.442695
        %v3158 = vpow.pop %v3157
        %v3159 = vmul.f32 %v3100, 1.442695
        %v3160 = vpow.pop %v3159
        %v3161 = vmul.f32 %v3101, 1.442695
        %v3162 = vpow.pop %v3161
        %v3163 = vmul.f32 %v3102, 1.442695
        %v3164 = vpow.pop %v3163
        %v3165 = vmul.f32 %v3103, 1.442695
        %v3166 = vpow.pop %v3165
        %v3167 = vmul.f32 %v3104, 1.442695
        %v3168 = vpow.pop %v3167
        %v3169 = vmul.f32 %v3105, 1.442695
        %v3170 = vpow.pop %v3169
        %v3171 = vmul.f32 %v3106, 1.442695
        %v3172 = vpow.pop %v3171
        %v3173 = vmul.f32 %v3107, 1.442695
        %v3174 = vpow.pop %v3173
        %v3175 = vmul.f32 %v3108, 1.442695
        %v3176 = vpow.pop %v3175
        %v3177 = vmul.f32 %v3109, 1.442695
        %v3178 = vpow.pop %v3177
        %v3179 = vmul.f32 %v3110, 1.442695
        %v3180 = vpow.pop %v3179
        %v3181 = vmul.f32 %v3111, 1.442695
        %v3182 = vpow.pop %v3181
        %v3183 = vmul.f32 %v3112, 1.442695
        %v3184 = vpow.pop %v3183
        %v3185 = vmul.f32 %v3113, 1.442695
        %v3186 = vpow.pop %v3185
        %v3187 = vmul.f32 %v3114, 1.442695
        %v3188 = vpow.pop %v3187
        %v3189 = vmul.f32 %v3115, 1.442695
        %v3190 = vpow.pop %v3189
        %v3191 = vmul.f32 %v3116, 1.442695
        %v3192 = vpow.pop %v3191
        %v3193 = vmul.f32 %v3117, 1.442695
        %v3194 = vpow.pop %v3193
        %v3195 = vmul.f32 %v3118, 1.442695
        %v3196 = vpow.pop %v3195
        %v3197 = vmul.f32 %v3119, 1.442695
        %v3198 = vpow.pop %v3197
        %v3199 = vmul.f32 %v3120, 1.442695
        %v3200 = vpow.pop %v3199
        %v3201 = vmul.f32 %v3121, 1.442695
        %v3202 = vpow.pop %v3201
        %v3203 = vmul.f32 %v3122, 1.442695
        %v3204 = vpow.pop %v3203
        %v3205 = vmul.f32 %v3123, 1.442695
        %v3206 = vpow.pop %v3205
        %v3207 = vmul.f32 %v3124, 1.442695
        %v3208 = vpow.pop %v3207
        %v3209 = vmul.f32 %v3125, 1.442695
        %v3210 = vpow.pop %v3209
        %v3211 = vmul.f32 %v3126, 1.442695
        %v3212 = vpow.pop %v3211
        %v3213 = vmul.f32 %v3127, 1.442695
        %v3214 = vpow.pop %v3213
        %v3215 = vmul.f32 %v3128, 1.442695
        %v3216 = vpow.pop %v3215
        %v3217 = vmul.f32 %v3129, 1.442695
        %v3218 = vpow.pop %v3217
        %v3219 = vmul.f32 %v3130, 1.442695
        %v3220 = vpow.pop %v3219
        %v3221 = vmul.f32 %v3131, 1.442695
        %v3222 = vpow.pop %v3221
        %v3223 = vmul.f32 %v3132, 1.442695
        %v3224 = vpow.pop %v3223
        %v3225 = vmul.f32 %v3133, 1.442695
        %v3226 = vpow.pop %v3225
        %v3227 = vmul.f32 %v3134, 1.442695
        %v3228 = vpow.pop %v3227
        %v3229 = vmul.f32 %v3135, 1.442695
        %v3230 = vpow.pop %v3229
        %v3231 = vmul.f32 %v3136, 1.442695
        %v3232 = vpow.pop %v3231
        %v3233 = vadd.f32 %v3138, 1.0
        %v3234 = vadd.f32 %v3140, 1.0
        %v3235 = vadd.f32 %v3142, 1.0
        %v3236 = vadd.f32 %v3144, 1.0
        %v3237 = vadd.f32 %v3146, 1.0
        %v3238 = vadd.f32 %v3148, 1.0
        %v3239 = vadd.f32 %v3150, 1.0
        %v3240 = vadd.f32 %v3152, 1.0
        %v3241 = vadd.f32 %v3154, 1.0
        %v3242 = vadd.f32 %v3156, 1.0
        %v3243 = vadd.f32 %v3158, 1.0
        %v3244 = vadd.f32 %v3160, 1.0
        %v3245 = vadd.f32 %v3162, 1.0
        %v3246 = vadd.f32 %v3164, 1.0
        %v3247 = vadd.f32 %v3166, 1.0
        %v3248 = vadd.f32 %v3168, 1.0
        %v3249 = vadd.f32 %v3170, 1.0
        %v3250 = vadd.f32 %v3172, 1.0
        %v3251 = vadd.f32 %v3174, 1.0
        %v3252 = vadd.f32 %v3176, 1.0
        %v3253 = vadd.f32 %v3178, 1.0
        %v3254 = vadd.f32 %v3180, 1.0
        %v3255 = vadd.f32 %v3182, 1.0
        %v3256 = vadd.f32 %v3184, 1.0
        %v3257 = vadd.f32 %v3186, 1.0
        %v3258 = vadd.f32 %v3188, 1.0
        %v3259 = vadd.f32 %v3190, 1.0
        %v3260 = vadd.f32 %v3192, 1.0
        %v3261 = vadd.f32 %v3194, 1.0
        %v3262 = vadd.f32 %v3196, 1.0
        %v3263 = vadd.f32 %v3198, 1.0
        %v3264 = vadd.f32 %v3200, 1.0
        %v3265 = vadd.f32 %v3202, 1.0
        %v3266 = vadd.f32 %v3204, 1.0
        %v3267 = vadd.f32 %v3206, 1.0
        %v3268 = vadd.f32 %v3208, 1.0
        %v3269 = vadd.f32 %v3210, 1.0
        %v3270 = vadd.f32 %v3212, 1.0
        %v3271 = vadd.f32 %v3214, 1.0
        %v3272 = vadd.f32 %v3216, 1.0
        %v3273 = vadd.f32 %v3218, 1.0
        %v3274 = vadd.f32 %v3220, 1.0
        %v3275 = vadd.f32 %v3222, 1.0
        %v3276 = vadd.f32 %v3224, 1.0
        %v3277 = vadd.f32 %v3226, 1.0
        %v3278 = vadd.f32 %v3228, 1.0
        %v3279 = vadd.f32 %v3230, 1.0
        %v3280 = vadd.f32 %v3232, 1.0
        %v3281 = vrcp.pop %v3233
        %v3282 = vmul.f32 1.0, %v3281
        %v3283 = vrcp.pop %v3234
        %v3284 = vmul.f32 1.0, %v3283
        %v3285 = vrcp.pop %v3235
        %v3286 = vmul.f32 1.0, %v3285
        %v3287 = vrcp.pop %v3236
        %v3288 = vmul.f32 1.0, %v3287
        %v3289 = vrcp.pop %v3237
        %v3290 = vmul.f32 1.0, %v3289
        %v3291 = vrcp.pop %v3238
        %v3292 = vmul.f32 1.0, %v3291
        %v3293 = vrcp.pop %v3239
        %v3294 = vmul.f32 1.0, %v3293
        %v3295 = vrcp.pop %v3240
        %v3296 = vmul.f32 1.0, %v3295
        %v3297 = vrcp.pop %v3241
        %v3298 = vmul.f32 1.0, %v3297
        %v3299 = vrcp.pop %v3242
        %v3300 = vmul.f32 1.0, %v3299
        %v3301 = vrcp.pop %v3243
        %v3302 = vmul.f32 1.0, %v3301
        %v3303 = vrcp.pop %v3244
        %v3304 = vmul.f32 1.0, %v3303
        %v3305 = vrcp.pop %v3245
        %v3306 = vmul.f32 1.0, %v3305
        %v3307 = vrcp.pop %v3246
        %v3308 = vmul.f32 1.0, %v3307
        %v3309 = vrcp.pop %v3247
        %v3310 = vmul.f32 1.0, %v3309
        %v3311 = vrcp.pop %v3248
        %v3312 = vmul.f32 1.0, %v3311
        %v3313 = vrcp.pop %v3249
        %v3314 = vmul.f32 1.0, %v3313
        %v3315 = vrcp.pop %v3250
        %v3316 = vmul.f32 1.0, %v3315
        %v3317 = vrcp.pop %v3251
        %v3318 = vmul.f32 1.0, %v3317
        %v3319 = vrcp.pop %v3252
        %v3320 = vmul.f32 1.0, %v3319
        %v3321 = vrcp.pop %v3253
        %v3322 = vmul.f32 1.0, %v3321
        %v3323 = vrcp.pop %v3254
        %v3324 = vmul.f32 1.0, %v3323
        %v3325 = vrcp.pop %v3255
        %v3326 = vmul.f32 1.0, %v3325
        %v3327 = vrcp.pop %v3256
        %v3328 = vmul.f32 1.0, %v3327
        %v3329 = vrcp.pop %v3257
        %v3330 = vmul.f32 1.0, %v3329
        %v3331 = vrcp.pop %v3258
        %v3332 = vmul.f32 1.0, %v3331
        %v3333 = vrcp.pop %v3259
        %v3334 = vmul.f32 1.0, %v3333
        %v3335 = vrcp.pop %v3260
        %v3336 = vmul.f32 1.0, %v3335
        %v3337 = vrcp.pop %v3261
        %v3338 = vmul.f32 1.0, %v3337
        %v3339 = vrcp.pop %v3262
        %v3340 = vmul.f32 1.0, %v3339
        %v3341 = vrcp.pop %v3263
        %v3342 = vmul.f32 1.0, %v3341
        %v3343 = vrcp.pop %v3264
        %v3344 = vmul.f32 1.0, %v3343
        %v3345 = vrcp.pop %v3265
        %v3346 = vmul.f32 1.0, %v3345
        %v3347 = vrcp.pop %v3266
        %v3348 = vmul.f32 1.0, %v3347
        %v3349 = vrcp.pop %v3267
        %v3350 = vmul.f32 1.0, %v3349
        %v3351 = vrcp.pop %v3268
        %v3352 = vmul.f32 1.0, %v3351
        %v3353 = vrcp.pop %v3269
        %v3354 = vmul.f32 1.0, %v3353
        %v3355 = vrcp.pop %v3270
        %v3356 = vmul.f32 1.0, %v3355
        %v3357 = vrcp.pop %v3271
        %v3358 = vmul.f32 1.0, %v3357
        %v3359 = vrcp.pop %v3272
        %v3360 = vmul.f32 1.0, %v3359
        %v3361 = vrcp.pop %v3273
        %v3362 = vmul.f32 1.0, %v3361
        %v3363 = vrcp.pop %v3274
        %v3364 = vmul.f32 1.0, %v3363
        %v3365 = vrcp.pop %v3275
        %v3366 = vmul.f32 1.0, %v3365
        %v3367 = vrcp.pop %v3276
        %v3368 = vmul.f32 1.0, %v3367
        %v3369 = vrcp.pop %v3277
        %v3370 = vmul.f32 1.0, %v3369
        %v3371 = vrcp.pop %v3278
        %v3372 = vmul.f32 1.0, %v3371
        %v3373 = vrcp.pop %v3279
        %v3374 = vmul.f32 1.0, %v3373
        %v3375 = vrcp.pop %v3280
        %v3376 = vmul.f32 1.0, %v3375
        %v3377 = vmul.f32 %v2850, %v3282
        %v3378 = vmul.f32 %v2852, %v3284
        %v3379 = vmul.f32 %v3011, %v3286
        %v3380 = vmul.f32 %v2856, %v3288
        %v3381 = vmul.f32 %v2858, %v3290
        %v3382 = vmul.f32 %v3016, %v3292
        %v3383 = vmul.f32 %v2862, %v3294
        %v3384 = vmul.f32 %v2864, %v3296
        %v3385 = vmul.f32 %v3021, %v3298
        %v3386 = vmul.f32 %v2868, %v3300
        %v3387 = vmul.f32 %v2870, %v3302
        %v3388 = vmul.f32 %v3026, %v3304
        %v3389 = vmul.f32 %v2874, %v3306
        %v3390 = vmul.f32 %v2876, %v3308
        %v3391 = vmul.f32 %v3031, %v3310
        %v3392 = vmul.f32 %v2880, %v3312
        %v3393 = vmul.f32 %v2882, %v3314
        %v3394 = vmul.f32 %v3036, %v3316
        %v3395 = vmul.f32 %v2886, %v3318
        %v3396 = vmul.f32 %v2888, %v3320
        %v3397 = vmul.f32 %v3041, %v3322
        %v3398 = vmul.f32 %v2892, %v3324
        %v3399 = vmul.f32 %v2894, %v3326
        %v3400 = vmul.f32 %v3046, %v3328
        %v3401 = vmul.f32 %v2898, %v3330
        %v3402 = vmul.f32 %v2900, %v3332
        %v3403 = vmul.f32 %v3051, %v3334
        %v3404 = vmul.f32 %v2904, %v3336
        %v3405 = vmul.f32 %v2906, %v3338
        %v3406 = vmul.f32 %v3056, %v3340
        %v3407 = vmul.f32 %v2910, %v3342
        %v3408 = vmul.f32 %v2912, %v3344
        %v3409 = vmul.f32 %v3061, %v3346
        %v3410 = vmul.f32 %v2916, %v3348
        %v3411 = vmul.f32 %v2918, %v3350
        %v3412 = vmul.f32 %v3066, %v3352
        %v3413 = vmul.f32 %v2922, %v3354
        %v3414 = vmul.f32 %v2924, %v3356
        %v3415 = vmul.f32 %v3071, %v3358
        %v3416 = vmul.f32 %v2928, %v3360
        %v3417 = vmul.f32 %v2930, %v3362
        %v3418 = vmul.f32 %v3076, %v3364
        %v3419 = vmul.f32 %v2934, %v3366
        %v3420 = vmul.f32 %v2936, %v3368
        %v3421 = vmul.f32 %v3081, %v3370
        %v3422 = vmul.f32 %v2940, %v3372
        %v3423 = vmul.f32 %v2942, %v3374
        %v3424 = vmul.f32 %v3086, %v3376
        %s3425 = scalar_lea.vmem %s6, 32
        %v3426 = vld [vmem:[%s3425] sm:$0xff]
        %v3427 = vld [vmem:[%s3425 + $0x8] sm:$0xff]
        %v3428 = vld [vmem:[%s3425 + $0x10] sm:$0xff]
        %v3429 = vld [vmem:[%s3425 + $0x18] sm:$0xff]
        %3430 = vmatprep.subr.mxu0 %v3378
        %3431 = vmatpush1.msra.mxu0 %v3377
        %3432 = vmatprep.subr.mxu0 %v3381
        %3433 = vmatpush1.msra.mxu0 %v3380
        %3434 = vmatprep.subr.mxu0 %v3384
        %3435 = vmatpush1.msra.mxu0 %v3383
        %3436 = vmatprep.subr.mxu0 %v3387
        %3437 = vmatpush1.msra.mxu0 %v3386
        %3438 = vmatprep.subr.mxu0 %v3390
        %3439 = vmatpush1.msra.mxu0 %v3389
        %3440 = vmatprep.subr.mxu0 %v3393
        %3441 = vmatpush1.msra.mxu0 %v3392
        %3442 = vmatprep.subr.mxu0 %v3396
        %3443 = vmatpush1.msra.mxu0 %v3395
        %3444 = vmatprep.subr.mxu0 %v3399
        %3445 = vmatpush1.msra.mxu0 %v3398
        %3446 = vmatprep.subr.mxu0 %v3402
        %3447 = vmatpush1.msra.mxu0 %v3401
        %3448 = vmatprep.subr.mxu0 %v3405
        %3449 = vmatpush1.msra.mxu0 %v3404
        %3450 = vmatprep.subr.mxu0 %v3408
        %3451 = vmatpush1.msra.mxu0 %v3407
        %3452 = vmatprep.subr.mxu0 %v3411
        %3453 = vmatpush1.msra.mxu0 %v3410
        %3454 = vmatprep.subr.mxu0 %v3414
        %3455 = vmatpush1.msra.mxu0 %v3413
        %3456 = vmatprep.subr.mxu0 %v3417
        %3457 = vmatpush1.msra.mxu0 %v3416
        %3458 = vmatprep.subr.mxu0 %v3420
        %3459 = vmatpush1.msra.mxu0 %v3419
        %3460 = vmatprep.subr.mxu0 %v3423
        %3461 = vmatpush1.msra.mxu0 %v3422
        %3462 = vmatprep.subr.mxu0 0.0
        %3463 = vmatpush1.msra.mxu0 0.0
        %3464 = vmatprep.subr.mxu0 0.0
        %3465 = vmatpush1.msra.mxu0 0.0
        %3466 = vmatprep.subr.mxu0 0.0
        %3467 = vmatpush1.msra.mxu0 0.0
        %3468 = vmatprep.subr.mxu0 0.0
        %3469 = vmatpush1.msra.mxu0 0.0
        %3470 = vmatprep.subr.mxu0 0.0
        %3471 = vmatpush1.msra.mxu0 0.0
        %3472 = vmatprep.subr.mxu0 0.0
        %3473 = vmatpush1.msra.mxu0 0.0
        %3474 = vmatprep.subr.mxu0 0.0
        %3475 = vmatpush1.msra.mxu0 0.0
        %3476 = vmatprep.subr.mxu0 0.0
        %3477 = vmatpush1.msra.mxu0 0.0
        %3478 = vmatprep.subr.mxu0 0.0
        %3479 = vmatpush1.msra.mxu0 0.0
        %3480 = vmatprep.subr.mxu0 0.0
        %3481 = vmatpush1.msra.mxu0 0.0
        %3482 = vmatprep.subr.mxu0 0.0
        %3483 = vmatpush1.msra.mxu0 0.0
        %3484 = vmatprep.subr.mxu0 0.0
        %3485 = vmatpush1.msra.mxu0 0.0
        %3486 = vmatprep.subr.mxu0 0.0
        %3487 = vmatpush1.msra.mxu0 0.0
        %3488 = vmatprep.subr.mxu0 0.0
        %3489 = vmatpush1.msra.mxu0 0.0
        %3490 = vmatprep.subr.mxu0 0.0
        %3491 = vmatpush1.msra.mxu0 0.0
        %3492 = vmatprep.subr.mxu0 0.0
        %3493 = vmatpush1.msra.mxu0 0.0
        %3494 = vmatprep.mubr.f32.mxu0 0.0
        %3495 = vmatmul.mubr.f32.gmra.mrb[0].mxu0 %v3426
        %v3496 = vpop.f32.mrb[0].mxu0
        %v3497 = vadd.f32 0.0, %v3496
        %v3498 = vpop.f32.mrb[0].mxu0
        %v3499 = vadd.f32 0.0, %v3498
        %3500 = vmatprep.mubr.f32.mxu0 0.0
        %3501 = vmatmul.mubr.f32.gmra.mrb[0].mxu0 %v3427
        %v3502 = vpop.f32.mrb[0].mxu0
        %v3503 = vadd.f32 0.0, %v3502
        %v3504 = vpop.f32.mrb[0].mxu0
        %v3505 = vadd.f32 0.0, %v3504
        %3506 = vmatprep.mubr.f32.mxu0 0.0
        %3507 = vmatmul.mubr.f32.gmra.mrb[0].mxu0 %v3428
        %v3508 = vpop.f32.mrb[0].mxu0
        %v3509 = vadd.f32 0.0, %v3508
        %v3510 = vpop.f32.mrb[0].mxu0
        %v3511 = vadd.f32 0.0, %v3510
        %3512 = vmatprep.mubr.f32.mxu0 0.0
        %3513 = vmatmul.mubr.f32.gmra.mrb[0].mxu0 %v3429
        %v3514 = vpop.f32.mrb[0].mxu0
        %v3515 = vadd.f32 0.0, %v3514
        %v3516 = vpop.f32.mrb[0].mxu0
        %v3517 = vadd.f32 0.0, %v3516
        %3518 = vdwg.mxu0
        %3519 = vmatprep.subr.mxu0 0.0
        %3520 = vmatpush1.msra.mxu0 %v3379
        %3521 = vmatprep.subr.mxu0 0.0
        %3522 = vmatpush1.msra.mxu0 %v3382
        %3523 = vmatprep.subr.mxu0 0.0
        %3524 = vmatpush1.msra.mxu0 %v3385
        %3525 = vmatprep.subr.mxu0 0.0
        %3526 = vmatpush1.msra.mxu0 %v3388
        %3527 = vmatprep.subr.mxu0 0.0
        %3528 = vmatpush1.msra.mxu0 %v3391
        %3529 = vmatprep.subr.mxu0 0.0
        %3530 = vmatpush1.msra.mxu0 %v3394
        %3531 = vmatprep.subr.mxu0 0.0
        %3532 = vmatpush1.msra.mxu0 %v3397
        %3533 = vmatprep.subr.mxu0 0.0
        %3534 = vmatpush1.msra.mxu0 %v3400
        %3535 = vmatprep.subr.mxu0 0.0
        %3536 = vmatpush1.msra.mxu0 %v3403
        %3537 = vmatprep.subr.mxu0 0.0
        %3538 = vmatpush1.msra.mxu0 %v3406
        %3539 = vmatprep.subr.mxu0 0.0
        %3540 = vmatpush1.msra.mxu0 %v3409
        %3541 = vmatprep.subr.mxu0 0.0
        %3542 = vmatpush1.msra.mxu0 %v3412
        %3543 = vmatprep.subr.mxu0 0.0
        %3544 = vmatpush1.msra.mxu0 %v3415
        %3545 = vmatprep.subr.mxu0 0.0
        %3546 = vmatpush1.msra.mxu0 %v3418
        %3547 = vmatprep.subr.mxu0 0.0
        %3548 = vmatpush1.msra.mxu0 %v3421
        %3549 = vmatprep.subr.mxu0 0.0
        %3550 = vmatpush1.msra.mxu0 %v3424
        %3551 = vmatprep.subr.mxu0 0.0
        %3552 = vmatpush1.msra.mxu0 0.0
        %3553 = vmatprep.subr.mxu0 0.0
        %3554 = vmatpush1.msra.mxu0 0.0
        %3555 = vmatprep.subr.mxu0 0.0
        %3556 = vmatpush1.msra.mxu0 0.0
        %3557 = vmatprep.subr.mxu0 0.0
        %3558 = vmatpush1.msra.mxu0 0.0
        %3559 = vmatprep.subr.mxu0 0.0
        %3560 = vmatpush1.msra.mxu0 0.0
        %3561 = vmatprep.subr.mxu0 0.0
        %3562 = vmatpush1.msra.mxu0 0.0
        %3563 = vmatprep.subr.mxu0 0.0
        %3564 = vmatpush1.msra.mxu0 0.0
        %3565 = vmatprep.subr.mxu0 0.0
        %3566 = vmatpush1.msra.mxu0 0.0
        %3567 = vmatprep.subr.mxu0 0.0
        %3568 = vmatpush1.msra.mxu0 0.0
        %3569 = vmatprep.subr.mxu0 0.0
        %3570 = vmatpush1.msra.mxu0 0.0
        %3571 = vmatprep.subr.mxu0 0.0
        %3572 = vmatpush1.msra.mxu0 0.0
        %3573 = vmatprep.subr.mxu0 0.0
        %3574 = vmatpush1.msra.mxu0 0.0
        %3575 = vmatprep.subr.mxu0 0.0
        %3576 = vmatpush1.msra.mxu0 0.0
        %3577 = vmatprep.subr.mxu0 0.0
        %3578 = vmatpush1.msra.mxu0 0.0
        %3579 = vmatprep.subr.mxu0 0.0
        %3580 = vmatpush1.msra.mxu0 0.0
        %3581 = vmatprep.subr.mxu0 0.0
        %3582 = vmatpush1.msra.mxu0 0.0
        %3583 = vmatprep.mubr.f32.mxu0 0.0
        %3584 = vmatmul.mubr.f32.gmra.mrb[0].mxu0 %v3426
        %v3585 = vpop.f32.mrb[0].mxu0
        %v3586 = vadd.f32 0.0, %v3585
        %v3587 = vpop.f32.mrb[0].mxu0
        %3588 = vmatprep.mubr.f32.mxu0 0.0
        %3589 = vmatmul.mubr.f32.gmra.mrb[0].mxu0 %v3427
        %v3590 = vpop.f32.mrb[0].mxu0
        %v3591 = vadd.f32 0.0, %v3590
        %v3592 = vpop.f32.mrb[0].mxu0
        %3593 = vmatprep.mubr.f32.mxu0 0.0
        %3594 = vmatmul.mubr.f32.gmra.mrb[0].mxu0 %v3428
        %v3595 = vpop.f32.mrb[0].mxu0
        %v3596 = vadd.f32 0.0, %v3595
        %v3597 = vpop.f32.mrb[0].mxu0
        %3598 = vmatprep.mubr.f32.mxu0 0.0
        %3599 = vmatmul.mubr.f32.gmra.mrb[0].mxu0 %v3429
        %v3600 = vpop.f32.mrb[0].mxu0
        %v3601 = vadd.f32 0.0, %v3600
        %v3602 = vpop.f32.mrb[0].mxu0
        %3603 = vdwg.mxu0
        %v3604 = vadd.f32 %v1407, %v3497
        %v3605 = vadd.f32 %v1409, %v3499
        %v3606 = vadd.f32 %v1496, %v3586
        %v3607 = vadd.f32 %v1413, %v3503
        %v3608 = vadd.f32 %v1415, %v3505
        %v3609 = vadd.f32 %v1501, %v3591
        %v3610 = vadd.f32 %v1419, %v3509
        %v3611 = vadd.f32 %v1421, %v3511
        %v3612 = vadd.f32 %v1506, %v3596
        %v3613 = vadd.f32 %v1425, %v3515
        %v3614 = vadd.f32 %v1427, %v3517
        %v3615 = vadd.f32 %v1511, %v3601
        %3617 = vset.pattern.permute.xlu0 0
        %3618 = vperm.xlu0 %3617, %v432
        %v3619 = vpop.permute.xlu0 %3618
        %3622 = vset.pattern.permute.xlu0 0
        %3623 = vperm.xlu0 %3622, %v433
        %v3624 = vpop.permute.xlu0 %3623
        %3627 = vset.pattern.permute.xlu0 0
        %3628 = vperm.xlu0 %3627, %v434
        %v3629 = vpop.permute.xlu0 %3628
        %3632 = vset.pattern.permute.xlu0 0
        %3633 = vperm.xlu0 %3632, %v435
        %v3634 = vpop.permute.xlu0 %3633
        %v3636 = vmul.f32 %v3619, %v412
        %v3637 = vmul.f32 %v3619, %v413
        %v3638 = vmul.f32 %v3619, %v414
        %v3639 = vmul.f32 %v3624, %v416
        %v3640 = vmul.f32 %v3624, %v417
        %v3641 = vmul.f32 %v3624, %v418
        %v3642 = vmul.f32 %v3629, %v420
        %v3643 = vmul.f32 %v3629, %v421
        %v3644 = vmul.f32 %v3629, %v422
        %v3645 = vmul.f32 %v3634, %v424
        %v3646 = vmul.f32 %v3634, %v425
        %v3647 = vmul.f32 %v3634, %v426
        %3648 = vset.pattern.permute.xlu0 1
        %3649 = vperm.xlu0 %3648, %v432
        %v3650 = vpop.permute.xlu0 %3649
        %3652 = vset.pattern.permute.xlu0 1
        %3653 = vperm.xlu0 %3652, %v433
        %v3654 = vpop.permute.xlu0 %3653
        %3656 = vset.pattern.permute.xlu0 1
        %3657 = vperm.xlu0 %3656, %v434
        %v3658 = vpop.permute.xlu0 %3657
        %3660 = vset.pattern.permute.xlu0 1
        %3661 = vperm.xlu0 %3660, %v435
        %v3662 = vpop.permute.xlu0 %3661
        %v3664 = vmul.f32 %v3650, %v412
        %v3665 = vmul.f32 %v3650, %v413
        %v3666 = vmul.f32 %v3650, %v414
        %v3667 = vmul.f32 %v3650, %v415
        %v3668 = vmul.f32 %v3654, %v416
        %v3669 = vmul.f32 %v3654, %v417
        %v3670 = vmul.f32 %v3654, %v418
        %v3671 = vmul.f32 %v3654, %v419
        %v3672 = vmul.f32 %v3658, %v420
        %v3673 = vmul.f32 %v3658, %v421
        %v3674 = vmul.f32 %v3658, %v422
        %v3675 = vmul.f32 %v3658, %v423
        %v3676 = vmul.f32 %v3662, %v424
        %v3677 = vmul.f32 %v3662, %v425
        %v3678 = vmul.f32 %v3662, %v426
        %v3679 = vmul.f32 %v3662, %v427
        %3696 = vrot.lane.b32.xlu0 %v3664, 127
        %v3697 = vpop.permute.xlu0 %3696
        %3698 = vrot.lane.b32.xlu0 %v3665, 127
        %v3699 = vpop.permute.xlu0 %3698
        %3700 = vrot.lane.b32.xlu0 %v3666, 127
        %v3701 = vpop.permute.xlu0 %3700
        %3702 = vrot.lane.b32.xlu0 %v3667, 127
        %v3703 = vpop.permute.xlu0 %3702
        %3704 = vrot.lane.b32.xlu0 %v3668, 127
        %v3705 = vpop.permute.xlu0 %3704
        %3706 = vrot.lane.b32.xlu0 %v3669, 127
        %v3707 = vpop.permute.xlu0 %3706
        %3708 = vrot.lane.b32.xlu0 %v3670, 127
        %v3709 = vpop.permute.xlu0 %3708
        %3710 = vrot.lane.b32.xlu0 %v3671, 127
        %v3711 = vpop.permute.xlu0 %3710
        %3712 = vrot.lane.b32.xlu0 %v3672, 127
        %v3713 = vpop.permute.xlu0 %3712
        %3714 = vrot.lane.b32.xlu0 %v3673, 127
        %v3715 = vpop.permute.xlu0 %3714
        %3716 = vrot.lane.b32.xlu0 %v3674, 127
        %v3717 = vpop.permute.xlu0 %3716
        %3718 = vrot.lane.b32.xlu0 %v3675, 127
        %v3719 = vpop.permute.xlu0 %3718
        %3720 = vrot.lane.b32.xlu0 %v3676, 127
        %v3721 = vpop.permute.xlu0 %3720
        %3722 = vrot.lane.b32.xlu0 %v3677, 127
        %v3723 = vpop.permute.xlu0 %3722
        %3724 = vrot.lane.b32.xlu0 %v3678, 127
        %v3725 = vpop.permute.xlu0 %3724
        %3726 = vrot.lane.b32.xlu0 %v3679, 127
        %v3727 = vpop.permute.xlu0 %3726
        %v3728 = vsel %vm1630, %v3697, %v3699
        %v3729 = vsel %vm1630, %v3699, %v3701
        %v3730 = vsel %vm1630, %v3701, %v3703
        %v3731 = vsel %vm1630, %v3705, %v3707
        %v3732 = vsel %vm1630, %v3707, %v3709
        %v3733 = vsel %vm1630, %v3709, %v3711
        %v3734 = vsel %vm1630, %v3713, %v3715
        %v3735 = vsel %vm1630, %v3715, %v3717
        %v3736 = vsel %vm1630, %v3717, %v3719
        %v3737 = vsel %vm1630, %v3721, %v3723
        %v3738 = vsel %vm1630, %v3723, %v3725
        %v3739 = vsel %vm1630, %v3725, %v3727
        %v3752 = vadd.f32 %v3636, %v3728
        %v3753 = vadd.f32 %v3637, %v3729
        %v3754 = vadd.f32 %v3638, %v3730
        %v3755 = vadd.f32 %v3639, %v3731
        %v3756 = vadd.f32 %v3640, %v3732
        %v3757 = vadd.f32 %v3641, %v3733
        %v3758 = vadd.f32 %v3642, %v3734
        %v3759 = vadd.f32 %v3643, %v3735
        %v3760 = vadd.f32 %v3644, %v3736
        %v3761 = vadd.f32 %v3645, %v3737
        %v3762 = vadd.f32 %v3646, %v3738
        %v3763 = vadd.f32 %v3647, %v3739
        %3764 = vset.pattern.permute.xlu0 2
        %3765 = vperm.xlu0 %3764, %v432
        %v3766 = vpop.permute.xlu0 %3765
        %3768 = vset.pattern.permute.xlu0 2
        %3769 = vperm.xlu0 %3768, %v433
        %v3770 = vpop.permute.xlu0 %3769
        %3772 = vset.pattern.permute.xlu0 2
        %3773 = vperm.xlu0 %3772, %v434
        %v3774 = vpop.permute.xlu0 %3773
        %3776 = vset.pattern.permute.xlu0 2
        %3777 = vperm.xlu0 %3776, %v435
        %v3778 = vpop.permute.xlu0 %3777
        %v3780 = vmul.f32 %v3766, %v412
        %v3781 = vmul.f32 %v3766, %v413
        %v3782 = vmul.f32 %v3766, %v414
        %v3783 = vmul.f32 %v3766, %v415
        %v3784 = vmul.f32 %v3770, %v416
        %v3785 = vmul.f32 %v3770, %v417
        %v3786 = vmul.f32 %v3770, %v418
        %v3787 = vmul.f32 %v3770, %v419
        %v3788 = vmul.f32 %v3774, %v420
        %v3789 = vmul.f32 %v3774, %v421
        %v3790 = vmul.f32 %v3774, %v422
        %v3791 = vmul.f32 %v3774, %v423
        %v3792 = vmul.f32 %v3778, %v424
        %v3793 = vmul.f32 %v3778, %v425
        %v3794 = vmul.f32 %v3778, %v426
        %v3795 = vmul.f32 %v3778, %v427
        %3812 = vrot.lane.b32.xlu0 %v3780, 126
        %v3813 = vpop.permute.xlu0 %3812
        %3814 = vrot.lane.b32.xlu0 %v3781, 126
        %v3815 = vpop.permute.xlu0 %3814
        %3816 = vrot.lane.b32.xlu0 %v3782, 126
        %v3817 = vpop.permute.xlu0 %3816
        %3818 = vrot.lane.b32.xlu0 %v3783, 126
        %v3819 = vpop.permute.xlu0 %3818
        %3820 = vrot.lane.b32.xlu0 %v3784, 126
        %v3821 = vpop.permute.xlu0 %3820
        %3822 = vrot.lane.b32.xlu0 %v3785, 126
        %v3823 = vpop.permute.xlu0 %3822
        %3824 = vrot.lane.b32.xlu0 %v3786, 126
        %v3825 = vpop.permute.xlu0 %3824
        %3826 = vrot.lane.b32.xlu0 %v3787, 126
        %v3827 = vpop.permute.xlu0 %3826
        %3828 = vrot.lane.b32.xlu0 %v3788, 126
        %v3829 = vpop.permute.xlu0 %3828
        %3830 = vrot.lane.b32.xlu0 %v3789, 126
        %v3831 = vpop.permute.xlu0 %3830
        %3832 = vrot.lane.b32.xlu0 %v3790, 126
        %v3833 = vpop.permute.xlu0 %3832
        %3834 = vrot.lane.b32.xlu0 %v3791, 126
        %v3835 = vpop.permute.xlu0 %3834
        %3836 = vrot.lane.b32.xlu0 %v3792, 126
        %v3837 = vpop.permute.xlu0 %3836
        %3838 = vrot.lane.b32.xlu0 %v3793, 126
        %v3839 = vpop.permute.xlu0 %3838
        %3840 = vrot.lane.b32.xlu0 %v3794, 126
        %v3841 = vpop.permute.xlu0 %3840
        %3842 = vrot.lane.b32.xlu0 %v3795, 126
        %v3843 = vpop.permute.xlu0 %3842
        %v3844 = vsel %vm1755, %v3813, %v3815
        %v3845 = vsel %vm1755, %v3815, %v3817
        %v3846 = vsel %vm1755, %v3817, %v3819
        %v3847 = vsel %vm1755, %v3821, %v3823
        %v3848 = vsel %vm1755, %v3823, %v3825
        %v3849 = vsel %vm1755, %v3825, %v3827
        %v3850 = vsel %vm1755, %v3829, %v3831
        %v3851 = vsel %vm1755, %v3831, %v3833
        %v3852 = vsel %vm1755, %v3833, %v3835
        %v3853 = vsel %vm1755, %v3837, %v3839
        %v3854 = vsel %vm1755, %v3839, %v3841
        %v3855 = vsel %vm1755, %v3841, %v3843
        %v3868 = vadd.f32 %v3752, %v3844
        %v3869 = vadd.f32 %v3753, %v3845
        %v3870 = vadd.f32 %v3754, %v3846
        %v3871 = vadd.f32 %v3755, %v3847
        %v3872 = vadd.f32 %v3756, %v3848
        %v3873 = vadd.f32 %v3757, %v3849
        %v3874 = vadd.f32 %v3758, %v3850
        %v3875 = vadd.f32 %v3759, %v3851
        %v3876 = vadd.f32 %v3760, %v3852
        %v3877 = vadd.f32 %v3761, %v3853
        %v3878 = vadd.f32 %v3762, %v3854
        %v3879 = vadd.f32 %v3763, %v3855
        %3880 = vset.pattern.permute.xlu0 3
        %3881 = vperm.xlu0 %3880, %v432
        %v3882 = vpop.permute.xlu0 %3881
        %3884 = vset.pattern.permute.xlu0 3
        %3885 = vperm.xlu0 %3884, %v433
        %v3886 = vpop.permute.xlu0 %3885
        %3888 = vset.pattern.permute.xlu0 3
        %3889 = vperm.xlu0 %3888, %v434
        %v3890 = vpop.permute.xlu0 %3889
        %3892 = vset.pattern.permute.xlu0 3
        %3893 = vperm.xlu0 %3892, %v435
        %v3894 = vpop.permute.xlu0 %3893
        %v3896 = vmul.f32 %v3882, %v412
        %v3897 = vmul.f32 %v3882, %v413
        %v3898 = vmul.f32 %v3882, %v414
        %v3899 = vmul.f32 %v3882, %v415
        %v3900 = vmul.f32 %v3886, %v416
        %v3901 = vmul.f32 %v3886, %v417
        %v3902 = vmul.f32 %v3886, %v418
        %v3903 = vmul.f32 %v3886, %v419
        %v3904 = vmul.f32 %v3890, %v420
        %v3905 = vmul.f32 %v3890, %v421
        %v3906 = vmul.f32 %v3890, %v422
        %v3907 = vmul.f32 %v3890, %v423
        %v3908 = vmul.f32 %v3894, %v424
        %v3909 = vmul.f32 %v3894, %v425
        %v3910 = vmul.f32 %v3894, %v426
        %v3911 = vmul.f32 %v3894, %v427
        %3928 = vrot.lane.b32.xlu0 %v3896, 125
        %v3929 = vpop.permute.xlu0 %3928
        %3930 = vrot.lane.b32.xlu0 %v3897, 125
        %v3931 = vpop.permute.xlu0 %3930
        %3932 = vrot.lane.b32.xlu0 %v3898, 125
        %v3933 = vpop.permute.xlu0 %3932
        %3934 = vrot.lane.b32.xlu0 %v3899, 125
        %v3935 = vpop.permute.xlu0 %3934
        %3936 = vrot.lane.b32.xlu0 %v3900, 125
        %v3937 = vpop.permute.xlu0 %3936
        %3938 = vrot.lane.b32.xlu0 %v3901, 125
        %v3939 = vpop.permute.xlu0 %3938
        %3940 = vrot.lane.b32.xlu0 %v3902, 125
        %v3941 = vpop.permute.xlu0 %3940
        %3942 = vrot.lane.b32.xlu0 %v3903, 125
        %v3943 = vpop.permute.xlu0 %3942
        %3944 = vrot.lane.b32.xlu0 %v3904, 125
        %v3945 = vpop.permute.xlu0 %3944
        %3946 = vrot.lane.b32.xlu0 %v3905, 125
        %v3947 = vpop.permute.xlu0 %3946
        %3948 = vrot.lane.b32.xlu0 %v3906, 125
        %v3949 = vpop.permute.xlu0 %3948
        %3950 = vrot.lane.b32.xlu0 %v3907, 125
        %v3951 = vpop.permute.xlu0 %3950
        %3952 = vrot.lane.b32.xlu0 %v3908, 125
        %v3953 = vpop.permute.xlu0 %3952
        %3954 = vrot.lane.b32.xlu0 %v3909, 125
        %v3955 = vpop.permute.xlu0 %3954
        %3956 = vrot.lane.b32.xlu0 %v3910, 125
        %v3957 = vpop.permute.xlu0 %3956
        %3958 = vrot.lane.b32.xlu0 %v3911, 125
        %v3959 = vpop.permute.xlu0 %3958
        %vm3960 = vcmask 1022976
        %v3961 = vsel %vm3960, %v3929, %v3931
        %v3962 = vsel %vm3960, %v3931, %v3933
        %v3963 = vsel %vm3960, %v3933, %v3935
        %v3964 = vsel %vm3960, %v3937, %v3939
        %v3965 = vsel %vm3960, %v3939, %v3941
        %v3966 = vsel %vm3960, %v3941, %v3943
        %v3967 = vsel %vm3960, %v3945, %v3947
        %v3968 = vsel %vm3960, %v3947, %v3949
        %v3969 = vsel %vm3960, %v3949, %v3951
        %v3970 = vsel %vm3960, %v3953, %v3955
        %v3971 = vsel %vm3960, %v3955, %v3957
        %v3972 = vsel %vm3960, %v3957, %v3959
        %v3985 = vadd.f32 %v3868, %v3961
        %v3986 = vadd.f32 %v3869, %v3962
        %v3987 = vadd.f32 %v3870, %v3963
        %v3988 = vadd.f32 %v3871, %v3964
        %v3989 = vadd.f32 %v3872, %v3965
        %v3990 = vadd.f32 %v3873, %v3966
        %v3991 = vadd.f32 %v3874, %v3967
        %v3992 = vadd.f32 %v3875, %v3968
        %v3993 = vadd.f32 %v3876, %v3969
        %v3994 = vadd.f32 %v3877, %v3970
        %v3995 = vadd.f32 %v3878, %v3971
        %v3996 = vadd.f32 %v3879, %v3972
        %3997 = vset.pattern.permute.xlu0 4
        %3998 = vperm.xlu0 %3997, %v432
        %v3999 = vpop.permute.xlu0 %3998
        %4001 = vset.pattern.permute.xlu0 4
        %4002 = vperm.xlu0 %4001, %v433
        %v4003 = vpop.permute.xlu0 %4002
        %4005 = vset.pattern.permute.xlu0 4
        %4006 = vperm.xlu0 %4005, %v434
        %v4007 = vpop.permute.xlu0 %4006
        %4009 = vset.pattern.permute.xlu0 4
        %4010 = vperm.xlu0 %4009, %v435
        %v4011 = vpop.permute.xlu0 %4010
        %v4013 = vmul.f32 %v3999, %v412
        %v4014 = vmul.f32 %v3999, %v413
        %v4015 = vmul.f32 %v3999, %v414
        %v4016 = vmul.f32 %v3999, %v415
        %v4017 = vmul.f32 %v4003, %v416
        %v4018 = vmul.f32 %v4003, %v417
        %v4019 = vmul.f32 %v4003, %v418
        %v4020 = vmul.f32 %v4003, %v419
        %v4021 = vmul.f32 %v4007, %v420
        %v4022 = vmul.f32 %v4007, %v421
        %v4023 = vmul.f32 %v4007, %v422
        %v4024 = vmul.f32 %v4007, %v423
        %v4025 = vmul.f32 %v4011, %v424
        %v4026 = vmul.f32 %v4011, %v425
        %v4027 = vmul.f32 %v4011, %v426
        %v4028 = vmul.f32 %v4011, %v427
        %4045 = vrot.lane.b32.xlu0 %v4013, 124
        %v4046 = vpop.permute.xlu0 %4045
        %4047 = vrot.lane.b32.xlu0 %v4014, 124
        %v4048 = vpop.permute.xlu0 %4047
        %4049 = vrot.lane.b32.xlu0 %v4015, 124
        %v4050 = vpop.permute.xlu0 %4049
        %4051 = vrot.lane.b32.xlu0 %v4016, 124
        %v4052 = vpop.permute.xlu0 %4051
        %4053 = vrot.lane.b32.xlu0 %v4017, 124
        %v4054 = vpop.permute.xlu0 %4053
        %4055 = vrot.lane.b32.xlu0 %v4018, 124
        %v4056 = vpop.permute.xlu0 %4055
        %4057 = vrot.lane.b32.xlu0 %v4019, 124
        %v4058 = vpop.permute.xlu0 %4057
        %4059 = vrot.lane.b32.xlu0 %v4020, 124
        %v4060 = vpop.permute.xlu0 %4059
        %4061 = vrot.lane.b32.xlu0 %v4021, 124
        %v4062 = vpop.permute.xlu0 %4061
        %4063 = vrot.lane.b32.xlu0 %v4022, 124
        %v4064 = vpop.permute.xlu0 %4063
        %4065 = vrot.lane.b32.xlu0 %v4023, 124
        %v4066 = vpop.permute.xlu0 %4065
        %4067 = vrot.lane.b32.xlu0 %v4024, 124
        %v4068 = vpop.permute.xlu0 %4067
        %4069 = vrot.lane.b32.xlu0 %v4025, 124
        %v4070 = vpop.permute.xlu0 %4069
        %4071 = vrot.lane.b32.xlu0 %v4026, 124
        %v4072 = vpop.permute.xlu0 %4071
        %4073 = vrot.lane.b32.xlu0 %v4027, 124
        %v4074 = vpop.permute.xlu0 %4073
        %4075 = vrot.lane.b32.xlu0 %v4028, 124
        %v4076 = vpop.permute.xlu0 %4075
        %vm4077 = vcmask 1014784
        %v4078 = vsel %vm4077, %v4046, %v4048
        %v4079 = vsel %vm4077, %v4048, %v4050
        %v4080 = vsel %vm4077, %v4050, %v4052
        %v4081 = vsel %vm4077, %v4054, %v4056
        %v4082 = vsel %vm4077, %v4056, %v4058
        %v4083 = vsel %vm4077, %v4058, %v4060
        %v4084 = vsel %vm4077, %v4062, %v4064
        %v4085 = vsel %vm4077, %v4064, %v4066
        %v4086 = vsel %vm4077, %v4066, %v4068
        %v4087 = vsel %vm4077, %v4070, %v4072
        %v4088 = vsel %vm4077, %v4072, %v4074
        %v4089 = vsel %vm4077, %v4074, %v4076
        %v4102 = vadd.f32 %v3985, %v4078
        %v4103 = vadd.f32 %v3986, %v4079
        %v4104 = vadd.f32 %v3987, %v4080
        %v4105 = vadd.f32 %v3988, %v4081
        %v4106 = vadd.f32 %v3989, %v4082
        %v4107 = vadd.f32 %v3990, %v4083
        %v4108 = vadd.f32 %v3991, %v4084
        %v4109 = vadd.f32 %v3992, %v4085
        %v4110 = vadd.f32 %v3993, %v4086
        %v4111 = vadd.f32 %v3994, %v4087
        %v4112 = vadd.f32 %v3995, %v4088
        %v4113 = vadd.f32 %v3996, %v4089
        %4114 = vset.pattern.permute.xlu0 5
        %4115 = vperm.xlu0 %4114, %v432
        %v4116 = vpop.permute.xlu0 %4115
        %4118 = vset.pattern.permute.xlu0 5
        %4119 = vperm.xlu0 %4118, %v433
        %v4120 = vpop.permute.xlu0 %4119
        %4122 = vset.pattern.permute.xlu0 5
        %4123 = vperm.xlu0 %4122, %v434
        %v4124 = vpop.permute.xlu0 %4123
        %4126 = vset.pattern.permute.xlu0 5
        %4127 = vperm.xlu0 %4126, %v435
        %v4128 = vpop.permute.xlu0 %4127
        %v4130 = vmul.f32 %v4116, %v412
        %v4131 = vmul.f32 %v4116, %v413
        %v4132 = vmul.f32 %v4116, %v414
        %v4133 = vmul.f32 %v4116, %v415
        %v4134 = vmul.f32 %v4120, %v416
        %v4135 = vmul.f32 %v4120, %v417
        %v4136 = vmul.f32 %v4120, %v418
        %v4137 = vmul.f32 %v4120, %v419
        %v4138 = vmul.f32 %v4124, %v420
        %v4139 = vmul.f32 %v4124, %v421
        %v4140 = vmul.f32 %v4124, %v422
        %v4141 = vmul.f32 %v4124, %v423
        %v4142 = vmul.f32 %v4128, %v424
        %v4143 = vmul.f32 %v4128, %v425
        %v4144 = vmul.f32 %v4128, %v426
        %v4145 = vmul.f32 %v4128, %v427
        %4162 = vrot.lane.b32.xlu0 %v4130, 104
        %v4163 = vpop.permute.xlu0 %4162
        %4164 = vrot.lane.b32.xlu0 %v4131, 104
        %v4165 = vpop.permute.xlu0 %4164
        %4166 = vrot.lane.b32.xlu0 %v4132, 104
        %v4167 = vpop.permute.xlu0 %4166
        %4168 = vrot.lane.b32.xlu0 %v4133, 104
        %v4169 = vpop.permute.xlu0 %4168
        %4170 = vrot.lane.b32.xlu0 %v4134, 104
        %v4171 = vpop.permute.xlu0 %4170
        %4172 = vrot.lane.b32.xlu0 %v4135, 104
        %v4173 = vpop.permute.xlu0 %4172
        %4174 = vrot.lane.b32.xlu0 %v4136, 104
        %v4175 = vpop.permute.xlu0 %4174
        %4176 = vrot.lane.b32.xlu0 %v4137, 104
        %v4177 = vpop.permute.xlu0 %4176
        %4178 = vrot.lane.b32.xlu0 %v4138, 104
        %v4179 = vpop.permute.xlu0 %4178
        %4180 = vrot.lane.b32.xlu0 %v4139, 104
        %v4181 = vpop.permute.xlu0 %4180
        %4182 = vrot.lane.b32.xlu0 %v4140, 104
        %v4183 = vpop.permute.xlu0 %4182
        %4184 = vrot.lane.b32.xlu0 %v4141, 104
        %v4185 = vpop.permute.xlu0 %4184
        %4186 = vrot.lane.b32.xlu0 %v4142, 104
        %v4187 = vpop.permute.xlu0 %4186
        %4188 = vrot.lane.b32.xlu0 %v4143, 104
        %v4189 = vpop.permute.xlu0 %4188
        %4190 = vrot.lane.b32.xlu0 %v4144, 104
        %v4191 = vpop.permute.xlu0 %4190
        %4192 = vrot.lane.b32.xlu0 %v4145, 104
        %v4193 = vpop.permute.xlu0 %4192
        %v4194 = vsel %vm1880, %v4163, %v4165
        %v4195 = vsel %vm1880, %v4165, %v4167
        %v4196 = vsel %vm1880, %v4167, %v4169
        %v4197 = vsel %vm1880, %v4171, %v4173
        %v4198 = vsel %vm1880, %v4173, %v4175
        %v4199 = vsel %vm1880, %v4175, %v4177
        %v4200 = vsel %vm1880, %v4179, %v4181
        %v4201 = vsel %vm1880, %v4181, %v4183
        %v4202 = vsel %vm1880, %v4183, %v4185
        %v4203 = vsel %vm1880, %v4187, %v4189
        %v4204 = vsel %vm1880, %v4189, %v4191
        %v4205 = vsel %vm1880, %v4191, %v4193
        %v4218 = vadd.f32 %v4102, %v4194
        %v4219 = vadd.f32 %v4103, %v4195
        %v4220 = vadd.f32 %v4104, %v4196
        %v4221 = vadd.f32 %v4105, %v4197
        %v4222 = vadd.f32 %v4106, %v4198
        %v4223 = vadd.f32 %v4107, %v4199
        %v4224 = vadd.f32 %v4108, %v4200
        %v4225 = vadd.f32 %v4109, %v4201
        %v4226 = vadd.f32 %v4110, %v4202
        %v4227 = vadd.f32 %v4111, %v4203
        %v4228 = vadd.f32 %v4112, %v4204
        %v4229 = vadd.f32 %v4113, %v4205
        %4230 = vset.pattern.permute.xlu0 6
        %4231 = vperm.xlu0 %4230, %v432
        %v4232 = vpop.permute.xlu0 %4231
        %4234 = vset.pattern.permute.xlu0 6
        %4235 = vperm.xlu0 %4234, %v433
        %v4236 = vpop.permute.xlu0 %4235
        %4238 = vset.pattern.permute.xlu0 6
        %4239 = vperm.xlu0 %4238, %v434
        %v4240 = vpop.permute.xlu0 %4239
        %4242 = vset.pattern.permute.xlu0 6
        %4243 = vperm.xlu0 %4242, %v435
        %v4244 = vpop.permute.xlu0 %4243
        %v4246 = vmul.f32 %v4232, %v412
        %v4247 = vmul.f32 %v4232, %v413
        %v4248 = vmul.f32 %v4232, %v414
        %v4249 = vmul.f32 %v4232, %v415
        %v4250 = vmul.f32 %v4236, %v416
        %v4251 = vmul.f32 %v4236, %v417
        %v4252 = vmul.f32 %v4236, %v418
        %v4253 = vmul.f32 %v4236, %v419
        %v4254 = vmul.f32 %v4240, %v420
        %v4255 = vmul.f32 %v4240, %v421
        %v4256 = vmul.f32 %v4240, %v422
        %v4257 = vmul.f32 %v4240, %v423
        %v4258 = vmul.f32 %v4244, %v424
        %v4259 = vmul.f32 %v4244, %v425
        %v4260 = vmul.f32 %v4244, %v426
        %v4261 = vmul.f32 %v4244, %v427
        %4278 = vrot.lane.b32.xlu0 %v4246, 103
        %v4279 = vpop.permute.xlu0 %4278
        %4280 = vrot.lane.b32.xlu0 %v4247, 103
        %v4281 = vpop.permute.xlu0 %4280
        %4282 = vrot.lane.b32.xlu0 %v4248, 103
        %v4283 = vpop.permute.xlu0 %4282
        %4284 = vrot.lane.b32.xlu0 %v4249, 103
        %v4285 = vpop.permute.xlu0 %4284
        %4286 = vrot.lane.b32.xlu0 %v4250, 103
        %v4287 = vpop.permute.xlu0 %4286
        %4288 = vrot.lane.b32.xlu0 %v4251, 103
        %v4289 = vpop.permute.xlu0 %4288
        %4290 = vrot.lane.b32.xlu0 %v4252, 103
        %v4291 = vpop.permute.xlu0 %4290
        %4292 = vrot.lane.b32.xlu0 %v4253, 103
        %v4293 = vpop.permute.xlu0 %4292
        %4294 = vrot.lane.b32.xlu0 %v4254, 103
        %v4295 = vpop.permute.xlu0 %4294
        %4296 = vrot.lane.b32.xlu0 %v4255, 103
        %v4297 = vpop.permute.xlu0 %4296
        %4298 = vrot.lane.b32.xlu0 %v4256, 103
        %v4299 = vpop.permute.xlu0 %4298
        %4300 = vrot.lane.b32.xlu0 %v4257, 103
        %v4301 = vpop.permute.xlu0 %4300
        %4302 = vrot.lane.b32.xlu0 %v4258, 103
        %v4303 = vpop.permute.xlu0 %4302
        %4304 = vrot.lane.b32.xlu0 %v4259, 103
        %v4305 = vpop.permute.xlu0 %4304
        %4306 = vrot.lane.b32.xlu0 %v4260, 103
        %v4307 = vpop.permute.xlu0 %4306
        %4308 = vrot.lane.b32.xlu0 %v4261, 103
        %v4309 = vpop.permute.xlu0 %4308
        %v4310 = vsel %vm2005, %v4279, %v4281
        %v4311 = vsel %vm2005, %v4281, %v4283
        %v4312 = vsel %vm2005, %v4283, %v4285
        %v4313 = vsel %vm2005, %v4287, %v4289
        %v4314 = vsel %vm2005, %v4289, %v4291
        %v4315 = vsel %vm2005, %v4291, %v4293
        %v4316 = vsel %vm2005, %v4295, %v4297
        %v4317 = vsel %vm2005, %v4297, %v4299
        %v4318 = vsel %vm2005, %v4299, %v4301
        %v4319 = vsel %vm2005, %v4303, %v4305
        %v4320 = vsel %vm2005, %v4305, %v4307
        %v4321 = vsel %vm2005, %v4307, %v4309
        %v4334 = vadd.f32 %v4218, %v4310
        %v4335 = vadd.f32 %v4219, %v4311
        %v4336 = vadd.f32 %v4220, %v4312
        %v4337 = vadd.f32 %v4221, %v4313
        %v4338 = vadd.f32 %v4222, %v4314
        %v4339 = vadd.f32 %v4223, %v4315
        %v4340 = vadd.f32 %v4224, %v4316
        %v4341 = vadd.f32 %v4225, %v4317
        %v4342 = vadd.f32 %v4226, %v4318
        %v4343 = vadd.f32 %v4227, %v4319
        %v4344 = vadd.f32 %v4228, %v4320
        %v4345 = vadd.f32 %v4229, %v4321
        %4346 = vset.pattern.permute.xlu0 7
        %4347 = vperm.xlu0 %4346, %v432
        %v4348 = vpop.permute.xlu0 %4347
        %4350 = vset.pattern.permute.xlu0 7
        %4351 = vperm.xlu0 %4350, %v433
        %v4352 = vpop.permute.xlu0 %4351
        %4354 = vset.pattern.permute.xlu0 7
        %4355 = vperm.xlu0 %4354, %v434
        %v4356 = vpop.permute.xlu0 %4355
        %4358 = vset.pattern.permute.xlu0 7
        %4359 = vperm.xlu0 %4358, %v435
        %v4360 = vpop.permute.xlu0 %4359
        %v4362 = vmul.f32 %v4348, %v412
        %v4363 = vmul.f32 %v4348, %v413
        %v4364 = vmul.f32 %v4348, %v414
        %v4365 = vmul.f32 %v4348, %v415
        %v4366 = vmul.f32 %v4352, %v416
        %v4367 = vmul.f32 %v4352, %v417
        %v4368 = vmul.f32 %v4352, %v418
        %v4369 = vmul.f32 %v4352, %v419
        %v4370 = vmul.f32 %v4356, %v420
        %v4371 = vmul.f32 %v4356, %v421
        %v4372 = vmul.f32 %v4356, %v422
        %v4373 = vmul.f32 %v4356, %v423
        %v4374 = vmul.f32 %v4360, %v424
        %v4375 = vmul.f32 %v4360, %v425
        %v4376 = vmul.f32 %v4360, %v426
        %v4377 = vmul.f32 %v4360, %v427
        %4394 = vrot.lane.b32.xlu0 %v4362, 102
        %v4395 = vpop.permute.xlu0 %4394
        %4396 = vrot.lane.b32.xlu0 %v4363, 102
        %v4397 = vpop.permute.xlu0 %4396
        %4398 = vrot.lane.b32.xlu0 %v4364, 102
        %v4399 = vpop.permute.xlu0 %4398
        %4400 = vrot.lane.b32.xlu0 %v4365, 102
        %v4401 = vpop.permute.xlu0 %4400
        %4402 = vrot.lane.b32.xlu0 %v4366, 102
        %v4403 = vpop.permute.xlu0 %4402
        %4404 = vrot.lane.b32.xlu0 %v4367, 102
        %v4405 = vpop.permute.xlu0 %4404
        %4406 = vrot.lane.b32.xlu0 %v4368, 102
        %v4407 = vpop.permute.xlu0 %4406
        %4408 = vrot.lane.b32.xlu0 %v4369, 102
        %v4409 = vpop.permute.xlu0 %4408
        %4410 = vrot.lane.b32.xlu0 %v4370, 102
        %v4411 = vpop.permute.xlu0 %4410
        %4412 = vrot.lane.b32.xlu0 %v4371, 102
        %v4413 = vpop.permute.xlu0 %4412
        %4414 = vrot.lane.b32.xlu0 %v4372, 102
        %v4415 = vpop.permute.xlu0 %4414
        %4416 = vrot.lane.b32.xlu0 %v4373, 102
        %v4417 = vpop.permute.xlu0 %4416
        %4418 = vrot.lane.b32.xlu0 %v4374, 102
        %v4419 = vpop.permute.xlu0 %4418
        %4420 = vrot.lane.b32.xlu0 %v4375, 102
        %v4421 = vpop.permute.xlu0 %4420
        %4422 = vrot.lane.b32.xlu0 %v4376, 102
        %v4423 = vpop.permute.xlu0 %4422
        %4424 = vrot.lane.b32.xlu0 %v4377, 102
        %v4425 = vpop.permute.xlu0 %4424
        %v4426 = vsel %vm2130, %v4395, %v4397
        %v4427 = vsel %vm2130, %v4397, %v4399
        %v4428 = vsel %vm2130, %v4399, %v4401
        %v4429 = vsel %vm2130, %v4403, %v4405
        %v4430 = vsel %vm2130, %v4405, %v4407
        %v4431 = vsel %vm2130, %v4407, %v4409
        %v4432 = vsel %vm2130, %v4411, %v4413
        %v4433 = vsel %vm2130, %v4413, %v4415
        %v4434 = vsel %vm2130, %v4415, %v4417
        %v4435 = vsel %vm2130, %v4419, %v4421
        %v4436 = vsel %vm2130, %v4421, %v4423
        %v4437 = vsel %vm2130, %v4423, %v4425
        %v4450 = vadd.f32 %v4334, %v4426
        %v4451 = vadd.f32 %v4335, %v4427
        %v4452 = vadd.f32 %v4336, %v4428
        %v4453 = vadd.f32 %v4337, %v4429
        %v4454 = vadd.f32 %v4338, %v4430
        %v4455 = vadd.f32 %v4339, %v4431
        %v4456 = vadd.f32 %v4340, %v4432
        %v4457 = vadd.f32 %v4341, %v4433
        %v4458 = vadd.f32 %v4342, %v4434
        %v4459 = vadd.f32 %v4343, %v4435
        %v4460 = vadd.f32 %v4344, %v4436
        %v4461 = vadd.f32 %v4345, %v4437
        %4462 = vset.pattern.permute.xlu0 8
        %4463 = vperm.xlu0 %4462, %v432
        %v4464 = vpop.permute.xlu0 %4463
        %4466 = vset.pattern.permute.xlu0 8
        %4467 = vperm.xlu0 %4466, %v433
        %v4468 = vpop.permute.xlu0 %4467
        %4470 = vset.pattern.permute.xlu0 8
        %4471 = vperm.xlu0 %4470, %v434
        %v4472 = vpop.permute.xlu0 %4471
        %4474 = vset.pattern.permute.xlu0 8
        %4475 = vperm.xlu0 %4474, %v435
        %v4476 = vpop.permute.xlu0 %4475
        %v4478 = vmul.f32 %v4464, %v412
        %v4479 = vmul.f32 %v4464, %v413
        %v4480 = vmul.f32 %v4464, %v414
        %v4481 = vmul.f32 %v4464, %v415
        %v4482 = vmul.f32 %v4468, %v416
        %v4483 = vmul.f32 %v4468, %v417
        %v4484 = vmul.f32 %v4468, %v418
        %v4485 = vmul.f32 %v4468, %v419
        %v4486 = vmul.f32 %v4472, %v420
        %v4487 = vmul.f32 %v4472, %v421
        %v4488 = vmul.f32 %v4472, %v422
        %v4489 = vmul.f32 %v4472, %v423
        %v4490 = vmul.f32 %v4476, %v424
        %v4491 = vmul.f32 %v4476, %v425
        %v4492 = vmul.f32 %v4476, %v426
        %v4493 = vmul.f32 %v4476, %v427
        %4510 = vrot.lane.b32.xlu0 %v4478, 101
        %v4511 = vpop.permute.xlu0 %4510
        %4512 = vrot.lane.b32.xlu0 %v4479, 101
        %v4513 = vpop.permute.xlu0 %4512
        %4514 = vrot.lane.b32.xlu0 %v4480, 101
        %v4515 = vpop.permute.xlu0 %4514
        %4516 = vrot.lane.b32.xlu0 %v4481, 101
        %v4517 = vpop.permute.xlu0 %4516
        %4518 = vrot.lane.b32.xlu0 %v4482, 101
        %v4519 = vpop.permute.xlu0 %4518
        %4520 = vrot.lane.b32.xlu0 %v4483, 101
        %v4521 = vpop.permute.xlu0 %4520
        %4522 = vrot.lane.b32.xlu0 %v4484, 101
        %v4523 = vpop.permute.xlu0 %4522
        %4524 = vrot.lane.b32.xlu0 %v4485, 101
        %v4525 = vpop.permute.xlu0 %4524
        %4526 = vrot.lane.b32.xlu0 %v4486, 101
        %v4527 = vpop.permute.xlu0 %4526
        %4528 = vrot.lane.b32.xlu0 %v4487, 101
        %v4529 = vpop.permute.xlu0 %4528
        %4530 = vrot.lane.b32.xlu0 %v4488, 101
        %v4531 = vpop.permute.xlu0 %4530
        %4532 = vrot.lane.b32.xlu0 %v4489, 101
        %v4533 = vpop.permute.xlu0 %4532
        %4534 = vrot.lane.b32.xlu0 %v4490, 101
        %v4535 = vpop.permute.xlu0 %4534
        %4536 = vrot.lane.b32.xlu0 %v4491, 101
        %v4537 = vpop.permute.xlu0 %4536
        %4538 = vrot.lane.b32.xlu0 %v4492, 101
        %v4539 = vpop.permute.xlu0 %4538
        %4540 = vrot.lane.b32.xlu0 %v4493, 101
        %v4541 = vpop.permute.xlu0 %4540
        %vm4542 = vcmask 826368
        %v4543 = vsel %vm4542, %v4511, %v4513
        %v4544 = vsel %vm4542, %v4513, %v4515
        %v4545 = vsel %vm4542, %v4515, %v4517
        %v4546 = vsel %vm4542, %v4519, %v4521
        %v4547 = vsel %vm4542, %v4521, %v4523
        %v4548 = vsel %vm4542, %v4523, %v4525
        %v4549 = vsel %vm4542, %v4527, %v4529
        %v4550 = vsel %vm4542, %v4529, %v4531
        %v4551 = vsel %vm4542, %v4531, %v4533
        %v4552 = vsel %vm4542, %v4535, %v4537
        %v4553 = vsel %vm4542, %v4537, %v4539
        %v4554 = vsel %vm4542, %v4539, %v4541
        %v4567 = vadd.f32 %v4450, %v4543
        %v4568 = vadd.f32 %v4451, %v4544
        %v4569 = vadd.f32 %v4452, %v4545
        %v4570 = vadd.f32 %v4453, %v4546
        %v4571 = vadd.f32 %v4454, %v4547
        %v4572 = vadd.f32 %v4455, %v4548
        %v4573 = vadd.f32 %v4456, %v4549
        %v4574 = vadd.f32 %v4457, %v4550
        %v4575 = vadd.f32 %v4458, %v4551
        %v4576 = vadd.f32 %v4459, %v4552
        %v4577 = vadd.f32 %v4460, %v4553
        %v4578 = vadd.f32 %v4461, %v4554
        %4579 = vset.pattern.permute.xlu0 9
        %4580 = vperm.xlu0 %4579, %v432
        %v4581 = vpop.permute.xlu0 %4580
        %4583 = vset.pattern.permute.xlu0 9
        %4584 = vperm.xlu0 %4583, %v433
        %v4585 = vpop.permute.xlu0 %4584
        %4587 = vset.pattern.permute.xlu0 9
        %4588 = vperm.xlu0 %4587, %v434
        %v4589 = vpop.permute.xlu0 %4588
        %4591 = vset.pattern.permute.xlu0 9
        %4592 = vperm.xlu0 %4591, %v435
        %v4593 = vpop.permute.xlu0 %4592
        %v4595 = vmul.f32 %v4581, %v412
        %v4596 = vmul.f32 %v4581, %v413
        %v4597 = vmul.f32 %v4581, %v414
        %v4598 = vmul.f32 %v4581, %v415
        %v4599 = vmul.f32 %v4585, %v416
        %v4600 = vmul.f32 %v4585, %v417
        %v4601 = vmul.f32 %v4585, %v418
        %v4602 = vmul.f32 %v4585, %v419
        %v4603 = vmul.f32 %v4589, %v420
        %v4604 = vmul.f32 %v4589, %v421
        %v4605 = vmul.f32 %v4589, %v422
        %v4606 = vmul.f32 %v4589, %v423
        %v4607 = vmul.f32 %v4593, %v424
        %v4608 = vmul.f32 %v4593, %v425
        %v4609 = vmul.f32 %v4593, %v426
        %v4610 = vmul.f32 %v4593, %v427
        %4627 = vrot.lane.b32.xlu0 %v4595, 100
        %v4628 = vpop.permute.xlu0 %4627
        %4629 = vrot.lane.b32.xlu0 %v4596, 100
        %v4630 = vpop.permute.xlu0 %4629
        %4631 = vrot.lane.b32.xlu0 %v4597, 100
        %v4632 = vpop.permute.xlu0 %4631
        %4633 = vrot.lane.b32.xlu0 %v4598, 100
        %v4634 = vpop.permute.xlu0 %4633
        %4635 = vrot.lane.b32.xlu0 %v4599, 100
        %v4636 = vpop.permute.xlu0 %4635
        %4637 = vrot.lane.b32.xlu0 %v4600, 100
        %v4638 = vpop.permute.xlu0 %4637
        %4639 = vrot.lane.b32.xlu0 %v4601, 100
        %v4640 = vpop.permute.xlu0 %4639
        %4641 = vrot.lane.b32.xlu0 %v4602, 100
        %v4642 = vpop.permute.xlu0 %4641
        %4643 = vrot.lane.b32.xlu0 %v4603, 100
        %v4644 = vpop.permute.xlu0 %4643
        %4645 = vrot.lane.b32.xlu0 %v4604, 100
        %v4646 = vpop.permute.xlu0 %4645
        %4647 = vrot.lane.b32.xlu0 %v4605, 100
        %v4648 = vpop.permute.xlu0 %4647
        %4649 = vrot.lane.b32.xlu0 %v4606, 100
        %v4650 = vpop.permute.xlu0 %4649
        %4651 = vrot.lane.b32.xlu0 %v4607, 100
        %v4652 = vpop.permute.xlu0 %4651
        %4653 = vrot.lane.b32.xlu0 %v4608, 100
        %v4654 = vpop.permute.xlu0 %4653
        %4655 = vrot.lane.b32.xlu0 %v4609, 100
        %v4656 = vpop.permute.xlu0 %4655
        %4657 = vrot.lane.b32.xlu0 %v4610, 100
        %v4658 = vpop.permute.xlu0 %4657
        %vm4659 = vcmask 818176
        %v4660 = vsel %vm4659, %v4628, %v4630
        %v4661 = vsel %vm4659, %v4630, %v4632
        %v4662 = vsel %vm4659, %v4632, %v4634
        %v4663 = vsel %vm4659, %v4636, %v4638
        %v4664 = vsel %vm4659, %v4638, %v4640
        %v4665 = vsel %vm4659, %v4640, %v4642
        %v4666 = vsel %vm4659, %v4644, %v4646
        %v4667 = vsel %vm4659, %v4646, %v4648
        %v4668 = vsel %vm4659, %v4648, %v4650
        %v4669 = vsel %vm4659, %v4652, %v4654
        %v4670 = vsel %vm4659, %v4654, %v4656
        %v4671 = vsel %vm4659, %v4656, %v4658
        %v4684 = vadd.f32 %v4567, %v4660
        %v4685 = vadd.f32 %v4568, %v4661
        %v4686 = vadd.f32 %v4569, %v4662
        %v4687 = vadd.f32 %v4570, %v4663
        %v4688 = vadd.f32 %v4571, %v4664
        %v4689 = vadd.f32 %v4572, %v4665
        %v4690 = vadd.f32 %v4573, %v4666
        %v4691 = vadd.f32 %v4574, %v4667
        %v4692 = vadd.f32 %v4575, %v4668
        %v4693 = vadd.f32 %v4576, %v4669
        %v4694 = vadd.f32 %v4577, %v4670
        %v4695 = vadd.f32 %v4578, %v4671
        %4696 = vset.pattern.permute.xlu0 10
        %4697 = vperm.xlu0 %4696, %v432
        %v4698 = vpop.permute.xlu0 %4697
        %4700 = vset.pattern.permute.xlu0 10
        %4701 = vperm.xlu0 %4700, %v433
        %v4702 = vpop.permute.xlu0 %4701
        %4704 = vset.pattern.permute.xlu0 10
        %4705 = vperm.xlu0 %4704, %v434
        %v4706 = vpop.permute.xlu0 %4705
        %4708 = vset.pattern.permute.xlu0 10
        %4709 = vperm.xlu0 %4708, %v435
        %v4710 = vpop.permute.xlu0 %4709
        %v4712 = vmul.f32 %v4698, %v412
        %v4713 = vmul.f32 %v4698, %v413
        %v4714 = vmul.f32 %v4698, %v414
        %v4715 = vmul.f32 %v4698, %v415
        %v4716 = vmul.f32 %v4702, %v416
        %v4717 = vmul.f32 %v4702, %v417
        %v4718 = vmul.f32 %v4702, %v418
        %v4719 = vmul.f32 %v4702, %v419
        %v4720 = vmul.f32 %v4706, %v420
        %v4721 = vmul.f32 %v4706, %v421
        %v4722 = vmul.f32 %v4706, %v422
        %v4723 = vmul.f32 %v4706, %v423
        %v4724 = vmul.f32 %v4710, %v424
        %v4725 = vmul.f32 %v4710, %v425
        %v4726 = vmul.f32 %v4710, %v426
        %v4727 = vmul.f32 %v4710, %v427
        %4744 = vrot.lane.b32.xlu0 %v4712, 80
        %v4745 = vpop.permute.xlu0 %4744
        %4746 = vrot.lane.b32.xlu0 %v4713, 80
        %v4747 = vpop.permute.xlu0 %4746
        %4748 = vrot.lane.b32.xlu0 %v4714, 80
        %v4749 = vpop.permute.xlu0 %4748
        %4750 = vrot.lane.b32.xlu0 %v4715, 80
        %v4751 = vpop.permute.xlu0 %4750
        %4752 = vrot.lane.b32.xlu0 %v4716, 80
        %v4753 = vpop.permute.xlu0 %4752
        %4754 = vrot.lane.b32.xlu0 %v4717, 80
        %v4755 = vpop.permute.xlu0 %4754
        %4756 = vrot.lane.b32.xlu0 %v4718, 80
        %v4757 = vpop.permute.xlu0 %4756
        %4758 = vrot.lane.b32.xlu0 %v4719, 80
        %v4759 = vpop.permute.xlu0 %4758
        %4760 = vrot.lane.b32.xlu0 %v4720, 80
        %v4761 = vpop.permute.xlu0 %4760
        %4762 = vrot.lane.b32.xlu0 %v4721, 80
        %v4763 = vpop.permute.xlu0 %4762
        %4764 = vrot.lane.b32.xlu0 %v4722, 80
        %v4765 = vpop.permute.xlu0 %4764
        %4766 = vrot.lane.b32.xlu0 %v4723, 80
        %v4767 = vpop.permute.xlu0 %4766
        %4768 = vrot.lane.b32.xlu0 %v4724, 80
        %v4769 = vpop.permute.xlu0 %4768
        %4770 = vrot.lane.b32.xlu0 %v4725, 80
        %v4771 = vpop.permute.xlu0 %4770
        %4772 = vrot.lane.b32.xlu0 %v4726, 80
        %v4773 = vpop.permute.xlu0 %4772
        %4774 = vrot.lane.b32.xlu0 %v4727, 80
        %v4775 = vpop.permute.xlu0 %4774
        %v4776 = vsel %vm2255, %v4745, %v4747
        %v4777 = vsel %vm2255, %v4747, %v4749
        %v4778 = vsel %vm2255, %v4749, %v4751
        %v4779 = vsel %vm2255, %v4753, %v4755
        %v4780 = vsel %vm2255, %v4755, %v4757
        %v4781 = vsel %vm2255, %v4757, %v4759
        %v4782 = vsel %vm2255, %v4761, %v4763
        %v4783 = vsel %vm2255, %v4763, %v4765
        %v4784 = vsel %vm2255, %v4765, %v4767
        %v4785 = vsel %vm2255, %v4769, %v4771
        %v4786 = vsel %vm2255, %v4771, %v4773
        %v4787 = vsel %vm2255, %v4773, %v4775
        %v4800 = vadd.f32 %v4684, %v4776
        %v4801 = vadd.f32 %v4685, %v4777
        %v4802 = vadd.f32 %v4686, %v4778
        %v4803 = vadd.f32 %v4687, %v4779
        %v4804 = vadd.f32 %v4688, %v4780
        %v4805 = vadd.f32 %v4689, %v4781
        %v4806 = vadd.f32 %v4690, %v4782
        %v4807 = vadd.f32 %v4691, %v4783
        %v4808 = vadd.f32 %v4692, %v4784
        %v4809 = vadd.f32 %v4693, %v4785
        %v4810 = vadd.f32 %v4694, %v4786
        %v4811 = vadd.f32 %v4695, %v4787
        %4812 = vset.pattern.permute.xlu0 11
        %4813 = vperm.xlu0 %4812, %v432
        %v4814 = vpop.permute.xlu0 %4813
        %4816 = vset.pattern.permute.xlu0 11
        %4817 = vperm.xlu0 %4816, %v433
        %v4818 = vpop.permute.xlu0 %4817
        %4820 = vset.pattern.permute.xlu0 11
        %4821 = vperm.xlu0 %4820, %v434
        %v4822 = vpop.permute.xlu0 %4821
        %4824 = vset.pattern.permute.xlu0 11
        %4825 = vperm.xlu0 %4824, %v435
        %v4826 = vpop.permute.xlu0 %4825
        %v4828 = vmul.f32 %v4814, %v412
        %v4829 = vmul.f32 %v4814, %v413
        %v4830 = vmul.f32 %v4814, %v414
        %v4831 = vmul.f32 %v4814, %v415
        %v4832 = vmul.f32 %v4818, %v416
        %v4833 = vmul.f32 %v4818, %v417
        %v4834 = vmul.f32 %v4818, %v418
        %v4835 = vmul.f32 %v4818, %v419
        %v4836 = vmul.f32 %v4822, %v420
        %v4837 = vmul.f32 %v4822, %v421
        %v4838 = vmul.f32 %v4822, %v422
        %v4839 = vmul.f32 %v4822, %v423
        %v4840 = vmul.f32 %v4826, %v424
        %v4841 = vmul.f32 %v4826, %v425
        %v4842 = vmul.f32 %v4826, %v426
        %v4843 = vmul.f32 %v4826, %v427
        %4860 = vrot.lane.b32.xlu0 %v4828, 79
        %v4861 = vpop.permute.xlu0 %4860
        %4862 = vrot.lane.b32.xlu0 %v4829, 79
        %v4863 = vpop.permute.xlu0 %4862
        %4864 = vrot.lane.b32.xlu0 %v4830, 79
        %v4865 = vpop.permute.xlu0 %4864
        %4866 = vrot.lane.b32.xlu0 %v4831, 79
        %v4867 = vpop.permute.xlu0 %4866
        %4868 = vrot.lane.b32.xlu0 %v4832, 79
        %v4869 = vpop.permute.xlu0 %4868
        %4870 = vrot.lane.b32.xlu0 %v4833, 79
        %v4871 = vpop.permute.xlu0 %4870
        %4872 = vrot.lane.b32.xlu0 %v4834, 79
        %v4873 = vpop.permute.xlu0 %4872
        %4874 = vrot.lane.b32.xlu0 %v4835, 79
        %v4875 = vpop.permute.xlu0 %4874
        %4876 = vrot.lane.b32.xlu0 %v4836, 79
        %v4877 = vpop.permute.xlu0 %4876
        %4878 = vrot.lane.b32.xlu0 %v4837, 79
        %v4879 = vpop.permute.xlu0 %4878
        %4880 = vrot.lane.b32.xlu0 %v4838, 79
        %v4881 = vpop.permute.xlu0 %4880
        %4882 = vrot.lane.b32.xlu0 %v4839, 79
        %v4883 = vpop.permute.xlu0 %4882
        %4884 = vrot.lane.b32.xlu0 %v4840, 79
        %v4885 = vpop.permute.xlu0 %4884
        %4886 = vrot.lane.b32.xlu0 %v4841, 79
        %v4887 = vpop.permute.xlu0 %4886
        %4888 = vrot.lane.b32.xlu0 %v4842, 79
        %v4889 = vpop.permute.xlu0 %4888
        %4890 = vrot.lane.b32.xlu0 %v4843, 79
        %v4891 = vpop.permute.xlu0 %4890
        %v4892 = vsel %vm2380, %v4861, %v4863
        %v4893 = vsel %vm2380, %v4863, %v4865
        %v4894 = vsel %vm2380, %v4865, %v4867
        %v4895 = vsel %vm2380, %v4869, %v4871
        %v4896 = vsel %vm2380, %v4871, %v4873
        %v4897 = vsel %vm2380, %v4873, %v4875
        %v4898 = vsel %vm2380, %v4877, %v4879
        %v4899 = vsel %vm2380, %v4879, %v4881
        %v4900 = vsel %vm2380, %v4881, %v4883
        %v4901 = vsel %vm2380, %v4885, %v4887
        %v4902 = vsel %vm2380, %v4887, %v4889
        %v4903 = vsel %vm2380, %v4889, %v4891
        %v4916 = vadd.f32 %v4800, %v4892
        %v4917 = vadd.f32 %v4801, %v4893
        %v4918 = vadd.f32 %v4802, %v4894
        %v4919 = vadd.f32 %v4803, %v4895
        %v4920 = vadd.f32 %v4804, %v4896
        %v4921 = vadd.f32 %v4805, %v4897
        %v4922 = vadd.f32 %v4806, %v4898
        %v4923 = vadd.f32 %v4807, %v4899
        %v4924 = vadd.f32 %v4808, %v4900
        %v4925 = vadd.f32 %v4809, %v4901
        %v4926 = vadd.f32 %v4810, %v4902
        %v4927 = vadd.f32 %v4811, %v4903
        %4928 = vset.pattern.permute.xlu0 12
        %4929 = vperm.xlu0 %4928, %v432
        %v4930 = vpop.permute.xlu0 %4929
        %4932 = vset.pattern.permute.xlu0 12
        %4933 = vperm.xlu0 %4932, %v433
        %v4934 = vpop.permute.xlu0 %4933
        %4936 = vset.pattern.permute.xlu0 12
        %4937 = vperm.xlu0 %4936, %v434
        %v4938 = vpop.permute.xlu0 %4937
        %4940 = vset.pattern.permute.xlu0 12
        %4941 = vperm.xlu0 %4940, %v435
        %v4942 = vpop.permute.xlu0 %4941
        %v4944 = vmul.f32 %v4930, %v412
        %v4945 = vmul.f32 %v4930, %v413
        %v4946 = vmul.f32 %v4930, %v414
        %v4947 = vmul.f32 %v4930, %v415
        %v4948 = vmul.f32 %v4934, %v416
        %v4949 = vmul.f32 %v4934, %v417
        %v4950 = vmul.f32 %v4934, %v418
        %v4951 = vmul.f32 %v4934, %v419
        %v4952 = vmul.f32 %v4938, %v420
        %v4953 = vmul.f32 %v4938, %v421
        %v4954 = vmul.f32 %v4938, %v422
        %v4955 = vmul.f32 %v4938, %v423
        %v4956 = vmul.f32 %v4942, %v424
        %v4957 = vmul.f32 %v4942, %v425
        %v4958 = vmul.f32 %v4942, %v426
        %v4959 = vmul.f32 %v4942, %v427
        %4976 = vrot.lane.b32.xlu0 %v4944, 78
        %v4977 = vpop.permute.xlu0 %4976
        %4978 = vrot.lane.b32.xlu0 %v4945, 78
        %v4979 = vpop.permute.xlu0 %4978
        %4980 = vrot.lane.b32.xlu0 %v4946, 78
        %v4981 = vpop.permute.xlu0 %4980
        %4982 = vrot.lane.b32.xlu0 %v4947, 78
        %v4983 = vpop.permute.xlu0 %4982
        %4984 = vrot.lane.b32.xlu0 %v4948, 78
        %v4985 = vpop.permute.xlu0 %4984
        %4986 = vrot.lane.b32.xlu0 %v4949, 78
        %v4987 = vpop.permute.xlu0 %4986
        %4988 = vrot.lane.b32.xlu0 %v4950, 78
        %v4989 = vpop.permute.xlu0 %4988
        %4990 = vrot.lane.b32.xlu0 %v4951, 78
        %v4991 = vpop.permute.xlu0 %4990
        %4992 = vrot.lane.b32.xlu0 %v4952, 78
        %v4993 = vpop.permute.xlu0 %4992
        %4994 = vrot.lane.b32.xlu0 %v4953, 78
        %v4995 = vpop.permute.xlu0 %4994
        %4996 = vrot.lane.b32.xlu0 %v4954, 78
        %v4997 = vpop.permute.xlu0 %4996
        %4998 = vrot.lane.b32.xlu0 %v4955, 78
        %v4999 = vpop.permute.xlu0 %4998
        %5000 = vrot.lane.b32.xlu0 %v4956, 78
        %v5001 = vpop.permute.xlu0 %5000
        %5002 = vrot.lane.b32.xlu0 %v4957, 78
        %v5003 = vpop.permute.xlu0 %5002
        %5004 = vrot.lane.b32.xlu0 %v4958, 78
        %v5005 = vpop.permute.xlu0 %5004
        %5006 = vrot.lane.b32.xlu0 %v4959, 78
        %v5007 = vpop.permute.xlu0 %5006
        %v5008 = vsel %vm596, %v4977, %v4979
        %v5009 = vsel %vm596, %v4979, %v4981
        %v5010 = vsel %vm596, %v4981, %v4983
        %v5011 = vsel %vm596, %v4985, %v4987
        %v5012 = vsel %vm596, %v4987, %v4989
        %v5013 = vsel %vm596, %v4989, %v4991
        %v5014 = vsel %vm596, %v4993, %v4995
        %v5015 = vsel %vm596, %v4995, %v4997
        %v5016 = vsel %vm596, %v4997, %v4999
        %v5017 = vsel %vm596, %v5001, %v5003
        %v5018 = vsel %vm596, %v5003, %v5005
        %v5019 = vsel %vm596, %v5005, %v5007
        %v5032 = vadd.f32 %v4916, %v5008
        %v5033 = vadd.f32 %v4917, %v5009
        %v5034 = vadd.f32 %v4918, %v5010
        %v5035 = vadd.f32 %v4919, %v5011
        %v5036 = vadd.f32 %v4920, %v5012
        %v5037 = vadd.f32 %v4921, %v5013
        %v5038 = vadd.f32 %v4922, %v5014
        %v5039 = vadd.f32 %v4923, %v5015
        %v5040 = vadd.f32 %v4924, %v5016
        %v5041 = vadd.f32 %v4925, %v5017
        %v5042 = vadd.f32 %v4926, %v5018
        %v5043 = vadd.f32 %v4927, %v5019
        %5044 = vset.pattern.permute.xlu0 13
        %5045 = vperm.xlu0 %5044, %v432
        %v5046 = vpop.permute.xlu0 %5045
        %5048 = vset.pattern.permute.xlu0 13
        %5049 = vperm.xlu0 %5048, %v433
        %v5050 = vpop.permute.xlu0 %5049
        %5052 = vset.pattern.permute.xlu0 13
        %5053 = vperm.xlu0 %5052, %v434
        %v5054 = vpop.permute.xlu0 %5053
        %5056 = vset.pattern.permute.xlu0 13
        %5057 = vperm.xlu0 %5056, %v435
        %v5058 = vpop.permute.xlu0 %5057
        %v5060 = vmul.f32 %v5046, %v412
        %v5061 = vmul.f32 %v5046, %v413
        %v5062 = vmul.f32 %v5046, %v414
        %v5063 = vmul.f32 %v5046, %v415
        %v5064 = vmul.f32 %v5050, %v416
        %v5065 = vmul.f32 %v5050, %v417
        %v5066 = vmul.f32 %v5050, %v418
        %v5067 = vmul.f32 %v5050, %v419
        %v5068 = vmul.f32 %v5054, %v420
        %v5069 = vmul.f32 %v5054, %v421
        %v5070 = vmul.f32 %v5054, %v422
        %v5071 = vmul.f32 %v5054, %v423
        %v5072 = vmul.f32 %v5058, %v424
        %v5073 = vmul.f32 %v5058, %v425
        %v5074 = vmul.f32 %v5058, %v426
        %v5075 = vmul.f32 %v5058, %v427
        %5092 = vrot.lane.b32.xlu0 %v5060, 77
        %v5093 = vpop.permute.xlu0 %5092
        %5094 = vrot.lane.b32.xlu0 %v5061, 77
        %v5095 = vpop.permute.xlu0 %5094
        %5096 = vrot.lane.b32.xlu0 %v5062, 77
        %v5097 = vpop.permute.xlu0 %5096
        %5098 = vrot.lane.b32.xlu0 %v5063, 77
        %v5099 = vpop.permute.xlu0 %5098
        %5100 = vrot.lane.b32.xlu0 %v5064, 77
        %v5101 = vpop.permute.xlu0 %5100
        %5102 = vrot.lane.b32.xlu0 %v5065, 77
        %v5103 = vpop.permute.xlu0 %5102
        %5104 = vrot.lane.b32.xlu0 %v5066, 77
        %v5105 = vpop.permute.xlu0 %5104
        %5106 = vrot.lane.b32.xlu0 %v5067, 77
        %v5107 = vpop.permute.xlu0 %5106
        %5108 = vrot.lane.b32.xlu0 %v5068, 77
        %v5109 = vpop.permute.xlu0 %5108
        %5110 = vrot.lane.b32.xlu0 %v5069, 77
        %v5111 = vpop.permute.xlu0 %5110
        %5112 = vrot.lane.b32.xlu0 %v5070, 77
        %v5113 = vpop.permute.xlu0 %5112
        %5114 = vrot.lane.b32.xlu0 %v5071, 77
        %v5115 = vpop.permute.xlu0 %5114
        %5116 = vrot.lane.b32.xlu0 %v5072, 77
        %v5117 = vpop.permute.xlu0 %5116
        %5118 = vrot.lane.b32.xlu0 %v5073, 77
        %v5119 = vpop.permute.xlu0 %5118
        %5120 = vrot.lane.b32.xlu0 %v5074, 77
        %v5121 = vpop.permute.xlu0 %5120
        %5122 = vrot.lane.b32.xlu0 %v5075, 77
        %v5123 = vpop.permute.xlu0 %5122
        %vm5124 = vcmask 629760
        %v5125 = vsel %vm5124, %v5093, %v5095
        %v5126 = vsel %vm5124, %v5095, %v5097
        %v5127 = vsel %vm5124, %v5097, %v5099
        %v5128 = vsel %vm5124, %v5101, %v5103
        %v5129 = vsel %vm5124, %v5103, %v5105
        %v5130 = vsel %vm5124, %v5105, %v5107
        %v5131 = vsel %vm5124, %v5109, %v5111
        %v5132 = vsel %vm5124, %v5111, %v5113
        %v5133 = vsel %vm5124, %v5113, %v5115
        %v5134 = vsel %vm5124, %v5117, %v5119
        %v5135 = vsel %vm5124, %v5119, %v5121
        %v5136 = vsel %vm5124, %v5121, %v5123
        %v5149 = vadd.f32 %v5032, %v5125
        %v5150 = vadd.f32 %v5033, %v5126
        %v5151 = vadd.f32 %v5034, %v5127
        %v5152 = vadd.f32 %v5035, %v5128
        %v5153 = vadd.f32 %v5036, %v5129
        %v5154 = vadd.f32 %v5037, %v5130
        %v5155 = vadd.f32 %v5038, %v5131
        %v5156 = vadd.f32 %v5039, %v5132
        %v5157 = vadd.f32 %v5040, %v5133
        %v5158 = vadd.f32 %v5041, %v5134
        %v5159 = vadd.f32 %v5042, %v5135
        %v5160 = vadd.f32 %v5043, %v5136
        %5161 = vset.pattern.permute.xlu0 14
        %5162 = vperm.xlu0 %5161, %v432
        %v5163 = vpop.permute.xlu0 %5162
        %5165 = vset.pattern.permute.xlu0 14
        %5166 = vperm.xlu0 %5165, %v433
        %v5167 = vpop.permute.xlu0 %5166
        %5169 = vset.pattern.permute.xlu0 14
        %5170 = vperm.xlu0 %5169, %v434
        %v5171 = vpop.permute.xlu0 %5170
        %5173 = vset.pattern.permute.xlu0 14
        %5174 = vperm.xlu0 %5173, %v435
        %v5175 = vpop.permute.xlu0 %5174
        %v5177 = vmul.f32 %v5163, %v412
        %v5178 = vmul.f32 %v5163, %v413
        %v5179 = vmul.f32 %v5163, %v414
        %v5180 = vmul.f32 %v5163, %v415
        %v5181 = vmul.f32 %v5167, %v416
        %v5182 = vmul.f32 %v5167, %v417
        %v5183 = vmul.f32 %v5167, %v418
        %v5184 = vmul.f32 %v5167, %v419
        %v5185 = vmul.f32 %v5171, %v420
        %v5186 = vmul.f32 %v5171, %v421
        %v5187 = vmul.f32 %v5171, %v422
        %v5188 = vmul.f32 %v5171, %v423
        %v5189 = vmul.f32 %v5175, %v424
        %v5190 = vmul.f32 %v5175, %v425
        %v5191 = vmul.f32 %v5175, %v426
        %v5192 = vmul.f32 %v5175, %v427
        %5209 = vrot.lane.b32.xlu0 %v5177, 76
        %v5210 = vpop.permute.xlu0 %5209
        %5211 = vrot.lane.b32.xlu0 %v5178, 76
        %v5212 = vpop.permute.xlu0 %5211
        %5213 = vrot.lane.b32.xlu0 %v5179, 76
        %v5214 = vpop.permute.xlu0 %5213
        %5215 = vrot.lane.b32.xlu0 %v5180, 76
        %v5216 = vpop.permute.xlu0 %5215
        %5217 = vrot.lane.b32.xlu0 %v5181, 76
        %v5218 = vpop.permute.xlu0 %5217
        %5219 = vrot.lane.b32.xlu0 %v5182, 76
        %v5220 = vpop.permute.xlu0 %5219
        %5221 = vrot.lane.b32.xlu0 %v5183, 76
        %v5222 = vpop.permute.xlu0 %5221
        %5223 = vrot.lane.b32.xlu0 %v5184, 76
        %v5224 = vpop.permute.xlu0 %5223
        %5225 = vrot.lane.b32.xlu0 %v5185, 76
        %v5226 = vpop.permute.xlu0 %5225
        %5227 = vrot.lane.b32.xlu0 %v5186, 76
        %v5228 = vpop.permute.xlu0 %5227
        %5229 = vrot.lane.b32.xlu0 %v5187, 76
        %v5230 = vpop.permute.xlu0 %5229
        %5231 = vrot.lane.b32.xlu0 %v5188, 76
        %v5232 = vpop.permute.xlu0 %5231
        %5233 = vrot.lane.b32.xlu0 %v5189, 76
        %v5234 = vpop.permute.xlu0 %5233
        %5235 = vrot.lane.b32.xlu0 %v5190, 76
        %v5236 = vpop.permute.xlu0 %5235
        %5237 = vrot.lane.b32.xlu0 %v5191, 76
        %v5238 = vpop.permute.xlu0 %5237
        %5239 = vrot.lane.b32.xlu0 %v5192, 76
        %v5240 = vpop.permute.xlu0 %5239
        %vm5241 = vcmask 621568
        %v5242 = vsel %vm5241, %v5210, %v5212
        %v5243 = vsel %vm5241, %v5212, %v5214
        %v5244 = vsel %vm5241, %v5214, %v5216
        %v5245 = vsel %vm5241, %v5218, %v5220
        %v5246 = vsel %vm5241, %v5220, %v5222
        %v5247 = vsel %vm5241, %v5222, %v5224
        %v5248 = vsel %vm5241, %v5226, %v5228
        %v5249 = vsel %vm5241, %v5228, %v5230
        %v5250 = vsel %vm5241, %v5230, %v5232
        %v5251 = vsel %vm5241, %v5234, %v5236
        %v5252 = vsel %vm5241, %v5236, %v5238
        %v5253 = vsel %vm5241, %v5238, %v5240
        %v5266 = vadd.f32 %v5149, %v5242
        %v5267 = vadd.f32 %v5150, %v5243
        %v5268 = vadd.f32 %v5151, %v5244
        %v5269 = vadd.f32 %v5152, %v5245
        %v5270 = vadd.f32 %v5153, %v5246
        %v5271 = vadd.f32 %v5154, %v5247
        %v5272 = vadd.f32 %v5155, %v5248
        %v5273 = vadd.f32 %v5156, %v5249
        %v5274 = vadd.f32 %v5157, %v5250
        %v5275 = vadd.f32 %v5158, %v5251
        %v5276 = vadd.f32 %v5159, %v5252
        %v5277 = vadd.f32 %v5160, %v5253
        %5278 = vset.pattern.permute.xlu0 15
        %5279 = vperm.xlu0 %5278, %v432
        %v5280 = vpop.permute.xlu0 %5279
        %5282 = vset.pattern.permute.xlu0 15
        %5283 = vperm.xlu0 %5282, %v433
        %v5284 = vpop.permute.xlu0 %5283
        %5286 = vset.pattern.permute.xlu0 15
        %5287 = vperm.xlu0 %5286, %v434
        %v5288 = vpop.permute.xlu0 %5287
        %5290 = vset.pattern.permute.xlu0 15
        %5291 = vperm.xlu0 %5290, %v435
        %v5292 = vpop.permute.xlu0 %5291
        %v5294 = vmul.f32 %v5280, %v412
        %v5295 = vmul.f32 %v5280, %v413
        %v5296 = vmul.f32 %v5280, %v414
        %v5297 = vmul.f32 %v5280, %v415
        %v5298 = vmul.f32 %v5284, %v416
        %v5299 = vmul.f32 %v5284, %v417
        %v5300 = vmul.f32 %v5284, %v418
        %v5301 = vmul.f32 %v5284, %v419
        %v5302 = vmul.f32 %v5288, %v420
        %v5303 = vmul.f32 %v5288, %v421
        %v5304 = vmul.f32 %v5288, %v422
        %v5305 = vmul.f32 %v5288, %v423
        %v5306 = vmul.f32 %v5292, %v424
        %v5307 = vmul.f32 %v5292, %v425
        %v5308 = vmul.f32 %v5292, %v426
        %v5309 = vmul.f32 %v5292, %v427
        %5326 = vrot.lane.b32.xlu0 %v5294, 56
        %v5327 = vpop.permute.xlu0 %5326
        %5328 = vrot.lane.b32.xlu0 %v5295, 56
        %v5329 = vpop.permute.xlu0 %5328
        %5330 = vrot.lane.b32.xlu0 %v5296, 56
        %v5331 = vpop.permute.xlu0 %5330
        %5332 = vrot.lane.b32.xlu0 %v5297, 56
        %v5333 = vpop.permute.xlu0 %5332
        %5334 = vrot.lane.b32.xlu0 %v5298, 56
        %v5335 = vpop.permute.xlu0 %5334
        %5336 = vrot.lane.b32.xlu0 %v5299, 56
        %v5337 = vpop.permute.xlu0 %5336
        %5338 = vrot.lane.b32.xlu0 %v5300, 56
        %v5339 = vpop.permute.xlu0 %5338
        %5340 = vrot.lane.b32.xlu0 %v5301, 56
        %v5341 = vpop.permute.xlu0 %5340
        %5342 = vrot.lane.b32.xlu0 %v5302, 56
        %v5343 = vpop.permute.xlu0 %5342
        %5344 = vrot.lane.b32.xlu0 %v5303, 56
        %v5345 = vpop.permute.xlu0 %5344
        %5346 = vrot.lane.b32.xlu0 %v5304, 56
        %v5347 = vpop.permute.xlu0 %5346
        %5348 = vrot.lane.b32.xlu0 %v5305, 56
        %v5349 = vpop.permute.xlu0 %5348
        %5350 = vrot.lane.b32.xlu0 %v5306, 56
        %v5351 = vpop.permute.xlu0 %5350
        %5352 = vrot.lane.b32.xlu0 %v5307, 56
        %v5353 = vpop.permute.xlu0 %5352
        %5354 = vrot.lane.b32.xlu0 %v5308, 56
        %v5355 = vpop.permute.xlu0 %5354
        %5356 = vrot.lane.b32.xlu0 %v5309, 56
        %v5357 = vpop.permute.xlu0 %5356
        %vm5358 = vcmask 457728
        %v5359 = vsel %vm5358, %v5327, %v5329
        %v5360 = vsel %vm5358, %v5329, %v5331
        %v5361 = vsel %vm5358, %v5331, %v5333
        %v5362 = vsel %vm5358, %v5335, %v5337
        %v5363 = vsel %vm5358, %v5337, %v5339
        %v5364 = vsel %vm5358, %v5339, %v5341
        %v5365 = vsel %vm5358, %v5343, %v5345
        %v5366 = vsel %vm5358, %v5345, %v5347
        %v5367 = vsel %vm5358, %v5347, %v5349
        %v5368 = vsel %vm5358, %v5351, %v5353
        %v5369 = vsel %vm5358, %v5353, %v5355
        %v5370 = vsel %vm5358, %v5355, %v5357
        %v5383 = vadd.f32 %v5266, %v5359
        %v5384 = vadd.f32 %v5267, %v5360
        %v5385 = vadd.f32 %v5268, %v5361
        %v5386 = vadd.f32 %v5269, %v5362
        %v5387 = vadd.f32 %v5270, %v5363
        %v5388 = vadd.f32 %v5271, %v5364
        %v5389 = vadd.f32 %v5272, %v5365
        %v5390 = vadd.f32 %v5273, %v5366
        %v5391 = vadd.f32 %v5274, %v5367
        %v5392 = vadd.f32 %v5275, %v5368
        %v5393 = vadd.f32 %v5276, %v5369
        %v5394 = vadd.f32 %v5277, %v5370
        %5395 = vset.pattern.permute.xlu0 16
        %5396 = vperm.xlu0 %5395, %v432
        %v5397 = vpop.permute.xlu0 %5396
        %5399 = vset.pattern.permute.xlu0 16
        %5400 = vperm.xlu0 %5399, %v433
        %v5401 = vpop.permute.xlu0 %5400
        %5403 = vset.pattern.permute.xlu0 16
        %5404 = vperm.xlu0 %5403, %v434
        %v5405 = vpop.permute.xlu0 %5404
        %5407 = vset.pattern.permute.xlu0 16
        %5408 = vperm.xlu0 %5407, %v435
        %v5409 = vpop.permute.xlu0 %5408
        %v5411 = vmul.f32 %v5397, %v412
        %v5412 = vmul.f32 %v5397, %v413
        %v5413 = vmul.f32 %v5397, %v414
        %v5414 = vmul.f32 %v5397, %v415
        %v5415 = vmul.f32 %v5401, %v416
        %v5416 = vmul.f32 %v5401, %v417
        %v5417 = vmul.f32 %v5401, %v418
        %v5418 = vmul.f32 %v5401, %v419
        %v5419 = vmul.f32 %v5405, %v420
        %v5420 = vmul.f32 %v5405, %v421
        %v5421 = vmul.f32 %v5405, %v422
        %v5422 = vmul.f32 %v5405, %v423
        %v5423 = vmul.f32 %v5409, %v424
        %v5424 = vmul.f32 %v5409, %v425
        %v5425 = vmul.f32 %v5409, %v426
        %v5426 = vmul.f32 %v5409, %v427
        %5443 = vrot.lane.b32.xlu0 %v5411, 55
        %v5444 = vpop.permute.xlu0 %5443
        %5445 = vrot.lane.b32.xlu0 %v5412, 55
        %v5446 = vpop.permute.xlu0 %5445
        %5447 = vrot.lane.b32.xlu0 %v5413, 55
        %v5448 = vpop.permute.xlu0 %5447
        %5449 = vrot.lane.b32.xlu0 %v5414, 55
        %v5450 = vpop.permute.xlu0 %5449
        %5451 = vrot.lane.b32.xlu0 %v5415, 55
        %v5452 = vpop.permute.xlu0 %5451
        %5453 = vrot.lane.b32.xlu0 %v5416, 55
        %v5454 = vpop.permute.xlu0 %5453
        %5455 = vrot.lane.b32.xlu0 %v5417, 55
        %v5456 = vpop.permute.xlu0 %5455
        %5457 = vrot.lane.b32.xlu0 %v5418, 55
        %v5458 = vpop.permute.xlu0 %5457
        %5459 = vrot.lane.b32.xlu0 %v5419, 55
        %v5460 = vpop.permute.xlu0 %5459
        %5461 = vrot.lane.b32.xlu0 %v5420, 55
        %v5462 = vpop.permute.xlu0 %5461
        %5463 = vrot.lane.b32.xlu0 %v5421, 55
        %v5464 = vpop.permute.xlu0 %5463
        %5465 = vrot.lane.b32.xlu0 %v5422, 55
        %v5466 = vpop.permute.xlu0 %5465
        %5467 = vrot.lane.b32.xlu0 %v5423, 55
        %v5468 = vpop.permute.xlu0 %5467
        %5469 = vrot.lane.b32.xlu0 %v5424, 55
        %v5470 = vpop.permute.xlu0 %5469
        %5471 = vrot.lane.b32.xlu0 %v5425, 55
        %v5472 = vpop.permute.xlu0 %5471
        %5473 = vrot.lane.b32.xlu0 %v5426, 55
        %v5474 = vpop.permute.xlu0 %5473
        %vm5475 = vcmask 449536
        %v5476 = vsel %vm5475, %v5444, %v5446
        %v5477 = vsel %vm5475, %v5446, %v5448
        %v5478 = vsel %vm5475, %v5448, %v5450
        %v5479 = vsel %vm5475, %v5452, %v5454
        %v5480 = vsel %vm5475, %v5454, %v5456
        %v5481 = vsel %vm5475, %v5456, %v5458
        %v5482 = vsel %vm5475, %v5460, %v5462
        %v5483 = vsel %vm5475, %v5462, %v5464
        %v5484 = vsel %vm5475, %v5464, %v5466
        %v5485 = vsel %vm5475, %v5468, %v5470
        %v5486 = vsel %vm5475, %v5470, %v5472
        %v5487 = vsel %vm5475, %v5472, %v5474
        %v5500 = vadd.f32 %v5383, %v5476
        %v5501 = vadd.f32 %v5384, %v5477
        %v5502 = vadd.f32 %v5385, %v5478
        %v5503 = vadd.f32 %v5386, %v5479
        %v5504 = vadd.f32 %v5387, %v5480
        %v5505 = vadd.f32 %v5388, %v5481
        %v5506 = vadd.f32 %v5389, %v5482
        %v5507 = vadd.f32 %v5390, %v5483
        %v5508 = vadd.f32 %v5391, %v5484
        %v5509 = vadd.f32 %v5392, %v5485
        %v5510 = vadd.f32 %v5393, %v5486
        %v5511 = vadd.f32 %v5394, %v5487
        %5512 = vset.pattern.permute.xlu0 17
        %5513 = vperm.xlu0 %5512, %v432
        %v5514 = vpop.permute.xlu0 %5513
        %5516 = vset.pattern.permute.xlu0 17
        %5517 = vperm.xlu0 %5516, %v433
        %v5518 = vpop.permute.xlu0 %5517
        %5520 = vset.pattern.permute.xlu0 17
        %5521 = vperm.xlu0 %5520, %v434
        %v5522 = vpop.permute.xlu0 %5521
        %5524 = vset.pattern.permute.xlu0 17
        %5525 = vperm.xlu0 %5524, %v435
        %v5526 = vpop.permute.xlu0 %5525
        %v5528 = vmul.f32 %v5514, %v412
        %v5529 = vmul.f32 %v5514, %v413
        %v5530 = vmul.f32 %v5514, %v414
        %v5531 = vmul.f32 %v5514, %v415
        %v5532 = vmul.f32 %v5518, %v416
        %v5533 = vmul.f32 %v5518, %v417
        %v5534 = vmul.f32 %v5518, %v418
        %v5535 = vmul.f32 %v5518, %v419
        %v5536 = vmul.f32 %v5522, %v420
        %v5537 = vmul.f32 %v5522, %v421
        %v5538 = vmul.f32 %v5522, %v422
        %v5539 = vmul.f32 %v5522, %v423
        %v5540 = vmul.f32 %v5526, %v424
        %v5541 = vmul.f32 %v5526, %v425
        %v5542 = vmul.f32 %v5526, %v426
        %v5543 = vmul.f32 %v5526, %v427
        %5560 = vrot.lane.b32.xlu0 %v5528, 54
        %v5561 = vpop.permute.xlu0 %5560
        %5562 = vrot.lane.b32.xlu0 %v5529, 54
        %v5563 = vpop.permute.xlu0 %5562
        %5564 = vrot.lane.b32.xlu0 %v5530, 54
        %v5565 = vpop.permute.xlu0 %5564
        %5566 = vrot.lane.b32.xlu0 %v5531, 54
        %v5567 = vpop.permute.xlu0 %5566
        %5568 = vrot.lane.b32.xlu0 %v5532, 54
        %v5569 = vpop.permute.xlu0 %5568
        %5570 = vrot.lane.b32.xlu0 %v5533, 54
        %v5571 = vpop.permute.xlu0 %5570
        %5572 = vrot.lane.b32.xlu0 %v5534, 54
        %v5573 = vpop.permute.xlu0 %5572
        %5574 = vrot.lane.b32.xlu0 %v5535, 54
        %v5575 = vpop.permute.xlu0 %5574
        %5576 = vrot.lane.b32.xlu0 %v5536, 54
        %v5577 = vpop.permute.xlu0 %5576
        %5578 = vrot.lane.b32.xlu0 %v5537, 54
        %v5579 = vpop.permute.xlu0 %5578
        %5580 = vrot.lane.b32.xlu0 %v5538, 54
        %v5581 = vpop.permute.xlu0 %5580
        %5582 = vrot.lane.b32.xlu0 %v5539, 54
        %v5583 = vpop.permute.xlu0 %5582
        %5584 = vrot.lane.b32.xlu0 %v5540, 54
        %v5585 = vpop.permute.xlu0 %5584
        %5586 = vrot.lane.b32.xlu0 %v5541, 54
        %v5587 = vpop.permute.xlu0 %5586
        %5588 = vrot.lane.b32.xlu0 %v5542, 54
        %v5589 = vpop.permute.xlu0 %5588
        %5590 = vrot.lane.b32.xlu0 %v5543, 54
        %v5591 = vpop.permute.xlu0 %5590
        %vm5592 = vcmask 441344
        %v5593 = vsel %vm5592, %v5561, %v5563
        %v5594 = vsel %vm5592, %v5563, %v5565
        %v5595 = vsel %vm5592, %v5565, %v5567
        %v5596 = vsel %vm5592, %v5569, %v5571
        %v5597 = vsel %vm5592, %v5571, %v5573
        %v5598 = vsel %vm5592, %v5573, %v5575
        %v5599 = vsel %vm5592, %v5577, %v5579
        %v5600 = vsel %vm5592, %v5579, %v5581
        %v5601 = vsel %vm5592, %v5581, %v5583
        %v5602 = vsel %vm5592, %v5585, %v5587
        %v5603 = vsel %vm5592, %v5587, %v5589
        %v5604 = vsel %vm5592, %v5589, %v5591
        %v5617 = vadd.f32 %v5500, %v5593
        %v5618 = vadd.f32 %v5501, %v5594
        %v5619 = vadd.f32 %v5502, %v5595
        %v5620 = vadd.f32 %v5503, %v5596
        %v5621 = vadd.f32 %v5504, %v5597
        %v5622 = vadd.f32 %v5505, %v5598
        %v5623 = vadd.f32 %v5506, %v5599
        %v5624 = vadd.f32 %v5507, %v5600
        %v5625 = vadd.f32 %v5508, %v5601
        %v5626 = vadd.f32 %v5509, %v5602
        %v5627 = vadd.f32 %v5510, %v5603
        %v5628 = vadd.f32 %v5511, %v5604
        %5629 = vset.pattern.permute.xlu0 18
        %5630 = vperm.xlu0 %5629, %v432
        %v5631 = vpop.permute.xlu0 %5630
        %5633 = vset.pattern.permute.xlu0 18
        %5634 = vperm.xlu0 %5633, %v433
        %v5635 = vpop.permute.xlu0 %5634
        %5637 = vset.pattern.permute.xlu0 18
        %5638 = vperm.xlu0 %5637, %v434
        %v5639 = vpop.permute.xlu0 %5638
        %5641 = vset.pattern.permute.xlu0 18
        %5642 = vperm.xlu0 %5641, %v435
        %v5643 = vpop.permute.xlu0 %5642
        %v5645 = vmul.f32 %v5631, %v412
        %v5646 = vmul.f32 %v5631, %v413
        %v5647 = vmul.f32 %v5631, %v414
        %v5648 = vmul.f32 %v5631, %v415
        %v5649 = vmul.f32 %v5635, %v416
        %v5650 = vmul.f32 %v5635, %v417
        %v5651 = vmul.f32 %v5635, %v418
        %v5652 = vmul.f32 %v5635, %v419
        %v5653 = vmul.f32 %v5639, %v420
        %v5654 = vmul.f32 %v5639, %v421
        %v5655 = vmul.f32 %v5639, %v422
        %v5656 = vmul.f32 %v5639, %v423
        %v5657 = vmul.f32 %v5643, %v424
        %v5658 = vmul.f32 %v5643, %v425
        %v5659 = vmul.f32 %v5643, %v426
        %v5660 = vmul.f32 %v5643, %v427
        %5677 = vrot.lane.b32.xlu0 %v5645, 53
        %v5678 = vpop.permute.xlu0 %5677
        %5679 = vrot.lane.b32.xlu0 %v5646, 53
        %v5680 = vpop.permute.xlu0 %5679
        %5681 = vrot.lane.b32.xlu0 %v5647, 53
        %v5682 = vpop.permute.xlu0 %5681
        %5683 = vrot.lane.b32.xlu0 %v5648, 53
        %v5684 = vpop.permute.xlu0 %5683
        %5685 = vrot.lane.b32.xlu0 %v5649, 53
        %v5686 = vpop.permute.xlu0 %5685
        %5687 = vrot.lane.b32.xlu0 %v5650, 53
        %v5688 = vpop.permute.xlu0 %5687
        %5689 = vrot.lane.b32.xlu0 %v5651, 53
        %v5690 = vpop.permute.xlu0 %5689
        %5691 = vrot.lane.b32.xlu0 %v5652, 53
        %v5692 = vpop.permute.xlu0 %5691
        %5693 = vrot.lane.b32.xlu0 %v5653, 53
        %v5694 = vpop.permute.xlu0 %5693
        %5695 = vrot.lane.b32.xlu0 %v5654, 53
        %v5696 = vpop.permute.xlu0 %5695
        %5697 = vrot.lane.b32.xlu0 %v5655, 53
        %v5698 = vpop.permute.xlu0 %5697
        %5699 = vrot.lane.b32.xlu0 %v5656, 53
        %v5700 = vpop.permute.xlu0 %5699
        %5701 = vrot.lane.b32.xlu0 %v5657, 53
        %v5702 = vpop.permute.xlu0 %5701
        %5703 = vrot.lane.b32.xlu0 %v5658, 53
        %v5704 = vpop.permute.xlu0 %5703
        %5705 = vrot.lane.b32.xlu0 %v5659, 53
        %v5706 = vpop.permute.xlu0 %5705
        %5707 = vrot.lane.b32.xlu0 %v5660, 53
        %v5708 = vpop.permute.xlu0 %5707
        %vm5709 = vcmask 433152
        %v5710 = vsel %vm5709, %v5678, %v5680
        %v5711 = vsel %vm5709, %v5680, %v5682
        %v5712 = vsel %vm5709, %v5682, %v5684
        %v5713 = vsel %vm5709, %v5686, %v5688
        %v5714 = vsel %vm5709, %v5688, %v5690
        %v5715 = vsel %vm5709, %v5690, %v5692
        %v5716 = vsel %vm5709, %v5694, %v5696
        %v5717 = vsel %vm5709, %v5696, %v5698
        %v5718 = vsel %vm5709, %v5698, %v5700
        %v5719 = vsel %vm5709, %v5702, %v5704
        %v5720 = vsel %vm5709, %v5704, %v5706
        %v5721 = vsel %vm5709, %v5706, %v5708
        %v5734 = vadd.f32 %v5617, %v5710
        %v5735 = vadd.f32 %v5618, %v5711
        %v5736 = vadd.f32 %v5619, %v5712
        %v5737 = vadd.f32 %v5620, %v5713
        %v5738 = vadd.f32 %v5621, %v5714
        %v5739 = vadd.f32 %v5622, %v5715
        %v5740 = vadd.f32 %v5623, %v5716
        %v5741 = vadd.f32 %v5624, %v5717
        %v5742 = vadd.f32 %v5625, %v5718
        %v5743 = vadd.f32 %v5626, %v5719
        %v5744 = vadd.f32 %v5627, %v5720
        %v5745 = vadd.f32 %v5628, %v5721
        %5746 = vset.pattern.permute.xlu0 19
        %5747 = vperm.xlu0 %5746, %v432
        %v5748 = vpop.permute.xlu0 %5747
        %5750 = vset.pattern.permute.xlu0 19
        %5751 = vperm.xlu0 %5750, %v433
        %v5752 = vpop.permute.xlu0 %5751
        %5754 = vset.pattern.permute.xlu0 19
        %5755 = vperm.xlu0 %5754, %v434
        %v5756 = vpop.permute.xlu0 %5755
        %5758 = vset.pattern.permute.xlu0 19
        %5759 = vperm.xlu0 %5758, %v435
        %v5760 = vpop.permute.xlu0 %5759
        %v5762 = vmul.f32 %v5748, %v412
        %v5763 = vmul.f32 %v5748, %v413
        %v5764 = vmul.f32 %v5748, %v414
        %v5765 = vmul.f32 %v5748, %v415
        %v5766 = vmul.f32 %v5752, %v416
        %v5767 = vmul.f32 %v5752, %v417
        %v5768 = vmul.f32 %v5752, %v418
        %v5769 = vmul.f32 %v5752, %v419
        %v5770 = vmul.f32 %v5756, %v420
        %v5771 = vmul.f32 %v5756, %v421
        %v5772 = vmul.f32 %v5756, %v422
        %v5773 = vmul.f32 %v5756, %v423
        %v5774 = vmul.f32 %v5760, %v424
        %v5775 = vmul.f32 %v5760, %v425
        %v5776 = vmul.f32 %v5760, %v426
        %v5777 = vmul.f32 %v5760, %v427
        %5794 = vrot.lane.b32.xlu0 %v5762, 52
        %v5795 = vpop.permute.xlu0 %5794
        %5796 = vrot.lane.b32.xlu0 %v5763, 52
        %v5797 = vpop.permute.xlu0 %5796
        %5798 = vrot.lane.b32.xlu0 %v5764, 52
        %v5799 = vpop.permute.xlu0 %5798
        %5800 = vrot.lane.b32.xlu0 %v5765, 52
        %v5801 = vpop.permute.xlu0 %5800
        %5802 = vrot.lane.b32.xlu0 %v5766, 52
        %v5803 = vpop.permute.xlu0 %5802
        %5804 = vrot.lane.b32.xlu0 %v5767, 52
        %v5805 = vpop.permute.xlu0 %5804
        %5806 = vrot.lane.b32.xlu0 %v5768, 52
        %v5807 = vpop.permute.xlu0 %5806
        %5808 = vrot.lane.b32.xlu0 %v5769, 52
        %v5809 = vpop.permute.xlu0 %5808
        %5810 = vrot.lane.b32.xlu0 %v5770, 52
        %v5811 = vpop.permute.xlu0 %5810
        %5812 = vrot.lane.b32.xlu0 %v5771, 52
        %v5813 = vpop.permute.xlu0 %5812
        %5814 = vrot.lane.b32.xlu0 %v5772, 52
        %v5815 = vpop.permute.xlu0 %5814
        %5816 = vrot.lane.b32.xlu0 %v5773, 52
        %v5817 = vpop.permute.xlu0 %5816
        %5818 = vrot.lane.b32.xlu0 %v5774, 52
        %v5819 = vpop.permute.xlu0 %5818
        %5820 = vrot.lane.b32.xlu0 %v5775, 52
        %v5821 = vpop.permute.xlu0 %5820
        %5822 = vrot.lane.b32.xlu0 %v5776, 52
        %v5823 = vpop.permute.xlu0 %5822
        %5824 = vrot.lane.b32.xlu0 %v5777, 52
        %v5825 = vpop.permute.xlu0 %5824
        %vm5826 = vcmask 424960
        %v5827 = vsel %vm5826, %v5795, %v5797
        %v5828 = vsel %vm5826, %v5797, %v5799
        %v5829 = vsel %vm5826, %v5799, %v5801
        %v5830 = vsel %vm5826, %v5803, %v5805
        %v5831 = vsel %vm5826, %v5805, %v5807
        %v5832 = vsel %vm5826, %v5807, %v5809
        %v5833 = vsel %vm5826, %v5811, %v5813
        %v5834 = vsel %vm5826, %v5813, %v5815
        %v5835 = vsel %vm5826, %v5815, %v5817
        %v5836 = vsel %vm5826, %v5819, %v5821
        %v5837 = vsel %vm5826, %v5821, %v5823
        %v5838 = vsel %vm5826, %v5823, %v5825
        %v5851 = vadd.f32 %v5734, %v5827
        %v5852 = vadd.f32 %v5735, %v5828
        %v5853 = vadd.f32 %v5736, %v5829
        %v5854 = vadd.f32 %v5737, %v5830
        %v5855 = vadd.f32 %v5738, %v5831
        %v5856 = vadd.f32 %v5739, %v5832
        %v5857 = vadd.f32 %v5740, %v5833
        %v5858 = vadd.f32 %v5741, %v5834
        %v5859 = vadd.f32 %v5742, %v5835
        %v5860 = vadd.f32 %v5743, %v5836
        %v5861 = vadd.f32 %v5744, %v5837
        %v5862 = vadd.f32 %v5745, %v5838
        %5863 = vset.pattern.permute.xlu0 20
        %5864 = vperm.xlu0 %5863, %v432
        %v5865 = vpop.permute.xlu0 %5864
        %5867 = vset.pattern.permute.xlu0 20
        %5868 = vperm.xlu0 %5867, %v433
        %v5869 = vpop.permute.xlu0 %5868
        %5871 = vset.pattern.permute.xlu0 20
        %5872 = vperm.xlu0 %5871, %v434
        %v5873 = vpop.permute.xlu0 %5872
        %5875 = vset.pattern.permute.xlu0 20
        %5876 = vperm.xlu0 %5875, %v435
        %v5877 = vpop.permute.xlu0 %5876
        %v5879 = vmul.f32 %v5865, %v412
        %v5880 = vmul.f32 %v5865, %v413
        %v5881 = vmul.f32 %v5865, %v414
        %v5882 = vmul.f32 %v5865, %v415
        %v5883 = vmul.f32 %v5869, %v416
        %v5884 = vmul.f32 %v5869, %v417
        %v5885 = vmul.f32 %v5869, %v418
        %v5886 = vmul.f32 %v5869, %v419
        %v5887 = vmul.f32 %v5873, %v420
        %v5888 = vmul.f32 %v5873, %v421
        %v5889 = vmul.f32 %v5873, %v422
        %v5890 = vmul.f32 %v5873, %v423
        %v5891 = vmul.f32 %v5877, %v424
        %v5892 = vmul.f32 %v5877, %v425
        %v5893 = vmul.f32 %v5877, %v426
        %v5894 = vmul.f32 %v5877, %v427
        %5911 = vrot.lane.b32.xlu0 %v5879, 32
        %v5912 = vpop.permute.xlu0 %5911
        %5913 = vrot.lane.b32.xlu0 %v5880, 32
        %v5914 = vpop.permute.xlu0 %5913
        %5915 = vrot.lane.b32.xlu0 %v5881, 32
        %v5916 = vpop.permute.xlu0 %5915
        %5917 = vrot.lane.b32.xlu0 %v5882, 32
        %v5918 = vpop.permute.xlu0 %5917
        %5919 = vrot.lane.b32.xlu0 %v5883, 32
        %v5920 = vpop.permute.xlu0 %5919
        %5921 = vrot.lane.b32.xlu0 %v5884, 32
        %v5922 = vpop.permute.xlu0 %5921
        %5923 = vrot.lane.b32.xlu0 %v5885, 32
        %v5924 = vpop.permute.xlu0 %5923
        %5925 = vrot.lane.b32.xlu0 %v5886, 32
        %v5926 = vpop.permute.xlu0 %5925
        %5927 = vrot.lane.b32.xlu0 %v5887, 32
        %v5928 = vpop.permute.xlu0 %5927
        %5929 = vrot.lane.b32.xlu0 %v5888, 32
        %v5930 = vpop.permute.xlu0 %5929
        %5931 = vrot.lane.b32.xlu0 %v5889, 32
        %v5932 = vpop.permute.xlu0 %5931
        %5933 = vrot.lane.b32.xlu0 %v5890, 32
        %v5934 = vpop.permute.xlu0 %5933
        %5935 = vrot.lane.b32.xlu0 %v5891, 32
        %v5936 = vpop.permute.xlu0 %5935
        %5937 = vrot.lane.b32.xlu0 %v5892, 32
        %v5938 = vpop.permute.xlu0 %5937
        %5939 = vrot.lane.b32.xlu0 %v5893, 32
        %v5940 = vpop.permute.xlu0 %5939
        %5941 = vrot.lane.b32.xlu0 %v5894, 32
        %v5942 = vpop.permute.xlu0 %5941
        %v5943 = vsel %vm621, %v5912, %v5914
        %v5944 = vsel %vm621, %v5914, %v5916
        %v5945 = vsel %vm621, %v5916, %v5918
        %v5946 = vsel %vm621, %v5920, %v5922
        %v5947 = vsel %vm621, %v5922, %v5924
        %v5948 = vsel %vm621, %v5924, %v5926
        %v5949 = vsel %vm621, %v5928, %v5930
        %v5950 = vsel %vm621, %v5930, %v5932
        %v5951 = vsel %vm621, %v5932, %v5934
        %v5952 = vsel %vm621, %v5936, %v5938
        %v5953 = vsel %vm621, %v5938, %v5940
        %v5954 = vsel %vm621, %v5940, %v5942
        %v5967 = vadd.f32 %v5851, %v5943
        %v5968 = vadd.f32 %v5852, %v5944
        %v5969 = vadd.f32 %v5853, %v5945
        %v5970 = vadd.f32 %v5854, %v5946
        %v5971 = vadd.f32 %v5855, %v5947
        %v5972 = vadd.f32 %v5856, %v5948
        %v5973 = vadd.f32 %v5857, %v5949
        %v5974 = vadd.f32 %v5858, %v5950
        %v5975 = vadd.f32 %v5859, %v5951
        %v5976 = vadd.f32 %v5860, %v5952
        %v5977 = vadd.f32 %v5861, %v5953
        %v5978 = vadd.f32 %v5862, %v5954
        %5979 = vset.pattern.permute.xlu0 21
        %5980 = vperm.xlu0 %5979, %v432
        %v5981 = vpop.permute.xlu0 %5980
        %5983 = vset.pattern.permute.xlu0 21
        %5984 = vperm.xlu0 %5983, %v433
        %v5985 = vpop.permute.xlu0 %5984
        %5987 = vset.pattern.permute.xlu0 21
        %5988 = vperm.xlu0 %5987, %v434
        %v5989 = vpop.permute.xlu0 %5988
        %5991 = vset.pattern.permute.xlu0 21
        %5992 = vperm.xlu0 %5991, %v435
        %v5993 = vpop.permute.xlu0 %5992
        %v5995 = vmul.f32 %v5981, %v412
        %v5996 = vmul.f32 %v5981, %v413
        %v5997 = vmul.f32 %v5981, %v414
        %v5998 = vmul.f32 %v5981, %v415
        %v5999 = vmul.f32 %v5985, %v416
        %v6000 = vmul.f32 %v5985, %v417
        %v6001 = vmul.f32 %v5985, %v418
        %v6002 = vmul.f32 %v5985, %v419
        %v6003 = vmul.f32 %v5989, %v420
        %v6004 = vmul.f32 %v5989, %v421
        %v6005 = vmul.f32 %v5989, %v422
        %v6006 = vmul.f32 %v5989, %v423
        %v6007 = vmul.f32 %v5993, %v424
        %v6008 = vmul.f32 %v5993, %v425
        %v6009 = vmul.f32 %v5993, %v426
        %v6010 = vmul.f32 %v5993, %v427
        %6027 = vrot.lane.b32.xlu0 %v5995, 31
        %v6028 = vpop.permute.xlu0 %6027
        %6029 = vrot.lane.b32.xlu0 %v5996, 31
        %v6030 = vpop.permute.xlu0 %6029
        %6031 = vrot.lane.b32.xlu0 %v5997, 31
        %v6032 = vpop.permute.xlu0 %6031
        %6033 = vrot.lane.b32.xlu0 %v5998, 31
        %v6034 = vpop.permute.xlu0 %6033
        %6035 = vrot.lane.b32.xlu0 %v5999, 31
        %v6036 = vpop.permute.xlu0 %6035
        %6037 = vrot.lane.b32.xlu0 %v6000, 31
        %v6038 = vpop.permute.xlu0 %6037
        %6039 = vrot.lane.b32.xlu0 %v6001, 31
        %v6040 = vpop.permute.xlu0 %6039
        %6041 = vrot.lane.b32.xlu0 %v6002, 31
        %v6042 = vpop.permute.xlu0 %6041
        %6043 = vrot.lane.b32.xlu0 %v6003, 31
        %v6044 = vpop.permute.xlu0 %6043
        %6045 = vrot.lane.b32.xlu0 %v6004, 31
        %v6046 = vpop.permute.xlu0 %6045
        %6047 = vrot.lane.b32.xlu0 %v6005, 31
        %v6048 = vpop.permute.xlu0 %6047
        %6049 = vrot.lane.b32.xlu0 %v6006, 31
        %v6050 = vpop.permute.xlu0 %6049
        %6051 = vrot.lane.b32.xlu0 %v6007, 31
        %v6052 = vpop.permute.xlu0 %6051
        %6053 = vrot.lane.b32.xlu0 %v6008, 31
        %v6054 = vpop.permute.xlu0 %6053
        %6055 = vrot.lane.b32.xlu0 %v6009, 31
        %v6056 = vpop.permute.xlu0 %6055
        %6057 = vrot.lane.b32.xlu0 %v6010, 31
        %v6058 = vpop.permute.xlu0 %6057
        %vm6059 = vcmask 252928
        %v6060 = vsel %vm6059, %v6028, %v6030
        %v6061 = vsel %vm6059, %v6030, %v6032
        %v6062 = vsel %vm6059, %v6032, %v6034
        %v6063 = vsel %vm6059, %v6036, %v6038
        %v6064 = vsel %vm6059, %v6038, %v6040
        %v6065 = vsel %vm6059, %v6040, %v6042
        %v6066 = vsel %vm6059, %v6044, %v6046
        %v6067 = vsel %vm6059, %v6046, %v6048
        %v6068 = vsel %vm6059, %v6048, %v6050
        %v6069 = vsel %vm6059, %v6052, %v6054
        %v6070 = vsel %vm6059, %v6054, %v6056
        %v6071 = vsel %vm6059, %v6056, %v6058
        %v6084 = vadd.f32 %v5967, %v6060
        %v6085 = vadd.f32 %v5968, %v6061
        %v6086 = vadd.f32 %v5969, %v6062
        %v6087 = vadd.f32 %v5970, %v6063
        %v6088 = vadd.f32 %v5971, %v6064
        %v6089 = vadd.f32 %v5972, %v6065
        %v6090 = vadd.f32 %v5973, %v6066
        %v6091 = vadd.f32 %v5974, %v6067
        %v6092 = vadd.f32 %v5975, %v6068
        %v6093 = vadd.f32 %v5976, %v6069
        %v6094 = vadd.f32 %v5977, %v6070
        %v6095 = vadd.f32 %v5978, %v6071
        %6096 = vset.pattern.permute.xlu0 22
        %6097 = vperm.xlu0 %6096, %v432
        %v6098 = vpop.permute.xlu0 %6097
        %6100 = vset.pattern.permute.xlu0 22
        %6101 = vperm.xlu0 %6100, %v433
        %v6102 = vpop.permute.xlu0 %6101
        %6104 = vset.pattern.permute.xlu0 22
        %6105 = vperm.xlu0 %6104, %v434
        %v6106 = vpop.permute.xlu0 %6105
        %6108 = vset.pattern.permute.xlu0 22
        %6109 = vperm.xlu0 %6108, %v435
        %v6110 = vpop.permute.xlu0 %6109
        %v6112 = vmul.f32 %v6098, %v412
        %v6113 = vmul.f32 %v6098, %v413
        %v6114 = vmul.f32 %v6098, %v414
        %v6115 = vmul.f32 %v6098, %v415
        %v6116 = vmul.f32 %v6102, %v416
        %v6117 = vmul.f32 %v6102, %v417
        %v6118 = vmul.f32 %v6102, %v418
        %v6119 = vmul.f32 %v6102, %v419
        %v6120 = vmul.f32 %v6106, %v420
        %v6121 = vmul.f32 %v6106, %v421
        %v6122 = vmul.f32 %v6106, %v422
        %v6123 = vmul.f32 %v6106, %v423
        %v6124 = vmul.f32 %v6110, %v424
        %v6125 = vmul.f32 %v6110, %v425
        %v6126 = vmul.f32 %v6110, %v426
        %v6127 = vmul.f32 %v6110, %v427
        %6144 = vrot.lane.b32.xlu0 %v6112, 30
        %v6145 = vpop.permute.xlu0 %6144
        %6146 = vrot.lane.b32.xlu0 %v6113, 30
        %v6147 = vpop.permute.xlu0 %6146
        %6148 = vrot.lane.b32.xlu0 %v6114, 30
        %v6149 = vpop.permute.xlu0 %6148
        %6150 = vrot.lane.b32.xlu0 %v6115, 30
        %v6151 = vpop.permute.xlu0 %6150
        %6152 = vrot.lane.b32.xlu0 %v6116, 30
        %v6153 = vpop.permute.xlu0 %6152
        %6154 = vrot.lane.b32.xlu0 %v6117, 30
        %v6155 = vpop.permute.xlu0 %6154
        %6156 = vrot.lane.b32.xlu0 %v6118, 30
        %v6157 = vpop.permute.xlu0 %6156
        %6158 = vrot.lane.b32.xlu0 %v6119, 30
        %v6159 = vpop.permute.xlu0 %6158
        %6160 = vrot.lane.b32.xlu0 %v6120, 30
        %v6161 = vpop.permute.xlu0 %6160
        %6162 = vrot.lane.b32.xlu0 %v6121, 30
        %v6163 = vpop.permute.xlu0 %6162
        %6164 = vrot.lane.b32.xlu0 %v6122, 30
        %v6165 = vpop.permute.xlu0 %6164
        %6166 = vrot.lane.b32.xlu0 %v6123, 30
        %v6167 = vpop.permute.xlu0 %6166
        %6168 = vrot.lane.b32.xlu0 %v6124, 30
        %v6169 = vpop.permute.xlu0 %6168
        %6170 = vrot.lane.b32.xlu0 %v6125, 30
        %v6171 = vpop.permute.xlu0 %6170
        %6172 = vrot.lane.b32.xlu0 %v6126, 30
        %v6173 = vpop.permute.xlu0 %6172
        %6174 = vrot.lane.b32.xlu0 %v6127, 30
        %v6175 = vpop.permute.xlu0 %6174
        %vm6176 = vcmask 244736
        %v6177 = vsel %vm6176, %v6145, %v6147
        %v6178 = vsel %vm6176, %v6147, %v6149
        %v6179 = vsel %vm6176, %v6149, %v6151
        %v6180 = vsel %vm6176, %v6153, %v6155
        %v6181 = vsel %vm6176, %v6155, %v6157
        %v6182 = vsel %vm6176, %v6157, %v6159
        %v6183 = vsel %vm6176, %v6161, %v6163
        %v6184 = vsel %vm6176, %v6163, %v6165
        %v6185 = vsel %vm6176, %v6165, %v6167
        %v6186 = vsel %vm6176, %v6169, %v6171
        %v6187 = vsel %vm6176, %v6171, %v6173
        %v6188 = vsel %vm6176, %v6173, %v6175
        %v6201 = vadd.f32 %v6084, %v6177
        %v6202 = vadd.f32 %v6085, %v6178
        %v6203 = vadd.f32 %v6086, %v6179
        %v6204 = vadd.f32 %v6087, %v6180
        %v6205 = vadd.f32 %v6088, %v6181
        %v6206 = vadd.f32 %v6089, %v6182
        %v6207 = vadd.f32 %v6090, %v6183
        %v6208 = vadd.f32 %v6091, %v6184
        %v6209 = vadd.f32 %v6092, %v6185
        %v6210 = vadd.f32 %v6093, %v6186
        %v6211 = vadd.f32 %v6094, %v6187
        %v6212 = vadd.f32 %v6095, %v6188
        %6213 = vset.pattern.permute.xlu0 23
        %6214 = vperm.xlu0 %6213, %v432
        %v6215 = vpop.permute.xlu0 %6214
        %6217 = vset.pattern.permute.xlu0 23
        %6218 = vperm.xlu0 %6217, %v433
        %v6219 = vpop.permute.xlu0 %6218
        %6221 = vset.pattern.permute.xlu0 23
        %6222 = vperm.xlu0 %6221, %v434
        %v6223 = vpop.permute.xlu0 %6222
        %6225 = vset.pattern.permute.xlu0 23
        %6226 = vperm.xlu0 %6225, %v435
        %v6227 = vpop.permute.xlu0 %6226
        %v6229 = vmul.f32 %v6215, %v412
        %v6230 = vmul.f32 %v6215, %v413
        %v6231 = vmul.f32 %v6215, %v414
        %v6232 = vmul.f32 %v6215, %v415
        %v6233 = vmul.f32 %v6219, %v416
        %v6234 = vmul.f32 %v6219, %v417
        %v6235 = vmul.f32 %v6219, %v418
        %v6236 = vmul.f32 %v6219, %v419
        %v6237 = vmul.f32 %v6223, %v420
        %v6238 = vmul.f32 %v6223, %v421
        %v6239 = vmul.f32 %v6223, %v422
        %v6240 = vmul.f32 %v6223, %v423
        %v6241 = vmul.f32 %v6227, %v424
        %v6242 = vmul.f32 %v6227, %v425
        %v6243 = vmul.f32 %v6227, %v426
        %v6244 = vmul.f32 %v6227, %v427
        %6261 = vrot.lane.b32.xlu0 %v6229, 29
        %v6262 = vpop.permute.xlu0 %6261
        %6263 = vrot.lane.b32.xlu0 %v6230, 29
        %v6264 = vpop.permute.xlu0 %6263
        %6265 = vrot.lane.b32.xlu0 %v6231, 29
        %v6266 = vpop.permute.xlu0 %6265
        %6267 = vrot.lane.b32.xlu0 %v6232, 29
        %v6268 = vpop.permute.xlu0 %6267
        %6269 = vrot.lane.b32.xlu0 %v6233, 29
        %v6270 = vpop.permute.xlu0 %6269
        %6271 = vrot.lane.b32.xlu0 %v6234, 29
        %v6272 = vpop.permute.xlu0 %6271
        %6273 = vrot.lane.b32.xlu0 %v6235, 29
        %v6274 = vpop.permute.xlu0 %6273
        %6275 = vrot.lane.b32.xlu0 %v6236, 29
        %v6276 = vpop.permute.xlu0 %6275
        %6277 = vrot.lane.b32.xlu0 %v6237, 29
        %v6278 = vpop.permute.xlu0 %6277
        %6279 = vrot.lane.b32.xlu0 %v6238, 29
        %v6280 = vpop.permute.xlu0 %6279
        %6281 = vrot.lane.b32.xlu0 %v6239, 29
        %v6282 = vpop.permute.xlu0 %6281
        %6283 = vrot.lane.b32.xlu0 %v6240, 29
        %v6284 = vpop.permute.xlu0 %6283
        %6285 = vrot.lane.b32.xlu0 %v6241, 29
        %v6286 = vpop.permute.xlu0 %6285
        %6287 = vrot.lane.b32.xlu0 %v6242, 29
        %v6288 = vpop.permute.xlu0 %6287
        %6289 = vrot.lane.b32.xlu0 %v6243, 29
        %v6290 = vpop.permute.xlu0 %6289
        %6291 = vrot.lane.b32.xlu0 %v6244, 29
        %v6292 = vpop.permute.xlu0 %6291
        %vm6293 = vcmask 236544
        %v6294 = vsel %vm6293, %v6262, %v6264
        %v6295 = vsel %vm6293, %v6264, %v6266
        %v6296 = vsel %vm6293, %v6266, %v6268
        %v6297 = vsel %vm6293, %v6270, %v6272
        %v6298 = vsel %vm6293, %v6272, %v6274
        %v6299 = vsel %vm6293, %v6274, %v6276
        %v6300 = vsel %vm6293, %v6278, %v6280
        %v6301 = vsel %vm6293, %v6280, %v6282
        %v6302 = vsel %vm6293, %v6282, %v6284
        %v6303 = vsel %vm6293, %v6286, %v6288
        %v6304 = vsel %vm6293, %v6288, %v6290
        %v6305 = vsel %vm6293, %v6290, %v6292
        %v6318 = vadd.f32 %v6201, %v6294
        %v6319 = vadd.f32 %v6202, %v6295
        %v6320 = vadd.f32 %v6203, %v6296
        %v6321 = vadd.f32 %v6204, %v6297
        %v6322 = vadd.f32 %v6205, %v6298
        %v6323 = vadd.f32 %v6206, %v6299
        %v6324 = vadd.f32 %v6207, %v6300
        %v6325 = vadd.f32 %v6208, %v6301
        %v6326 = vadd.f32 %v6209, %v6302
        %v6327 = vadd.f32 %v6210, %v6303
        %v6328 = vadd.f32 %v6211, %v6304
        %v6329 = vadd.f32 %v6212, %v6305
        %6330 = vset.pattern.permute.xlu0 24
        %6331 = vperm.xlu0 %6330, %v432
        %v6332 = vpop.permute.xlu0 %6331
        %6334 = vset.pattern.permute.xlu0 24
        %6335 = vperm.xlu0 %6334, %v433
        %v6336 = vpop.permute.xlu0 %6335
        %6338 = vset.pattern.permute.xlu0 24
        %6339 = vperm.xlu0 %6338, %v434
        %v6340 = vpop.permute.xlu0 %6339
        %6342 = vset.pattern.permute.xlu0 24
        %6343 = vperm.xlu0 %6342, %v435
        %v6344 = vpop.permute.xlu0 %6343
        %v6346 = vmul.f32 %v6332, %v412
        %v6347 = vmul.f32 %v6332, %v413
        %v6348 = vmul.f32 %v6332, %v414
        %v6349 = vmul.f32 %v6332, %v415
        %v6350 = vmul.f32 %v6336, %v416
        %v6351 = vmul.f32 %v6336, %v417
        %v6352 = vmul.f32 %v6336, %v418
        %v6353 = vmul.f32 %v6336, %v419
        %v6354 = vmul.f32 %v6340, %v420
        %v6355 = vmul.f32 %v6340, %v421
        %v6356 = vmul.f32 %v6340, %v422
        %v6357 = vmul.f32 %v6340, %v423
        %v6358 = vmul.f32 %v6344, %v424
        %v6359 = vmul.f32 %v6344, %v425
        %v6360 = vmul.f32 %v6344, %v426
        %v6361 = vmul.f32 %v6344, %v427
        %6378 = vrot.lane.b32.xlu0 %v6346, 28
        %v6379 = vpop.permute.xlu0 %6378
        %6380 = vrot.lane.b32.xlu0 %v6347, 28
        %v6381 = vpop.permute.xlu0 %6380
        %6382 = vrot.lane.b32.xlu0 %v6348, 28
        %v6383 = vpop.permute.xlu0 %6382
        %6384 = vrot.lane.b32.xlu0 %v6349, 28
        %v6385 = vpop.permute.xlu0 %6384
        %6386 = vrot.lane.b32.xlu0 %v6350, 28
        %v6387 = vpop.permute.xlu0 %6386
        %6388 = vrot.lane.b32.xlu0 %v6351, 28
        %v6389 = vpop.permute.xlu0 %6388
        %6390 = vrot.lane.b32.xlu0 %v6352, 28
        %v6391 = vpop.permute.xlu0 %6390
        %6392 = vrot.lane.b32.xlu0 %v6353, 28
        %v6393 = vpop.permute.xlu0 %6392
        %6394 = vrot.lane.b32.xlu0 %v6354, 28
        %v6395 = vpop.permute.xlu0 %6394
        %6396 = vrot.lane.b32.xlu0 %v6355, 28
        %v6397 = vpop.permute.xlu0 %6396
        %6398 = vrot.lane.b32.xlu0 %v6356, 28
        %v6399 = vpop.permute.xlu0 %6398
        %6400 = vrot.lane.b32.xlu0 %v6357, 28
        %v6401 = vpop.permute.xlu0 %6400
        %6402 = vrot.lane.b32.xlu0 %v6358, 28
        %v6403 = vpop.permute.xlu0 %6402
        %6404 = vrot.lane.b32.xlu0 %v6359, 28
        %v6405 = vpop.permute.xlu0 %6404
        %6406 = vrot.lane.b32.xlu0 %v6360, 28
        %v6407 = vpop.permute.xlu0 %6406
        %6408 = vrot.lane.b32.xlu0 %v6361, 28
        %v6409 = vpop.permute.xlu0 %6408
        %vm6410 = vcmask 228352
        %v6411 = vsel %vm6410, %v6379, %v6381
        %v6412 = vsel %vm6410, %v6381, %v6383
        %v6413 = vsel %vm6410, %v6383, %v6385
        %v6414 = vsel %vm6410, %v6387, %v6389
        %v6415 = vsel %vm6410, %v6389, %v6391
        %v6416 = vsel %vm6410, %v6391, %v6393
        %v6417 = vsel %vm6410, %v6395, %v6397
        %v6418 = vsel %vm6410, %v6397, %v6399
        %v6419 = vsel %vm6410, %v6399, %v6401
        %v6420 = vsel %vm6410, %v6403, %v6405
        %v6421 = vsel %vm6410, %v6405, %v6407
        %v6422 = vsel %vm6410, %v6407, %v6409
        %v6435 = vadd.f32 %v6318, %v6411
        %v6436 = vadd.f32 %v6319, %v6412
        %v6437 = vadd.f32 %v6320, %v6413
        %v6438 = vadd.f32 %v6321, %v6414
        %v6439 = vadd.f32 %v6322, %v6415
        %v6440 = vadd.f32 %v6323, %v6416
        %v6441 = vadd.f32 %v6324, %v6417
        %v6442 = vadd.f32 %v6325, %v6418
        %v6443 = vadd.f32 %v6326, %v6419
        %v6444 = vadd.f32 %v6327, %v6420
        %v6445 = vadd.f32 %v6328, %v6421
        %v6446 = vadd.f32 %v6329, %v6422
        %s6447 = scalar_lea.vmem %s4, 256
        %v6448 = vld [vmem:[%s6447] sm:$0xff]
        %v6449 = vld [vmem:[%s6447 + $0x8] sm:$0xff]
        %v6450 = vld [vmem:[%s6447 + $0x10] sm:$0xff]
        %v6451 = vld [vmem:[%s6447 + $0x18] sm:$0xff]
        %v6452 = vld [vmem:[%s6447 + $0x20] sm:$0xff]
        %v6453 = vld [vmem:[%s6447 + $0x28] sm:$0xff]
        %v6454 = vld [vmem:[%s6447 + $0x30] sm:$0xff]
        %v6455 = vld [vmem:[%s6447 + $0x38] sm:$0xff]
        %v6456 = vld [vmem:[%s6447 + $0x40] sm:$0xff]
        %v6457 = vld [vmem:[%s6447 + $0x48] sm:$0xff]
        %v6458 = vld [vmem:[%s6447 + $0x50] sm:$0xff]
        %v6459 = vld [vmem:[%s6447 + $0x58] sm:$0xff]
        %v6460 = vld [vmem:[%s6447 + $0x60] sm:$0xff]
        %v6461 = vld [vmem:[%s6447 + $0x68] sm:$0xff]
        %v6462 = vld [vmem:[%s6447 + $0x70] sm:$0xff]
        %v6463 = vld [vmem:[%s6447 + $0x78] sm:$0xff]
        %s6464 = scalar_lea.vmem %s5, 256
        %v6465 = vld [vmem:[%s6464] sm:$0xff]
        %v6466 = vld [vmem:[%s6464 + $0x8] sm:$0xff]
        %v6467 = vld [vmem:[%s6464 + $0x10] sm:$0xff]
        %v6468 = vld [vmem:[%s6464 + $0x18] sm:$0xff]
        %v6469 = vld [vmem:[%s6464 + $0x20] sm:$0xff]
        %v6470 = vld [vmem:[%s6464 + $0x28] sm:$0xff]
        %v6471 = vld [vmem:[%s6464 + $0x30] sm:$0xff]
        %v6472 = vld [vmem:[%s6464 + $0x38] sm:$0xff]
        %v6473 = vld [vmem:[%s6464 + $0x40] sm:$0xff]
        %v6474 = vld [vmem:[%s6464 + $0x48] sm:$0xff]
        %v6475 = vld [vmem:[%s6464 + $0x50] sm:$0xff]
        %v6476 = vld [vmem:[%s6464 + $0x58] sm:$0xff]
        %v6477 = vld [vmem:[%s6464 + $0x60] sm:$0xff]
        %v6478 = vld [vmem:[%s6464 + $0x68] sm:$0xff]
        %v6479 = vld [vmem:[%s6464 + $0x70] sm:$0xff]
        %v6480 = vld [vmem:[%s6464 + $0x78] sm:$0xff]
        %6482 = vset.pattern.permute.xlu0 0
        %6483 = vperm.xlu0 %6482, %v6465
        %v6484 = vpop.permute.xlu0 %6483
        %6487 = vset.pattern.permute.xlu0 0
        %6488 = vperm.xlu0 %6487, %v6466
        %v6489 = vpop.permute.xlu0 %6488
        %6492 = vset.pattern.permute.xlu0 0
        %6493 = vperm.xlu0 %6492, %v6467
        %v6494 = vpop.permute.xlu0 %6493
        %6497 = vset.pattern.permute.xlu0 0
        %6498 = vperm.xlu0 %6497, %v6468
        %v6499 = vpop.permute.xlu0 %6498
        %6502 = vset.pattern.permute.xlu0 0
        %6503 = vperm.xlu0 %6502, %v6469
        %v6504 = vpop.permute.xlu0 %6503
        %6507 = vset.pattern.permute.xlu0 0
        %6508 = vperm.xlu0 %6507, %v6470
        %v6509 = vpop.permute.xlu0 %6508
        %6512 = vset.pattern.permute.xlu0 0
        %6513 = vperm.xlu0 %6512, %v6471
        %v6514 = vpop.permute.xlu0 %6513
        %6517 = vset.pattern.permute.xlu0 0
        %6518 = vperm.xlu0 %6517, %v6472
        %v6519 = vpop.permute.xlu0 %6518
        %6522 = vset.pattern.permute.xlu0 0
        %6523 = vperm.xlu0 %6522, %v6473
        %v6524 = vpop.permute.xlu0 %6523
        %6527 = vset.pattern.permute.xlu0 0
        %6528 = vperm.xlu0 %6527, %v6474
        %v6529 = vpop.permute.xlu0 %6528
        %6532 = vset.pattern.permute.xlu0 0
        %6533 = vperm.xlu0 %6532, %v6475
        %v6534 = vpop.permute.xlu0 %6533
        %6537 = vset.pattern.permute.xlu0 0
        %6538 = vperm.xlu0 %6537, %v6476
        %v6539 = vpop.permute.xlu0 %6538
        %6542 = vset.pattern.permute.xlu0 0
        %6543 = vperm.xlu0 %6542, %v6477
        %v6544 = vpop.permute.xlu0 %6543
        %6547 = vset.pattern.permute.xlu0 0
        %6548 = vperm.xlu0 %6547, %v6478
        %v6549 = vpop.permute.xlu0 %6548
        %6552 = vset.pattern.permute.xlu0 0
        %6553 = vperm.xlu0 %6552, %v6479
        %v6554 = vpop.permute.xlu0 %6553
        %6557 = vset.pattern.permute.xlu0 0
        %6558 = vperm.xlu0 %6557, %v6480
        %v6559 = vpop.permute.xlu0 %6558
        %v6562 = vsel %vm621, %v6448, 0
        %v6565 = vsel %vm621, %v6449, 0
        %v6568 = vsel %vm621, %v6450, 0
        %v6571 = vsel %vm621, %v6451, 0
        %v6574 = vsel %vm621, %v6452, 0
        %v6577 = vsel %vm621, %v6453, 0
        %v6580 = vsel %vm621, %v6454, 0
        %v6583 = vsel %vm621, %v6455, 0
        %v6586 = vsel %vm621, %v6456, 0
        %v6589 = vsel %vm621, %v6457, 0
        %v6592 = vsel %vm621, %v6458, 0
        %v6595 = vsel %vm621, %v6459, 0
        %v6598 = vsel %vm621, %v6460, 0
        %v6601 = vsel %vm621, %v6461, 0
        %v6604 = vsel %vm621, %v6462, 0
        %v6607 = vsel %vm621, %v6463, 0
        %6609 = vmatprep.subr.mxu0 %v6436
        %6610 = vmatpush1.msra.mxu0 %v6435
        %6611 = vmatprep.subr.mxu0 %v6439
        %6612 = vmatpush1.msra.mxu0 %v6438
        %6613 = vmatprep.subr.mxu0 %v6442
        %6614 = vmatpush1.msra.mxu0 %v6441
        %6615 = vmatprep.subr.mxu0 %v6445
        %6616 = vmatpush1.msra.mxu0 %v6444
        %6617 = vmatprep.subr.mxu0 0.0
        %6618 = vmatpush1.msra.mxu0 0.0
        %6619 = vmatprep.subr.mxu0 0.0
        %6620 = vmatpush1.msra.mxu0 0.0
        %6621 = vmatprep.subr.mxu0 0.0
        %6622 = vmatpush1.msra.mxu0 0.0
        %6623 = vmatprep.subr.mxu0 0.0
        %6624 = vmatpush1.msra.mxu0 0.0
        %6625 = vmatprep.subr.mxu0 0.0
        %6626 = vmatpush1.msra.mxu0 0.0
        %6627 = vmatprep.subr.mxu0 0.0
        %6628 = vmatpush1.msra.mxu0 0.0
        %6629 = vmatprep.subr.mxu0 0.0
        %6630 = vmatpush1.msra.mxu0 0.0
        %6631 = vmatprep.subr.mxu0 0.0
        %6632 = vmatpush1.msra.mxu0 0.0
        %6633 = vmatprep.subr.mxu0 0.0
        %6634 = vmatpush1.msra.mxu0 0.0
        %6635 = vmatprep.subr.mxu0 0.0
        %6636 = vmatpush1.msra.mxu0 0.0
        %6637 = vmatprep.subr.mxu0 0.0
        %6638 = vmatpush1.msra.mxu0 0.0
        %6639 = vmatprep.subr.mxu0 0.0
        %6640 = vmatpush1.msra.mxu0 0.0
        %6641 = vmatprep.subr.mxu0 0.0
        %6642 = vmatpush1.msra.mxu0 0.0
        %6643 = vmatprep.subr.mxu0 0.0
        %6644 = vmatpush1.msra.mxu0 0.0
        %6645 = vmatprep.subr.mxu0 0.0
        %6646 = vmatpush1.msra.mxu0 0.0
        %6647 = vmatprep.subr.mxu0 0.0
        %6648 = vmatpush1.msra.mxu0 0.0
        %6649 = vmatprep.subr.mxu0 0.0
        %6650 = vmatpush1.msra.mxu0 0.0
        %6651 = vmatprep.subr.mxu0 0.0
        %6652 = vmatpush1.msra.mxu0 0.0
        %6653 = vmatprep.subr.mxu0 0.0
        %6654 = vmatpush1.msra.mxu0 0.0
        %6655 = vmatprep.subr.mxu0 0.0
        %6656 = vmatpush1.msra.mxu0 0.0
        %6657 = vmatprep.subr.mxu0 0.0
        %6658 = vmatpush1.msra.mxu0 0.0
        %6659 = vmatprep.subr.mxu0 0.0
        %6660 = vmatpush1.msra.mxu0 0.0
        %6661 = vmatprep.subr.mxu0 0.0
        %6662 = vmatpush1.msra.mxu0 0.0
        %6663 = vmatprep.subr.mxu0 0.0
        %6664 = vmatpush1.msra.mxu0 0.0
        %6665 = vmatprep.subr.mxu0 0.0
        %6666 = vmatpush1.msra.mxu0 0.0
        %6667 = vmatprep.subr.mxu0 0.0
        %6668 = vmatpush1.msra.mxu0 0.0
        %6669 = vmatprep.subr.mxu0 0.0
        %6670 = vmatpush1.msra.mxu0 0.0
        %6671 = vmatprep.subr.mxu0 0.0
        %6672 = vmatpush1.msra.mxu0 0.0
        %6673 = vmatprep.mubr.f32.mxu0 0.0
        %6674 = vmatmul.mubr.f32.gmra.mrb[0].mxu0 %v6562
        %v6675 = vpop.f32.mrb[0].mxu0
        %v6676 = vadd.f32 %v6484, %v6675
        %v6677 = vpop.f32.mrb[0].mxu0
        %v6678 = vadd.f32 %v6484, %v6677
        %6679 = vmatprep.mubr.f32.mxu0 0.0
        %6680 = vmatmul.mubr.f32.gmra.mrb[0].mxu0 %v6565
        %v6681 = vpop.f32.mrb[0].mxu0
        %v6682 = vadd.f32 %v6489, %v6681
        %v6683 = vpop.f32.mrb[0].mxu0
        %v6684 = vadd.f32 %v6489, %v6683
        %6685 = vmatprep.mubr.f32.mxu0 0.0
        %6686 = vmatmul.mubr.f32.gmra.mrb[0].mxu0 %v6568
        %v6687 = vpop.f32.mrb[0].mxu0
        %v6688 = vadd.f32 %v6494, %v6687
        %v6689 = vpop.f32.mrb[0].mxu0
        %v6690 = vadd.f32 %v6494, %v6689
        %6691 = vmatprep.mubr.f32.mxu0 0.0
        %6692 = vmatmul.mubr.f32.gmra.mrb[0].mxu0 %v6571
        %v6693 = vpop.f32.mrb[0].mxu0
        %v6694 = vadd.f32 %v6499, %v6693
        %v6695 = vpop.f32.mrb[0].mxu0
        %v6696 = vadd.f32 %v6499, %v6695
        %6697 = vmatprep.mubr.f32.mxu0 0.0
        %6698 = vmatmul.mubr.f32.gmra.mrb[0].mxu0 %v6574
        %v6699 = vpop.f32.mrb[0].mxu0
        %v6700 = vadd.f32 %v6504, %v6699
        %v6701 = vpop.f32.mrb[0].mxu0
        %v6702 = vadd.f32 %v6504, %v6701
        %6703 = vmatprep.mubr.f32.mxu0 0.0
        %6704 = vmatmul.mubr.f32.gmra.mrb[0].mxu0 %v6577
        %v6705 = vpop.f32.mrb[0].mxu0
        %v6706 = vadd.f32 %v6509, %v6705
        %v6707 = vpop.f32.mrb[0].mxu0
        %v6708 = vadd.f32 %v6509, %v6707
        %6709 = vmatprep.mubr.f32.mxu0 0.0
        %6710 = vmatmul.mubr.f32.gmra.mrb[0].mxu0 %v6580
        %v6711 = vpop.f32.mrb[0].mxu0
        %v6712 = vadd.f32 %v6514, %v6711
        %v6713 = vpop.f32.mrb[0].mxu0
        %v6714 = vadd.f32 %v6514, %v6713
        %6715 = vmatprep.mubr.f32.mxu0 0.0
        %6716 = vmatmul.mubr.f32.gmra.mrb[0].mxu0 %v6583
        %v6717 = vpop.f32.mrb[0].mxu0
        %v6718 = vadd.f32 %v6519, %v6717
        %v6719 = vpop.f32.mrb[0].mxu0
        %v6720 = vadd.f32 %v6519, %v6719
        %6721 = vmatprep.mubr.f32.mxu0 0.0
        %6722 = vmatmul.mubr.f32.gmra.mrb[0].mxu0 %v6586
        %v6723 = vpop.f32.mrb[0].mxu0
        %v6724 = vadd.f32 %v6524, %v6723
        %v6725 = vpop.f32.mrb[0].mxu0
        %v6726 = vadd.f32 %v6524, %v6725
        %6727 = vmatprep.mubr.f32.mxu0 0.0
        %6728 = vmatmul.mubr.f32.gmra.mrb[0].mxu0 %v6589
        %v6729 = vpop.f32.mrb[0].mxu0
        %v6730 = vadd.f32 %v6529, %v6729
        %v6731 = vpop.f32.mrb[0].mxu0
        %v6732 = vadd.f32 %v6529, %v6731
        %6733 = vmatprep.mubr.f32.mxu0 0.0
        %6734 = vmatmul.mubr.f32.gmra.mrb[0].mxu0 %v6592
        %v6735 = vpop.f32.mrb[0].mxu0
        %v6736 = vadd.f32 %v6534, %v6735
        %v6737 = vpop.f32.mrb[0].mxu0
        %v6738 = vadd.f32 %v6534, %v6737
        %6739 = vmatprep.mubr.f32.mxu0 0.0
        %6740 = vmatmul.mubr.f32.gmra.mrb[0].mxu0 %v6595
        %v6741 = vpop.f32.mrb[0].mxu0
        %v6742 = vadd.f32 %v6539, %v6741
        %v6743 = vpop.f32.mrb[0].mxu0
        %v6744 = vadd.f32 %v6539, %v6743
        %6745 = vmatprep.mubr.f32.mxu0 0.0
        %6746 = vmatmul.mubr.f32.gmra.mrb[0].mxu0 %v6598
        %v6747 = vpop.f32.mrb[0].mxu0
        %v6748 = vadd.f32 %v6544, %v6747
        %v6749 = vpop.f32.mrb[0].mxu0
        %v6750 = vadd.f32 %v6544, %v6749
        %6751 = vmatprep.mubr.f32.mxu0 0.0
        %6752 = vmatmul.mubr.f32.gmra.mrb[0].mxu0 %v6601
        %v6753 = vpop.f32.mrb[0].mxu0
        %v6754 = vadd.f32 %v6549, %v6753
        %v6755 = vpop.f32.mrb[0].mxu0
        %v6756 = vadd.f32 %v6549, %v6755
        %6757 = vmatprep.mubr.f32.mxu0 0.0
        %6758 = vmatmul.mubr.f32.gmra.mrb[0].mxu0 %v6604
        %v6759 = vpop.f32.mrb[0].mxu0
        %v6760 = vadd.f32 %v6554, %v6759
        %v6761 = vpop.f32.mrb[0].mxu0
        %v6762 = vadd.f32 %v6554, %v6761
        %6763 = vmatprep.mubr.f32.mxu0 0.0
        %6764 = vmatmul.mubr.f32.gmra.mrb[0].mxu0 %v6607
        %v6765 = vpop.f32.mrb[0].mxu0
        %v6766 = vadd.f32 %v6559, %v6765
        %v6767 = vpop.f32.mrb[0].mxu0
        %v6768 = vadd.f32 %v6559, %v6767
        %6769 = vdwg.mxu0
        %6770 = vmatprep.subr.mxu0 0.0
        %6771 = vmatpush1.msra.mxu0 %v6437
        %6772 = vmatprep.subr.mxu0 0.0
        %6773 = vmatpush1.msra.mxu0 %v6440
        %6774 = vmatprep.subr.mxu0 0.0
        %6775 = vmatpush1.msra.mxu0 %v6443
        %6776 = vmatprep.subr.mxu0 0.0
        %6777 = vmatpush1.msra.mxu0 %v6446
        %6778 = vmatprep.subr.mxu0 0.0
        %6779 = vmatpush1.msra.mxu0 0.0
        %6780 = vmatprep.subr.mxu0 0.0
        %6781 = vmatpush1.msra.mxu0 0.0
        %6782 = vmatprep.subr.mxu0 0.0
        %6783 = vmatpush1.msra.mxu0 0.0
        %6784 = vmatprep.subr.mxu0 0.0
        %6785 = vmatpush1.msra.mxu0 0.0
        %6786 = vmatprep.subr.mxu0 0.0
        %6787 = vmatpush1.msra.mxu0 0.0
        %6788 = vmatprep.subr.mxu0 0.0
        %6789 = vmatpush1.msra.mxu0 0.0
        %6790 = vmatprep.subr.mxu0 0.0
        %6791 = vmatpush1.msra.mxu0 0.0
        %6792 = vmatprep.subr.mxu0 0.0
        %6793 = vmatpush1.msra.mxu0 0.0
        %6794 = vmatprep.subr.mxu0 0.0
        %6795 = vmatpush1.msra.mxu0 0.0
        %6796 = vmatprep.subr.mxu0 0.0
        %6797 = vmatpush1.msra.mxu0 0.0
        %6798 = vmatprep.subr.mxu0 0.0
        %6799 = vmatpush1.msra.mxu0 0.0
        %6800 = vmatprep.subr.mxu0 0.0
        %6801 = vmatpush1.msra.mxu0 0.0
        %6802 = vmatprep.subr.mxu0 0.0
        %6803 = vmatpush1.msra.mxu0 0.0
        %6804 = vmatprep.subr.mxu0 0.0
        %6805 = vmatpush1.msra.mxu0 0.0
        %6806 = vmatprep.subr.mxu0 0.0
        %6807 = vmatpush1.msra.mxu0 0.0
        %6808 = vmatprep.subr.mxu0 0.0
        %6809 = vmatpush1.msra.mxu0 0.0
        %6810 = vmatprep.subr.mxu0 0.0
        %6811 = vmatpush1.msra.mxu0 0.0
        %6812 = vmatprep.subr.mxu0 0.0
        %6813 = vmatpush1.msra.mxu0 0.0
        %6814 = vmatprep.subr.mxu0 0.0
        %6815 = vmatpush1.msra.mxu0 0.0
        %6816 = vmatprep.subr.mxu0 0.0
        %6817 = vmatpush1.msra.mxu0 0.0
        %6818 = vmatprep.subr.mxu0 0.0
        %6819 = vmatpush1.msra.mxu0 0.0
        %6820 = vmatprep.subr.mxu0 0.0
        %6821 = vmatpush1.msra.mxu0 0.0
        %6822 = vmatprep.subr.mxu0 0.0
        %6823 = vmatpush1.msra.mxu0 0.0
        %6824 = vmatprep.subr.mxu0 0.0
        %6825 = vmatpush1.msra.mxu0 0.0
        %6826 = vmatprep.subr.mxu0 0.0
        %6827 = vmatpush1.msra.mxu0 0.0
        %6828 = vmatprep.subr.mxu0 0.0
        %6829 = vmatpush1.msra.mxu0 0.0
        %6830 = vmatprep.subr.mxu0 0.0
        %6831 = vmatpush1.msra.mxu0 0.0
        %6832 = vmatprep.subr.mxu0 0.0
        %6833 = vmatpush1.msra.mxu0 0.0
        %6834 = vmatprep.mubr.f32.mxu0 0.0
        %6835 = vmatmul.mubr.f32.gmra.mrb[0].mxu0 %v6562
        %v6836 = vpop.f32.mrb[0].mxu0
        %v6837 = vadd.f32 %v6484, %v6836
        %v6838 = vpop.f32.mrb[0].mxu0
        %6839 = vmatprep.mubr.f32.mxu0 0.0
        %6840 = vmatmul.mubr.f32.gmra.mrb[0].mxu0 %v6565
        %v6841 = vpop.f32.mrb[0].mxu0
        %v6842 = vadd.f32 %v6489, %v6841
        %v6843 = vpop.f32.mrb[0].mxu0
        %6844 = vmatprep.mubr.f32.mxu0 0.0
        %6845 = vmatmul.mubr.f32.gmra.mrb[0].mxu0 %v6568
        %v6846 = vpop.f32.mrb[0].mxu0
        %v6847 = vadd.f32 %v6494, %v6846
        %v6848 = vpop.f32.mrb[0].mxu0
        %6849 = vmatprep.mubr.f32.mxu0 0.0
        %6850 = vmatmul.mubr.f32.gmra.mrb[0].mxu0 %v6571
        %v6851 = vpop.f32.mrb[0].mxu0
        %v6852 = vadd.f32 %v6499, %v6851
        %v6853 = vpop.f32.mrb[0].mxu0
        %6854 = vmatprep.mubr.f32.mxu0 0.0
        %6855 = vmatmul.mubr.f32.gmra.mrb[0].mxu0 %v6574
        %v6856 = vpop.f32.mrb[0].mxu0
        %v6857 = vadd.f32 %v6504, %v6856
        %v6858 = vpop.f32.mrb[0].mxu0
        %6859 = vmatprep.mubr.f32.mxu0 0.0
        %6860 = vmatmul.mubr.f32.gmra.mrb[0].mxu0 %v6577
        %v6861 = vpop.f32.mrb[0].mxu0
        %v6862 = vadd.f32 %v6509, %v6861
        %v6863 = vpop.f32.mrb[0].mxu0
        %6864 = vmatprep.mubr.f32.mxu0 0.0
        %6865 = vmatmul.mubr.f32.gmra.mrb[0].mxu0 %v6580
        %v6866 = vpop.f32.mrb[0].mxu0
        %v6867 = vadd.f32 %v6514, %v6866
        %v6868 = vpop.f32.mrb[0].mxu0
        %6869 = vmatprep.mubr.f32.mxu0 0.0
        %6870 = vmatmul.mubr.f32.gmra.mrb[0].mxu0 %v6583
        %v6871 = vpop.f32.mrb[0].mxu0
        %v6872 = vadd.f32 %v6519, %v6871
        %v6873 = vpop.f32.mrb[0].mxu0
        %6874 = vmatprep.mubr.f32.mxu0 0.0
        %6875 = vmatmul.mubr.f32.gmra.mrb[0].mxu0 %v6586
        %v6876 = vpop.f32.mrb[0].mxu0
        %v6877 = vadd.f32 %v6524, %v6876
        %v6878 = vpop.f32.mrb[0].mxu0
        %6879 = vmatprep.mubr.f32.mxu0 0.0
        %6880 = vmatmul.mubr.f32.gmra.mrb[0].mxu0 %v6589
        %v6881 = vpop.f32.mrb[0].mxu0
        %v6882 = vadd.f32 %v6529, %v6881
        %v6883 = vpop.f32.mrb[0].mxu0
        %6884 = vmatprep.mubr.f32.mxu0 0.0
        %6885 = vmatmul.mubr.f32.gmra.mrb[0].mxu0 %v6592
        %v6886 = vpop.f32.mrb[0].mxu0
        %v6887 = vadd.f32 %v6534, %v6886
        %v6888 = vpop.f32.mrb[0].mxu0
        %6889 = vmatprep.mubr.f32.mxu0 0.0
        %6890 = vmatmul.mubr.f32.gmra.mrb[0].mxu0 %v6595
        %v6891 = vpop.f32.mrb[0].mxu0
        %v6892 = vadd.f32 %v6539, %v6891
        %v6893 = vpop.f32.mrb[0].mxu0
        %6894 = vmatprep.mubr.f32.mxu0 0.0
        %6895 = vmatmul.mubr.f32.gmra.mrb[0].mxu0 %v6598
        %v6896 = vpop.f32.mrb[0].mxu0
        %v6897 = vadd.f32 %v6544, %v6896
        %v6898 = vpop.f32.mrb[0].mxu0
        %6899 = vmatprep.mubr.f32.mxu0 0.0
        %6900 = vmatmul.mubr.f32.gmra.mrb[0].mxu0 %v6601
        %v6901 = vpop.f32.mrb[0].mxu0
        %v6902 = vadd.f32 %v6549, %v6901
        %v6903 = vpop.f32.mrb[0].mxu0
        %6904 = vmatprep.mubr.f32.mxu0 0.0
        %6905 = vmatmul.mubr.f32.gmra.mrb[0].mxu0 %v6604
        %v6906 = vpop.f32.mrb[0].mxu0
        %v6907 = vadd.f32 %v6554, %v6906
        %v6908 = vpop.f32.mrb[0].mxu0
        %6909 = vmatprep.mubr.f32.mxu0 0.0
        %6910 = vmatmul.mubr.f32.gmra.mrb[0].mxu0 %v6607
        %v6911 = vpop.f32.mrb[0].mxu0
        %v6912 = vadd.f32 %v6559, %v6911
        %v6913 = vpop.f32.mrb[0].mxu0
        %6914 = vdwg.mxu0
        %v6915 = vxor.u32 %v6676, 2147483648
        %v6916 = vxor.u32 %v6678, 2147483648
        %v6917 = vxor.u32 %v6837, 2147483648
        %v6918 = vxor.u32 %v6682, 2147483648
        %v6919 = vxor.u32 %v6684, 2147483648
        %v6920 = vxor.u32 %v6842, 2147483648
        %v6921 = vxor.u32 %v6688, 2147483648
        %v6922 = vxor.u32 %v6690, 2147483648
        %v6923 = vxor.u32 %v6847, 2147483648
        %v6924 = vxor.u32 %v6694, 2147483648
        %v6925 = vxor.u32 %v6696, 2147483648
        %v6926 = vxor.u32 %v6852, 2147483648
        %v6927 = vxor.u32 %v6700, 2147483648
        %v6928 = vxor.u32 %v6702, 2147483648
        %v6929 = vxor.u32 %v6857, 2147483648
        %v6930 = vxor.u32 %v6706, 2147483648
        %v6931 = vxor.u32 %v6708, 2147483648
        %v6932 = vxor.u32 %v6862, 2147483648
        %v6933 = vxor.u32 %v6712, 2147483648
        %v6934 = vxor.u32 %v6714, 2147483648
        %v6935 = vxor.u32 %v6867, 2147483648
        %v6936 = vxor.u32 %v6718, 2147483648
        %v6937 = vxor.u32 %v6720, 2147483648
        %v6938 = vxor.u32 %v6872, 2147483648
        %v6939 = vxor.u32 %v6724, 2147483648
        %v6940 = vxor.u32 %v6726, 2147483648
        %v6941 = vxor.u32 %v6877, 2147483648
        %v6942 = vxor.u32 %v6730, 2147483648
        %v6943 = vxor.u32 %v6732, 2147483648
        %v6944 = vxor.u32 %v6882, 2147483648
        %v6945 = vxor.u32 %v6736, 2147483648
        %v6946 = vxor.u32 %v6738, 2147483648
        %v6947 = vxor.u32 %v6887, 2147483648
        %v6948 = vxor.u32 %v6742, 2147483648
        %v6949 = vxor.u32 %v6744, 2147483648
        %v6950 = vxor.u32 %v6892, 2147483648
        %v6951 = vxor.u32 %v6748, 2147483648
        %v6952 = vxor.u32 %v6750, 2147483648
        %v6953 = vxor.u32 %v6897, 2147483648
        %v6954 = vxor.u32 %v6754, 2147483648
        %v6955 = vxor.u32 %v6756, 2147483648
        %v6956 = vxor.u32 %v6902, 2147483648
        %v6957 = vxor.u32 %v6760, 2147483648
        %v6958 = vxor.u32 %v6762, 2147483648
        %v6959 = vxor.u32 %v6907, 2147483648
        %v6960 = vxor.u32 %v6766, 2147483648
        %v6961 = vxor.u32 %v6768, 2147483648
        %v6962 = vxor.u32 %v6912, 2147483648
        %v6963 = vmul.f32 %v6915, 1.442695
        %v6964 = vpow.pop %v6963
        %v6965 = vmul.f32 %v6916, 1.442695
        %v6966 = vpow.pop %v6965
        %v6967 = vmul.f32 %v6917, 1.442695
        %v6968 = vpow.pop %v6967
        %v6969 = vmul.f32 %v6918, 1.442695
        %v6970 = vpow.pop %v6969
        %v6971 = vmul.f32 %v6919, 1.442695
        %v6972 = vpow.pop %v6971
        %v6973 = vmul.f32 %v6920, 1.442695
        %v6974 = vpow.pop %v6973
        %v6975 = vmul.f32 %v6921, 1.442695
        %v6976 = vpow.pop %v6975
        %v6977 = vmul.f32 %v6922, 1.442695
        %v6978 = vpow.pop %v6977
        %v6979 = vmul.f32 %v6923, 1.442695
        %v6980 = vpow.pop %v6979
        %v6981 = vmul.f32 %v6924, 1.442695
        %v6982 = vpow.pop %v6981
        %v6983 = vmul.f32 %v6925, 1.442695
        %v6984 = vpow.pop %v6983
        %v6985 = vmul.f32 %v6926, 1.442695
        %v6986 = vpow.pop %v6985
        %v6987 = vmul.f32 %v6927, 1.442695
        %v6988 = vpow.pop %v6987
        %v6989 = vmul.f32 %v6928, 1.442695
        %v6990 = vpow.pop %v6989
        %v6991 = vmul.f32 %v6929, 1.442695
        %v6992 = vpow.pop %v6991
        %v6993 = vmul.f32 %v6930, 1.442695
        %v6994 = vpow.pop %v6993
        %v6995 = vmul.f32 %v6931, 1.442695
        %v6996 = vpow.pop %v6995
        %v6997 = vmul.f32 %v6932, 1.442695
        %v6998 = vpow.pop %v6997
        %v6999 = vmul.f32 %v6933, 1.442695
        %v7000 = vpow.pop %v6999
        %v7001 = vmul.f32 %v6934, 1.442695
        %v7002 = vpow.pop %v7001
        %v7003 = vmul.f32 %v6935, 1.442695
        %v7004 = vpow.pop %v7003
        %v7005 = vmul.f32 %v6936, 1.442695
        %v7006 = vpow.pop %v7005
        %v7007 = vmul.f32 %v6937, 1.442695
        %v7008 = vpow.pop %v7007
        %v7009 = vmul.f32 %v6938, 1.442695
        %v7010 = vpow.pop %v7009
        %v7011 = vmul.f32 %v6939, 1.442695
        %v7012 = vpow.pop %v7011
        %v7013 = vmul.f32 %v6940, 1.442695
        %v7014 = vpow.pop %v7013
        %v7015 = vmul.f32 %v6941, 1.442695
        %v7016 = vpow.pop %v7015
        %v7017 = vmul.f32 %v6942, 1.442695
        %v7018 = vpow.pop %v7017
        %v7019 = vmul.f32 %v6943, 1.442695
        %v7020 = vpow.pop %v7019
        %v7021 = vmul.f32 %v6944, 1.442695
        %v7022 = vpow.pop %v7021
        %v7023 = vmul.f32 %v6945, 1.442695
        %v7024 = vpow.pop %v7023
        %v7025 = vmul.f32 %v6946, 1.442695
        %v7026 = vpow.pop %v7025
        %v7027 = vmul.f32 %v6947, 1.442695
        %v7028 = vpow.pop %v7027
        %v7029 = vmul.f32 %v6948, 1.442695
        %v7030 = vpow.pop %v7029
        %v7031 = vmul.f32 %v6949, 1.442695
        %v7032 = vpow.pop %v7031
        %v7033 = vmul.f32 %v6950, 1.442695
        %v7034 = vpow.pop %v7033
        %v7035 = vmul.f32 %v6951, 1.442695
        %v7036 = vpow.pop %v7035
        %v7037 = vmul.f32 %v6952, 1.442695
        %v7038 = vpow.pop %v7037
        %v7039 = vmul.f32 %v6953, 1.442695
        %v7040 = vpow.pop %v7039
        %v7041 = vmul.f32 %v6954, 1.442695
        %v7042 = vpow.pop %v7041
        %v7043 = vmul.f32 %v6955, 1.442695
        %v7044 = vpow.pop %v7043
        %v7045 = vmul.f32 %v6956, 1.442695
        %v7046 = vpow.pop %v7045
        %v7047 = vmul.f32 %v6957, 1.442695
        %v7048 = vpow.pop %v7047
        %v7049 = vmul.f32 %v6958, 1.442695
        %v7050 = vpow.pop %v7049
        %v7051 = vmul.f32 %v6959, 1.442695
        %v7052 = vpow.pop %v7051
        %v7053 = vmul.f32 %v6960, 1.442695
        %v7054 = vpow.pop %v7053
        %v7055 = vmul.f32 %v6961, 1.442695
        %v7056 = vpow.pop %v7055
        %v7057 = vmul.f32 %v6962, 1.442695
        %v7058 = vpow.pop %v7057
        %v7059 = vadd.f32 %v6964, 1.0
        %v7060 = vadd.f32 %v6966, 1.0
        %v7061 = vadd.f32 %v6968, 1.0
        %v7062 = vadd.f32 %v6970, 1.0
        %v7063 = vadd.f32 %v6972, 1.0
        %v7064 = vadd.f32 %v6974, 1.0
        %v7065 = vadd.f32 %v6976, 1.0
        %v7066 = vadd.f32 %v6978, 1.0
        %v7067 = vadd.f32 %v6980, 1.0
        %v7068 = vadd.f32 %v6982, 1.0
        %v7069 = vadd.f32 %v6984, 1.0
        %v7070 = vadd.f32 %v6986, 1.0
        %v7071 = vadd.f32 %v6988, 1.0
        %v7072 = vadd.f32 %v6990, 1.0
        %v7073 = vadd.f32 %v6992, 1.0
        %v7074 = vadd.f32 %v6994, 1.0
        %v7075 = vadd.f32 %v6996, 1.0
        %v7076 = vadd.f32 %v6998, 1.0
        %v7077 = vadd.f32 %v7000, 1.0
        %v7078 = vadd.f32 %v7002, 1.0
        %v7079 = vadd.f32 %v7004, 1.0
        %v7080 = vadd.f32 %v7006, 1.0
        %v7081 = vadd.f32 %v7008, 1.0
        %v7082 = vadd.f32 %v7010, 1.0
        %v7083 = vadd.f32 %v7012, 1.0
        %v7084 = vadd.f32 %v7014, 1.0
        %v7085 = vadd.f32 %v7016, 1.0
        %v7086 = vadd.f32 %v7018, 1.0
        %v7087 = vadd.f32 %v7020, 1.0
        %v7088 = vadd.f32 %v7022, 1.0
        %v7089 = vadd.f32 %v7024, 1.0
        %v7090 = vadd.f32 %v7026, 1.0
        %v7091 = vadd.f32 %v7028, 1.0
        %v7092 = vadd.f32 %v7030, 1.0
        %v7093 = vadd.f32 %v7032, 1.0
        %v7094 = vadd.f32 %v7034, 1.0
        %v7095 = vadd.f32 %v7036, 1.0
        %v7096 = vadd.f32 %v7038, 1.0
        %v7097 = vadd.f32 %v7040, 1.0
        %v7098 = vadd.f32 %v7042, 1.0
        %v7099 = vadd.f32 %v7044, 1.0
        %v7100 = vadd.f32 %v7046, 1.0
        %v7101 = vadd.f32 %v7048, 1.0
        %v7102 = vadd.f32 %v7050, 1.0
        %v7103 = vadd.f32 %v7052, 1.0
        %v7104 = vadd.f32 %v7054, 1.0
        %v7105 = vadd.f32 %v7056, 1.0
        %v7106 = vadd.f32 %v7058, 1.0
        %v7107 = vrcp.pop %v7059
        %v7108 = vmul.f32 1.0, %v7107
        %v7109 = vrcp.pop %v7060
        %v7110 = vmul.f32 1.0, %v7109
        %v7111 = vrcp.pop %v7061
        %v7112 = vmul.f32 1.0, %v7111
        %v7113 = vrcp.pop %v7062
        %v7114 = vmul.f32 1.0, %v7113
        %v7115 = vrcp.pop %v7063
        %v7116 = vmul.f32 1.0, %v7115
        %v7117 = vrcp.pop %v7064
        %v7118 = vmul.f32 1.0, %v7117
        %v7119 = vrcp.pop %v7065
        %v7120 = vmul.f32 1.0, %v7119
        %v7121 = vrcp.pop %v7066
        %v7122 = vmul.f32 1.0, %v7121
        %v7123 = vrcp.pop %v7067
        %v7124 = vmul.f32 1.0, %v7123
        %v7125 = vrcp.pop %v7068
        %v7126 = vmul.f32 1.0, %v7125
        %v7127 = vrcp.pop %v7069
        %v7128 = vmul.f32 1.0, %v7127
        %v7129 = vrcp.pop %v7070
        %v7130 = vmul.f32 1.0, %v7129
        %v7131 = vrcp.pop %v7071
        %v7132 = vmul.f32 1.0, %v7131
        %v7133 = vrcp.pop %v7072
        %v7134 = vmul.f32 1.0, %v7133
        %v7135 = vrcp.pop %v7073
        %v7136 = vmul.f32 1.0, %v7135
        %v7137 = vrcp.pop %v7074
        %v7138 = vmul.f32 1.0, %v7137
        %v7139 = vrcp.pop %v7075
        %v7140 = vmul.f32 1.0, %v7139
        %v7141 = vrcp.pop %v7076
        %v7142 = vmul.f32 1.0, %v7141
        %v7143 = vrcp.pop %v7077
        %v7144 = vmul.f32 1.0, %v7143
        %v7145 = vrcp.pop %v7078
        %v7146 = vmul.f32 1.0, %v7145
        %v7147 = vrcp.pop %v7079
        %v7148 = vmul.f32 1.0, %v7147
        %v7149 = vrcp.pop %v7080
        %v7150 = vmul.f32 1.0, %v7149
        %v7151 = vrcp.pop %v7081
        %v7152 = vmul.f32 1.0, %v7151
        %v7153 = vrcp.pop %v7082
        %v7154 = vmul.f32 1.0, %v7153
        %v7155 = vrcp.pop %v7083
        %v7156 = vmul.f32 1.0, %v7155
        %v7157 = vrcp.pop %v7084
        %v7158 = vmul.f32 1.0, %v7157
        %v7159 = vrcp.pop %v7085
        %v7160 = vmul.f32 1.0, %v7159
        %v7161 = vrcp.pop %v7086
        %v7162 = vmul.f32 1.0, %v7161
        %v7163 = vrcp.pop %v7087
        %v7164 = vmul.f32 1.0, %v7163
        %v7165 = vrcp.pop %v7088
        %v7166 = vmul.f32 1.0, %v7165
        %v7167 = vrcp.pop %v7089
        %v7168 = vmul.f32 1.0, %v7167
        %v7169 = vrcp.pop %v7090
        %v7170 = vmul.f32 1.0, %v7169
        %v7171 = vrcp.pop %v7091
        %v7172 = vmul.f32 1.0, %v7171
        %v7173 = vrcp.pop %v7092
        %v7174 = vmul.f32 1.0, %v7173
        %v7175 = vrcp.pop %v7093
        %v7176 = vmul.f32 1.0, %v7175
        %v7177 = vrcp.pop %v7094
        %v7178 = vmul.f32 1.0, %v7177
        %v7179 = vrcp.pop %v7095
        %v7180 = vmul.f32 1.0, %v7179
        %v7181 = vrcp.pop %v7096
        %v7182 = vmul.f32 1.0, %v7181
        %v7183 = vrcp.pop %v7097
        %v7184 = vmul.f32 1.0, %v7183
        %v7185 = vrcp.pop %v7098
        %v7186 = vmul.f32 1.0, %v7185
        %v7187 = vrcp.pop %v7099
        %v7188 = vmul.f32 1.0, %v7187
        %v7189 = vrcp.pop %v7100
        %v7190 = vmul.f32 1.0, %v7189
        %v7191 = vrcp.pop %v7101
        %v7192 = vmul.f32 1.0, %v7191
        %v7193 = vrcp.pop %v7102
        %v7194 = vmul.f32 1.0, %v7193
        %v7195 = vrcp.pop %v7103
        %v7196 = vmul.f32 1.0, %v7195
        %v7197 = vrcp.pop %v7104
        %v7198 = vmul.f32 1.0, %v7197
        %v7199 = vrcp.pop %v7105
        %v7200 = vmul.f32 1.0, %v7199
        %v7201 = vrcp.pop %v7106
        %v7202 = vmul.f32 1.0, %v7201
        %v7203 = vmul.f32 %v6676, %v7108
        %v7204 = vmul.f32 %v6678, %v7110
        %v7205 = vmul.f32 %v6837, %v7112
        %v7206 = vmul.f32 %v6682, %v7114
        %v7207 = vmul.f32 %v6684, %v7116
        %v7208 = vmul.f32 %v6842, %v7118
        %v7209 = vmul.f32 %v6688, %v7120
        %v7210 = vmul.f32 %v6690, %v7122
        %v7211 = vmul.f32 %v6847, %v7124
        %v7212 = vmul.f32 %v6694, %v7126
        %v7213 = vmul.f32 %v6696, %v7128
        %v7214 = vmul.f32 %v6852, %v7130
        %v7215 = vmul.f32 %v6700, %v7132
        %v7216 = vmul.f32 %v6702, %v7134
        %v7217 = vmul.f32 %v6857, %v7136
        %v7218 = vmul.f32 %v6706, %v7138
        %v7219 = vmul.f32 %v6708, %v7140
        %v7220 = vmul.f32 %v6862, %v7142
        %v7221 = vmul.f32 %v6712, %v7144
        %v7222 = vmul.f32 %v6714, %v7146
        %v7223 = vmul.f32 %v6867, %v7148
        %v7224 = vmul.f32 %v6718, %v7150
        %v7225 = vmul.f32 %v6720, %v7152
        %v7226 = vmul.f32 %v6872, %v7154
        %v7227 = vmul.f32 %v6724, %v7156
        %v7228 = vmul.f32 %v6726, %v7158
        %v7229 = vmul.f32 %v6877, %v7160
        %v7230 = vmul.f32 %v6730, %v7162
        %v7231 = vmul.f32 %v6732, %v7164
        %v7232 = vmul.f32 %v6882, %v7166
        %v7233 = vmul.f32 %v6736, %v7168
        %v7234 = vmul.f32 %v6738, %v7170
        %v7235 = vmul.f32 %v6887, %v7172
        %v7236 = vmul.f32 %v6742, %v7174
        %v7237 = vmul.f32 %v6744, %v7176
        %v7238 = vmul.f32 %v6892, %v7178
        %v7239 = vmul.f32 %v6748, %v7180
        %v7240 = vmul.f32 %v6750, %v7182
        %v7241 = vmul.f32 %v6897, %v7184
        %v7242 = vmul.f32 %v6754, %v7186
        %v7243 = vmul.f32 %v6756, %v7188
        %v7244 = vmul.f32 %v6902, %v7190
        %v7245 = vmul.f32 %v6760, %v7192
        %v7246 = vmul.f32 %v6762, %v7194
        %v7247 = vmul.f32 %v6907, %v7196
        %v7248 = vmul.f32 %v6766, %v7198
        %v7249 = vmul.f32 %v6768, %v7200
        %v7250 = vmul.f32 %v6912, %v7202
        %s7251 = scalar_lea.vmem %s6, 64
        %v7252 = vld [vmem:[%s7251] sm:$0xff]
        %v7253 = vld [vmem:[%s7251 + $0x8] sm:$0xff]
        %v7254 = vld [vmem:[%s7251 + $0x10] sm:$0xff]
        %v7255 = vld [vmem:[%s7251 + $0x18] sm:$0xff]
        %7256 = vmatprep.subr.mxu0 %v7204
        %7257 = vmatpush1.msra.mxu0 %v7203
        %7258 = vmatprep.subr.mxu0 %v7207
        %7259 = vmatpush1.msra.mxu0 %v7206
        %7260 = vmatprep.subr.mxu0 %v7210
        %7261 = vmatpush1.msra.mxu0 %v7209
        %7262 = vmatprep.subr.mxu0 %v7213
        %7263 = vmatpush1.msra.mxu0 %v7212
        %7264 = vmatprep.subr.mxu0 %v7216
        %7265 = vmatpush1.msra.mxu0 %v7215
        %7266 = vmatprep.subr.mxu0 %v7219
        %7267 = vmatpush1.msra.mxu0 %v7218
        %7268 = vmatprep.subr.mxu0 %v7222
        %7269 = vmatpush1.msra.mxu0 %v7221
        %7270 = vmatprep.subr.mxu0 %v7225
        %7271 = vmatpush1.msra.mxu0 %v7224
        %7272 = vmatprep.subr.mxu0 %v7228
        %7273 = vmatpush1.msra.mxu0 %v7227
        %7274 = vmatprep.subr.mxu0 %v7231
        %7275 = vmatpush1.msra.mxu0 %v7230
        %7276 = vmatprep.subr.mxu0 %v7234
        %7277 = vmatpush1.msra.mxu0 %v7233
        %7278 = vmatprep.subr.mxu0 %v7237
        %7279 = vmatpush1.msra.mxu0 %v7236
        %7280 = vmatprep.subr.mxu0 %v7240
        %7281 = vmatpush1.msra.mxu0 %v7239
        %7282 = vmatprep.subr.mxu0 %v7243
        %7283 = vmatpush1.msra.mxu0 %v7242
        %7284 = vmatprep.subr.mxu0 %v7246
        %7285 = vmatpush1.msra.mxu0 %v7245
        %7286 = vmatprep.subr.mxu0 %v7249
        %7287 = vmatpush1.msra.mxu0 %v7248
        %7288 = vmatprep.subr.mxu0 0.0
        %7289 = vmatpush1.msra.mxu0 0.0
        %7290 = vmatprep.subr.mxu0 0.0
        %7291 = vmatpush1.msra.mxu0 0.0
        %7292 = vmatprep.subr.mxu0 0.0
        %7293 = vmatpush1.msra.mxu0 0.0
        %7294 = vmatprep.subr.mxu0 0.0
        %7295 = vmatpush1.msra.mxu0 0.0
        %7296 = vmatprep.subr.mxu0 0.0
        %7297 = vmatpush1.msra.mxu0 0.0
        %7298 = vmatprep.subr.mxu0 0.0
        %7299 = vmatpush1.msra.mxu0 0.0
        %7300 = vmatprep.subr.mxu0 0.0
        %7301 = vmatpush1.msra.mxu0 0.0
        %7302 = vmatprep.subr.mxu0 0.0
        %7303 = vmatpush1.msra.mxu0 0.0
        %7304 = vmatprep.subr.mxu0 0.0
        %7305 = vmatpush1.msra.mxu0 0.0
        %7306 = vmatprep.subr.mxu0 0.0
        %7307 = vmatpush1.msra.mxu0 0.0
        %7308 = vmatprep.subr.mxu0 0.0
        %7309 = vmatpush1.msra.mxu0 0.0
        %7310 = vmatprep.subr.mxu0 0.0
        %7311 = vmatpush1.msra.mxu0 0.0
        %7312 = vmatprep.subr.mxu0 0.0
        %7313 = vmatpush1.msra.mxu0 0.0
        %7314 = vmatprep.subr.mxu0 0.0
        %7315 = vmatpush1.msra.mxu0 0.0
        %7316 = vmatprep.subr.mxu0 0.0
        %7317 = vmatpush1.msra.mxu0 0.0
        %7318 = vmatprep.subr.mxu0 0.0
        %7319 = vmatpush1.msra.mxu0 0.0
        %7320 = vmatprep.mubr.f32.mxu0 0.0
        %7321 = vmatmul.mubr.f32.gmra.mrb[0].mxu0 %v7252
        %v7322 = vpop.f32.mrb[0].mxu0
        %v7323 = vadd.f32 0.0, %v7322
        %v7324 = vpop.f32.mrb[0].mxu0
        %v7325 = vadd.f32 0.0, %v7324
        %7326 = vmatprep.mubr.f32.mxu0 0.0
        %7327 = vmatmul.mubr.f32.gmra.mrb[0].mxu0 %v7253
        %v7328 = vpop.f32.mrb[0].mxu0
        %v7329 = vadd.f32 0.0, %v7328
        %v7330 = vpop.f32.mrb[0].mxu0
        %v7331 = vadd.f32 0.0, %v7330
        %7332 = vmatprep.mubr.f32.mxu0 0.0
        %7333 = vmatmul.mubr.f32.gmra.mrb[0].mxu0 %v7254
        %v7334 = vpop.f32.mrb[0].mxu0
        %v7335 = vadd.f32 0.0, %v7334
        %v7336 = vpop.f32.mrb[0].mxu0
        %v7337 = vadd.f32 0.0, %v7336
        %7338 = vmatprep.mubr.f32.mxu0 0.0
        %7339 = vmatmul.mubr.f32.gmra.mrb[0].mxu0 %v7255
        %v7340 = vpop.f32.mrb[0].mxu0
        %v7341 = vadd.f32 0.0, %v7340
        %v7342 = vpop.f32.mrb[0].mxu0
        %v7343 = vadd.f32 0.0, %v7342
        %7344 = vdwg.mxu0
        %7345 = vmatprep.subr.mxu0 0.0
        %7346 = vmatpush1.msra.mxu0 %v7205
        %7347 = vmatprep.subr.mxu0 0.0
        %7348 = vmatpush1.msra.mxu0 %v7208
        %7349 = vmatprep.subr.mxu0 0.0
        %7350 = vmatpush1.msra.mxu0 %v7211
        %7351 = vmatprep.subr.mxu0 0.0
        %7352 = vmatpush1.msra.mxu0 %v7214
        %7353 = vmatprep.subr.mxu0 0.0
        %7354 = vmatpush1.msra.mxu0 %v7217
        %7355 = vmatprep.subr.mxu0 0.0
        %7356 = vmatpush1.msra.mxu0 %v7220
        %7357 = vmatprep.subr.mxu0 0.0
        %7358 = vmatpush1.msra.mxu0 %v7223
        %7359 = vmatprep.subr.mxu0 0.0
        %7360 = vmatpush1.msra.mxu0 %v7226
        %7361 = vmatprep.subr.mxu0 0.0
        %7362 = vmatpush1.msra.mxu0 %v7229
        %7363 = vmatprep.subr.mxu0 0.0
        %7364 = vmatpush1.msra.mxu0 %v7232
        %7365 = vmatprep.subr.mxu0 0.0
        %7366 = vmatpush1.msra.mxu0 %v7235
        %7367 = vmatprep.subr.mxu0 0.0
        %7368 = vmatpush1.msra.mxu0 %v7238
        %7369 = vmatprep.subr.mxu0 0.0
        %7370 = vmatpush1.msra.mxu0 %v7241
        %7371 = vmatprep.subr.mxu0 0.0
        %7372 = vmatpush1.msra.mxu0 %v7244
        %7373 = vmatprep.subr.mxu0 0.0
        %7374 = vmatpush1.msra.mxu0 %v7247
        %7375 = vmatprep.subr.mxu0 0.0
        %7376 = vmatpush1.msra.mxu0 %v7250
        %7377 = vmatprep.subr.mxu0 0.0
        %7378 = vmatpush1.msra.mxu0 0.0
        %7379 = vmatprep.subr.mxu0 0.0
        %7380 = vmatpush1.msra.mxu0 0.0
        %7381 = vmatprep.subr.mxu0 0.0
        %7382 = vmatpush1.msra.mxu0 0.0
        %7383 = vmatprep.subr.mxu0 0.0
        %7384 = vmatpush1.msra.mxu0 0.0
        %7385 = vmatprep.subr.mxu0 0.0
        %7386 = vmatpush1.msra.mxu0 0.0
        %7387 = vmatprep.subr.mxu0 0.0
        %7388 = vmatpush1.msra.mxu0 0.0
        %7389 = vmatprep.subr.mxu0 0.0
        %7390 = vmatpush1.msra.mxu0 0.0
        %7391 = vmatprep.subr.mxu0 0.0
        %7392 = vmatpush1.msra.mxu0 0.0
        %7393 = vmatprep.subr.mxu0 0.0
        %7394 = vmatpush1.msra.mxu0 0.0
        %7395 = vmatprep.subr.mxu0 0.0
        %7396 = vmatpush1.msra.mxu0 0.0
        %7397 = vmatprep.subr.mxu0 0.0
        %7398 = vmatpush1.msra.mxu0 0.0
        %7399 = vmatprep.subr.mxu0 0.0
        %7400 = vmatpush1.msra.mxu0 0.0
        %7401 = vmatprep.subr.mxu0 0.0
        %7402 = vmatpush1.msra.mxu0 0.0
        %7403 = vmatprep.subr.mxu0 0.0
        %7404 = vmatpush1.msra.mxu0 0.0
        %7405 = vmatprep.subr.mxu0 0.0
        %7406 = vmatpush1.msra.mxu0 0.0
        %7407 = vmatprep.subr.mxu0 0.0
        %7408 = vmatpush1.msra.mxu0 0.0
        %7409 = vmatprep.mubr.f32.mxu0 0.0
        %7410 = vmatmul.mubr.f32.gmra.mrb[0].mxu0 %v7252
        %v7411 = vpop.f32.mrb[0].mxu0
        %v7412 = vadd.f32 0.0, %v7411
        %v7413 = vpop.f32.mrb[0].mxu0
        %7414 = vmatprep.mubr.f32.mxu0 0.0
        %7415 = vmatmul.mubr.f32.gmra.mrb[0].mxu0 %v7253
        %v7416 = vpop.f32.mrb[0].mxu0
        %v7417 = vadd.f32 0.0, %v7416
        %v7418 = vpop.f32.mrb[0].mxu0
        %7419 = vmatprep.mubr.f32.mxu0 0.0
        %7420 = vmatmul.mubr.f32.gmra.mrb[0].mxu0 %v7254
        %v7421 = vpop.f32.mrb[0].mxu0
        %v7422 = vadd.f32 0.0, %v7421
        %v7423 = vpop.f32.mrb[0].mxu0
        %7424 = vmatprep.mubr.f32.mxu0 0.0
        %7425 = vmatmul.mubr.f32.gmra.mrb[0].mxu0 %v7255
        %v7426 = vpop.f32.mrb[0].mxu0
        %v7427 = vadd.f32 0.0, %v7426
        %v7428 = vpop.f32.mrb[0].mxu0
        %7429 = vdwg.mxu0
        %v7430 = vadd.f32 %v3604, %v7323
        %v7431 = vadd.f32 %v3605, %v7325
        %v7432 = vadd.f32 %v3606, %v7412
        %v7433 = vadd.f32 %v3607, %v7329
        %v7434 = vadd.f32 %v3608, %v7331
        %v7435 = vadd.f32 %v3609, %v7417
        %v7436 = vadd.f32 %v3610, %v7335
        %v7437 = vadd.f32 %v3611, %v7337
        %v7438 = vadd.f32 %v3612, %v7422
        %v7439 = vadd.f32 %v3613, %v7341
        %v7440 = vadd.f32 %v3614, %v7343
        %v7441 = vadd.f32 %v3615, %v7427
        %v7442 = vxor.u32 %v7430, 2147483648
        %v7443 = vxor.u32 %v7431, 2147483648
        %v7444 = vxor.u32 %v7432, 2147483648
        %v7445 = vxor.u32 %v7433, 2147483648
        %v7446 = vxor.u32 %v7434, 2147483648
        %v7447 = vxor.u32 %v7435, 2147483648
        %v7448 = vxor.u32 %v7436, 2147483648
        %v7449 = vxor.u32 %v7437, 2147483648
        %v7450 = vxor.u32 %v7438, 2147483648
        %v7451 = vxor.u32 %v7439, 2147483648
        %v7452 = vxor.u32 %v7440, 2147483648
        %v7453 = vxor.u32 %v7441, 2147483648
        %v7454 = vmul.f32 %v7442, 1.442695
        %v7455 = vpow.pop %v7454
        %v7456 = vmul.f32 %v7443, 1.442695
        %v7457 = vpow.pop %v7456
        %v7458 = vmul.f32 %v7444, 1.442695
        %v7459 = vpow.pop %v7458
        %v7460 = vmul.f32 %v7445, 1.442695
        %v7461 = vpow.pop %v7460
        %v7462 = vmul.f32 %v7446, 1.442695
        %v7463 = vpow.pop %v7462
        %v7464 = vmul.f32 %v7447, 1.442695
        %v7465 = vpow.pop %v7464
        %v7466 = vmul.f32 %v7448, 1.442695
        %v7467 = vpow.pop %v7466
        %v7468 = vmul.f32 %v7449, 1.442695
        %v7469 = vpow.pop %v7468
        %v7470 = vmul.f32 %v7450, 1.442695
        %v7471 = vpow.pop %v7470
        %v7472 = vmul.f32 %v7451, 1.442695
        %v7473 = vpow.pop %v7472
        %v7474 = vmul.f32 %v7452, 1.442695
        %v7475 = vpow.pop %v7474
        %v7476 = vmul.f32 %v7453, 1.442695
        %v7477 = vpow.pop %v7476
        %v7478 = vadd.f32 %v7455, 1.0
        %v7479 = vadd.f32 %v7457, 1.0
        %v7480 = vadd.f32 %v7459, 1.0
        %v7481 = vadd.f32 %v7461, 1.0
        %v7482 = vadd.f32 %v7463, 1.0
        %v7483 = vadd.f32 %v7465, 1.0
        %v7484 = vadd.f32 %v7467, 1.0
        %v7485 = vadd.f32 %v7469, 1.0
        %v7486 = vadd.f32 %v7471, 1.0
        %v7487 = vadd.f32 %v7473, 1.0
        %v7488 = vadd.f32 %v7475, 1.0
        %v7489 = vadd.f32 %v7477, 1.0
        %v7490 = vrcp.pop %v7478
        %v7491 = vmul.f32 1.0, %v7490
        %v7492 = vrcp.pop %v7479
        %v7493 = vmul.f32 1.0, %v7492
        %v7494 = vrcp.pop %v7480
        %v7495 = vmul.f32 1.0, %v7494
        %v7496 = vrcp.pop %v7481
        %v7497 = vmul.f32 1.0, %v7496
        %v7498 = vrcp.pop %v7482
        %v7499 = vmul.f32 1.0, %v7498
        %v7500 = vrcp.pop %v7483
        %v7501 = vmul.f32 1.0, %v7500
        %v7502 = vrcp.pop %v7484
        %v7503 = vmul.f32 1.0, %v7502
        %v7504 = vrcp.pop %v7485
        %v7505 = vmul.f32 1.0, %v7504
        %v7506 = vrcp.pop %v7486
        %v7507 = vmul.f32 1.0, %v7506
        %v7508 = vrcp.pop %v7487
        %v7509 = vmul.f32 1.0, %v7508
        %v7510 = vrcp.pop %v7488
        %v7511 = vmul.f32 1.0, %v7510
        %v7512 = vrcp.pop %v7489
        %v7513 = vmul.f32 1.0, %v7512
        %v7514 = vmul.f32 %v7430, %v7491
        %v7515 = vmul.f32 %v7431, %v7493
        %v7516 = vmul.f32 %v7432, %v7495
        %v7517 = vmul.f32 %v7433, %v7497
        %v7518 = vmul.f32 %v7434, %v7499
        %v7519 = vmul.f32 %v7435, %v7501
        %v7520 = vmul.f32 %v7436, %v7503
        %v7521 = vmul.f32 %v7437, %v7505
        %v7522 = vmul.f32 %v7438, %v7507
        %v7523 = vmul.f32 %v7439, %v7509
        %v7524 = vmul.f32 %v7440, %v7511
        %v7525 = vmul.f32 %v7441, %v7513
        %v7526 = vld [vmem:[%s1] sm:$0x7]
        %vm7527 = vcmp.ne.f32.partialorder %v7526, 0.0
        %v7528 = vsel %vm7527, 1, 0
        %v7529 = vlaneseq
        %v7530 = vshrl.u32 %v7529, 7
        %v7531 = vsub.s32 0, %v7530
        %v7532 = vrot.slane %v7528, %v7531
        %v7533 = vlaneseq
        %v7534 = vshrl.u32 %v7533, 7
        %v7535 = vsub.s32 1, %v7534
        %v7536 = vrot.slane %v7528, %v7535
        %v7537 = vlaneseq
        %v7538 = vshrl.u32 %v7537, 7
        %v7539 = vsub.s32 2, %v7538
        %v7540 = vrot.slane %v7528, %v7539
        %vm7541 = vcmp.eq.s32.totalorder %v7532, 1
        %vm7542 = vcmp.eq.s32.totalorder %v7536, 1
        %vm7543 = vcmp.eq.s32.totalorder %v7540, 1
        %v7544 = vsel %vm7541, %v7514, 0.0
        %v7545 = vsel %vm7542, %v7515, 0.0
        %v7546 = vsel %vm7543, %v7516, 0.0
        %v7547 = vsel %vm7541, %v7517, 0.0
        %v7548 = vsel %vm7542, %v7518, 0.0
        %v7549 = vsel %vm7543, %v7519, 0.0
        %v7550 = vsel %vm7541, %v7520, 0.0
        %v7551 = vsel %vm7542, %v7521, 0.0
        %v7552 = vsel %vm7543, %v7522, 0.0
        %v7553 = vsel %vm7541, %v7523, 0.0
        %v7554 = vsel %vm7542, %v7524, 0.0
        %v7555 = vsel %vm7543, %v7525, 0.0
        %v7556 = vadd.f32 %v7544, %v7545
        %v7557 = vadd.f32 %v7556, %v7546
        %7558 = vadd.xlane.f32.xlu0 %v7557
        %v7559 = vpop.xlane.xlu0 %7558
        %v7560 = vadd.f32 %v7547, %v7548
        %v7561 = vadd.f32 %v7560, %v7549
        %7562 = vadd.xlane.f32.xlu0 %v7561
        %v7563 = vpop.xlane.xlu0 %7562
        %v7564 = vadd.f32 %v7550, %v7551
        %v7565 = vadd.f32 %v7564, %v7552
        %7566 = vadd.xlane.f32.xlu0 %v7565
        %v7567 = vpop.xlane.xlu0 %7566
        %v7568 = vadd.f32 %v7553, %v7554
        %v7569 = vadd.f32 %v7568, %v7555
        %7570 = vadd.xlane.f32.xlu0 %v7569
        %v7571 = vpop.xlane.xlu0 %7570
        %v7572 = vmul.f32 %v7559, 0.00390625
        %v7573 = vmul.f32 %v7563, 0.00390625
        %v7574 = vmul.f32 %v7567, 0.00390625
        %v7575 = vmul.f32 %v7571, 0.00390625
        %v7576 = vld [vmem:[%s8] sm:$0x3]
        %v7577 = vld [vmem:[%s9] sm:$0x3]
        %v7579 = vsel %vm621, %v7576, 0
        %7581 = vmatprep.subr.mxu0 0.0
        %7582 = vmatpush1.msra.mxu0 %v7572
        %7583 = vmatprep.subr.mxu0 0.0
        %7584 = vmatpush1.msra.mxu0 %v7573
        %7585 = vmatprep.subr.mxu0 0.0
        %7586 = vmatpush1.msra.mxu0 %v7574
        %7587 = vmatprep.subr.mxu0 0.0
        %7588 = vmatpush1.msra.mxu0 %v7575
        %7589 = vmatprep.subr.mxu0 0.0
        %7590 = vmatpush1.msra.mxu0 0.0
        %7591 = vmatprep.subr.mxu0 0.0
        %7592 = vmatpush1.msra.mxu0 0.0
        %7593 = vmatprep.subr.mxu0 0.0
        %7594 = vmatpush1.msra.mxu0 0.0
        %7595 = vmatprep.subr.mxu0 0.0
        %7596 = vmatpush1.msra.mxu0 0.0
        %7597 = vmatprep.subr.mxu0 0.0
        %7598 = vmatpush1.msra.mxu0 0.0
        %7599 = vmatprep.subr.mxu0 0.0
        %7600 = vmatpush1.msra.mxu0 0.0
        %7601 = vmatprep.subr.mxu0 0.0
        %7602 = vmatpush1.msra.mxu0 0.0
        %7603 = vmatprep.subr.mxu0 0.0
        %7604 = vmatpush1.msra.mxu0 0.0
        %7605 = vmatprep.subr.mxu0 0.0
        %7606 = vmatpush1.msra.mxu0 0.0
        %7607 = vmatprep.subr.mxu0 0.0
        %7608 = vmatpush1.msra.mxu0 0.0
        %7609 = vmatprep.subr.mxu0 0.0
        %7610 = vmatpush1.msra.mxu0 0.0
        %7611 = vmatprep.subr.mxu0 0.0
        %7612 = vmatpush1.msra.mxu0 0.0
        %7613 = vmatprep.subr.mxu0 0.0
        %7614 = vmatpush1.msra.mxu0 0.0
        %7615 = vmatprep.subr.mxu0 0.0
        %7616 = vmatpush1.msra.mxu0 0.0
        %7617 = vmatprep.subr.mxu0 0.0
        %7618 = vmatpush1.msra.mxu0 0.0
        %7619 = vmatprep.subr.mxu0 0.0
        %7620 = vmatpush1.msra.mxu0 0.0
        %7621 = vmatprep.subr.mxu0 0.0
        %7622 = vmatpush1.msra.mxu0 0.0
        %7623 = vmatprep.subr.mxu0 0.0
        %7624 = vmatpush1.msra.mxu0 0.0
        %7625 = vmatprep.subr.mxu0 0.0
        %7626 = vmatpush1.msra.mxu0 0.0
        %7627 = vmatprep.subr.mxu0 0.0
        %7628 = vmatpush1.msra.mxu0 0.0
        %7629 = vmatprep.subr.mxu0 0.0
        %7630 = vmatpush1.msra.mxu0 0.0
        %7631 = vmatprep.subr.mxu0 0.0
        %7632 = vmatpush1.msra.mxu0 0.0
        %7633 = vmatprep.subr.mxu0 0.0
        %7634 = vmatpush1.msra.mxu0 0.0
        %7635 = vmatprep.subr.mxu0 0.0
        %7636 = vmatpush1.msra.mxu0 0.0
        %7637 = vmatprep.subr.mxu0 0.0
        %7638 = vmatpush1.msra.mxu0 0.0
        %7639 = vmatprep.subr.mxu0 0.0
        %7640 = vmatpush1.msra.mxu0 0.0
        %7641 = vmatprep.subr.mxu0 0.0
        %7642 = vmatpush1.msra.mxu0 0.0
        %7643 = vmatprep.subr.mxu0 0.0
        %7644 = vmatpush1.msra.mxu0 0.0
        %7645 = vmatprep.mubr.f32.mxu0 0.0
        %7646 = vmatmul.mubr.f32.gmra.mrb[0].mxu0 %v7579
        %v7647 = vpop.f32.mrb[0].mxu0
        %v7648 = vadd.f32 %v7577, %v7647
        %v7649 = vpop.f32.mrb[0].mxu0
        %7650 = vdwg.mxu0
        %v7651 = vxor.u32 %v7648, 2147483648
        %v7652 = vmul.f32 %v7651, 1.442695
        %v7653 = vpow.pop %v7652
        %v7654 = vadd.f32 %v7653, 1.0
        %v7655 = vrcp.pop %v7654
        %v7656 = vmul.f32 1.0, %v7655
        %v7657 = vmul.f32 %v7648, %v7656
        %v7658 = vld [vmem:[%s10] sm:$0xff]
        %v7659 = vld [vmem:[%s10 + $0x8] sm:$0xff]
        %v7660 = vld [vmem:[%s10 + $0x10] sm:$0xff]
        %v7661 = vld [vmem:[%s10 + $0x18] sm:$0xff]
        %v7662 = vld [vmem:[%s11] sm:$0xff]
        %v7663 = vld [vmem:[%s11 + $0x8] sm:$0xff]
        %v7664 = vld [vmem:[%s11 + $0x10] sm:$0xff]
        %v7665 = vld [vmem:[%s11 + $0x18] sm:$0xff]
        %vm7666 = vcmask 15360
        %v7668 = vsel %vm7666, %v7658, 0
        %v7671 = vsel %vm7666, %v7659, 0
        %v7674 = vsel %vm7666, %v7660, 0
        %v7677 = vsel %vm7666, %v7661, 0
        %vm7679 = vcmask 1041408
        %v7681 = vsel %vm7679, %v7657, 0
        %7683 = vmatprep.subr.mxu0 0.0
        %7684 = vmatpush1.msra.mxu0 %v7681
        %7685 = vmatprep.subr.mxu0 0.0
        %7686 = vmatpush1.msra.mxu0 0.0
        %7687 = vmatprep.subr.mxu0 0.0
        %7688 = vmatpush1.msra.mxu0 0.0
        %7689 = vmatprep.subr.mxu0 0.0
        %7690 = vmatpush1.msra.mxu0 0.0
        %7691 = vmatprep.subr.mxu0 0.0
        %7692 = vmatpush1.msra.mxu0 0.0
        %7693 = vmatprep.subr.mxu0 0.0
        %7694 = vmatpush1.msra.mxu0 0.0
        %7695 = vmatprep.subr.mxu0 0.0
        %7696 = vmatpush1.msra.mxu0 0.0
        %7697 = vmatprep.subr.mxu0 0.0
        %7698 = vmatpush1.msra.mxu0 0.0
        %7699 = vmatprep.subr.mxu0 0.0
        %7700 = vmatpush1.msra.mxu0 0.0
        %7701 = vmatprep.subr.mxu0 0.0
        %7702 = vmatpush1.msra.mxu0 0.0
        %7703 = vmatprep.subr.mxu0 0.0
        %7704 = vmatpush1.msra.mxu0 0.0
        %7705 = vmatprep.subr.mxu0 0.0
        %7706 = vmatpush1.msra.mxu0 0.0
        %7707 = vmatprep.subr.mxu0 0.0
        %7708 = vmatpush1.msra.mxu0 0.0
        %7709 = vmatprep.subr.mxu0 0.0
        %7710 = vmatpush1.msra.mxu0 0.0
        %7711 = vmatprep.subr.mxu0 0.0
        %7712 = vmatpush1.msra.mxu0 0.0
        %7713 = vmatprep.subr.mxu0 0.0
        %7714 = vmatpush1.msra.mxu0 0.0
        %7715 = vmatprep.subr.mxu0 0.0
        %7716 = vmatpush1.msra.mxu0 0.0
        %7717 = vmatprep.subr.mxu0 0.0
        %7718 = vmatpush1.msra.mxu0 0.0
        %7719 = vmatprep.subr.mxu0 0.0
        %7720 = vmatpush1.msra.mxu0 0.0
        %7721 = vmatprep.subr.mxu0 0.0
        %7722 = vmatpush1.msra.mxu0 0.0
        %7723 = vmatprep.subr.mxu0 0.0
        %7724 = vmatpush1.msra.mxu0 0.0
        %7725 = vmatprep.subr.mxu0 0.0
        %7726 = vmatpush1.msra.mxu0 0.0
        %7727 = vmatprep.subr.mxu0 0.0
        %7728 = vmatpush1.msra.mxu0 0.0
        %7729 = vmatprep.subr.mxu0 0.0
        %7730 = vmatpush1.msra.mxu0 0.0
        %7731 = vmatprep.subr.mxu0 0.0
        %7732 = vmatpush1.msra.mxu0 0.0
        %7733 = vmatprep.subr.mxu0 0.0
        %7734 = vmatpush1.msra.mxu0 0.0
        %7735 = vmatprep.subr.mxu0 0.0
        %7736 = vmatpush1.msra.mxu0 0.0
        %7737 = vmatprep.subr.mxu0 0.0
        %7738 = vmatpush1.msra.mxu0 0.0
        %7739 = vmatprep.subr.mxu0 0.0
        %7740 = vmatpush1.msra.mxu0 0.0
        %7741 = vmatprep.subr.mxu0 0.0
        %7742 = vmatpush1.msra.mxu0 0.0
        %7743 = vmatprep.subr.mxu0 0.0
        %7744 = vmatpush1.msra.mxu0 0.0
        %7745 = vmatprep.subr.mxu0 0.0
        %7746 = vmatpush1.msra.mxu0 0.0
        %7747 = vmatprep.mubr.f32.mxu0 0.0
        %7748 = vmatmul.mubr.f32.gmra.mrb[0].mxu0 %v7668
        %v7749 = vpop.f32.mrb[0].mxu0
        %v7750 = vadd.f32 %v7662, %v7749
        %v7751 = vpop.f32.mrb[0].mxu0
        %7752 = vmatprep.mubr.f32.mxu0 0.0
        %7753 = vmatmul.mubr.f32.gmra.mrb[0].mxu0 %v7671
        %v7754 = vpop.f32.mrb[0].mxu0
        %v7755 = vadd.f32 %v7663, %v7754
        %v7756 = vpop.f32.mrb[0].mxu0
        %7757 = vmatprep.mubr.f32.mxu0 0.0
        %7758 = vmatmul.mubr.f32.gmra.mrb[0].mxu0 %v7674
        %v7759 = vpop.f32.mrb[0].mxu0
        %v7760 = vadd.f32 %v7664, %v7759
        %v7761 = vpop.f32.mrb[0].mxu0
        %7762 = vmatprep.mubr.f32.mxu0 0.0
        %7763 = vmatmul.mubr.f32.gmra.mrb[0].mxu0 %v7677
        %v7764 = vpop.f32.mrb[0].mxu0
        %v7765 = vadd.f32 %v7665, %v7764
        %v7766 = vpop.f32.mrb[0].mxu0
        %7767 = vdwg.mxu0
        %v7768 = vxor.u32 %v7750, 2147483648
        %v7769 = vxor.u32 %v7755, 2147483648
        %v7770 = vxor.u32 %v7760, 2147483648
        %v7771 = vxor.u32 %v7765, 2147483648
        %v7772 = vmul.f32 %v7768, 1.442695
        %v7773 = vpow.pop %v7772
        %v7774 = vmul.f32 %v7769, 1.442695
        %v7775 = vpow.pop %v7774
        %v7776 = vmul.f32 %v7770, 1.442695
        %v7777 = vpow.pop %v7776
        %v7778 = vmul.f32 %v7771, 1.442695
        %v7779 = vpow.pop %v7778
        %v7780 = vadd.f32 %v7773, 1.0
        %v7781 = vadd.f32 %v7775, 1.0
        %v7782 = vadd.f32 %v7777, 1.0
        %v7783 = vadd.f32 %v7779, 1.0
        %v7784 = vrcp.pop %v7780
        %v7785 = vmul.f32 1.0, %v7784
        %v7786 = vrcp.pop %v7781
        %v7787 = vmul.f32 1.0, %v7786
        %v7788 = vrcp.pop %v7782
        %v7789 = vmul.f32 1.0, %v7788
        %v7790 = vrcp.pop %v7783
        %v7791 = vmul.f32 1.0, %v7790
        %7793 = vset.pattern.permute.xlu0 0
        %7794 = vperm.xlu0 %7793, %v7785
        %v7795 = vpop.permute.xlu0 %7794
        %7798 = vset.pattern.permute.xlu0 0
        %7799 = vperm.xlu0 %7798, %v7787
        %v7800 = vpop.permute.xlu0 %7799
        %7803 = vset.pattern.permute.xlu0 0
        %7804 = vperm.xlu0 %7803, %v7789
        %v7805 = vpop.permute.xlu0 %7804
        %7808 = vset.pattern.permute.xlu0 0
        %7809 = vperm.xlu0 %7808, %v7791
        %v7810 = vpop.permute.xlu0 %7809
        %v7812 = vmul.f32 %v7514, %v7795
        %v7813 = vmul.f32 %v7515, %v7795
        %v7814 = vmul.f32 %v7516, %v7795
        %v7815 = vmul.f32 %v7517, %v7800
        %v7816 = vmul.f32 %v7518, %v7800
        %v7817 = vmul.f32 %v7519, %v7800
        %v7818 = vmul.f32 %v7520, %v7805
        %v7819 = vmul.f32 %v7521, %v7805
        %v7820 = vmul.f32 %v7522, %v7805
        %v7821 = vmul.f32 %v7523, %v7810
        %v7822 = vmul.f32 %v7524, %v7810
        %v7823 = vmul.f32 %v7525, %v7810
        %v7824 = vadd.f32 %v7812, %v597
        %v7825 = vadd.f32 %v7813, %v598
        %v7826 = vadd.f32 %v7814, %v599
        %v7827 = vadd.f32 %v7815, %v600
        %v7828 = vadd.f32 %v7816, %v601
        %v7829 = vadd.f32 %v7817, %v602
        %v7830 = vadd.f32 %v7818, %v603
        %v7831 = vadd.f32 %v7819, %v604
        %v7832 = vadd.f32 %v7820, %v605
        %v7833 = vadd.f32 %v7821, %v606
        %v7834 = vadd.f32 %v7822, %v607
        %v7835 = vadd.f32 %v7823, %v608
        %7836 = vst [vmem:[%s406] sm:$0xff] %v7824
        %7837 = vst [vmem:[%s406 + $0x8] sm:$0xff] %v7825
        %7838 = vst [vmem:[%s406 + $0x10] sm:$0xff] %v7826
        %7839 = vst [vmem:[%s406 + $0x18] sm:$0xff] %v7827
        %7840 = vst [vmem:[%s406 + $0x20] sm:$0xff] %v7828
        %7841 = vst [vmem:[%s406 + $0x28] sm:$0xff] %v7829
        %7842 = vst [vmem:[%s406 + $0x30] sm:$0xff] %v7830
        %7843 = vst [vmem:[%s406 + $0x38] sm:$0xff] %v7831
        %7844 = vst [vmem:[%s406 + $0x40] sm:$0xff] %v7832
        %7845 = vst [vmem:[%s406 + $0x48] sm:$0xff] %v7833
        %7846 = vst [vmem:[%s406 + $0x50] sm:$0xff] %v7834
        %7847 = vst [vmem:[%s406 + $0x58] sm:$0xff] %v7835
        %s7848 = sand.u32 %s291, 1
        %s7849 = scalar_lea.sflag [#allocation3], %s7848
        %s7850 = sand.u32 %s291, 1
        %s7851 = smul.addr %s7850, 96
        %s7852 = scalar_lea.vmem [#allocation2], %s7851
        // Predicated region
        $region69: #{tpu_custom_call.1} parent=67 // pred_check
          %p7853 = pneg %p301
        $region70: #{tpu_custom_call.1} parent=67 // pred_check_branch
          %7855 = sbr.rel (%p7853) target = $region72
        $region71: #{tpu_custom_call.1} parent=67 // pred_region
          %s7857 = ssub.s32 1536, 1536
          %7858 = vsyncadd %s7849, %s7857
          %s7859 = smul.addr %s26, 12
          %s7860 = smul.addr %s7859, 128
          %s7861 = scalar_lea.hbm %s12, %s7860
          %s7862 = sshll.u32 %s7852, 4
          %s7863 = int_to_ptr.vmem [resolvable:$true] %s7862
          %7868 = dma.vmem_to_hbm [thread:$0]  %s7863, 1536, %s7861, %s7849, 384, 384, 24
        $region72: #{tpu_custom_call.1} parent=67 // pred_fallthru
          _
      $region68: #{tpu_custom_call.1} parent=5 // pred_fallthru
        _
      %p7869 = scmp.le.s32.totalorder 2, %s21
      // Predicated region
      $region73: #{tpu_custom_call.1} parent=5 // pred_check
        %p7870 = pneg %p7869
      $region74: #{tpu_custom_call.1} parent=5 // pred_check_branch
        %7872 = sbr.rel (%p7870) target = $region76
      $region75: #{tpu_custom_call.1} parent=5 // pred_region
        %s7873 = ssub.s32 %s21, 2
        // Predicated region
        $region77: #{tpu_custom_call.1} parent=75 // pred_check
          %p7874 = pneg %p307
        $region78: #{tpu_custom_call.1} parent=75 // pred_check_branch
          %7876 = sbr.rel (%p7874) target = $region80
        $region79: #{tpu_custom_call.1} parent=75 // pred_region
          %s7877 = sand.u32 %s292, 1
          %s7878 = scalar_lea.sflag [#allocation3], %s7877
          %s7879 = sand.u32 %s292, 1
          %s7880 = smul.addr %s7879, 96
          %s7881 = scalar_lea.vmem [#allocation2], %s7880
          %7882 = dma.done %s7878, 1536
        $region80: #{tpu_custom_call.1} parent=75 // pred_fallthru
          _
      $region76: #{tpu_custom_call.1} parent=5 // pred_fallthru
        _
    $region6: #{tpu_custom_call.1} parent=1 // loop_footer
      %s25 = sadd.s32 1, %s21
    $region7: #{tpu_custom_call.1} parent=1 // loop_footer_branch
      %20 = sbr.rel target = $region3
    $region8: #{tpu_custom_call.1} parent=1 // loop_exit
      _
    %7883 = vsyncpa [#allocation3], 1
    %s7884 = scalar_lea.sflag [#allocation3], 1
    %7885 = vsyncpa %s7884, 1

</llo_original>
